<compile_context>
chip_gen: v7x
topology: tpu7x:2x2x1
jax: 0.10.0
libtpu: 0.0.40
codegen_flags: <defaults>
</compile_context>

<pallas_src>
import functools

import jax
import jax.numpy as jnp
import numpy as np
from jax.experimental import pallas as pl
from jax.experimental.pallas import tpu as pltpu


def _cn_kernel(x_ref, w1_ref, b1_ref, w2_ref, b2_ref, wf_ref, bf_ref,
               out_ref, s2_ref, *, Bb, H, W, C_in, out_pad):
    """One batch-block (Bb images) per grid step.

    x_ref : (H, W, Bb, 25*C_in)   im2col'ed input (pad=2), batch on sublanes
    w1_ref: (25*C_in, 16)         conv1 weights packed to match im2col order
    b1_ref: (1, 16)
    w2_ref: (5, 80, 16)           conv2 weights, kw-packed per kh, N padded 6->16
    b2_ref: (1, 16)               conv2 bias, padded 6->16 with zeros
    wf_ref: (H4*W4*16, out_pad)   fc weights, (h, w, c) row order, zero-padded
    bf_ref: (1, out_pad)
    out_ref: (Bb, out_pad)
    s2_ref: VMEM scratch (H2+4, W2, Bb, 80)  kw-packed, zero-padded conv2 input
    """
    H2, W2 = H // 2, W // 2
    H4, W4 = H // 4, W // 4
    K1 = 25 * C_in

    # ---------------- conv1: a single lane-dense MXU dot ---------------------
    lhs1 = x_ref[...].reshape(H * W * Bb, K1)            # free reshape (Bb % 8 == 0)
    a1 = jnp.dot(lhs1, w1_ref[...], preferred_element_type=jnp.float32)
    act1 = jnp.maximum(a1 + b1_ref[...], 0.0).reshape(H, W, Bb, 16)

    # ---------------- maxpool 2x2 (both spatial dims are leading dims) -------
    v = act1.reshape(H2, 2, W, Bb, 16)
    rowp = jnp.maximum(v[:, 0], v[:, 1])                 # (H2, W, Bb, 16)
    u = rowp.reshape(H2, W2, 2, Bb, 16)
    pooled1 = jnp.maximum(u[:, :, 0], u[:, :, 1])        # (H2, W2, Bb, 16)

    # ---------------- stage kw-packed, zero-padded conv2 input ---------------
    # s2[h, j, b, kw*16 + c] = padded_pooled1[h, j + kw, b, c]
    # (pad built with leading-dim concats; the 5 stores cover the whole scratch)
    zc = jnp.zeros((H2, 2, Bb, 16), jnp.float32)
    zr = jnp.zeros((2, W2 + 4, Bb, 16), jnp.float32)
    pp = jnp.concatenate(
        [zr, jnp.concatenate([zc, pooled1, zc], axis=1), zr], axis=0)
    for kw in range(5):
        s2_ref[:, :, :, pl.ds(kw * 16, 16)] = pp[:, kw:kw + W2, :, :]

    # ---------------- conv2: 5 accumulating MXU dots with K = 80 -------------
    acc2 = None
    for kh in range(5):
        lhs2 = s2_ref[pl.ds(kh, H2), :, :, :].reshape(H2 * W2 * Bb, 80)
        d = jnp.dot(lhs2, w2_ref[kh], preferred_element_type=jnp.float32)
        acc2 = d if acc2 is None else acc2 + d
    act2 = jnp.maximum(acc2 + b2_ref[...], 0.0).reshape(H2, W2, Bb, 16)

    # ---------------- maxpool 2x2 again ---------------------------------------
    v2 = act2.reshape(H4, 2, W2, Bb, 16)
    rowp2 = jnp.maximum(v2[:, 0], v2[:, 1])              # (H4, W2, Bb, 16)
    u2 = rowp2.reshape(H4, W4, 2, Bb, 16)
    pooled2 = jnp.maximum(u2[:, :, 0], u2[:, :, 1])      # (H4, W4, Bb, 16)

    # ---------------- fc: one lane-dense dot ----------------------------------
    # Lane-concatenate pooled2 into (Bb, H4*W4*16); slots are 16-lane aligned.
    flat = jnp.concatenate(
        [pooled2[h, w] for h in range(H4) for w in range(W4)], axis=-1)
    out_ref[...] = jnp.dot(flat, wf_ref[...],
                           preferred_element_type=jnp.float32) + bf_ref[...]


def cn_forward(x_nchw, params, block_b=8):
    """Pallas implementation of CN.forward. x_nchw: (B, C_in, H, W) float32."""
    B, C_in, H, W = x_nchw.shape
    assert H % 4 == 0 and W % 4 == 0
    H4, W4 = H // 4, W // 4
    out_dim = params["fc_w"].shape[0]

    # Batch block: multiple of 8 (sublane-dense, free in-kernel reshapes).
    # Keep >= 2 grid steps when the batch allows it (uses both v7x TCs).
    Bb = block_b
    while Bb > 8 and (B + Bb - 1) // Bb < 2:
        Bb //= 2
    assert Bb % 8 == 0
    Bpad = ((B + Bb - 1) // Bb) * Bb

    # Pad out_dim to a lane-dense multiple of 128 (unmasked output stores).
    Npad = ((out_dim + 127) // 128) * 128

    # ---- glue (plain JAX, once per call): im2col + weight repacking ----------
    x_f32 = x_nchw.astype(jnp.float32)
    xp = jnp.pad(x_f32, ((0, Bpad - B), (0, 0), (2, 2), (2, 2)))   # (Bpad,C,H+4,W+4)
    patches = jnp.stack([xp[:, :, kh:kh + H, kw:kw + W]
                         for kh in range(5) for kw in range(5)], axis=1)
    # (Bpad, 25, C, H, W) -> (H, W, Bpad, 25*C): batch on sublanes, K on lanes
    x_cols = jnp.transpose(patches, (3, 4, 0, 1, 2)).reshape(H, W, Bpad, 25 * C_in)

    # conv1 weights packed as rows (kh*5 + kw)*C + c  (matches im2col order)
    w1 = jnp.transpose(params["conv1_w"], (2, 3, 1, 0)).reshape(25 * C_in, 16)
    b1 = params["conv1_b"].reshape(1, 16)

    # conv2 weights kw-packed per kh: (kh, kw*16 + c, o), N padded 6 -> 16
    w2 = jnp.transpose(params["conv2_w"], (2, 3, 1, 0)).reshape(5, 5 * 16, 6)
    w2 = jnp.pad(w2, ((0, 0), (0, 0), (0, 10)))                    # (5, 80, 16)
    b2 = jnp.pad(params["conv2_b"], ((0, 10),)).reshape(1, 16)

    # fc weights: PyTorch flattens NCHW as (c, h, w); rearrange to (h, w, c)
    # row order, pad c 6 -> 16 and out_dim -> Npad with zeros.
    wf = jnp.transpose(params["fc_w"].reshape(out_dim, 6, H4, W4), (2, 3, 1, 0))
    wf = jnp.pad(wf, ((0, 0), (0, 0), (0, 10), (0, Npad - out_dim)))
    wf = wf.reshape(H4 * W4 * 16, Npad)
    bf = jnp.pad(params["fc_b"], ((0, Npad - out_dim),)).reshape(1, Npad)

    kernel = functools.partial(_cn_kernel, Bb=Bb, H=H, W=W, C_in=C_in,
                               out_pad=Npad)

    out = pl.pallas_call(
        kernel,
        out_shape=jax.ShapeDtypeStruct((Bpad, Npad), jnp.float32),
        grid=(Bpad // Bb,),
        in_specs=[
            pl.BlockSpec((H, W, Bb, 25 * C_in), lambda b: (0, 0, b, 0)),
            pl.BlockSpec((25 * C_in, 16), lambda b: (0, 0)),
            pl.BlockSpec((1, 16), lambda b: (0, 0)),
            pl.BlockSpec((5, 5 * 16, 16), lambda b: (0, 0, 0)),
            pl.BlockSpec((1, 16), lambda b: (0, 0)),
            pl.BlockSpec((H4 * W4 * 16, Npad), lambda b: (0, 0)),
            pl.BlockSpec((1, Npad), lambda b: (0, 0)),
        ],
        out_specs=pl.BlockSpec((Bb, Npad), lambda b: (b, 0)),
        scratch_shapes=[
            pltpu.VMEM((H // 2 + 4, W // 2, Bb, 80), jnp.float32),  # conv2 input
        ],
        compiler_params=pltpu.CompilerParams(
            dimension_semantics=("parallel",),          # 2 TCs on v7x
            vmem_limit_bytes=32 * 1024 * 1024),
    )(x_cols, w1, b1, w2, b2, wf, bf)
    return out[:B, :out_dim]


def cn_reference(x_nchw, params):
    """Pure-JAX reference with identical semantics (for validation)."""
    x = jnp.transpose(x_nchw, (0, 2, 3, 1)).astype(jnp.float32)

    def conv_relu(x, w_oihw, b):
        w = jnp.transpose(w_oihw, (2, 3, 1, 0))                    # HWIO
        y = jax.lax.conv_general_dilated(
            x, w, (1, 1), ((2, 2), (2, 2)),
            dimension_numbers=("NHWC", "HWIO", "NHWC"))
        return jnp.maximum(y + b[None, None, None, :], 0.0)

    def pool(x):
        B, H, W, C = x.shape
        return x.reshape(B, H // 2, 2, W // 2, 2, C).max(axis=(2, 4))

    x = pool(conv_relu(x, params["conv1_w"], params["conv1_b"]))
    x = pool(conv_relu(x, params["conv2_w"], params["conv2_b"]))
    B = x.shape[0]
    flat = jnp.transpose(x, (0, 3, 1, 2)).reshape(B, -1)           # (c, h, w) order
    return flat @ params["fc_w"].T + params["fc_b"][None, :]


def init_params(key, input_dims, output_dim):
    """Deterministic PyTorch-shaped parameters (uniform(-1/sqrt(fan_in), ...))."""
    H, W, C_in = input_dims
    h4, w4 = H // 4, W // 4
    ks = jax.random.split(key, 6)

    def u(k, shape, fan_in):
        bound = 1.0 / np.sqrt(fan_in)
        return jax.random.uniform(k, shape, jnp.float32, -bound, bound)

    return {
        "conv1_w": u(ks[0], (16, C_in, 5, 5), C_in * 25),
        "conv1_b": u(ks[1], (16,), C_in * 25),
        "conv2_w": u(ks[2], (6, 16, 5, 5), 16 * 25),
        "conv2_b": u(ks[3], (6,), 16 * 25),
        "fc_w":    u(ks[4], (output_dim, 6 * h4 * w4), 6 * h4 * w4),
        "fc_b":    u(ks[5], (output_dim,), 6 * h4 * w4),
    }


if __name__ == "__main__":
    # B=16 with Bb=8 gives a 2-step grid (both v7x TensorCores) and no
    # zero-padded batch rows; shapes otherwise match input_dims=(16, 16, 4).
    B, H, W, C_in, out_dim = 16, 16, 16, 4, 10
    key = jax.random.PRNGKey(0)
    pkey, xkey = jax.random.split(key)

    params = init_params(pkey, (H, W, C_in), out_dim)
    x = jax.random.normal(xkey, (B, C_in, H, W), jnp.float32)      # NCHW like PyTorch

    out = jax.block_until_ready(cn_forward(x, params))
    assert out.shape == (B, out_dim)

    ref = cn_reference(x, params)
    np.testing.assert_allclose(np.asarray(out), np.asarray(ref),
                               rtol=1e-2, atol=1e-2)
    print("KERNEL_OK")
</pallas_src>

<mosaic_0001>
module attributes {stable_mosaic.version = 11 : i64} {
  func.func @_cn_kernel(%arg0: i32, %arg1: memref<16x16x8x100xf32, #tpu.memory_space<vmem>>, %arg2: memref<100x16xf32, #tpu.memory_space<vmem>>, %arg3: memref<1x16xf32, #tpu.memory_space<vmem>>, %arg4: memref<5x80x16xf32, #tpu.memory_space<vmem>>, %arg5: memref<1x16xf32, #tpu.memory_space<vmem>>, %arg6: memref<256x128xf32, #tpu.memory_space<vmem>>, %arg7: memref<1x128xf32, #tpu.memory_space<vmem>>, %arg8: memref<8x128xf32, #tpu.memory_space<vmem>>, %arg9: memref<12x8x8x80xf32, #tpu.memory_space<vmem>>) attributes {dimension_semantics = [#tpu.dimension_semantics<parallel>], iteration_bounds = array<i64: 2>, scalar_prefetch = 0 : i64, scratch_operands = 1 : i64, tpu.core_type = #tpu.core_type<tc>, window_params = [{transform_indices = @transform_0, window_bounds = array<i64: 16, 16, 8, 100>}, {pipeline_mode = #tpu.pipeline_mode<synchronous>, transform_indices = @transform_1, window_bounds = array<i64: 100, 16>}, {pipeline_mode = #tpu.pipeline_mode<synchronous>, transform_indices = @transform_2, window_bounds = array<i64: 1, 16>}, {pipeline_mode = #tpu.pipeline_mode<synchronous>, transform_indices = @transform_3, window_bounds = array<i64: 5, 80, 16>}, {pipeline_mode = #tpu.pipeline_mode<synchronous>, transform_indices = @transform_4, window_bounds = array<i64: 1, 16>}, {pipeline_mode = #tpu.pipeline_mode<synchronous>, transform_indices = @transform_5, window_bounds = array<i64: 256, 128>}, {pipeline_mode = #tpu.pipeline_mode<synchronous>, transform_indices = @transform_6, window_bounds = array<i64: 1, 128>}, {transform_indices = @transform_7, window_bounds = array<i64: 8, 128>}]} {
    %c0 = arith.constant 0 : index
    %c0_0 = arith.constant 0 : index
    %c0_1 = arith.constant 0 : index
    %c0_2 = arith.constant 0 : index
    %0 = vector.load %arg1[%c0, %c0_0, %c0_1, %c0_2] : memref<16x16x8x100xf32, #tpu.memory_space<vmem>>, vector<16x16x8x100xf32>
    %1 = vector.shape_cast %0 : vector<16x16x8x100xf32> to vector<2048x100xf32>
    %c0_3 = arith.constant 0 : index
    %c0_4 = arith.constant 0 : index
    %2 = vector.load %arg2[%c0_3, %c0_4] : memref<100x16xf32, #tpu.memory_space<vmem>>, vector<100x16xf32>
    %cst = arith.constant dense<0.000000e+00> : vector<2048x16xf32>
    %3 = tpu.matmul %1, %2, %cst {dimension_numbers = #tpu.dot_dimension_numbers<[1], [0], [0], [1], [0, 0, 1, 1], [], []>} : vector<2048x100xf32>, vector<100x16xf32>, vector<2048x16xf32> -> vector<2048x16xf32>
    %c0_5 = arith.constant 0 : index
    %c0_6 = arith.constant 0 : index
    %4 = vector.load %arg3[%c0_5, %c0_6] : memref<1x16xf32, #tpu.memory_space<vmem>>, vector<1x16xf32>
    %5 = vector.broadcast %4 : vector<1x16xf32> to vector<2048x16xf32>
    %6 = arith.addf %3, %5 : vector<2048x16xf32>
    %cst_7 = arith.constant 0.000000e+00 : f32
    %7 = vector.broadcast %cst_7 : f32 to vector<2048x16xf32>
    %8 = arith.maximumf %6, %7 : vector<2048x16xf32>
    %9 = vector.shape_cast %8 : vector<2048x16xf32> to vector<16x16x8x16xf32>
    %10 = vector.shape_cast %9 : vector<16x16x8x16xf32> to vector<8x2x16x8x16xf32>
    %11 = vector.extract_strided_slice %10 {offsets = [0, 0, 0, 0, 0], sizes = [8, 1, 16, 8, 16], strides = [1, 1, 1, 1, 1]} : vector<8x2x16x8x16xf32> to vector<8x1x16x8x16xf32>
    %12 = vector.shape_cast %11 : vector<8x1x16x8x16xf32> to vector<8x16x8x16xf32>
    %13 = vector.extract_strided_slice %10 {offsets = [0, 1, 0, 0, 0], sizes = [8, 1, 16, 8, 16], strides = [1, 1, 1, 1, 1]} : vector<8x2x16x8x16xf32> to vector<8x1x16x8x16xf32>
    %14 = vector.shape_cast %13 : vector<8x1x16x8x16xf32> to vector<8x16x8x16xf32>
    %15 = arith.maximumf %12, %14 : vector<8x16x8x16xf32>
    %16 = vector.shape_cast %15 : vector<8x16x8x16xf32> to vector<8x8x2x8x16xf32>
    %17 = vector.extract_strided_slice %16 {offsets = [0, 0, 0, 0, 0], sizes = [8, 8, 1, 8, 16], strides = [1, 1, 1, 1, 1]} : vector<8x8x2x8x16xf32> to vector<8x8x1x8x16xf32>
    %18 = vector.shape_cast %17 : vector<8x8x1x8x16xf32> to vector<8x8x8x16xf32>
    %19 = vector.extract_strided_slice %16 {offsets = [0, 0, 1, 0, 0], sizes = [8, 8, 1, 8, 16], strides = [1, 1, 1, 1, 1]} : vector<8x8x2x8x16xf32> to vector<8x8x1x8x16xf32>
    %20 = vector.shape_cast %19 : vector<8x8x1x8x16xf32> to vector<8x8x8x16xf32>
    %21 = arith.maximumf %18, %20 : vector<8x8x8x16xf32>
    %cst_8 = arith.constant 0.000000e+00 : f32
    %22 = vector.broadcast %cst_8 : f32 to vector<8x2x8x16xf32>
    %cst_9 = arith.constant 0.000000e+00 : f32
    %23 = vector.broadcast %cst_9 : f32 to vector<2x12x8x16xf32>
    %24 = tpu.concatenate %22, %21, %22 in 1 : vector<8x2x8x16xf32>, vector<8x8x8x16xf32>, vector<8x2x8x16xf32> -> vector<8x12x8x16xf32>
    %25 = tpu.concatenate %23, %24, %23 in 0 : vector<2x12x8x16xf32>, vector<8x12x8x16xf32>, vector<2x12x8x16xf32> -> vector<12x12x8x16xf32>
    %26 = vector.extract_strided_slice %25 {offsets = [0, 0, 0, 0], sizes = [12, 8, 8, 16], strides = [1, 1, 1, 1]} : vector<12x12x8x16xf32> to vector<12x8x8x16xf32>
    %c0_10 = arith.constant 0 : index
    %c0_11 = arith.constant 0 : index
    %c0_12 = arith.constant 0 : index
    %c0_13 = arith.constant 0 : index
    %27 = vector.load %arg9[%c0_10, %c0_11, %c0_12, %c0_13] : memref<12x8x8x80xf32, #tpu.memory_space<vmem>>, vector<12x8x8x16xf32>
    tpu.vector_store %arg9[%c0_10, %c0_11, %c0_12, %c0_13], %26 {strides = array<i32>} : memref<12x8x8x80xf32, #tpu.memory_space<vmem>>, vector<12x8x8x16xf32>,
    %28 = vector.extract_strided_slice %25 {offsets = [0, 1, 0, 0], sizes = [12, 8, 8, 16], strides = [1, 1, 1, 1]} : vector<12x12x8x16xf32> to vector<12x8x8x16xf32>
    %c0_14 = arith.constant 0 : index
    %c0_15 = arith.constant 0 : index
    %c0_16 = arith.constant 0 : index
    %c16 = arith.constant 16 : index
    %29 = vector.load %arg9[%c0_14, %c0_15, %c0_16, %c16] : memref<12x8x8x80xf32, #tpu.memory_space<vmem>>, vector<12x8x8x16xf32>
    tpu.vector_store %arg9[%c0_14, %c0_15, %c0_16, %c16], %28 {strides = array<i32>} : memref<12x8x8x80xf32, #tpu.memory_space<vmem>>, vector<12x8x8x16xf32>,
    %30 = vector.extract_strided_slice %25 {offsets = [0, 2, 0, 0], sizes = [12, 8, 8, 16], strides = [1, 1, 1, 1]} : vector<12x12x8x16xf32> to vector<12x8x8x16xf32>
    %c0_17 = arith.constant 0 : index
    %c0_18 = arith.constant 0 : index
    %c0_19 = arith.constant 0 : index
    %c32 = arith.constant 32 : index
    %31 = vector.load %arg9[%c0_17, %c0_18, %c0_19, %c32] : memref<12x8x8x80xf32, #tpu.memory_space<vmem>>, vector<12x8x8x16xf32>
    tpu.vector_store %arg9[%c0_17, %c0_18, %c0_19, %c32], %30 {strides = array<i32>} : memref<12x8x8x80xf32, #tpu.memory_space<vmem>>, vector<12x8x8x16xf32>,
    %32 = vector.extract_strided_slice %25 {offsets = [0, 3, 0, 0], sizes = [12, 8, 8, 16], strides = [1, 1, 1, 1]} : vector<12x12x8x16xf32> to vector<12x8x8x16xf32>
    %c0_20 = arith.constant 0 : index
    %c0_21 = arith.constant 0 : index
    %c0_22 = arith.constant 0 : index
    %c48 = arith.constant 48 : index
    %33 = vector.load %arg9[%c0_20, %c0_21, %c0_22, %c48] : memref<12x8x8x80xf32, #tpu.memory_space<vmem>>, vector<12x8x8x16xf32>
    tpu.vector_store %arg9[%c0_20, %c0_21, %c0_22, %c48], %32 {strides = array<i32>} : memref<12x8x8x80xf32, #tpu.memory_space<vmem>>, vector<12x8x8x16xf32>,
    %34 = vector.extract_strided_slice %25 {offsets = [0, 4, 0, 0], sizes = [12, 8, 8, 16], strides = [1, 1, 1, 1]} : vector<12x12x8x16xf32> to vector<12x8x8x16xf32>
    %c0_23 = arith.constant 0 : index
    %c0_24 = arith.constant 0 : index
    %c0_25 = arith.constant 0 : index
    %c64 = arith.constant 64 : index
    %35 = vector.load %arg9[%c0_23, %c0_24, %c0_25, %c64] : memref<12x8x8x80xf32, #tpu.memory_space<vmem>>, vector<12x8x8x16xf32>
    tpu.vector_store %arg9[%c0_23, %c0_24, %c0_25, %c64], %34 {strides = array<i32>} : memref<12x8x8x80xf32, #tpu.memory_space<vmem>>, vector<12x8x8x16xf32>,
    %c0_26 = arith.constant 0 : index
    %c0_27 = arith.constant 0 : index
    %c0_28 = arith.constant 0 : index
    %c0_29 = arith.constant 0 : index
    %36 = vector.load %arg9[%c0_26, %c0_27, %c0_28, %c0_29] : memref<12x8x8x80xf32, #tpu.memory_space<vmem>>, vector<8x8x8x80xf32>
    %37 = vector.shape_cast %36 : vector<8x8x8x80xf32> to vector<512x80xf32>
    %c0_30 = arith.constant 0 : index
    %c0_31 = arith.constant 0 : index
    %c0_32 = arith.constant 0 : index
    %38 = vector.load %arg4[%c0_30, %c0_31, %c0_32] : memref<5x80x16xf32, #tpu.memory_space<vmem>>, vector<1x80x16xf32>
    %39 = vector.shape_cast %38 : vector<1x80x16xf32> to vector<80x16xf32>
    %cst_33 = arith.constant dense<0.000000e+00> : vector<512x16xf32>
    %40 = tpu.matmul %37, %39, %cst_33 {dimension_numbers = #tpu.dot_dimension_numbers<[1], [0], [0], [1], [0, 0, 1, 1], [], []>} : vector<512x80xf32>, vector<80x16xf32>, vector<512x16xf32> -> vector<512x16xf32>
    %c1 = arith.constant 1 : index
    %c0_34 = arith.constant 0 : index
    %c0_35 = arith.constant 0 : index
    %c0_36 = arith.constant 0 : index
    %41 = vector.load %arg9[%c1, %c0_34, %c0_35, %c0_36] : memref<12x8x8x80xf32, #tpu.memory_space<vmem>>, vector<8x8x8x80xf32>
    %42 = vector.shape_cast %41 : vector<8x8x8x80xf32> to vector<512x80xf32>
    %c1_37 = arith.constant 1 : index
    %c0_38 = arith.constant 0 : index
    %c0_39 = arith.constant 0 : index
    %43 = vector.load %arg4[%c1_37, %c0_38, %c0_39] : memref<5x80x16xf32, #tpu.memory_space<vmem>>, vector<1x80x16xf32>
    %44 = vector.shape_cast %43 : vector<1x80x16xf32> to vector<80x16xf32>
    %cst_40 = arith.constant dense<0.000000e+00> : vector<512x16xf32>
    %45 = tpu.matmul %42, %44, %cst_40 {dimension_numbers = #tpu.dot_dimension_numbers<[1], [0], [0], [1], [0, 0, 1, 1], [], []>} : vector<512x80xf32>, vector<80x16xf32>, vector<512x16xf32> -> vector<512x16xf32>
    %46 = arith.addf %40, %45 : vector<512x16xf32>
    %c2 = arith.constant 2 : index
    %c0_41 = arith.constant 0 : index
    %c0_42 = arith.constant 0 : index
    %c0_43 = arith.constant 0 : index
    %47 = vector.load %arg9[%c2, %c0_41, %c0_42, %c0_43] : memref<12x8x8x80xf32, #tpu.memory_space<vmem>>, vector<8x8x8x80xf32>
    %48 = vector.shape_cast %47 : vector<8x8x8x80xf32> to vector<512x80xf32>
    %c2_44 = arith.constant 2 : index
    %c0_45 = arith.constant 0 : index
    %c0_46 = arith.constant 0 : index
    %49 = vector.load %arg4[%c2_44, %c0_45, %c0_46] : memref<5x80x16xf32, #tpu.memory_space<vmem>>, vector<1x80x16xf32>
    %50 = vector.shape_cast %49 : vector<1x80x16xf32> to vector<80x16xf32>
    %cst_47 = arith.constant dense<0.000000e+00> : vector<512x16xf32>
    %51 = tpu.matmul %48, %50, %cst_47 {dimension_numbers = #tpu.dot_dimension_numbers<[1], [0], [0], [1], [0, 0, 1, 1], [], []>} : vector<512x80xf32>, vector<80x16xf32>, vector<512x16xf32> -> vector<512x16xf32>
    %52 = arith.addf %46, %51 : vector<512x16xf32>
    %c3 = arith.constant 3 : index
    %c0_48 = arith.constant 0 : index
    %c0_49 = arith.constant 0 : index
    %c0_50 = arith.constant 0 : index
    %53 = vector.load %arg9[%c3, %c0_48, %c0_49, %c0_50] : memref<12x8x8x80xf32, #tpu.memory_space<vmem>>, vector<8x8x8x80xf32>
    %54 = vector.shape_cast %53 : vector<8x8x8x80xf32> to vector<512x80xf32>
    %c3_51 = arith.constant 3 : index
    %c0_52 = arith.constant 0 : index
    %c0_53 = arith.constant 0 : index
    %55 = vector.load %arg4[%c3_51, %c0_52, %c0_53] : memref<5x80x16xf32, #tpu.memory_space<vmem>>, vector<1x80x16xf32>
    %56 = vector.shape_cast %55 : vector<1x80x16xf32> to vector<80x16xf32>
    %cst_54 = arith.constant dense<0.000000e+00> : vector<512x16xf32>
    %57 = tpu.matmul %54, %56, %cst_54 {dimension_numbers = #tpu.dot_dimension_numbers<[1], [0], [0], [1], [0, 0, 1, 1], [], []>} : vector<512x80xf32>, vector<80x16xf32>, vector<512x16xf32> -> vector<512x16xf32>
    %58 = arith.addf %52, %57 : vector<512x16xf32>
    %c4 = arith.constant 4 : index
    %c0_55 = arith.constant 0 : index
    %c0_56 = arith.constant 0 : index
    %c0_57 = arith.constant 0 : index
    %59 = vector.load %arg9[%c4, %c0_55, %c0_56, %c0_57] : memref<12x8x8x80xf32, #tpu.memory_space<vmem>>, vector<8x8x8x80xf32>
    %60 = vector.shape_cast %59 : vector<8x8x8x80xf32> to vector<512x80xf32>
    %c4_58 = arith.constant 4 : index
    %c0_59 = arith.constant 0 : index
    %c0_60 = arith.constant 0 : index
    %61 = vector.load %arg4[%c4_58, %c0_59, %c0_60] : memref<5x80x16xf32, #tpu.memory_space<vmem>>, vector<1x80x16xf32>
    %62 = vector.shape_cast %61 : vector<1x80x16xf32> to vector<80x16xf32>
    %cst_61 = arith.constant dense<0.000000e+00> : vector<512x16xf32>
    %63 = tpu.matmul %60, %62, %cst_61 {dimension_numbers = #tpu.dot_dimension_numbers<[1], [0], [0], [1], [0, 0, 1, 1], [], []>} : vector<512x80xf32>, vector<80x16xf32>, vector<512x16xf32> -> vector<512x16xf32>
    %64 = arith.addf %58, %63 : vector<512x16xf32>
    %c0_62 = arith.constant 0 : index
    %c0_63 = arith.constant 0 : index
    %65 = vector.load %arg5[%c0_62, %c0_63] : memref<1x16xf32, #tpu.memory_space<vmem>>, vector<1x16xf32>
    %66 = vector.broadcast %65 : vector<1x16xf32> to vector<512x16xf32>
    %67 = arith.addf %64, %66 : vector<512x16xf32>
    %cst_64 = arith.constant 0.000000e+00 : f32
    %68 = vector.broadcast %cst_64 : f32 to vector<512x16xf32>
    %69 = arith.maximumf %67, %68 : vector<512x16xf32>
    %70 = vector.shape_cast %69 : vector<512x16xf32> to vector<8x8x8x16xf32>
    %71 = vector.shape_cast %70 : vector<8x8x8x16xf32> to vector<4x2x8x8x16xf32>
    %72 = vector.extract_strided_slice %71 {offsets = [0, 0, 0, 0, 0], sizes = [4, 1, 8, 8, 16], strides = [1, 1, 1, 1, 1]} : vector<4x2x8x8x16xf32> to vector<4x1x8x8x16xf32>
    %73 = vector.shape_cast %72 : vector<4x1x8x8x16xf32> to vector<4x8x8x16xf32>
    %74 = vector.extract_strided_slice %71 {offsets = [0, 1, 0, 0, 0], sizes = [4, 1, 8, 8, 16], strides = [1, 1, 1, 1, 1]} : vector<4x2x8x8x16xf32> to vector<4x1x8x8x16xf32>
    %75 = vector.shape_cast %74 : vector<4x1x8x8x16xf32> to vector<4x8x8x16xf32>
    %76 = arith.maximumf %73, %75 : vector<4x8x8x16xf32>
    %77 = vector.shape_cast %76 : vector<4x8x8x16xf32> to vector<4x4x2x8x16xf32>
    %78 = vector.extract_strided_slice %77 {offsets = [0, 0, 0, 0, 0], sizes = [4, 4, 1, 8, 16], strides = [1, 1, 1, 1, 1]} : vector<4x4x2x8x16xf32> to vector<4x4x1x8x16xf32>
    %79 = vector.shape_cast %78 : vector<4x4x1x8x16xf32> to vector<4x4x8x16xf32>
    %80 = vector.extract_strided_slice %77 {offsets = [0, 0, 1, 0, 0], sizes = [4, 4, 1, 8, 16], strides = [1, 1, 1, 1, 1]} : vector<4x4x2x8x16xf32> to vector<4x4x1x8x16xf32>
    %81 = vector.shape_cast %80 : vector<4x4x1x8x16xf32> to vector<4x4x8x16xf32>
    %82 = arith.maximumf %79, %81 : vector<4x4x8x16xf32>
    %83 = vector.extract_strided_slice %82 {offsets = [0, 0, 0, 0], sizes = [1, 1, 8, 16], strides = [1, 1, 1, 1]} : vector<4x4x8x16xf32> to vector<1x1x8x16xf32>
    %84 = vector.shape_cast %83 : vector<1x1x8x16xf32> to vector<8x16xf32>
    %85 = vector.extract_strided_slice %82 {offsets = [0, 1, 0, 0], sizes = [1, 1, 8, 16], strides = [1, 1, 1, 1]} : vector<4x4x8x16xf32> to vector<1x1x8x16xf32>
    %86 = vector.shape_cast %85 : vector<1x1x8x16xf32> to vector<8x16xf32>
    %87 = vector.extract_strided_slice %82 {offsets = [0, 2, 0, 0], sizes = [1, 1, 8, 16], strides = [1, 1, 1, 1]} : vector<4x4x8x16xf32> to vector<1x1x8x16xf32>
    %88 = vector.shape_cast %87 : vector<1x1x8x16xf32> to vector<8x16xf32>
    %89 = vector.extract_strided_slice %82 {offsets = [0, 3, 0, 0], sizes = [1, 1, 8, 16], strides = [1, 1, 1, 1]} : vector<4x4x8x16xf32> to vector<1x1x8x16xf32>
    %90 = vector.shape_cast %89 : vector<1x1x8x16xf32> to vector<8x16xf32>
    %91 = vector.extract_strided_slice %82 {offsets = [1, 0, 0, 0], sizes = [1, 1, 8, 16], strides = [1, 1, 1, 1]} : vector<4x4x8x16xf32> to vector<1x1x8x16xf32>
    %92 = vector.shape_cast %91 : vector<1x1x8x16xf32> to vector<8x16xf32>
    %93 = vector.extract_strided_slice %82 {offsets = [1, 1, 0, 0], sizes = [1, 1, 8, 16], strides = [1, 1, 1, 1]} : vector<4x4x8x16xf32> to vector<1x1x8x16xf32>
    %94 = vector.shape_cast %93 : vector<1x1x8x16xf32> to vector<8x16xf32>
    %95 = vector.extract_strided_slice %82 {offsets = [1, 2, 0, 0], sizes = [1, 1, 8, 16], strides = [1, 1, 1, 1]} : vector<4x4x8x16xf32> to vector<1x1x8x16xf32>
    %96 = vector.shape_cast %95 : vector<1x1x8x16xf32> to vector<8x16xf32>
    %97 = vector.extract_strided_slice %82 {offsets = [1, 3, 0, 0], sizes = [1, 1, 8, 16], strides = [1, 1, 1, 1]} : vector<4x4x8x16xf32> to vector<1x1x8x16xf32>
    %98 = vector.shape_cast %97 : vector<1x1x8x16xf32> to vector<8x16xf32>
    %99 = vector.extract_strided_slice %82 {offsets = [2, 0, 0, 0], sizes = [1, 1, 8, 16], strides = [1, 1, 1, 1]} : vector<4x4x8x16xf32> to vector<1x1x8x16xf32>
    %100 = vector.shape_cast %99 : vector<1x1x8x16xf32> to vector<8x16xf32>
    %101 = vector.extract_strided_slice %82 {offsets = [2, 1, 0, 0], sizes = [1, 1, 8, 16], strides = [1, 1, 1, 1]} : vector<4x4x8x16xf32> to vector<1x1x8x16xf32>
    %102 = vector.shape_cast %101 : vector<1x1x8x16xf32> to vector<8x16xf32>
    %103 = vector.extract_strided_slice %82 {offsets = [2, 2, 0, 0], sizes = [1, 1, 8, 16], strides = [1, 1, 1, 1]} : vector<4x4x8x16xf32> to vector<1x1x8x16xf32>
    %104 = vector.shape_cast %103 : vector<1x1x8x16xf32> to vector<8x16xf32>
    %105 = vector.extract_strided_slice %82 {offsets = [2, 3, 0, 0], sizes = [1, 1, 8, 16], strides = [1, 1, 1, 1]} : vector<4x4x8x16xf32> to vector<1x1x8x16xf32>
    %106 = vector.shape_cast %105 : vector<1x1x8x16xf32> to vector<8x16xf32>
    %107 = vector.extract_strided_slice %82 {offsets = [3, 0, 0, 0], sizes = [1, 1, 8, 16], strides = [1, 1, 1, 1]} : vector<4x4x8x16xf32> to vector<1x1x8x16xf32>
    %108 = vector.shape_cast %107 : vector<1x1x8x16xf32> to vector<8x16xf32>
    %109 = vector.extract_strided_slice %82 {offsets = [3, 1, 0, 0], sizes = [1, 1, 8, 16], strides = [1, 1, 1, 1]} : vector<4x4x8x16xf32> to vector<1x1x8x16xf32>
    %110 = vector.shape_cast %109 : vector<1x1x8x16xf32> to vector<8x16xf32>
    %111 = vector.extract_strided_slice %82 {offsets = [3, 2, 0, 0], sizes = [1, 1, 8, 16], strides = [1, 1, 1, 1]} : vector<4x4x8x16xf32> to vector<1x1x8x16xf32>
    %112 = vector.shape_cast %111 : vector<1x1x8x16xf32> to vector<8x16xf32>
    %113 = vector.extract_strided_slice %82 {offsets = [3, 3, 0, 0], sizes = [1, 1, 8, 16], strides = [1, 1, 1, 1]} : vector<4x4x8x16xf32> to vector<1x1x8x16xf32>
    %114 = vector.shape_cast %113 : vector<1x1x8x16xf32> to vector<8x16xf32>
    %115 = tpu.concatenate %84, %86, %88, %90, %92, %94, %96, %98, %100, %102, %104, %106, %108, %110, %112, %114 in 1 : vector<8x16xf32>, vector<8x16xf32>, vector<8x16xf32>, vector<8x16xf32>, vector<8x16xf32>, vector<8x16xf32>, vector<8x16xf32>, vector<8x16xf32>, vector<8x16xf32>, vector<8x16xf32>, vector<8x16xf32>, vector<8x16xf32>, vector<8x16xf32>, vector<8x16xf32>, vector<8x16xf32>, vector<8x16xf32> -> vector<8x256xf32>
    %c0_65 = arith.constant 0 : index
    %c0_66 = arith.constant 0 : index
    %116 = vector.load %arg6[%c0_65, %c0_66] : memref<256x128xf32, #tpu.memory_space<vmem>>, vector<256x128xf32>
    %cst_67 = arith.constant dense<0.000000e+00> : vector<8x128xf32>
    %117 = tpu.matmul %115, %116, %cst_67 {dimension_numbers = #tpu.dot_dimension_numbers<[1], [0], [0], [1], [0, 0, 1, 1], [], []>} : vector<8x256xf32>, vector<256x128xf32>, vector<8x128xf32> -> vector<8x128xf32>
    %c0_68 = arith.constant 0 : index
    %c0_69 = arith.constant 0 : index
    %118 = vector.load %arg7[%c0_68, %c0_69] : memref<1x128xf32, #tpu.memory_space<vmem>>, vector<1x128xf32>
    %119 = vector.broadcast %118 : vector<1x128xf32> to vector<8x128xf32>
    %120 = arith.addf %117, %119 : vector<8x128xf32>
    %c0_70 = arith.constant 0 : index
    %c0_71 = arith.constant 0 : index
    %121 = vector.load %arg8[%c0_70, %c0_71] : memref<8x128xf32, #tpu.memory_space<vmem>>, vector<8x128xf32>
    tpu.vector_store %arg8[%c0_70, %c0_71], %120 {strides = array<i32>} : memref<8x128xf32, #tpu.memory_space<vmem>>, vector<8x128xf32>,
    return
  }
  func.func @transform_0(%arg0: i32) -> (i32, i32, i32, i32) {
    %c0_i32 = arith.constant 0 : i32
    %c0_i32_0 = arith.constant 0 : i32
    %c0_i32_1 = arith.constant 0 : i32
    %c0_i32_2 = arith.constant 0 : i32
    return %c0_i32, %c0_i32_0, %arg0, %c0_i32_1 : i32, i32, i32, i32
  }
  func.func @transform_1(%arg0: i32) -> (i32, i32) {
    %c0_i32 = arith.constant 0 : i32
    %c0_i32_0 = arith.constant 0 : i32
    %c0_i32_1 = arith.constant 0 : i32
    return %c0_i32, %c0_i32_0 : i32, i32
  }
  func.func @transform_2(%arg0: i32) -> (i32, i32) {
    %c0_i32 = arith.constant 0 : i32
    %c0_i32_0 = arith.constant 0 : i32
    %c0_i32_1 = arith.constant 0 : i32
    return %c0_i32, %c0_i32_0 : i32, i32
  }
  func.func @transform_3(%arg0: i32) -> (i32, i32, i32) {
    %c0_i32 = arith.constant 0 : i32
    %c0_i32_0 = arith.constant 0 : i32
    %c0_i32_1 = arith.constant 0 : i32
    %c0_i32_2 = arith.constant 0 : i32
    return %c0_i32, %c0_i32_0, %c0_i32_1 : i32, i32, i32
  }
  func.func @transform_4(%arg0: i32) -> (i32, i32) {
    %c0_i32 = arith.constant 0 : i32
    %c0_i32_0 = arith.constant 0 : i32
    %c0_i32_1 = arith.constant 0 : i32
    return %c0_i32, %c0_i32_0 : i32, i32
  }
  func.func @transform_5(%arg0: i32) -> (i32, i32) {
    %c0_i32 = arith.constant 0 : i32
    %c0_i32_0 = arith.constant 0 : i32
    %c0_i32_1 = arith.constant 0 : i32
    return %c0_i32, %c0_i32_0 : i32, i32
  }
  func.func @transform_6(%arg0: i32) -> (i32, i32) {
    %c0_i32 = arith.constant 0 : i32
    %c0_i32_0 = arith.constant 0 : i32
    %c0_i32_1 = arith.constant 0 : i32
    return %c0_i32, %c0_i32_0 : i32, i32
  }
  func.func @transform_7(%arg0: i32) -> (i32, i32) {
    %c0_i32 = arith.constant 0 : i32
    %c0_i32_0 = arith.constant 0 : i32
    return %arg0, %c0_i32 : i32, i32
  }
}

</mosaic_0001>

<llo_original>
// kernel: tpu_custom_call.1
$region0: #{tpu_custom_call.1}
  #allocation0 [shape = 'u32[]', space=smem, size = 0x4, offset = 0x4, fixed_abs, tag = 'smem constant byte address 0x4 - core index']
  #allocation1 [shape = 'u32[144,128]{1,0:T(1,128)}', space=vmem, size = 0x12000, scoped, tag = 'internal scratch']
  #allocation2 [shape = 'f32[12,8,8,80]{3,2,1,0:T(8,128)}', space=vmem, size = 0x60000, scoped, tag = 'scratch operand']
  %s0 = inlined_call_operand.hbm [shape: f32[16,16,16,100], index: 0, kind: input, shape index: {}]
  %s1 = inlined_call_operand.vmem [shape: f32[100,16], index: 1, kind: input, shape index: {}]
  %s2 = inlined_call_operand.hbm [shape: f32[1,16], index: 2, kind: input, shape index: {}]
  %s3 = inlined_call_operand.vmem [shape: f32[5,80,16], index: 3, kind: input, shape index: {}]
  %s4 = inlined_call_operand.hbm [shape: f32[1,16], index: 4, kind: input, shape index: {}]
  %s5 = inlined_call_operand.hbm [shape: f32[256,128], index: 5, kind: input, shape index: {}]
  %s6 = inlined_call_operand.hbm [shape: f32[1,128], index: 6, kind: input, shape index: {}]
  %s7 = inlined_call_operand.hbm [shape: f32[16,128], index: 7, kind: output, shape index: {}]
  %s8 = sld [smem:[#allocation0]]
  $region81: #{tpu_custom_call.1} parent=0
    _
  %s10 = ssub.s32 1, %s8
  %s11 = scalar_select 0, %s10, %s8
  $region1: #{tpu_custom_call.1} parent=0
    #allocation3 [shape = 'u8[2097152]{0}', space=vmem, size = 0x200000, scoped, tag = 'input window, operand 0']
    #allocation4 [shape = 's32[2]{0}', space=sflag, size = 0x8, scoped, tag = 'scoped memory for tpu_custom_call.1']
    #allocation5 [shape = 's32[2]{0}', space=sflag, size = 0x8, scoped, tag = 'scoped memory for tpu_custom_call.1']
    #allocation6 [shape = 'u8[512]{0}', space=vmem, size = 0x400, scoped, tag = 'input window, operand 2, single buffered']
    #allocation7 [shape = 's32[1]{0}', space=sflag, size = 0x4, scoped, tag = 'scoped memory for tpu_custom_call.1']
    #allocation8 [shape = 'u8[512]{0}', space=vmem, size = 0x400, scoped, tag = 'input window, operand 4, single buffered']
    #allocation9 [shape = 'u8[131072]{0}', space=vmem, size = 0x20000, scoped, tag = 'input window, operand 5, single buffered']
    #allocation10 [shape = 's32[1]{0}', space=sflag, size = 0x4, scoped, tag = 'scoped memory for tpu_custom_call.1']
    #allocation11 [shape = 'u8[512]{0}', space=vmem, size = 0x400, scoped, tag = 'input window, operand 6, single buffered']
    #allocation12 [shape = 'u8[8192]{0}', space=vmem, size = 0x2000, scoped, tag = 'output window, operand 0']
    %12 = vsyncpa [#allocation4], 0
    %s13 = scalar_lea.sflag [#allocation4], 1
    %14 = vsyncpa %s13, 0
    %15 = vsyncpa [#allocation7], 0
    %16 = vsyncpa [#allocation10], 0
    %17 = vsyncpa [#allocation5], 0
    %s18 = scalar_lea.sflag [#allocation5], 1
    %19 = vsyncpa %s18, 0
    loop: start=0, step=1, limit=4
    $region2: #{tpu_custom_call.1} parent=1 // loop_pre_header
      _
    $region3: #{tpu_custom_call.1} parent=1 // loop_header
      %s21 = sphi 0, %s25
      %p22 = scmp.ge.s32.totalorder %s21, 4
      %s31 = sphi 0, %s33
      %s34 = sphi 0, %s31
      %s35 = sphi 0, %s34
      %s51 = sphi 0, %s35
      %s55 = sphi 0, %s55
      %s57 = sphi 0, %s55
      %s58 = sphi 0, %s57
      %s72 = sphi 0, %s58
      %s76 = sphi 0, %s76
      %s78 = sphi 0, %s76
      %s79 = sphi 0, %s78
      %s93 = sphi 0, %s79
      %s97 = sphi 0, %s97
      %s99 = sphi 0, %s97
      %s100 = sphi 0, %s99
      %s114 = sphi 0, %s100
      %s118 = sphi 0, %s118
      %s120 = sphi 0, %s118
      %s121 = sphi 0, %s120
      %s135 = sphi 0, %s121
      %s139 = sphi 0, %s139
      %s141 = sphi 0, %s139
      %s142 = sphi 0, %s141
      %s156 = sphi 0, %s142
      %s160 = sphi 0, %s160
      %s162 = sphi 0, %s160
      %s163 = sphi 0, %s162
      %s177 = sphi 0, %s163
      %s183 = sphi 0, %s185
      %s186 = sphi 0, %s183
      %s187 = sphi 0, %s186
      %s203 = sphi 0, %s187
    $region4: #{tpu_custom_call.1} parent=1 // loop_header_branch
      %24 = sbr.rel (%p22) target = $region8
    $region5: #{tpu_custom_call.1} parent=1 // loop_body
      %s26 = ssub.s32 %s21, 1
      %s27 = ssub.s32 %s21, 2
      %s28 = sadd.s32 %s21, 1
      %s29 = ssub.s32 %s21, %s28
      %p30 = scmp.eq.s32.totalorder %s29, 0
      %s32 = sadd.s32 %s31, 1
      %s33 = scalar_select %p30, %s31, %s32
      %p36 = pneg %p30
      %p37 = scmp.eq.s32.totalorder %s21, 1
      %p38 = por %p36, %p37
      %p39 = scmp.ne.s32.totalorder %s31, %s34
      %p40 = scmp.eq.s32.totalorder %s21, 0
      %p41 = por %p39, %p40
      %p42 = scmp.ne.s32.totalorder %s31, %s34
      %p43 = scmp.eq.s32.totalorder %s26, 1
      %p44 = por %p42, %p43
      %p45 = scmp.ne.s32.totalorder %s34, %s35
      %p46 = scmp.eq.s32.totalorder %s26, 0
      %p47 = por %p45, %p46
      %p48 = scmp.ne.s32.totalorder %s34, %s35
      %p49 = scmp.eq.s32.totalorder %s27, 1
      %p50 = por %p48, %p49
      %p52 = scmp.ne.s32.totalorder %s35, %s51
      %p53 = scmp.eq.s32.totalorder %s27, 0
      %p54 = por %p52, %p53
      %s56 = sadd.s32 %s55, 1
      %p59 = scmp.eq.s32.totalorder %s21, 1
      %p60 = scmp.ne.s32.totalorder %s55, %s57
      %p61 = scmp.eq.s32.totalorder %s21, 0
      %p62 = por %p60, %p61
      %p63 = scmp.ne.s32.totalorder %s55, %s57
      %p64 = scmp.eq.s32.totalorder %s26, 1
      %p65 = por %p63, %p64
      %p66 = scmp.ne.s32.totalorder %s57, %s58
      %p67 = scmp.eq.s32.totalorder %s26, 0
      %p68 = por %p66, %p67
      %p69 = scmp.ne.s32.totalorder %s57, %s58
      %p70 = scmp.eq.s32.totalorder %s27, 1
      %p71 = por %p69, %p70
      %p73 = scmp.ne.s32.totalorder %s58, %s72
      %p74 = scmp.eq.s32.totalorder %s27, 0
      %p75 = por %p73, %p74
      %s77 = sadd.s32 %s76, 1
      %p80 = scmp.eq.s32.totalorder %s21, 1
      %p81 = scmp.ne.s32.totalorder %s76, %s78
      %p82 = scmp.eq.s32.totalorder %s21, 0
      %p83 = por %p81, %p82
      %p84 = scmp.ne.s32.totalorder %s76, %s78
      %p85 = scmp.eq.s32.totalorder %s26, 1
      %p86 = por %p84, %p85
      %p87 = scmp.ne.s32.totalorder %s78, %s79
      %p88 = scmp.eq.s32.totalorder %s26, 0
      %p89 = por %p87, %p88
      %p90 = scmp.ne.s32.totalorder %s78, %s79
      %p91 = scmp.eq.s32.totalorder %s27, 1
      %p92 = por %p90, %p91
      %p94 = scmp.ne.s32.totalorder %s79, %s93
      %p95 = scmp.eq.s32.totalorder %s27, 0
      %p96 = por %p94, %p95
      %s98 = sadd.s32 %s97, 1
      %p101 = scmp.eq.s32.totalorder %s21, 1
      %p102 = scmp.ne.s32.totalorder %s97, %s99
      %p103 = scmp.eq.s32.totalorder %s21, 0
      %p104 = por %p102, %p103
      %p105 = scmp.ne.s32.totalorder %s97, %s99
      %p106 = scmp.eq.s32.totalorder %s26, 1
      %p107 = por %p105, %p106
      %p108 = scmp.ne.s32.totalorder %s99, %s100
      %p109 = scmp.eq.s32.totalorder %s26, 0
      %p110 = por %p108, %p109
      %p111 = scmp.ne.s32.totalorder %s99, %s100
      %p112 = scmp.eq.s32.totalorder %s27, 1
      %p113 = por %p111, %p112
      %p115 = scmp.ne.s32.totalorder %s100, %s114
      %p116 = scmp.eq.s32.totalorder %s27, 0
      %p117 = por %p115, %p116
      %s119 = sadd.s32 %s118, 1
      %p122 = scmp.eq.s32.totalorder %s21, 1
      %p123 = scmp.ne.s32.totalorder %s118, %s120
      %p124 = scmp.eq.s32.totalorder %s21, 0
      %p125 = por %p123, %p124
      %p126 = scmp.ne.s32.totalorder %s118, %s120
      %p127 = scmp.eq.s32.totalorder %s26, 1
      %p128 = por %p126, %p127
      %p129 = scmp.ne.s32.totalorder %s120, %s121
      %p130 = scmp.eq.s32.totalorder %s26, 0
      %p131 = por %p129, %p130
      %p132 = scmp.ne.s32.totalorder %s120, %s121
      %p133 = scmp.eq.s32.totalorder %s27, 1
      %p134 = por %p132, %p133
      %p136 = scmp.ne.s32.totalorder %s121, %s135
      %p137 = scmp.eq.s32.totalorder %s27, 0
      %p138 = por %p136, %p137
      %s140 = sadd.s32 %s139, 1
      %p143 = scmp.eq.s32.totalorder %s21, 1
      %p144 = scmp.ne.s32.totalorder %s139, %s141
      %p145 = scmp.eq.s32.totalorder %s21, 0
      %p146 = por %p144, %p145
      %p147 = scmp.ne.s32.totalorder %s139, %s141
      %p148 = scmp.eq.s32.totalorder %s26, 1
      %p149 = por %p147, %p148
      %p150 = scmp.ne.s32.totalorder %s141, %s142
      %p151 = scmp.eq.s32.totalorder %s26, 0
      %p152 = por %p150, %p151
      %p153 = scmp.ne.s32.totalorder %s141, %s142
      %p154 = scmp.eq.s32.totalorder %s27, 1
      %p155 = por %p153, %p154
      %p157 = scmp.ne.s32.totalorder %s142, %s156
      %p158 = scmp.eq.s32.totalorder %s27, 0
      %p159 = por %p157, %p158
      %s161 = sadd.s32 %s160, 1
      %p164 = scmp.eq.s32.totalorder %s21, 1
      %p165 = scmp.ne.s32.totalorder %s160, %s162
      %p166 = scmp.eq.s32.totalorder %s21, 0
      %p167 = por %p165, %p166
      %p168 = scmp.ne.s32.totalorder %s160, %s162
      %p169 = scmp.eq.s32.totalorder %s26, 1
      %p170 = por %p168, %p169
      %p171 = scmp.ne.s32.totalorder %s162, %s163
      %p172 = scmp.eq.s32.totalorder %s26, 0
      %p173 = por %p171, %p172
      %p174 = scmp.ne.s32.totalorder %s162, %s163
      %p175 = scmp.eq.s32.totalorder %s27, 1
      %p176 = por %p174, %p175
      %p178 = scmp.ne.s32.totalorder %s163, %s177
      %p179 = scmp.eq.s32.totalorder %s27, 0
      %p180 = por %p178, %p179
      %s181 = ssub.s32 %s21, %s28
      %p182 = scmp.eq.s32.totalorder %s181, 0
      %s184 = sadd.s32 %s183, 1
      %s185 = scalar_select %p182, %s183, %s184
      %p188 = pneg %p182
      %p189 = scmp.eq.s32.totalorder %s21, 1
      %p190 = por %p188, %p189
      %p191 = scmp.ne.s32.totalorder %s183, %s186
      %p192 = scmp.eq.s32.totalorder %s21, 0
      %p193 = por %p191, %p192
      %p194 = scmp.ne.s32.totalorder %s183, %s186
      %p195 = scmp.eq.s32.totalorder %s26, 1
      %p196 = por %p194, %p195
      %p197 = scmp.ne.s32.totalorder %s186, %s187
      %p198 = scmp.eq.s32.totalorder %s26, 0
      %p199 = por %p197, %p198
      %p200 = scmp.ne.s32.totalorder %s186, %s187
      %p201 = scmp.eq.s32.totalorder %s27, 1
      %p202 = por %p200, %p201
      %p204 = scmp.ne.s32.totalorder %s187, %s203
      %p205 = scmp.eq.s32.totalorder %s27, 0
      %p206 = por %p204, %p205
      %p207 = scmp.le.s32.totalorder 1, %s21
      %p208 = scmp.lt.s32.totalorder %s21, 3
      %p209 = pnand %p207, %p208
      %p210 = pneg %p209
      // Predicated region
      $region9: #{tpu_custom_call.1} parent=5 // pred_check
        _
      $region10: #{tpu_custom_call.1} parent=5 // pred_check_branch
        %212 = sbr.rel (%p209) target = $region12
      $region11: #{tpu_custom_call.1} parent=5 // pred_region
        %s213 = ssub.s32 %s21, 1
        // Predicated region
        $region13: #{tpu_custom_call.1} parent=11 // pred_check
          %p214 = pneg %p68
        $region14: #{tpu_custom_call.1} parent=11 // pred_check_branch
          %216 = sbr.rel (%p214) target = $region16
        $region15: #{tpu_custom_call.1} parent=11 // pred_region
          _
        $region16: #{tpu_custom_call.1} parent=11 // pred_fallthru
          _
        // Predicated region
        $region17: #{tpu_custom_call.1} parent=11 // pred_check
          %p217 = pneg %p89
        $region18: #{tpu_custom_call.1} parent=11 // pred_check_branch
          %219 = sbr.rel (%p217) target = $region20
        $region19: #{tpu_custom_call.1} parent=11 // pred_region
          %s221 = ssub.s32 16, 16
          %222 = vsyncadd [#allocation7], %s221
          %s224 = sshll.u32 [#allocation6], 4
          %s225 = int_to_ptr.vmem [resolvable:$true] %s224
          %227 = dma.hbm_to_vmem [thread:$0]  %s2, 16, %s225, [#allocation7]
        $region20: #{tpu_custom_call.1} parent=11 // pred_fallthru
          _
        // Predicated region
        $region21: #{tpu_custom_call.1} parent=11 // pred_check
          %p228 = pneg %p110
        $region22: #{tpu_custom_call.1} parent=11 // pred_check_branch
          %230 = sbr.rel (%p228) target = $region24
        $region23: #{tpu_custom_call.1} parent=11 // pred_region
          _
        $region24: #{tpu_custom_call.1} parent=11 // pred_fallthru
          _
        // Predicated region
        $region25: #{tpu_custom_call.1} parent=11 // pred_check
          %p231 = pneg %p131
        $region26: #{tpu_custom_call.1} parent=11 // pred_check_branch
          %233 = sbr.rel (%p231) target = $region28
        $region27: #{tpu_custom_call.1} parent=11 // pred_region
          %s235 = ssub.s32 16, 16
          %236 = vsyncadd [#allocation7], %s235
          %s238 = sshll.u32 [#allocation8], 4
          %s239 = int_to_ptr.vmem [resolvable:$true] %s238
          %241 = dma.hbm_to_vmem [thread:$0]  %s4, 16, %s239, [#allocation7]
        $region28: #{tpu_custom_call.1} parent=11 // pred_fallthru
          _
        // Predicated region
        $region29: #{tpu_custom_call.1} parent=11 // pred_check
          %p242 = pneg %p152
        $region30: #{tpu_custom_call.1} parent=11 // pred_check_branch
          %244 = sbr.rel (%p242) target = $region32
        $region31: #{tpu_custom_call.1} parent=11 // pred_region
          %s246 = ssub.s32 4096, 4096
          %247 = vsyncadd [#allocation10], %s246
          %s248 = sshll.u32 [#allocation9], 4
          %s249 = int_to_ptr.vmem [resolvable:$true] %s248
          %254 = dma.hbm_to_vmem [thread:$0]  %s5, 4096, %s249, [#allocation10], 128, 128, 8
        $region32: #{tpu_custom_call.1} parent=11 // pred_fallthru
          _
        // Predicated region
        $region33: #{tpu_custom_call.1} parent=11 // pred_check
          %p255 = pneg %p173
        $region34: #{tpu_custom_call.1} parent=11 // pred_check_branch
          %257 = sbr.rel (%p255) target = $region36
        $region35: #{tpu_custom_call.1} parent=11 // pred_region
          %s259 = ssub.s32 16, 16
          %260 = vsyncadd [#allocation10], %s259
          %s262 = sshll.u32 [#allocation11], 4
          %s263 = int_to_ptr.vmem [resolvable:$true] %s262
          %265 = dma.hbm_to_vmem [thread:$0]  %s6, 16, %s263, [#allocation10]
        $region36: #{tpu_custom_call.1} parent=11 // pred_fallthru
          _
      $region12: #{tpu_custom_call.1} parent=5 // pred_fallthru
        _
      %p266 = scmp.lt.s32.totalorder %s21, 2
      // Predicated region
      $region37: #{tpu_custom_call.1} parent=5 // pred_check
        %p267 = pneg %p266
      $region38: #{tpu_custom_call.1} parent=5 // pred_check_branch
        %269 = sbr.rel (%p267) target = $region40
      $region39: #{tpu_custom_call.1} parent=5 // pred_region
        // Predicated region
        $region41: #{tpu_custom_call.1} parent=39 // pred_check
          %p270 = pneg %p41
        $region42: #{tpu_custom_call.1} parent=39 // pred_check_branch
          %272 = sbr.rel (%p270) target = $region44
        $region43: #{tpu_custom_call.1} parent=39 // pred_region
          %s273 = sand.u32 %s31, 1
          %s274 = scalar_lea.sflag [#allocation4], %s273
          %s275 = sand.u32 %s31, 1
          %s276 = smul.addr %s275, 2048
          %s277 = scalar_lea.vmem [#allocation3], %s276
          %s279 = ssub.s32 32768, 32768
          %280 = vsyncadd %s274, %s279
          %s281 = smul.addr %s21, 128
          %s282 = scalar_lea.hbm %s0, %s281
          %s283 = sshll.u32 %s277, 4
          %s284 = int_to_ptr.vmem [resolvable:$true] %s283
          %289 = dma.hbm_to_vmem [thread:$0]  %s282, 32768, %s284, %s274, 256, 128, 8
        $region44: #{tpu_custom_call.1} parent=39 // pred_fallthru
          _
      $region40: #{tpu_custom_call.1} parent=5 // pred_fallthru
        _
      %p290 = scmp.le.s32.totalorder 1, %s21
      %p291 = scmp.lt.s32.totalorder %s21, 3
      %p292 = pnand %p290, %p291
      %p293 = pneg %p292
      // Predicated region
      $region45: #{tpu_custom_call.1} parent=5 // pred_check
        _
      $region46: #{tpu_custom_call.1} parent=5 // pred_check_branch
        %295 = sbr.rel (%p292) target = $region48
      $region47: #{tpu_custom_call.1} parent=5 // pred_region
        %s296 = ssub.s32 %s21, 1
        %s297 = sand.u32 %s34, 1
        %s298 = scalar_lea.sflag [#allocation4], %s297
        %s299 = sand.u32 %s34, 1
        %s300 = smul.addr %s299, 2048
        %s301 = scalar_lea.vmem [#allocation3], %s300
        // Predicated region
        $region49: #{tpu_custom_call.1} parent=47 // pred_check
          %p302 = pneg %p47
        $region50: #{tpu_custom_call.1} parent=47 // pred_check_branch
          %304 = sbr.rel (%p302) target = $region52
        $region51: #{tpu_custom_call.1} parent=47 // pred_region
          %305 = dma.done %s298, 32768
        $region52: #{tpu_custom_call.1} parent=47 // pred_fallthru
          _
        // Predicated region
        $region53: #{tpu_custom_call.1} parent=47 // pred_check
          %p306 = pneg %p89
        $region54: #{tpu_custom_call.1} parent=47 // pred_check_branch
          %308 = sbr.rel (%p306) target = $region56
        $region55: #{tpu_custom_call.1} parent=47 // pred_region
          %309 = dma.done [#allocation7], 16
        $region56: #{tpu_custom_call.1} parent=47 // pred_fallthru
          _
        // Predicated region
        $region57: #{tpu_custom_call.1} parent=47 // pred_check
          %p310 = pneg %p131
        $region58: #{tpu_custom_call.1} parent=47 // pred_check_branch
          %312 = sbr.rel (%p310) target = $region60
        $region59: #{tpu_custom_call.1} parent=47 // pred_region
          %313 = dma.done [#allocation7], 16
        $region60: #{tpu_custom_call.1} parent=47 // pred_fallthru
          _
        // Predicated region
        $region61: #{tpu_custom_call.1} parent=47 // pred_check
          %p314 = pneg %p152
        $region62: #{tpu_custom_call.1} parent=47 // pred_check_branch
          %316 = sbr.rel (%p314) target = $region64
        $region63: #{tpu_custom_call.1} parent=47 // pred_region
          %317 = dma.done [#allocation10], 4096
        $region64: #{tpu_custom_call.1} parent=47 // pred_fallthru
          _
        // Predicated region
        $region65: #{tpu_custom_call.1} parent=47 // pred_check
          %p318 = pneg %p173
        $region66: #{tpu_custom_call.1} parent=47 // pred_check_branch
          %320 = sbr.rel (%p318) target = $region68
        $region67: #{tpu_custom_call.1} parent=47 // pred_region
          %321 = dma.done [#allocation10], 16
        $region68: #{tpu_custom_call.1} parent=47 // pred_fallthru
          _
        %s322 = sand.u32 %s34, 1
        %s323 = scalar_lea.sflag [#allocation4], %s322
        %s324 = sand.u32 %s34, 1
        %s325 = smul.addr %s324, 2048
        %s326 = scalar_lea.vmem [#allocation3], %s325
        %p327 = pneg %p47
        %p328 = pneg %p44
        %p329 = pneg %p68
        %p330 = pneg %p65
        %p331 = pneg %p89
        %p332 = pneg %p86
        %p333 = pneg %p110
        %p334 = pneg %p107
        %p335 = pneg %p131
        %p336 = pneg %p128
        %p337 = pneg %p152
        %p338 = pneg %p149
        %p339 = pneg %p173
        %p340 = pneg %p170
        %p341 = pneg %p199
        %p342 = pneg %p196
        %s343 = sand.u32 %s186, 1
        %s344 = scalar_lea.sflag [#allocation5], %s343
        %s345 = sand.u32 %s186, 1
        %s346 = smul.addr %s345, 8
        %s347 = scalar_lea.vmem [#allocation12], %s346
        %v348 = vld [vmem:[%s301] sm:$0xff]
        %v349 = vld [vmem:[%s301 + $0x8] sm:$0xff]
        %v350 = vld [vmem:[%s301 + $0x10] sm:$0xff]
        %v351 = vld [vmem:[%s301 + $0x18] sm:$0xff]
        %v352 = vld [vmem:[%s301 + $0x20] sm:$0xff]
        %v353 = vld [vmem:[%s301 + $0x28] sm:$0xff]
        %v354 = vld [vmem:[%s301 + $0x30] sm:$0xff]
        %v355 = vld [vmem:[%s301 + $0x38] sm:$0xff]
        %v356 = vld [vmem:[%s301 + $0x40] sm:$0xff]
        %v357 = vld [vmem:[%s301 + $0x48] sm:$0xff]
        %v358 = vld [vmem:[%s301 + $0x50] sm:$0xff]
        %v359 = vld [vmem:[%s301 + $0x58] sm:$0xff]
        %v360 = vld [vmem:[%s301 + $0x60] sm:$0xff]
        %v361 = vld [vmem:[%s301 + $0x68] sm:$0xff]
        %v362 = vld [vmem:[%s301 + $0x70] sm:$0xff]
        %v363 = vld [vmem:[%s301 + $0x78] sm:$0xff]
        %v364 = vld [vmem:[%s301 + $0x80] sm:$0xff]
        %v365 = vld [vmem:[%s301 + $0x88] sm:$0xff]
        %v366 = vld [vmem:[%s301 + $0x90] sm:$0xff]
        %v367 = vld [vmem:[%s301 + $0x98] sm:$0xff]
        %v368 = vld [vmem:[%s301 + $0xa0] sm:$0xff]
        %v369 = vld [vmem:[%s301 + $0xa8] sm:$0xff]
        %v370 = vld [vmem:[%s301 + $0xb0] sm:$0xff]
        %v371 = vld [vmem:[%s301 + $0xb8] sm:$0xff]
        %v372 = vld [vmem:[%s301 + $0xc0] sm:$0xff]
        %v373 = vld [vmem:[%s301 + $0xc8] sm:$0xff]
        %v374 = vld [vmem:[%s301 + $0xd0] sm:$0xff]
        %v375 = vld [vmem:[%s301 + $0xd8] sm:$0xff]
        %v376 = vld [vmem:[%s301 + $0xe0] sm:$0xff]
        %v377 = vld [vmem:[%s301 + $0xe8] sm:$0xff]
        %v378 = vld [vmem:[%s301 + $0xf0] sm:$0xff]
        %v379 = vld [vmem:[%s301 + $0xf8] sm:$0xff]
        %v380 = vld [vmem:[%s301 + $0x100] sm:$0xff]
        %v381 = vld [vmem:[%s301 + $0x108] sm:$0xff]
        %v382 = vld [vmem:[%s301 + $0x110] sm:$0xff]
        %v383 = vld [vmem:[%s301 + $0x118] sm:$0xff]
        %v384 = vld [vmem:[%s301 + $0x120] sm:$0xff]
        %v385 = vld [vmem:[%s301 + $0x128] sm:$0xff]
        %v386 = vld [vmem:[%s301 + $0x130] sm:$0xff]
        %v387 = vld [vmem:[%s301 + $0x138] sm:$0xff]
        %v388 = vld [vmem:[%s301 + $0x140] sm:$0xff]
        %v389 = vld [vmem:[%s301 + $0x148] sm:$0xff]
        %v390 = vld [vmem:[%s301 + $0x150] sm:$0xff]
        %v391 = vld [vmem:[%s301 + $0x158] sm:$0xff]
        %v392 = vld [vmem:[%s301 + $0x160] sm:$0xff]
        %v393 = vld [vmem:[%s301 + $0x168] sm:$0xff]
        %v394 = vld [vmem:[%s301 + $0x170] sm:$0xff]
        %v395 = vld [vmem:[%s301 + $0x178] sm:$0xff]
        %v396 = vld [vmem:[%s301 + $0x180] sm:$0xff]
        %v397 = vld [vmem:[%s301 + $0x188] sm:$0xff]
        %v398 = vld [vmem:[%s301 + $0x190] sm:$0xff]
        %v399 = vld [vmem:[%s301 + $0x198] sm:$0xff]
        %v400 = vld [vmem:[%s301 + $0x1a0] sm:$0xff]
        %v401 = vld [vmem:[%s301 + $0x1a8] sm:$0xff]
        %v402 = vld [vmem:[%s301 + $0x1b0] sm:$0xff]
        %v403 = vld [vmem:[%s301 + $0x1b8] sm:$0xff]
        %v404 = vld [vmem:[%s301 + $0x1c0] sm:$0xff]
        %v405 = vld [vmem:[%s301 + $0x1c8] sm:$0xff]
        %v406 = vld [vmem:[%s301 + $0x1d0] sm:$0xff]
        %v407 = vld [vmem:[%s301 + $0x1d8] sm:$0xff]
        %v408 = vld [vmem:[%s301 + $0x1e0] sm:$0xff]
        %v409 = vld [vmem:[%s301 + $0x1e8] sm:$0xff]
        %v410 = vld [vmem:[%s301 + $0x1f0] sm:$0xff]
        %v411 = vld [vmem:[%s301 + $0x1f8] sm:$0xff]
        %v412 = vld [vmem:[%s301 + $0x200] sm:$0xff]
        %v413 = vld [vmem:[%s301 + $0x208] sm:$0xff]
        %v414 = vld [vmem:[%s301 + $0x210] sm:$0xff]
        %v415 = vld [vmem:[%s301 + $0x218] sm:$0xff]
        %v416 = vld [vmem:[%s301 + $0x220] sm:$0xff]
        %v417 = vld [vmem:[%s301 + $0x228] sm:$0xff]
        %v418 = vld [vmem:[%s301 + $0x230] sm:$0xff]
        %v419 = vld [vmem:[%s301 + $0x238] sm:$0xff]
        %v420 = vld [vmem:[%s301 + $0x240] sm:$0xff]
        %v421 = vld [vmem:[%s301 + $0x248] sm:$0xff]
        %v422 = vld [vmem:[%s301 + $0x250] sm:$0xff]
        %v423 = vld [vmem:[%s301 + $0x258] sm:$0xff]
        %v424 = vld [vmem:[%s301 + $0x260] sm:$0xff]
        %v425 = vld [vmem:[%s301 + $0x268] sm:$0xff]
        %v426 = vld [vmem:[%s301 + $0x270] sm:$0xff]
        %v427 = vld [vmem:[%s301 + $0x278] sm:$0xff]
        %v428 = vld [vmem:[%s301 + $0x280] sm:$0xff]
        %v429 = vld [vmem:[%s301 + $0x288] sm:$0xff]
        %v430 = vld [vmem:[%s301 + $0x290] sm:$0xff]
        %v431 = vld [vmem:[%s301 + $0x298] sm:$0xff]
        %v432 = vld [vmem:[%s301 + $0x2a0] sm:$0xff]
        %v433 = vld [vmem:[%s301 + $0x2a8] sm:$0xff]
        %v434 = vld [vmem:[%s301 + $0x2b0] sm:$0xff]
        %v435 = vld [vmem:[%s301 + $0x2b8] sm:$0xff]
        %v436 = vld [vmem:[%s301 + $0x2c0] sm:$0xff]
        %v437 = vld [vmem:[%s301 + $0x2c8] sm:$0xff]
        %v438 = vld [vmem:[%s301 + $0x2d0] sm:$0xff]
        %v439 = vld [vmem:[%s301 + $0x2d8] sm:$0xff]
        %v440 = vld [vmem:[%s301 + $0x2e0] sm:$0xff]
        %v441 = vld [vmem:[%s301 + $0x2e8] sm:$0xff]
        %v442 = vld [vmem:[%s301 + $0x2f0] sm:$0xff]
        %v443 = vld [vmem:[%s301 + $0x2f8] sm:$0xff]
        %v444 = vld [vmem:[%s301 + $0x300] sm:$0xff]
        %v445 = vld [vmem:[%s301 + $0x308] sm:$0xff]
        %v446 = vld [vmem:[%s301 + $0x310] sm:$0xff]
        %v447 = vld [vmem:[%s301 + $0x318] sm:$0xff]
        %v448 = vld [vmem:[%s301 + $0x320] sm:$0xff]
        %v449 = vld [vmem:[%s301 + $0x328] sm:$0xff]
        %v450 = vld [vmem:[%s301 + $0x330] sm:$0xff]
        %v451 = vld [vmem:[%s301 + $0x338] sm:$0xff]
        %v452 = vld [vmem:[%s301 + $0x340] sm:$0xff]
        %v453 = vld [vmem:[%s301 + $0x348] sm:$0xff]
        %v454 = vld [vmem:[%s301 + $0x350] sm:$0xff]
        %v455 = vld [vmem:[%s301 + $0x358] sm:$0xff]
        %v456 = vld [vmem:[%s301 + $0x360] sm:$0xff]
        %v457 = vld [vmem:[%s301 + $0x368] sm:$0xff]
        %v458 = vld [vmem:[%s301 + $0x370] sm:$0xff]
        %v459 = vld [vmem:[%s301 + $0x378] sm:$0xff]
        %v460 = vld [vmem:[%s301 + $0x380] sm:$0xff]
        %v461 = vld [vmem:[%s301 + $0x388] sm:$0xff]
        %v462 = vld [vmem:[%s301 + $0x390] sm:$0xff]
        %v463 = vld [vmem:[%s301 + $0x398] sm:$0xff]
        %v464 = vld [vmem:[%s301 + $0x3a0] sm:$0xff]
        %v465 = vld [vmem:[%s301 + $0x3a8] sm:$0xff]
        %v466 = vld [vmem:[%s301 + $0x3b0] sm:$0xff]
        %v467 = vld [vmem:[%s301 + $0x3b8] sm:$0xff]
        %v468 = vld [vmem:[%s301 + $0x3c0] sm:$0xff]
        %v469 = vld [vmem:[%s301 + $0x3c8] sm:$0xff]
        %v470 = vld [vmem:[%s301 + $0x3d0] sm:$0xff]
        %v471 = vld [vmem:[%s301 + $0x3d8] sm:$0xff]
        %v472 = vld [vmem:[%s301 + $0x3e0] sm:$0xff]
        %v473 = vld [vmem:[%s301 + $0x3e8] sm:$0xff]
        %v474 = vld [vmem:[%s301 + $0x3f0] sm:$0xff]
        %v475 = vld [vmem:[%s301 + $0x3f8] sm:$0xff]
        %v476 = vld [vmem:[%s301 + $0x400] sm:$0xff]
        %v477 = vld [vmem:[%s301 + $0x408] sm:$0xff]
        %v478 = vld [vmem:[%s301 + $0x410] sm:$0xff]
        %v479 = vld [vmem:[%s301 + $0x418] sm:$0xff]
        %v480 = vld [vmem:[%s301 + $0x420] sm:$0xff]
        %v481 = vld [vmem:[%s301 + $0x428] sm:$0xff]
        %v482 = vld [vmem:[%s301 + $0x430] sm:$0xff]
        %v483 = vld [vmem:[%s301 + $0x438] sm:$0xff]
        %v484 = vld [vmem:[%s301 + $0x440] sm:$0xff]
        %v485 = vld [vmem:[%s301 + $0x448] sm:$0xff]
        %v486 = vld [vmem:[%s301 + $0x450] sm:$0xff]
        %v487 = vld [vmem:[%s301 + $0x458] sm:$0xff]
        %v488 = vld [vmem:[%s301 + $0x460] sm:$0xff]
        %v489 = vld [vmem:[%s301 + $0x468] sm:$0xff]
        %v490 = vld [vmem:[%s301 + $0x470] sm:$0xff]
        %v491 = vld [vmem:[%s301 + $0x478] sm:$0xff]
        %v492 = vld [vmem:[%s301 + $0x480] sm:$0xff]
        %v493 = vld [vmem:[%s301 + $0x488] sm:$0xff]
        %v494 = vld [vmem:[%s301 + $0x490] sm:$0xff]
        %v495 = vld [vmem:[%s301 + $0x498] sm:$0xff]
        %v496 = vld [vmem:[%s301 + $0x4a0] sm:$0xff]
        %v497 = vld [vmem:[%s301 + $0x4a8] sm:$0xff]
        %v498 = vld [vmem:[%s301 + $0x4b0] sm:$0xff]
        %v499 = vld [vmem:[%s301 + $0x4b8] sm:$0xff]
        %v500 = vld [vmem:[%s301 + $0x4c0] sm:$0xff]
        %v501 = vld [vmem:[%s301 + $0x4c8] sm:$0xff]
        %v502 = vld [vmem:[%s301 + $0x4d0] sm:$0xff]
        %v503 = vld [vmem:[%s301 + $0x4d8] sm:$0xff]
        %v504 = vld [vmem:[%s301 + $0x4e0] sm:$0xff]
        %v505 = vld [vmem:[%s301 + $0x4e8] sm:$0xff]
        %v506 = vld [vmem:[%s301 + $0x4f0] sm:$0xff]
        %v507 = vld [vmem:[%s301 + $0x4f8] sm:$0xff]
        %v508 = vld [vmem:[%s301 + $0x500] sm:$0xff]
        %v509 = vld [vmem:[%s301 + $0x508] sm:$0xff]
        %v510 = vld [vmem:[%s301 + $0x510] sm:$0xff]
        %v511 = vld [vmem:[%s301 + $0x518] sm:$0xff]
        %v512 = vld [vmem:[%s301 + $0x520] sm:$0xff]
        %v513 = vld [vmem:[%s301 + $0x528] sm:$0xff]
        %v514 = vld [vmem:[%s301 + $0x530] sm:$0xff]
        %v515 = vld [vmem:[%s301 + $0x538] sm:$0xff]
        %v516 = vld [vmem:[%s301 + $0x540] sm:$0xff]
        %v517 = vld [vmem:[%s301 + $0x548] sm:$0xff]
        %v518 = vld [vmem:[%s301 + $0x550] sm:$0xff]
        %v519 = vld [vmem:[%s301 + $0x558] sm:$0xff]
        %v520 = vld [vmem:[%s301 + $0x560] sm:$0xff]
        %v521 = vld [vmem:[%s301 + $0x568] sm:$0xff]
        %v522 = vld [vmem:[%s301 + $0x570] sm:$0xff]
        %v523 = vld [vmem:[%s301 + $0x578] sm:$0xff]
        %v524 = vld [vmem:[%s301 + $0x580] sm:$0xff]
        %v525 = vld [vmem:[%s301 + $0x588] sm:$0xff]
        %v526 = vld [vmem:[%s301 + $0x590] sm:$0xff]
        %v527 = vld [vmem:[%s301 + $0x598] sm:$0xff]
        %v528 = vld [vmem:[%s301 + $0x5a0] sm:$0xff]
        %v529 = vld [vmem:[%s301 + $0x5a8] sm:$0xff]
        %v530 = vld [vmem:[%s301 + $0x5b0] sm:$0xff]
        %v531 = vld [vmem:[%s301 + $0x5b8] sm:$0xff]
        %v532 = vld [vmem:[%s301 + $0x5c0] sm:$0xff]
        %v533 = vld [vmem:[%s301 + $0x5c8] sm:$0xff]
        %v534 = vld [vmem:[%s301 + $0x5d0] sm:$0xff]
        %v535 = vld [vmem:[%s301 + $0x5d8] sm:$0xff]
        %v536 = vld [vmem:[%s301 + $0x5e0] sm:$0xff]
        %v537 = vld [vmem:[%s301 + $0x5e8] sm:$0xff]
        %v538 = vld [vmem:[%s301 + $0x5f0] sm:$0xff]
        %v539 = vld [vmem:[%s301 + $0x5f8] sm:$0xff]
        %v540 = vld [vmem:[%s301 + $0x600] sm:$0xff]
        %v541 = vld [vmem:[%s301 + $0x608] sm:$0xff]
        %v542 = vld [vmem:[%s301 + $0x610] sm:$0xff]
        %v543 = vld [vmem:[%s301 + $0x618] sm:$0xff]
        %v544 = vld [vmem:[%s301 + $0x620] sm:$0xff]
        %v545 = vld [vmem:[%s301 + $0x628] sm:$0xff]
        %v546 = vld [vmem:[%s301 + $0x630] sm:$0xff]
        %v547 = vld [vmem:[%s301 + $0x638] sm:$0xff]
        %v548 = vld [vmem:[%s301 + $0x640] sm:$0xff]
        %v549 = vld [vmem:[%s301 + $0x648] sm:$0xff]
        %v550 = vld [vmem:[%s301 + $0x650] sm:$0xff]
        %v551 = vld [vmem:[%s301 + $0x658] sm:$0xff]
        %v552 = vld [vmem:[%s301 + $0x660] sm:$0xff]
        %v553 = vld [vmem:[%s301 + $0x668] sm:$0xff]
        %v554 = vld [vmem:[%s301 + $0x670] sm:$0xff]
        %v555 = vld [vmem:[%s301 + $0x678] sm:$0xff]
        %v556 = vld [vmem:[%s301 + $0x680] sm:$0xff]
        %v557 = vld [vmem:[%s301 + $0x688] sm:$0xff]
        %v558 = vld [vmem:[%s301 + $0x690] sm:$0xff]
        %v559 = vld [vmem:[%s301 + $0x698] sm:$0xff]
        %v560 = vld [vmem:[%s301 + $0x6a0] sm:$0xff]
        %v561 = vld [vmem:[%s301 + $0x6a8] sm:$0xff]
        %v562 = vld [vmem:[%s301 + $0x6b0] sm:$0xff]
        %v563 = vld [vmem:[%s301 + $0x6b8] sm:$0xff]
        %v564 = vld [vmem:[%s301 + $0x6c0] sm:$0xff]
        %v565 = vld [vmem:[%s301 + $0x6c8] sm:$0xff]
        %v566 = vld [vmem:[%s301 + $0x6d0] sm:$0xff]
        %v567 = vld [vmem:[%s301 + $0x6d8] sm:$0xff]
        %v568 = vld [vmem:[%s301 + $0x6e0] sm:$0xff]
        %v569 = vld [vmem:[%s301 + $0x6e8] sm:$0xff]
        %v570 = vld [vmem:[%s301 + $0x6f0] sm:$0xff]
        %v571 = vld [vmem:[%s301 + $0x6f8] sm:$0xff]
        %v572 = vld [vmem:[%s301 + $0x700] sm:$0xff]
        %v573 = vld [vmem:[%s301 + $0x708] sm:$0xff]
        %v574 = vld [vmem:[%s301 + $0x710] sm:$0xff]
        %v575 = vld [vmem:[%s301 + $0x718] sm:$0xff]
        %v576 = vld [vmem:[%s301 + $0x720] sm:$0xff]
        %v577 = vld [vmem:[%s301 + $0x728] sm:$0xff]
        %v578 = vld [vmem:[%s301 + $0x730] sm:$0xff]
        %v579 = vld [vmem:[%s301 + $0x738] sm:$0xff]
        %v580 = vld [vmem:[%s301 + $0x740] sm:$0xff]
        %v581 = vld [vmem:[%s301 + $0x748] sm:$0xff]
        %v582 = vld [vmem:[%s301 + $0x750] sm:$0xff]
        %v583 = vld [vmem:[%s301 + $0x758] sm:$0xff]
        %v584 = vld [vmem:[%s301 + $0x760] sm:$0xff]
        %v585 = vld [vmem:[%s301 + $0x768] sm:$0xff]
        %v586 = vld [vmem:[%s301 + $0x770] sm:$0xff]
        %v587 = vld [vmem:[%s301 + $0x778] sm:$0xff]
        %v588 = vld [vmem:[%s301 + $0x780] sm:$0xff]
        %v589 = vld [vmem:[%s301 + $0x788] sm:$0xff]
        %v590 = vld [vmem:[%s301 + $0x790] sm:$0xff]
        %v591 = vld [vmem:[%s301 + $0x798] sm:$0xff]
        %v592 = vld [vmem:[%s301 + $0x7a0] sm:$0xff]
        %v593 = vld [vmem:[%s301 + $0x7a8] sm:$0xff]
        %v594 = vld [vmem:[%s301 + $0x7b0] sm:$0xff]
        %v595 = vld [vmem:[%s301 + $0x7b8] sm:$0xff]
        %v596 = vld [vmem:[%s301 + $0x7c0] sm:$0xff]
        %v597 = vld [vmem:[%s301 + $0x7c8] sm:$0xff]
        %v598 = vld [vmem:[%s301 + $0x7d0] sm:$0xff]
        %v599 = vld [vmem:[%s301 + $0x7d8] sm:$0xff]
        %v600 = vld [vmem:[%s301 + $0x7e0] sm:$0xff]
        %v601 = vld [vmem:[%s301 + $0x7e8] sm:$0xff]
        %v602 = vld [vmem:[%s301 + $0x7f0] sm:$0xff]
        %v603 = vld [vmem:[%s301 + $0x7f8] sm:$0xff]
        %v604 = vld [vmem:[%s1] sm:$0xff]
        %v605 = vld [vmem:[%s1 + $0x8] sm:$0xff]
        %v606 = vld [vmem:[%s1 + $0x10] sm:$0xff]
        %v607 = vld [vmem:[%s1 + $0x18] sm:$0xff]
        %v608 = vld [vmem:[%s1 + $0x20] sm:$0xff]
        %v609 = vld [vmem:[%s1 + $0x28] sm:$0xff]
        %v610 = vld [vmem:[%s1 + $0x30] sm:$0xff]
        %v611 = vld [vmem:[%s1 + $0x38] sm:$0xff]
        %v612 = vld [vmem:[%s1 + $0x40] sm:$0xff]
        %v613 = vld [vmem:[%s1 + $0x48] sm:$0xff]
        %v614 = vld [vmem:[%s1 + $0x50] sm:$0xff]
        %v615 = vld [vmem:[%s1 + $0x58] sm:$0xff]
        %v616 = vld [vmem:[%s1 + $0x60] sm:$0xf]
        %v617 = vld [vmem:[#allocation6] sm:$0x1]
        %v619 = vlaneseq
        %v620 = vshrl.u32 %v619, 7
        %v621 = vsub.s32 0, %v620
        %v622 = vrot.slane %v617, %v621
        %vm624 = vcmask 818176
        %v626 = vsel %vm624, %v348, 0
        %v629 = vsel %vm624, %v349, 0
        %v632 = vsel %vm624, %v350, 0
        %v635 = vsel %vm624, %v351, 0
        %v638 = vsel %vm624, %v352, 0
        %v641 = vsel %vm624, %v353, 0
        %v644 = vsel %vm624, %v354, 0
        %v647 = vsel %vm624, %v355, 0
        %v650 = vsel %vm624, %v356, 0
        %v653 = vsel %vm624, %v357, 0
        %v656 = vsel %vm624, %v358, 0
        %v659 = vsel %vm624, %v359, 0
        %v662 = vsel %vm624, %v360, 0
        %v665 = vsel %vm624, %v361, 0
        %v668 = vsel %vm624, %v362, 0
        %v671 = vsel %vm624, %v363, 0
        %v674 = vsel %vm624, %v364, 0
        %v677 = vsel %vm624, %v365, 0
        %v680 = vsel %vm624, %v366, 0
        %v683 = vsel %vm624, %v367, 0
        %v686 = vsel %vm624, %v368, 0
        %v689 = vsel %vm624, %v369, 0
        %v692 = vsel %vm624, %v370, 0
        %v695 = vsel %vm624, %v371, 0
        %v698 = vsel %vm624, %v372, 0
        %v701 = vsel %vm624, %v373, 0
        %v704 = vsel %vm624, %v374, 0
        %v707 = vsel %vm624, %v375, 0
        %v710 = vsel %vm624, %v376, 0
        %v713 = vsel %vm624, %v377, 0
        %v716 = vsel %vm624, %v378, 0
        %v719 = vsel %vm624, %v379, 0
        %v722 = vsel %vm624, %v380, 0
        %v725 = vsel %vm624, %v381, 0
        %v728 = vsel %vm624, %v382, 0
        %v731 = vsel %vm624, %v383, 0
        %v734 = vsel %vm624, %v384, 0
        %v737 = vsel %vm624, %v385, 0
        %v740 = vsel %vm624, %v386, 0
        %v743 = vsel %vm624, %v387, 0
        %v746 = vsel %vm624, %v388, 0
        %v749 = vsel %vm624, %v389, 0
        %v752 = vsel %vm624, %v390, 0
        %v755 = vsel %vm624, %v391, 0
        %v758 = vsel %vm624, %v392, 0
        %v761 = vsel %vm624, %v393, 0
        %v764 = vsel %vm624, %v394, 0
        %v767 = vsel %vm624, %v395, 0
        %v770 = vsel %vm624, %v396, 0
        %v773 = vsel %vm624, %v397, 0
        %v776 = vsel %vm624, %v398, 0
        %v779 = vsel %vm624, %v399, 0
        %v782 = vsel %vm624, %v400, 0
        %v785 = vsel %vm624, %v401, 0
        %v788 = vsel %vm624, %v402, 0
        %v791 = vsel %vm624, %v403, 0
        %v794 = vsel %vm624, %v404, 0
        %v797 = vsel %vm624, %v405, 0
        %v800 = vsel %vm624, %v406, 0
        %v803 = vsel %vm624, %v407, 0
        %v806 = vsel %vm624, %v408, 0
        %v809 = vsel %vm624, %v409, 0
        %v812 = vsel %vm624, %v410, 0
        %v815 = vsel %vm624, %v411, 0
        %v818 = vsel %vm624, %v412, 0
        %v821 = vsel %vm624, %v413, 0
        %v824 = vsel %vm624, %v414, 0
        %v827 = vsel %vm624, %v415, 0
        %v830 = vsel %vm624, %v416, 0
        %v833 = vsel %vm624, %v417, 0
        %v836 = vsel %vm624, %v418, 0
        %v839 = vsel %vm624, %v419, 0
        %v842 = vsel %vm624, %v420, 0
        %v845 = vsel %vm624, %v421, 0
        %v848 = vsel %vm624, %v422, 0
        %v851 = vsel %vm624, %v423, 0
        %v854 = vsel %vm624, %v424, 0
        %v857 = vsel %vm624, %v425, 0
        %v860 = vsel %vm624, %v426, 0
        %v863 = vsel %vm624, %v427, 0
        %v866 = vsel %vm624, %v428, 0
        %v869 = vsel %vm624, %v429, 0
        %v872 = vsel %vm624, %v430, 0
        %v875 = vsel %vm624, %v431, 0
        %v878 = vsel %vm624, %v432, 0
        %v881 = vsel %vm624, %v433, 0
        %v884 = vsel %vm624, %v434, 0
        %v887 = vsel %vm624, %v435, 0
        %v890 = vsel %vm624, %v436, 0
        %v893 = vsel %vm624, %v437, 0
        %v896 = vsel %vm624, %v438, 0
        %v899 = vsel %vm624, %v439, 0
        %v902 = vsel %vm624, %v440, 0
        %v905 = vsel %vm624, %v441, 0
        %v908 = vsel %vm624, %v442, 0
        %v911 = vsel %vm624, %v443, 0
        %v914 = vsel %vm624, %v444, 0
        %v917 = vsel %vm624, %v445, 0
        %v920 = vsel %vm624, %v446, 0
        %v923 = vsel %vm624, %v447, 0
        %v926 = vsel %vm624, %v448, 0
        %v929 = vsel %vm624, %v449, 0
        %v932 = vsel %vm624, %v450, 0
        %v935 = vsel %vm624, %v451, 0
        %v938 = vsel %vm624, %v452, 0
        %v941 = vsel %vm624, %v453, 0
        %v944 = vsel %vm624, %v454, 0
        %v947 = vsel %vm624, %v455, 0
        %v950 = vsel %vm624, %v456, 0
        %v953 = vsel %vm624, %v457, 0
        %v956 = vsel %vm624, %v458, 0
        %v959 = vsel %vm624, %v459, 0
        %v962 = vsel %vm624, %v460, 0
        %v965 = vsel %vm624, %v461, 0
        %v968 = vsel %vm624, %v462, 0
        %v971 = vsel %vm624, %v463, 0
        %v974 = vsel %vm624, %v464, 0
        %v977 = vsel %vm624, %v465, 0
        %v980 = vsel %vm624, %v466, 0
        %v983 = vsel %vm624, %v467, 0
        %v986 = vsel %vm624, %v468, 0
        %v989 = vsel %vm624, %v469, 0
        %v992 = vsel %vm624, %v470, 0
        %v995 = vsel %vm624, %v471, 0
        %v998 = vsel %vm624, %v472, 0
        %v1001 = vsel %vm624, %v473, 0
        %v1004 = vsel %vm624, %v474, 0
        %v1007 = vsel %vm624, %v475, 0
        %v1010 = vsel %vm624, %v476, 0
        %v1013 = vsel %vm624, %v477, 0
        %v1016 = vsel %vm624, %v478, 0
        %v1019 = vsel %vm624, %v479, 0
        %v1022 = vsel %vm624, %v480, 0
        %v1025 = vsel %vm624, %v481, 0
        %v1028 = vsel %vm624, %v482, 0
        %v1031 = vsel %vm624, %v483, 0
        %v1034 = vsel %vm624, %v484, 0
        %v1037 = vsel %vm624, %v485, 0
        %v1040 = vsel %vm624, %v486, 0
        %v1043 = vsel %vm624, %v487, 0
        %v1046 = vsel %vm624, %v488, 0
        %v1049 = vsel %vm624, %v489, 0
        %v1052 = vsel %vm624, %v490, 0
        %v1055 = vsel %vm624, %v491, 0
        %v1058 = vsel %vm624, %v492, 0
        %v1061 = vsel %vm624, %v493, 0
        %v1064 = vsel %vm624, %v494, 0
        %v1067 = vsel %vm624, %v495, 0
        %v1070 = vsel %vm624, %v496, 0
        %v1073 = vsel %vm624, %v497, 0
        %v1076 = vsel %vm624, %v498, 0
        %v1079 = vsel %vm624, %v499, 0
        %v1082 = vsel %vm624, %v500, 0
        %v1085 = vsel %vm624, %v501, 0
        %v1088 = vsel %vm624, %v502, 0
        %v1091 = vsel %vm624, %v503, 0
        %v1094 = vsel %vm624, %v504, 0
        %v1097 = vsel %vm624, %v505, 0
        %v1100 = vsel %vm624, %v506, 0
        %v1103 = vsel %vm624, %v507, 0
        %v1106 = vsel %vm624, %v508, 0
        %v1109 = vsel %vm624, %v509, 0
        %v1112 = vsel %vm624, %v510, 0
        %v1115 = vsel %vm624, %v511, 0
        %v1118 = vsel %vm624, %v512, 0
        %v1121 = vsel %vm624, %v513, 0
        %v1124 = vsel %vm624, %v514, 0
        %v1127 = vsel %vm624, %v515, 0
        %v1130 = vsel %vm624, %v516, 0
        %v1133 = vsel %vm624, %v517, 0
        %v1136 = vsel %vm624, %v518, 0
        %v1139 = vsel %vm624, %v519, 0
        %v1142 = vsel %vm624, %v520, 0
        %v1145 = vsel %vm624, %v521, 0
        %v1148 = vsel %vm624, %v522, 0
        %v1151 = vsel %vm624, %v523, 0
        %v1154 = vsel %vm624, %v524, 0
        %v1157 = vsel %vm624, %v525, 0
        %v1160 = vsel %vm624, %v526, 0
        %v1163 = vsel %vm624, %v527, 0
        %v1166 = vsel %vm624, %v528, 0
        %v1169 = vsel %vm624, %v529, 0
        %v1172 = vsel %vm624, %v530, 0
        %v1175 = vsel %vm624, %v531, 0
        %v1178 = vsel %vm624, %v532, 0
        %v1181 = vsel %vm624, %v533, 0
        %v1184 = vsel %vm624, %v534, 0
        %v1187 = vsel %vm624, %v535, 0
        %v1190 = vsel %vm624, %v536, 0
        %v1193 = vsel %vm624, %v537, 0
        %v1196 = vsel %vm624, %v538, 0
        %v1199 = vsel %vm624, %v539, 0
        %v1202 = vsel %vm624, %v540, 0
        %v1205 = vsel %vm624, %v541, 0
        %v1208 = vsel %vm624, %v542, 0
        %v1211 = vsel %vm624, %v543, 0
        %v1214 = vsel %vm624, %v544, 0
        %v1217 = vsel %vm624, %v545, 0
        %v1220 = vsel %vm624, %v546, 0
        %v1223 = vsel %vm624, %v547, 0
        %v1226 = vsel %vm624, %v548, 0
        %v1229 = vsel %vm624, %v549, 0
        %v1232 = vsel %vm624, %v550, 0
        %v1235 = vsel %vm624, %v551, 0
        %v1238 = vsel %vm624, %v552, 0
        %v1241 = vsel %vm624, %v553, 0
        %v1244 = vsel %vm624, %v554, 0
        %v1247 = vsel %vm624, %v555, 0
        %v1250 = vsel %vm624, %v556, 0
        %v1253 = vsel %vm624, %v557, 0
        %v1256 = vsel %vm624, %v558, 0
        %v1259 = vsel %vm624, %v559, 0
        %v1262 = vsel %vm624, %v560, 0
        %v1265 = vsel %vm624, %v561, 0
        %v1268 = vsel %vm624, %v562, 0
        %v1271 = vsel %vm624, %v563, 0
        %v1274 = vsel %vm624, %v564, 0
        %v1277 = vsel %vm624, %v565, 0
        %v1280 = vsel %vm624, %v566, 0
        %v1283 = vsel %vm624, %v567, 0
        %v1286 = vsel %vm624, %v568, 0
        %v1289 = vsel %vm624, %v569, 0
        %v1292 = vsel %vm624, %v570, 0
        %v1295 = vsel %vm624, %v571, 0
        %v1298 = vsel %vm624, %v572, 0
        %v1301 = vsel %vm624, %v573, 0
        %v1304 = vsel %vm624, %v574, 0
        %v1307 = vsel %vm624, %v575, 0
        %v1310 = vsel %vm624, %v576, 0
        %v1313 = vsel %vm624, %v577, 0
        %v1316 = vsel %vm624, %v578, 0
        %v1319 = vsel %vm624, %v579, 0
        %v1322 = vsel %vm624, %v580, 0
        %v1325 = vsel %vm624, %v581, 0
        %v1328 = vsel %vm624, %v582, 0
        %v1331 = vsel %vm624, %v583, 0
        %v1334 = vsel %vm624, %v584, 0
        %v1337 = vsel %vm624, %v585, 0
        %v1340 = vsel %vm624, %v586, 0
        %v1343 = vsel %vm624, %v587, 0
        %v1346 = vsel %vm624, %v588, 0
        %v1349 = vsel %vm624, %v589, 0
        %v1352 = vsel %vm624, %v590, 0
        %v1355 = vsel %vm624, %v591, 0
        %v1358 = vsel %vm624, %v592, 0
        %v1361 = vsel %vm624, %v593, 0
        %v1364 = vsel %vm624, %v594, 0
        %v1367 = vsel %vm624, %v595, 0
        %v1370 = vsel %vm624, %v596, 0
        %v1373 = vsel %vm624, %v597, 0
        %v1376 = vsel %vm624, %v598, 0
        %v1379 = vsel %vm624, %v599, 0
        %v1382 = vsel %vm624, %v600, 0
        %v1385 = vsel %vm624, %v601, 0
        %v1388 = vsel %vm624, %v602, 0
        %v1391 = vsel %vm624, %v603, 0
        %vm1393 = vcmask 1043456
        %v1395 = vsel %vm1393, %v616, 0
        %1397 = vmatprep.subr.mxu0 0.0
        %1398 = vmatpush1.msra.mxu0 %v604
        %1399 = vmatprep.subr.mxu0 0.0
        %1400 = vmatpush1.msra.mxu0 %v605
        %1401 = vmatprep.subr.mxu0 0.0
        %1402 = vmatpush1.msra.mxu0 %v606
        %1403 = vmatprep.subr.mxu0 0.0
        %1404 = vmatpush1.msra.mxu0 %v607
        %1405 = vmatprep.subr.mxu0 0.0
        %1406 = vmatpush1.msra.mxu0 %v608
        %1407 = vmatprep.subr.mxu0 0.0
        %1408 = vmatpush1.msra.mxu0 %v609
        %1409 = vmatprep.subr.mxu0 0.0
        %1410 = vmatpush1.msra.mxu0 %v610
        %1411 = vmatprep.subr.mxu0 0.0
        %1412 = vmatpush1.msra.mxu0 %v611
        %1413 = vmatprep.subr.mxu0 0.0
        %1414 = vmatpush1.msra.mxu0 %v612
        %1415 = vmatprep.subr.mxu0 0.0
        %1416 = vmatpush1.msra.mxu0 %v613
        %1417 = vmatprep.subr.mxu0 0.0
        %1418 = vmatpush1.msra.mxu0 %v614
        %1419 = vmatprep.subr.mxu0 0.0
        %1420 = vmatpush1.msra.mxu0 %v615
        %1421 = vmatprep.subr.mxu0 0.0
        %1422 = vmatpush1.msra.mxu0 %v1395
        %1423 = vmatprep.subr.mxu0 0.0
        %1424 = vmatpush1.msra.mxu0 0.0
        %1425 = vmatprep.subr.mxu0 0.0
        %1426 = vmatpush1.msra.mxu0 0.0
        %1427 = vmatprep.subr.mxu0 0.0
        %1428 = vmatpush1.msra.mxu0 0.0
        %1429 = vmatprep.subr.mxu0 0.0
        %1430 = vmatpush1.msra.mxu0 0.0
        %1431 = vmatprep.subr.mxu0 0.0
        %1432 = vmatpush1.msra.mxu0 0.0
        %1433 = vmatprep.subr.mxu0 0.0
        %1434 = vmatpush1.msra.mxu0 0.0
        %1435 = vmatprep.subr.mxu0 0.0
        %1436 = vmatpush1.msra.mxu0 0.0
        %1437 = vmatprep.subr.mxu0 0.0
        %1438 = vmatpush1.msra.mxu0 0.0
        %1439 = vmatprep.subr.mxu0 0.0
        %1440 = vmatpush1.msra.mxu0 0.0
        %1441 = vmatprep.subr.mxu0 0.0
        %1442 = vmatpush1.msra.mxu0 0.0
        %1443 = vmatprep.subr.mxu0 0.0
        %1444 = vmatpush1.msra.mxu0 0.0
        %1445 = vmatprep.subr.mxu0 0.0
        %1446 = vmatpush1.msra.mxu0 0.0
        %1447 = vmatprep.subr.mxu0 0.0
        %1448 = vmatpush1.msra.mxu0 0.0
        %1449 = vmatprep.subr.mxu0 0.0
        %1450 = vmatpush1.msra.mxu0 0.0
        %1451 = vmatprep.subr.mxu0 0.0
        %1452 = vmatpush1.msra.mxu0 0.0
        %1453 = vmatprep.subr.mxu0 0.0
        %1454 = vmatpush1.msra.mxu0 0.0
        %1455 = vmatprep.subr.mxu0 0.0
        %1456 = vmatpush1.msra.mxu0 0.0
        %1457 = vmatprep.subr.mxu0 0.0
        %1458 = vmatpush1.msra.mxu0 0.0
        %1459 = vmatprep.subr.mxu0 0.0
        %1460 = vmatpush1.msra.mxu0 0.0
        %1461 = vmatprep.mubr.f32.mxu0 0.0
        %1462 = vmatmul.mubr.f32.gmra.mrb[0].mxu0 %v626
        %v1463 = vpop.f32.mrb[0].mxu0
        %v1464 = vadd.f32 %v622, %v1463
        %v1465 = vpop.f32.mrb[0].mxu0
        %1466 = vmatprep.mubr.f32.mxu0 0.0
        %1467 = vmatmul.mubr.f32.gmra.mrb[0].mxu0 %v629
        %v1468 = vpop.f32.mrb[0].mxu0
        %v1469 = vadd.f32 %v622, %v1468
        %v1470 = vpop.f32.mrb[0].mxu0
        %1471 = vmatprep.mubr.f32.mxu0 0.0
        %1472 = vmatmul.mubr.f32.gmra.mrb[0].mxu0 %v632
        %v1473 = vpop.f32.mrb[0].mxu0
        %v1474 = vadd.f32 %v622, %v1473
        %v1475 = vpop.f32.mrb[0].mxu0
        %1476 = vmatprep.mubr.f32.mxu0 0.0
        %1477 = vmatmul.mubr.f32.gmra.mrb[0].mxu0 %v635
        %v1478 = vpop.f32.mrb[0].mxu0
        %v1479 = vadd.f32 %v622, %v1478
        %v1480 = vpop.f32.mrb[0].mxu0
        %1481 = vmatprep.mubr.f32.mxu0 0.0
        %1482 = vmatmul.mubr.f32.gmra.mrb[0].mxu0 %v638
        %v1483 = vpop.f32.mrb[0].mxu0
        %v1484 = vadd.f32 %v622, %v1483
        %v1485 = vpop.f32.mrb[0].mxu0
        %1486 = vmatprep.mubr.f32.mxu0 0.0
        %1487 = vmatmul.mubr.f32.gmra.mrb[0].mxu0 %v641
        %v1488 = vpop.f32.mrb[0].mxu0
        %v1489 = vadd.f32 %v622, %v1488
        %v1490 = vpop.f32.mrb[0].mxu0
        %1491 = vmatprep.mubr.f32.mxu0 0.0
        %1492 = vmatmul.mubr.f32.gmra.mrb[0].mxu0 %v644
        %v1493 = vpop.f32.mrb[0].mxu0
        %v1494 = vadd.f32 %v622, %v1493
        %v1495 = vpop.f32.mrb[0].mxu0
        %1496 = vmatprep.mubr.f32.mxu0 0.0
        %1497 = vmatmul.mubr.f32.gmra.mrb[0].mxu0 %v647
        %v1498 = vpop.f32.mrb[0].mxu0
        %v1499 = vadd.f32 %v622, %v1498
        %v1500 = vpop.f32.mrb[0].mxu0
        %1501 = vmatprep.mubr.f32.mxu0 0.0
        %1502 = vmatmul.mubr.f32.gmra.mrb[0].mxu0 %v650
        %v1503 = vpop.f32.mrb[0].mxu0
        %v1504 = vadd.f32 %v622, %v1503
        %v1505 = vpop.f32.mrb[0].mxu0
        %1506 = vmatprep.mubr.f32.mxu0 0.0
        %1507 = vmatmul.mubr.f32.gmra.mrb[0].mxu0 %v653
        %v1508 = vpop.f32.mrb[0].mxu0
        %v1509 = vadd.f32 %v622, %v1508
        %v1510 = vpop.f32.mrb[0].mxu0
        %1511 = vmatprep.mubr.f32.mxu0 0.0
        %1512 = vmatmul.mubr.f32.gmra.mrb[0].mxu0 %v656
        %v1513 = vpop.f32.mrb[0].mxu0
        %v1514 = vadd.f32 %v622, %v1513
        %v1515 = vpop.f32.mrb[0].mxu0
        %1516 = vmatprep.mubr.f32.mxu0 0.0
        %1517 = vmatmul.mubr.f32.gmra.mrb[0].mxu0 %v659
        %v1518 = vpop.f32.mrb[0].mxu0
        %v1519 = vadd.f32 %v622, %v1518
        %v1520 = vpop.f32.mrb[0].mxu0
        %1521 = vmatprep.mubr.f32.mxu0 0.0
        %1522 = vmatmul.mubr.f32.gmra.mrb[0].mxu0 %v662
        %v1523 = vpop.f32.mrb[0].mxu0
        %v1524 = vadd.f32 %v622, %v1523
        %v1525 = vpop.f32.mrb[0].mxu0
        %1526 = vmatprep.mubr.f32.mxu0 0.0
        %1527 = vmatmul.mubr.f32.gmra.mrb[0].mxu0 %v665
        %v1528 = vpop.f32.mrb[0].mxu0
        %v1529 = vadd.f32 %v622, %v1528
        %v1530 = vpop.f32.mrb[0].mxu0
        %1531 = vmatprep.mubr.f32.mxu0 0.0
        %1532 = vmatmul.mubr.f32.gmra.mrb[0].mxu0 %v668
        %v1533 = vpop.f32.mrb[0].mxu0
        %v1534 = vadd.f32 %v622, %v1533
        %v1535 = vpop.f32.mrb[0].mxu0
        %1536 = vmatprep.mubr.f32.mxu0 0.0
        %1537 = vmatmul.mubr.f32.gmra.mrb[0].mxu0 %v671
        %v1538 = vpop.f32.mrb[0].mxu0
        %v1539 = vadd.f32 %v622, %v1538
        %v1540 = vpop.f32.mrb[0].mxu0
        %1541 = vmatprep.mubr.f32.mxu0 0.0
        %1542 = vmatmul.mubr.f32.gmra.mrb[0].mxu0 %v674
        %v1543 = vpop.f32.mrb[0].mxu0
        %v1544 = vadd.f32 %v622, %v1543
        %v1545 = vpop.f32.mrb[0].mxu0
        %1546 = vmatprep.mubr.f32.mxu0 0.0
        %1547 = vmatmul.mubr.f32.gmra.mrb[0].mxu0 %v677
        %v1548 = vpop.f32.mrb[0].mxu0
        %v1549 = vadd.f32 %v622, %v1548
        %v1550 = vpop.f32.mrb[0].mxu0
        %1551 = vmatprep.mubr.f32.mxu0 0.0
        %1552 = vmatmul.mubr.f32.gmra.mrb[0].mxu0 %v680
        %v1553 = vpop.f32.mrb[0].mxu0
        %v1554 = vadd.f32 %v622, %v1553
        %v1555 = vpop.f32.mrb[0].mxu0
        %1556 = vmatprep.mubr.f32.mxu0 0.0
        %1557 = vmatmul.mubr.f32.gmra.mrb[0].mxu0 %v683
        %v1558 = vpop.f32.mrb[0].mxu0
        %v1559 = vadd.f32 %v622, %v1558
        %v1560 = vpop.f32.mrb[0].mxu0
        %1561 = vmatprep.mubr.f32.mxu0 0.0
        %1562 = vmatmul.mubr.f32.gmra.mrb[0].mxu0 %v686
        %v1563 = vpop.f32.mrb[0].mxu0
        %v1564 = vadd.f32 %v622, %v1563
        %v1565 = vpop.f32.mrb[0].mxu0
        %1566 = vmatprep.mubr.f32.mxu0 0.0
        %1567 = vmatmul.mubr.f32.gmra.mrb[0].mxu0 %v689
        %v1568 = vpop.f32.mrb[0].mxu0
        %v1569 = vadd.f32 %v622, %v1568
        %v1570 = vpop.f32.mrb[0].mxu0
        %1571 = vmatprep.mubr.f32.mxu0 0.0
        %1572 = vmatmul.mubr.f32.gmra.mrb[0].mxu0 %v692
        %v1573 = vpop.f32.mrb[0].mxu0
        %v1574 = vadd.f32 %v622, %v1573
        %v1575 = vpop.f32.mrb[0].mxu0
        %1576 = vmatprep.mubr.f32.mxu0 0.0
        %1577 = vmatmul.mubr.f32.gmra.mrb[0].mxu0 %v695
        %v1578 = vpop.f32.mrb[0].mxu0
        %v1579 = vadd.f32 %v622, %v1578
        %v1580 = vpop.f32.mrb[0].mxu0
        %1581 = vmatprep.mubr.f32.mxu0 0.0
        %1582 = vmatmul.mubr.f32.gmra.mrb[0].mxu0 %v698
        %v1583 = vpop.f32.mrb[0].mxu0
        %v1584 = vadd.f32 %v622, %v1583
        %v1585 = vpop.f32.mrb[0].mxu0
        %1586 = vmatprep.mubr.f32.mxu0 0.0
        %1587 = vmatmul.mubr.f32.gmra.mrb[0].mxu0 %v701
        %v1588 = vpop.f32.mrb[0].mxu0
        %v1589 = vadd.f32 %v622, %v1588
        %v1590 = vpop.f32.mrb[0].mxu0
        %1591 = vmatprep.mubr.f32.mxu0 0.0
        %1592 = vmatmul.mubr.f32.gmra.mrb[0].mxu0 %v704
        %v1593 = vpop.f32.mrb[0].mxu0
        %v1594 = vadd.f32 %v622, %v1593
        %v1595 = vpop.f32.mrb[0].mxu0
        %1596 = vmatprep.mubr.f32.mxu0 0.0
        %1597 = vmatmul.mubr.f32.gmra.mrb[0].mxu0 %v707
        %v1598 = vpop.f32.mrb[0].mxu0
        %v1599 = vadd.f32 %v622, %v1598
        %v1600 = vpop.f32.mrb[0].mxu0
        %1601 = vmatprep.mubr.f32.mxu0 0.0
        %1602 = vmatmul.mubr.f32.gmra.mrb[0].mxu0 %v710
        %v1603 = vpop.f32.mrb[0].mxu0
        %v1604 = vadd.f32 %v622, %v1603
        %v1605 = vpop.f32.mrb[0].mxu0
        %1606 = vmatprep.mubr.f32.mxu0 0.0
        %1607 = vmatmul.mubr.f32.gmra.mrb[0].mxu0 %v713
        %v1608 = vpop.f32.mrb[0].mxu0
        %v1609 = vadd.f32 %v622, %v1608
        %v1610 = vpop.f32.mrb[0].mxu0
        %1611 = vmatprep.mubr.f32.mxu0 0.0
        %1612 = vmatmul.mubr.f32.gmra.mrb[0].mxu0 %v716
        %v1613 = vpop.f32.mrb[0].mxu0
        %v1614 = vadd.f32 %v622, %v1613
        %v1615 = vpop.f32.mrb[0].mxu0
        %1616 = vmatprep.mubr.f32.mxu0 0.0
        %1617 = vmatmul.mubr.f32.gmra.mrb[0].mxu0 %v719
        %v1618 = vpop.f32.mrb[0].mxu0
        %v1619 = vadd.f32 %v622, %v1618
        %v1620 = vpop.f32.mrb[0].mxu0
        %1621 = vmatprep.mubr.f32.mxu0 0.0
        %1622 = vmatmul.mubr.f32.gmra.mrb[0].mxu0 %v722
        %v1623 = vpop.f32.mrb[0].mxu0
        %v1624 = vadd.f32 %v622, %v1623
        %v1625 = vpop.f32.mrb[0].mxu0
        %1626 = vmatprep.mubr.f32.mxu0 0.0
        %1627 = vmatmul.mubr.f32.gmra.mrb[0].mxu0 %v725
        %v1628 = vpop.f32.mrb[0].mxu0
        %v1629 = vadd.f32 %v622, %v1628
        %v1630 = vpop.f32.mrb[0].mxu0
        %1631 = vmatprep.mubr.f32.mxu0 0.0
        %1632 = vmatmul.mubr.f32.gmra.mrb[0].mxu0 %v728
        %v1633 = vpop.f32.mrb[0].mxu0
        %v1634 = vadd.f32 %v622, %v1633
        %v1635 = vpop.f32.mrb[0].mxu0
        %1636 = vmatprep.mubr.f32.mxu0 0.0
        %1637 = vmatmul.mubr.f32.gmra.mrb[0].mxu0 %v731
        %v1638 = vpop.f32.mrb[0].mxu0
        %v1639 = vadd.f32 %v622, %v1638
        %v1640 = vpop.f32.mrb[0].mxu0
        %1641 = vmatprep.mubr.f32.mxu0 0.0
        %1642 = vmatmul.mubr.f32.gmra.mrb[0].mxu0 %v734
        %v1643 = vpop.f32.mrb[0].mxu0
        %v1644 = vadd.f32 %v622, %v1643
        %v1645 = vpop.f32.mrb[0].mxu0
        %1646 = vmatprep.mubr.f32.mxu0 0.0
        %1647 = vmatmul.mubr.f32.gmra.mrb[0].mxu0 %v737
        %v1648 = vpop.f32.mrb[0].mxu0
        %v1649 = vadd.f32 %v622, %v1648
        %v1650 = vpop.f32.mrb[0].mxu0
        %1651 = vmatprep.mubr.f32.mxu0 0.0
        %1652 = vmatmul.mubr.f32.gmra.mrb[0].mxu0 %v740
        %v1653 = vpop.f32.mrb[0].mxu0
        %v1654 = vadd.f32 %v622, %v1653
        %v1655 = vpop.f32.mrb[0].mxu0
        %1656 = vmatprep.mubr.f32.mxu0 0.0
        %1657 = vmatmul.mubr.f32.gmra.mrb[0].mxu0 %v743
        %v1658 = vpop.f32.mrb[0].mxu0
        %v1659 = vadd.f32 %v622, %v1658
        %v1660 = vpop.f32.mrb[0].mxu0
        %1661 = vmatprep.mubr.f32.mxu0 0.0
        %1662 = vmatmul.mubr.f32.gmra.mrb[0].mxu0 %v746
        %v1663 = vpop.f32.mrb[0].mxu0
        %v1664 = vadd.f32 %v622, %v1663
        %v1665 = vpop.f32.mrb[0].mxu0
        %1666 = vmatprep.mubr.f32.mxu0 0.0
        %1667 = vmatmul.mubr.f32.gmra.mrb[0].mxu0 %v749
        %v1668 = vpop.f32.mrb[0].mxu0
        %v1669 = vadd.f32 %v622, %v1668
        %v1670 = vpop.f32.mrb[0].mxu0
        %1671 = vmatprep.mubr.f32.mxu0 0.0
        %1672 = vmatmul.mubr.f32.gmra.mrb[0].mxu0 %v752
        %v1673 = vpop.f32.mrb[0].mxu0
        %v1674 = vadd.f32 %v622, %v1673
        %v1675 = vpop.f32.mrb[0].mxu0
        %1676 = vmatprep.mubr.f32.mxu0 0.0
        %1677 = vmatmul.mubr.f32.gmra.mrb[0].mxu0 %v755
        %v1678 = vpop.f32.mrb[0].mxu0
        %v1679 = vadd.f32 %v622, %v1678
        %v1680 = vpop.f32.mrb[0].mxu0
        %1681 = vmatprep.mubr.f32.mxu0 0.0
        %1682 = vmatmul.mubr.f32.gmra.mrb[0].mxu0 %v758
        %v1683 = vpop.f32.mrb[0].mxu0
        %v1684 = vadd.f32 %v622, %v1683
        %v1685 = vpop.f32.mrb[0].mxu0
        %1686 = vmatprep.mubr.f32.mxu0 0.0
        %1687 = vmatmul.mubr.f32.gmra.mrb[0].mxu0 %v761
        %v1688 = vpop.f32.mrb[0].mxu0
        %v1689 = vadd.f32 %v622, %v1688
        %v1690 = vpop.f32.mrb[0].mxu0
        %1691 = vmatprep.mubr.f32.mxu0 0.0
        %1692 = vmatmul.mubr.f32.gmra.mrb[0].mxu0 %v764
        %v1693 = vpop.f32.mrb[0].mxu0
        %v1694 = vadd.f32 %v622, %v1693
        %v1695 = vpop.f32.mrb[0].mxu0
        %1696 = vmatprep.mubr.f32.mxu0 0.0
        %1697 = vmatmul.mubr.f32.gmra.mrb[0].mxu0 %v767
        %v1698 = vpop.f32.mrb[0].mxu0
        %v1699 = vadd.f32 %v622, %v1698
        %v1700 = vpop.f32.mrb[0].mxu0
        %1701 = vmatprep.mubr.f32.mxu0 0.0
        %1702 = vmatmul.mubr.f32.gmra.mrb[0].mxu0 %v770
        %v1703 = vpop.f32.mrb[0].mxu0
        %v1704 = vadd.f32 %v622, %v1703
        %v1705 = vpop.f32.mrb[0].mxu0
        %1706 = vmatprep.mubr.f32.mxu0 0.0
        %1707 = vmatmul.mubr.f32.gmra.mrb[0].mxu0 %v773
        %v1708 = vpop.f32.mrb[0].mxu0
        %v1709 = vadd.f32 %v622, %v1708
        %v1710 = vpop.f32.mrb[0].mxu0
        %1711 = vmatprep.mubr.f32.mxu0 0.0
        %1712 = vmatmul.mubr.f32.gmra.mrb[0].mxu0 %v776
        %v1713 = vpop.f32.mrb[0].mxu0
        %v1714 = vadd.f32 %v622, %v1713
        %v1715 = vpop.f32.mrb[0].mxu0
        %1716 = vmatprep.mubr.f32.mxu0 0.0
        %1717 = vmatmul.mubr.f32.gmra.mrb[0].mxu0 %v779
        %v1718 = vpop.f32.mrb[0].mxu0
        %v1719 = vadd.f32 %v622, %v1718
        %v1720 = vpop.f32.mrb[0].mxu0
        %1721 = vmatprep.mubr.f32.mxu0 0.0
        %1722 = vmatmul.mubr.f32.gmra.mrb[0].mxu0 %v782
        %v1723 = vpop.f32.mrb[0].mxu0
        %v1724 = vadd.f32 %v622, %v1723
        %v1725 = vpop.f32.mrb[0].mxu0
        %1726 = vmatprep.mubr.f32.mxu0 0.0
        %1727 = vmatmul.mubr.f32.gmra.mrb[0].mxu0 %v785
        %v1728 = vpop.f32.mrb[0].mxu0
        %v1729 = vadd.f32 %v622, %v1728
        %v1730 = vpop.f32.mrb[0].mxu0
        %1731 = vmatprep.mubr.f32.mxu0 0.0
        %1732 = vmatmul.mubr.f32.gmra.mrb[0].mxu0 %v788
        %v1733 = vpop.f32.mrb[0].mxu0
        %v1734 = vadd.f32 %v622, %v1733
        %v1735 = vpop.f32.mrb[0].mxu0
        %1736 = vmatprep.mubr.f32.mxu0 0.0
        %1737 = vmatmul.mubr.f32.gmra.mrb[0].mxu0 %v791
        %v1738 = vpop.f32.mrb[0].mxu0
        %v1739 = vadd.f32 %v622, %v1738
        %v1740 = vpop.f32.mrb[0].mxu0
        %1741 = vmatprep.mubr.f32.mxu0 0.0
        %1742 = vmatmul.mubr.f32.gmra.mrb[0].mxu0 %v794
        %v1743 = vpop.f32.mrb[0].mxu0
        %v1744 = vadd.f32 %v622, %v1743
        %v1745 = vpop.f32.mrb[0].mxu0
        %1746 = vmatprep.mubr.f32.mxu0 0.0
        %1747 = vmatmul.mubr.f32.gmra.mrb[0].mxu0 %v797
        %v1748 = vpop.f32.mrb[0].mxu0
        %v1749 = vadd.f32 %v622, %v1748
        %v1750 = vpop.f32.mrb[0].mxu0
        %1751 = vmatprep.mubr.f32.mxu0 0.0
        %1752 = vmatmul.mubr.f32.gmra.mrb[0].mxu0 %v800
        %v1753 = vpop.f32.mrb[0].mxu0
        %v1754 = vadd.f32 %v622, %v1753
        %v1755 = vpop.f32.mrb[0].mxu0
        %1756 = vmatprep.mubr.f32.mxu0 0.0
        %1757 = vmatmul.mubr.f32.gmra.mrb[0].mxu0 %v803
        %v1758 = vpop.f32.mrb[0].mxu0
        %v1759 = vadd.f32 %v622, %v1758
        %v1760 = vpop.f32.mrb[0].mxu0
        %1761 = vmatprep.mubr.f32.mxu0 0.0
        %1762 = vmatmul.mubr.f32.gmra.mrb[0].mxu0 %v806
        %v1763 = vpop.f32.mrb[0].mxu0
        %v1764 = vadd.f32 %v622, %v1763
        %v1765 = vpop.f32.mrb[0].mxu0
        %1766 = vmatprep.mubr.f32.mxu0 0.0
        %1767 = vmatmul.mubr.f32.gmra.mrb[0].mxu0 %v809
        %v1768 = vpop.f32.mrb[0].mxu0
        %v1769 = vadd.f32 %v622, %v1768
        %v1770 = vpop.f32.mrb[0].mxu0
        %1771 = vmatprep.mubr.f32.mxu0 0.0
        %1772 = vmatmul.mubr.f32.gmra.mrb[0].mxu0 %v812
        %v1773 = vpop.f32.mrb[0].mxu0
        %v1774 = vadd.f32 %v622, %v1773
        %v1775 = vpop.f32.mrb[0].mxu0
        %1776 = vmatprep.mubr.f32.mxu0 0.0
        %1777 = vmatmul.mubr.f32.gmra.mrb[0].mxu0 %v815
        %v1778 = vpop.f32.mrb[0].mxu0
        %v1779 = vadd.f32 %v622, %v1778
        %v1780 = vpop.f32.mrb[0].mxu0
        %1781 = vmatprep.mubr.f32.mxu0 0.0
        %1782 = vmatmul.mubr.f32.gmra.mrb[0].mxu0 %v818
        %v1783 = vpop.f32.mrb[0].mxu0
        %v1784 = vadd.f32 %v622, %v1783
        %v1785 = vpop.f32.mrb[0].mxu0
        %1786 = vmatprep.mubr.f32.mxu0 0.0
        %1787 = vmatmul.mubr.f32.gmra.mrb[0].mxu0 %v821
        %v1788 = vpop.f32.mrb[0].mxu0
        %v1789 = vadd.f32 %v622, %v1788
        %v1790 = vpop.f32.mrb[0].mxu0
        %1791 = vmatprep.mubr.f32.mxu0 0.0
        %1792 = vmatmul.mubr.f32.gmra.mrb[0].mxu0 %v824
        %v1793 = vpop.f32.mrb[0].mxu0
        %v1794 = vadd.f32 %v622, %v1793
        %v1795 = vpop.f32.mrb[0].mxu0
        %1796 = vmatprep.mubr.f32.mxu0 0.0
        %1797 = vmatmul.mubr.f32.gmra.mrb[0].mxu0 %v827
        %v1798 = vpop.f32.mrb[0].mxu0
        %v1799 = vadd.f32 %v622, %v1798
        %v1800 = vpop.f32.mrb[0].mxu0
        %1801 = vmatprep.mubr.f32.mxu0 0.0
        %1802 = vmatmul.mubr.f32.gmra.mrb[0].mxu0 %v830
        %v1803 = vpop.f32.mrb[0].mxu0
        %v1804 = vadd.f32 %v622, %v1803
        %v1805 = vpop.f32.mrb[0].mxu0
        %1806 = vmatprep.mubr.f32.mxu0 0.0
        %1807 = vmatmul.mubr.f32.gmra.mrb[0].mxu0 %v833
        %v1808 = vpop.f32.mrb[0].mxu0
        %v1809 = vadd.f32 %v622, %v1808
        %v1810 = vpop.f32.mrb[0].mxu0
        %1811 = vmatprep.mubr.f32.mxu0 0.0
        %1812 = vmatmul.mubr.f32.gmra.mrb[0].mxu0 %v836
        %v1813 = vpop.f32.mrb[0].mxu0
        %v1814 = vadd.f32 %v622, %v1813
        %v1815 = vpop.f32.mrb[0].mxu0
        %1816 = vmatprep.mubr.f32.mxu0 0.0
        %1817 = vmatmul.mubr.f32.gmra.mrb[0].mxu0 %v839
        %v1818 = vpop.f32.mrb[0].mxu0
        %v1819 = vadd.f32 %v622, %v1818
        %v1820 = vpop.f32.mrb[0].mxu0
        %1821 = vmatprep.mubr.f32.mxu0 0.0
        %1822 = vmatmul.mubr.f32.gmra.mrb[0].mxu0 %v842
        %v1823 = vpop.f32.mrb[0].mxu0
        %v1824 = vadd.f32 %v622, %v1823
        %v1825 = vpop.f32.mrb[0].mxu0
        %1826 = vmatprep.mubr.f32.mxu0 0.0
        %1827 = vmatmul.mubr.f32.gmra.mrb[0].mxu0 %v845
        %v1828 = vpop.f32.mrb[0].mxu0
        %v1829 = vadd.f32 %v622, %v1828
        %v1830 = vpop.f32.mrb[0].mxu0
        %1831 = vmatprep.mubr.f32.mxu0 0.0
        %1832 = vmatmul.mubr.f32.gmra.mrb[0].mxu0 %v848
        %v1833 = vpop.f32.mrb[0].mxu0
        %v1834 = vadd.f32 %v622, %v1833
        %v1835 = vpop.f32.mrb[0].mxu0
        %1836 = vmatprep.mubr.f32.mxu0 0.0
        %1837 = vmatmul.mubr.f32.gmra.mrb[0].mxu0 %v851
        %v1838 = vpop.f32.mrb[0].mxu0
        %v1839 = vadd.f32 %v622, %v1838
        %v1840 = vpop.f32.mrb[0].mxu0
        %1841 = vmatprep.mubr.f32.mxu0 0.0
        %1842 = vmatmul.mubr.f32.gmra.mrb[0].mxu0 %v854
        %v1843 = vpop.f32.mrb[0].mxu0
        %v1844 = vadd.f32 %v622, %v1843
        %v1845 = vpop.f32.mrb[0].mxu0
        %1846 = vmatprep.mubr.f32.mxu0 0.0
        %1847 = vmatmul.mubr.f32.gmra.mrb[0].mxu0 %v857
        %v1848 = vpop.f32.mrb[0].mxu0
        %v1849 = vadd.f32 %v622, %v1848
        %v1850 = vpop.f32.mrb[0].mxu0
        %1851 = vmatprep.mubr.f32.mxu0 0.0
        %1852 = vmatmul.mubr.f32.gmra.mrb[0].mxu0 %v860
        %v1853 = vpop.f32.mrb[0].mxu0
        %v1854 = vadd.f32 %v622, %v1853
        %v1855 = vpop.f32.mrb[0].mxu0
        %1856 = vmatprep.mubr.f32.mxu0 0.0
        %1857 = vmatmul.mubr.f32.gmra.mrb[0].mxu0 %v863
        %v1858 = vpop.f32.mrb[0].mxu0
        %v1859 = vadd.f32 %v622, %v1858
        %v1860 = vpop.f32.mrb[0].mxu0
        %1861 = vmatprep.mubr.f32.mxu0 0.0
        %1862 = vmatmul.mubr.f32.gmra.mrb[0].mxu0 %v866
        %v1863 = vpop.f32.mrb[0].mxu0
        %v1864 = vadd.f32 %v622, %v1863
        %v1865 = vpop.f32.mrb[0].mxu0
        %1866 = vmatprep.mubr.f32.mxu0 0.0
        %1867 = vmatmul.mubr.f32.gmra.mrb[0].mxu0 %v869
        %v1868 = vpop.f32.mrb[0].mxu0
        %v1869 = vadd.f32 %v622, %v1868
        %v1870 = vpop.f32.mrb[0].mxu0
        %1871 = vmatprep.mubr.f32.mxu0 0.0
        %1872 = vmatmul.mubr.f32.gmra.mrb[0].mxu0 %v872
        %v1873 = vpop.f32.mrb[0].mxu0
        %v1874 = vadd.f32 %v622, %v1873
        %v1875 = vpop.f32.mrb[0].mxu0
        %1876 = vmatprep.mubr.f32.mxu0 0.0
        %1877 = vmatmul.mubr.f32.gmra.mrb[0].mxu0 %v875
        %v1878 = vpop.f32.mrb[0].mxu0
        %v1879 = vadd.f32 %v622, %v1878
        %v1880 = vpop.f32.mrb[0].mxu0
        %1881 = vmatprep.mubr.f32.mxu0 0.0
        %1882 = vmatmul.mubr.f32.gmra.mrb[0].mxu0 %v878
        %v1883 = vpop.f32.mrb[0].mxu0
        %v1884 = vadd.f32 %v622, %v1883
        %v1885 = vpop.f32.mrb[0].mxu0
        %1886 = vmatprep.mubr.f32.mxu0 0.0
        %1887 = vmatmul.mubr.f32.gmra.mrb[0].mxu0 %v881
        %v1888 = vpop.f32.mrb[0].mxu0
        %v1889 = vadd.f32 %v622, %v1888
        %v1890 = vpop.f32.mrb[0].mxu0
        %1891 = vmatprep.mubr.f32.mxu0 0.0
        %1892 = vmatmul.mubr.f32.gmra.mrb[0].mxu0 %v884
        %v1893 = vpop.f32.mrb[0].mxu0
        %v1894 = vadd.f32 %v622, %v1893
        %v1895 = vpop.f32.mrb[0].mxu0
        %1896 = vmatprep.mubr.f32.mxu0 0.0
        %1897 = vmatmul.mubr.f32.gmra.mrb[0].mxu0 %v887
        %v1898 = vpop.f32.mrb[0].mxu0
        %v1899 = vadd.f32 %v622, %v1898
        %v1900 = vpop.f32.mrb[0].mxu0
        %1901 = vmatprep.mubr.f32.mxu0 0.0
        %1902 = vmatmul.mubr.f32.gmra.mrb[0].mxu0 %v890
        %v1903 = vpop.f32.mrb[0].mxu0
        %v1904 = vadd.f32 %v622, %v1903
        %v1905 = vpop.f32.mrb[0].mxu0
        %1906 = vmatprep.mubr.f32.mxu0 0.0
        %1907 = vmatmul.mubr.f32.gmra.mrb[0].mxu0 %v893
        %v1908 = vpop.f32.mrb[0].mxu0
        %v1909 = vadd.f32 %v622, %v1908
        %v1910 = vpop.f32.mrb[0].mxu0
        %1911 = vmatprep.mubr.f32.mxu0 0.0
        %1912 = vmatmul.mubr.f32.gmra.mrb[0].mxu0 %v896
        %v1913 = vpop.f32.mrb[0].mxu0
        %v1914 = vadd.f32 %v622, %v1913
        %v1915 = vpop.f32.mrb[0].mxu0
        %1916 = vmatprep.mubr.f32.mxu0 0.0
        %1917 = vmatmul.mubr.f32.gmra.mrb[0].mxu0 %v899
        %v1918 = vpop.f32.mrb[0].mxu0
        %v1919 = vadd.f32 %v622, %v1918
        %v1920 = vpop.f32.mrb[0].mxu0
        %1921 = vmatprep.mubr.f32.mxu0 0.0
        %1922 = vmatmul.mubr.f32.gmra.mrb[0].mxu0 %v902
        %v1923 = vpop.f32.mrb[0].mxu0
        %v1924 = vadd.f32 %v622, %v1923
        %v1925 = vpop.f32.mrb[0].mxu0
        %1926 = vmatprep.mubr.f32.mxu0 0.0
        %1927 = vmatmul.mubr.f32.gmra.mrb[0].mxu0 %v905
        %v1928 = vpop.f32.mrb[0].mxu0
        %v1929 = vadd.f32 %v622, %v1928
        %v1930 = vpop.f32.mrb[0].mxu0
        %1931 = vmatprep.mubr.f32.mxu0 0.0
        %1932 = vmatmul.mubr.f32.gmra.mrb[0].mxu0 %v908
        %v1933 = vpop.f32.mrb[0].mxu0
        %v1934 = vadd.f32 %v622, %v1933
        %v1935 = vpop.f32.mrb[0].mxu0
        %1936 = vmatprep.mubr.f32.mxu0 0.0
        %1937 = vmatmul.mubr.f32.gmra.mrb[0].mxu0 %v911
        %v1938 = vpop.f32.mrb[0].mxu0
        %v1939 = vadd.f32 %v622, %v1938
        %v1940 = vpop.f32.mrb[0].mxu0
        %1941 = vmatprep.mubr.f32.mxu0 0.0
        %1942 = vmatmul.mubr.f32.gmra.mrb[0].mxu0 %v914
        %v1943 = vpop.f32.mrb[0].mxu0
        %v1944 = vadd.f32 %v622, %v1943
        %v1945 = vpop.f32.mrb[0].mxu0
        %1946 = vmatprep.mubr.f32.mxu0 0.0
        %1947 = vmatmul.mubr.f32.gmra.mrb[0].mxu0 %v917
        %v1948 = vpop.f32.mrb[0].mxu0
        %v1949 = vadd.f32 %v622, %v1948
        %v1950 = vpop.f32.mrb[0].mxu0
        %1951 = vmatprep.mubr.f32.mxu0 0.0
        %1952 = vmatmul.mubr.f32.gmra.mrb[0].mxu0 %v920
        %v1953 = vpop.f32.mrb[0].mxu0
        %v1954 = vadd.f32 %v622, %v1953
        %v1955 = vpop.f32.mrb[0].mxu0
        %1956 = vmatprep.mubr.f32.mxu0 0.0
        %1957 = vmatmul.mubr.f32.gmra.mrb[0].mxu0 %v923
        %v1958 = vpop.f32.mrb[0].mxu0
        %v1959 = vadd.f32 %v622, %v1958
        %v1960 = vpop.f32.mrb[0].mxu0
        %1961 = vmatprep.mubr.f32.mxu0 0.0
        %1962 = vmatmul.mubr.f32.gmra.mrb[0].mxu0 %v926
        %v1963 = vpop.f32.mrb[0].mxu0
        %v1964 = vadd.f32 %v622, %v1963
        %v1965 = vpop.f32.mrb[0].mxu0
        %1966 = vmatprep.mubr.f32.mxu0 0.0
        %1967 = vmatmul.mubr.f32.gmra.mrb[0].mxu0 %v929
        %v1968 = vpop.f32.mrb[0].mxu0
        %v1969 = vadd.f32 %v622, %v1968
        %v1970 = vpop.f32.mrb[0].mxu0
        %1971 = vmatprep.mubr.f32.mxu0 0.0
        %1972 = vmatmul.mubr.f32.gmra.mrb[0].mxu0 %v932
        %v1973 = vpop.f32.mrb[0].mxu0
        %v1974 = vadd.f32 %v622, %v1973
        %v1975 = vpop.f32.mrb[0].mxu0
        %1976 = vmatprep.mubr.f32.mxu0 0.0
        %1977 = vmatmul.mubr.f32.gmra.mrb[0].mxu0 %v935
        %v1978 = vpop.f32.mrb[0].mxu0
        %v1979 = vadd.f32 %v622, %v1978
        %v1980 = vpop.f32.mrb[0].mxu0
        %1981 = vmatprep.mubr.f32.mxu0 0.0
        %1982 = vmatmul.mubr.f32.gmra.mrb[0].mxu0 %v938
        %v1983 = vpop.f32.mrb[0].mxu0
        %v1984 = vadd.f32 %v622, %v1983
        %v1985 = vpop.f32.mrb[0].mxu0
        %1986 = vmatprep.mubr.f32.mxu0 0.0
        %1987 = vmatmul.mubr.f32.gmra.mrb[0].mxu0 %v941
        %v1988 = vpop.f32.mrb[0].mxu0
        %v1989 = vadd.f32 %v622, %v1988
        %v1990 = vpop.f32.mrb[0].mxu0
        %1991 = vmatprep.mubr.f32.mxu0 0.0
        %1992 = vmatmul.mubr.f32.gmra.mrb[0].mxu0 %v944
        %v1993 = vpop.f32.mrb[0].mxu0
        %v1994 = vadd.f32 %v622, %v1993
        %v1995 = vpop.f32.mrb[0].mxu0
        %1996 = vmatprep.mubr.f32.mxu0 0.0
        %1997 = vmatmul.mubr.f32.gmra.mrb[0].mxu0 %v947
        %v1998 = vpop.f32.mrb[0].mxu0
        %v1999 = vadd.f32 %v622, %v1998
        %v2000 = vpop.f32.mrb[0].mxu0
        %2001 = vmatprep.mubr.f32.mxu0 0.0
        %2002 = vmatmul.mubr.f32.gmra.mrb[0].mxu0 %v950
        %v2003 = vpop.f32.mrb[0].mxu0
        %v2004 = vadd.f32 %v622, %v2003
        %v2005 = vpop.f32.mrb[0].mxu0
        %2006 = vmatprep.mubr.f32.mxu0 0.0
        %2007 = vmatmul.mubr.f32.gmra.mrb[0].mxu0 %v953
        %v2008 = vpop.f32.mrb[0].mxu0
        %v2009 = vadd.f32 %v622, %v2008
        %v2010 = vpop.f32.mrb[0].mxu0
        %2011 = vmatprep.mubr.f32.mxu0 0.0
        %2012 = vmatmul.mubr.f32.gmra.mrb[0].mxu0 %v956
        %v2013 = vpop.f32.mrb[0].mxu0
        %v2014 = vadd.f32 %v622, %v2013
        %v2015 = vpop.f32.mrb[0].mxu0
        %2016 = vmatprep.mubr.f32.mxu0 0.0
        %2017 = vmatmul.mubr.f32.gmra.mrb[0].mxu0 %v959
        %v2018 = vpop.f32.mrb[0].mxu0
        %v2019 = vadd.f32 %v622, %v2018
        %v2020 = vpop.f32.mrb[0].mxu0
        %2021 = vmatprep.mubr.f32.mxu0 0.0
        %2022 = vmatmul.mubr.f32.gmra.mrb[0].mxu0 %v962
        %v2023 = vpop.f32.mrb[0].mxu0
        %v2024 = vadd.f32 %v622, %v2023
        %v2025 = vpop.f32.mrb[0].mxu0
        %2026 = vmatprep.mubr.f32.mxu0 0.0
        %2027 = vmatmul.mubr.f32.gmra.mrb[0].mxu0 %v965
        %v2028 = vpop.f32.mrb[0].mxu0
        %v2029 = vadd.f32 %v622, %v2028
        %v2030 = vpop.f32.mrb[0].mxu0
        %2031 = vmatprep.mubr.f32.mxu0 0.0
        %2032 = vmatmul.mubr.f32.gmra.mrb[0].mxu0 %v968
        %v2033 = vpop.f32.mrb[0].mxu0
        %v2034 = vadd.f32 %v622, %v2033
        %v2035 = vpop.f32.mrb[0].mxu0
        %2036 = vmatprep.mubr.f32.mxu0 0.0
        %2037 = vmatmul.mubr.f32.gmra.mrb[0].mxu0 %v971
        %v2038 = vpop.f32.mrb[0].mxu0
        %v2039 = vadd.f32 %v622, %v2038
        %v2040 = vpop.f32.mrb[0].mxu0
        %2041 = vmatprep.mubr.f32.mxu0 0.0
        %2042 = vmatmul.mubr.f32.gmra.mrb[0].mxu0 %v974
        %v2043 = vpop.f32.mrb[0].mxu0
        %v2044 = vadd.f32 %v622, %v2043
        %v2045 = vpop.f32.mrb[0].mxu0
        %2046 = vmatprep.mubr.f32.mxu0 0.0
        %2047 = vmatmul.mubr.f32.gmra.mrb[0].mxu0 %v977
        %v2048 = vpop.f32.mrb[0].mxu0
        %v2049 = vadd.f32 %v622, %v2048
        %v2050 = vpop.f32.mrb[0].mxu0
        %2051 = vmatprep.mubr.f32.mxu0 0.0
        %2052 = vmatmul.mubr.f32.gmra.mrb[0].mxu0 %v980
        %v2053 = vpop.f32.mrb[0].mxu0
        %v2054 = vadd.f32 %v622, %v2053
        %v2055 = vpop.f32.mrb[0].mxu0
        %2056 = vmatprep.mubr.f32.mxu0 0.0
        %2057 = vmatmul.mubr.f32.gmra.mrb[0].mxu0 %v983
        %v2058 = vpop.f32.mrb[0].mxu0
        %v2059 = vadd.f32 %v622, %v2058
        %v2060 = vpop.f32.mrb[0].mxu0
        %2061 = vmatprep.mubr.f32.mxu0 0.0
        %2062 = vmatmul.mubr.f32.gmra.mrb[0].mxu0 %v986
        %v2063 = vpop.f32.mrb[0].mxu0
        %v2064 = vadd.f32 %v622, %v2063
        %v2065 = vpop.f32.mrb[0].mxu0
        %2066 = vmatprep.mubr.f32.mxu0 0.0
        %2067 = vmatmul.mubr.f32.gmra.mrb[0].mxu0 %v989
        %v2068 = vpop.f32.mrb[0].mxu0
        %v2069 = vadd.f32 %v622, %v2068
        %v2070 = vpop.f32.mrb[0].mxu0
        %2071 = vmatprep.mubr.f32.mxu0 0.0
        %2072 = vmatmul.mubr.f32.gmra.mrb[0].mxu0 %v992
        %v2073 = vpop.f32.mrb[0].mxu0
        %v2074 = vadd.f32 %v622, %v2073
        %v2075 = vpop.f32.mrb[0].mxu0
        %2076 = vmatprep.mubr.f32.mxu0 0.0
        %2077 = vmatmul.mubr.f32.gmra.mrb[0].mxu0 %v995
        %v2078 = vpop.f32.mrb[0].mxu0
        %v2079 = vadd.f32 %v622, %v2078
        %v2080 = vpop.f32.mrb[0].mxu0
        %2081 = vmatprep.mubr.f32.mxu0 0.0
        %2082 = vmatmul.mubr.f32.gmra.mrb[0].mxu0 %v998
        %v2083 = vpop.f32.mrb[0].mxu0
        %v2084 = vadd.f32 %v622, %v2083
        %v2085 = vpop.f32.mrb[0].mxu0
        %2086 = vmatprep.mubr.f32.mxu0 0.0
        %2087 = vmatmul.mubr.f32.gmra.mrb[0].mxu0 %v1001
        %v2088 = vpop.f32.mrb[0].mxu0
        %v2089 = vadd.f32 %v622, %v2088
        %v2090 = vpop.f32.mrb[0].mxu0
        %2091 = vmatprep.mubr.f32.mxu0 0.0
        %2092 = vmatmul.mubr.f32.gmra.mrb[0].mxu0 %v1004
        %v2093 = vpop.f32.mrb[0].mxu0
        %v2094 = vadd.f32 %v622, %v2093
        %v2095 = vpop.f32.mrb[0].mxu0
        %2096 = vmatprep.mubr.f32.mxu0 0.0
        %2097 = vmatmul.mubr.f32.gmra.mrb[0].mxu0 %v1007
        %v2098 = vpop.f32.mrb[0].mxu0
        %v2099 = vadd.f32 %v622, %v2098
        %v2100 = vpop.f32.mrb[0].mxu0
        %2101 = vmatprep.mubr.f32.mxu0 0.0
        %2102 = vmatmul.mubr.f32.gmra.mrb[0].mxu0 %v1010
        %v2103 = vpop.f32.mrb[0].mxu0
        %v2104 = vadd.f32 %v622, %v2103
        %v2105 = vpop.f32.mrb[0].mxu0
        %2106 = vmatprep.mubr.f32.mxu0 0.0
        %2107 = vmatmul.mubr.f32.gmra.mrb[0].mxu0 %v1013
        %v2108 = vpop.f32.mrb[0].mxu0
        %v2109 = vadd.f32 %v622, %v2108
        %v2110 = vpop.f32.mrb[0].mxu0
        %2111 = vmatprep.mubr.f32.mxu0 0.0
        %2112 = vmatmul.mubr.f32.gmra.mrb[0].mxu0 %v1016
        %v2113 = vpop.f32.mrb[0].mxu0
        %v2114 = vadd.f32 %v622, %v2113
        %v2115 = vpop.f32.mrb[0].mxu0
        %2116 = vmatprep.mubr.f32.mxu0 0.0
        %2117 = vmatmul.mubr.f32.gmra.mrb[0].mxu0 %v1019
        %v2118 = vpop.f32.mrb[0].mxu0
        %v2119 = vadd.f32 %v622, %v2118
        %v2120 = vpop.f32.mrb[0].mxu0
        %2121 = vmatprep.mubr.f32.mxu0 0.0
        %2122 = vmatmul.mubr.f32.gmra.mrb[0].mxu0 %v1022
        %v2123 = vpop.f32.mrb[0].mxu0
        %v2124 = vadd.f32 %v622, %v2123
        %v2125 = vpop.f32.mrb[0].mxu0
        %2126 = vmatprep.mubr.f32.mxu0 0.0
        %2127 = vmatmul.mubr.f32.gmra.mrb[0].mxu0 %v1025
        %v2128 = vpop.f32.mrb[0].mxu0
        %v2129 = vadd.f32 %v622, %v2128
        %v2130 = vpop.f32.mrb[0].mxu0
        %2131 = vmatprep.mubr.f32.mxu0 0.0
        %2132 = vmatmul.mubr.f32.gmra.mrb[0].mxu0 %v1028
        %v2133 = vpop.f32.mrb[0].mxu0
        %v2134 = vadd.f32 %v622, %v2133
        %v2135 = vpop.f32.mrb[0].mxu0
        %2136 = vmatprep.mubr.f32.mxu0 0.0
        %2137 = vmatmul.mubr.f32.gmra.mrb[0].mxu0 %v1031
        %v2138 = vpop.f32.mrb[0].mxu0
        %v2139 = vadd.f32 %v622, %v2138
        %v2140 = vpop.f32.mrb[0].mxu0
        %2141 = vmatprep.mubr.f32.mxu0 0.0
        %2142 = vmatmul.mubr.f32.gmra.mrb[0].mxu0 %v1034
        %v2143 = vpop.f32.mrb[0].mxu0
        %v2144 = vadd.f32 %v622, %v2143
        %v2145 = vpop.f32.mrb[0].mxu0
        %2146 = vmatprep.mubr.f32.mxu0 0.0
        %2147 = vmatmul.mubr.f32.gmra.mrb[0].mxu0 %v1037
        %v2148 = vpop.f32.mrb[0].mxu0
        %v2149 = vadd.f32 %v622, %v2148
        %v2150 = vpop.f32.mrb[0].mxu0
        %2151 = vmatprep.mubr.f32.mxu0 0.0
        %2152 = vmatmul.mubr.f32.gmra.mrb[0].mxu0 %v1040
        %v2153 = vpop.f32.mrb[0].mxu0
        %v2154 = vadd.f32 %v622, %v2153
        %v2155 = vpop.f32.mrb[0].mxu0
        %2156 = vmatprep.mubr.f32.mxu0 0.0
        %2157 = vmatmul.mubr.f32.gmra.mrb[0].mxu0 %v1043
        %v2158 = vpop.f32.mrb[0].mxu0
        %v2159 = vadd.f32 %v622, %v2158
        %v2160 = vpop.f32.mrb[0].mxu0
        %2161 = vmatprep.mubr.f32.mxu0 0.0
        %2162 = vmatmul.mubr.f32.gmra.mrb[0].mxu0 %v1046
        %v2163 = vpop.f32.mrb[0].mxu0
        %v2164 = vadd.f32 %v622, %v2163
        %v2165 = vpop.f32.mrb[0].mxu0
        %2166 = vmatprep.mubr.f32.mxu0 0.0
        %2167 = vmatmul.mubr.f32.gmra.mrb[0].mxu0 %v1049
        %v2168 = vpop.f32.mrb[0].mxu0
        %v2169 = vadd.f32 %v622, %v2168
        %v2170 = vpop.f32.mrb[0].mxu0
        %2171 = vmatprep.mubr.f32.mxu0 0.0
        %2172 = vmatmul.mubr.f32.gmra.mrb[0].mxu0 %v1052
        %v2173 = vpop.f32.mrb[0].mxu0
        %v2174 = vadd.f32 %v622, %v2173
        %v2175 = vpop.f32.mrb[0].mxu0
        %2176 = vmatprep.mubr.f32.mxu0 0.0
        %2177 = vmatmul.mubr.f32.gmra.mrb[0].mxu0 %v1055
        %v2178 = vpop.f32.mrb[0].mxu0
        %v2179 = vadd.f32 %v622, %v2178
        %v2180 = vpop.f32.mrb[0].mxu0
        %2181 = vmatprep.mubr.f32.mxu0 0.0
        %2182 = vmatmul.mubr.f32.gmra.mrb[0].mxu0 %v1058
        %v2183 = vpop.f32.mrb[0].mxu0
        %v2184 = vadd.f32 %v622, %v2183
        %v2185 = vpop.f32.mrb[0].mxu0
        %2186 = vmatprep.mubr.f32.mxu0 0.0
        %2187 = vmatmul.mubr.f32.gmra.mrb[0].mxu0 %v1061
        %v2188 = vpop.f32.mrb[0].mxu0
        %v2189 = vadd.f32 %v622, %v2188
        %v2190 = vpop.f32.mrb[0].mxu0
        %2191 = vmatprep.mubr.f32.mxu0 0.0
        %2192 = vmatmul.mubr.f32.gmra.mrb[0].mxu0 %v1064
        %v2193 = vpop.f32.mrb[0].mxu0
        %v2194 = vadd.f32 %v622, %v2193
        %v2195 = vpop.f32.mrb[0].mxu0
        %2196 = vmatprep.mubr.f32.mxu0 0.0
        %2197 = vmatmul.mubr.f32.gmra.mrb[0].mxu0 %v1067
        %v2198 = vpop.f32.mrb[0].mxu0
        %v2199 = vadd.f32 %v622, %v2198
        %v2200 = vpop.f32.mrb[0].mxu0
        %2201 = vmatprep.mubr.f32.mxu0 0.0
        %2202 = vmatmul.mubr.f32.gmra.mrb[0].mxu0 %v1070
        %v2203 = vpop.f32.mrb[0].mxu0
        %v2204 = vadd.f32 %v622, %v2203
        %v2205 = vpop.f32.mrb[0].mxu0
        %2206 = vmatprep.mubr.f32.mxu0 0.0
        %2207 = vmatmul.mubr.f32.gmra.mrb[0].mxu0 %v1073
        %v2208 = vpop.f32.mrb[0].mxu0
        %v2209 = vadd.f32 %v622, %v2208
        %v2210 = vpop.f32.mrb[0].mxu0
        %2211 = vmatprep.mubr.f32.mxu0 0.0
        %2212 = vmatmul.mubr.f32.gmra.mrb[0].mxu0 %v1076
        %v2213 = vpop.f32.mrb[0].mxu0
        %v2214 = vadd.f32 %v622, %v2213
        %v2215 = vpop.f32.mrb[0].mxu0
        %2216 = vmatprep.mubr.f32.mxu0 0.0
        %2217 = vmatmul.mubr.f32.gmra.mrb[0].mxu0 %v1079
        %v2218 = vpop.f32.mrb[0].mxu0
        %v2219 = vadd.f32 %v622, %v2218
        %v2220 = vpop.f32.mrb[0].mxu0
        %2221 = vmatprep.mubr.f32.mxu0 0.0
        %2222 = vmatmul.mubr.f32.gmra.mrb[0].mxu0 %v1082
        %v2223 = vpop.f32.mrb[0].mxu0
        %v2224 = vadd.f32 %v622, %v2223
        %v2225 = vpop.f32.mrb[0].mxu0
        %2226 = vmatprep.mubr.f32.mxu0 0.0
        %2227 = vmatmul.mubr.f32.gmra.mrb[0].mxu0 %v1085
        %v2228 = vpop.f32.mrb[0].mxu0
        %v2229 = vadd.f32 %v622, %v2228
        %v2230 = vpop.f32.mrb[0].mxu0
        %2231 = vmatprep.mubr.f32.mxu0 0.0
        %2232 = vmatmul.mubr.f32.gmra.mrb[0].mxu0 %v1088
        %v2233 = vpop.f32.mrb[0].mxu0
        %v2234 = vadd.f32 %v622, %v2233
        %v2235 = vpop.f32.mrb[0].mxu0
        %2236 = vmatprep.mubr.f32.mxu0 0.0
        %2237 = vmatmul.mubr.f32.gmra.mrb[0].mxu0 %v1091
        %v2238 = vpop.f32.mrb[0].mxu0
        %v2239 = vadd.f32 %v622, %v2238
        %v2240 = vpop.f32.mrb[0].mxu0
        %2241 = vmatprep.mubr.f32.mxu0 0.0
        %2242 = vmatmul.mubr.f32.gmra.mrb[0].mxu0 %v1094
        %v2243 = vpop.f32.mrb[0].mxu0
        %v2244 = vadd.f32 %v622, %v2243
        %v2245 = vpop.f32.mrb[0].mxu0
        %2246 = vmatprep.mubr.f32.mxu0 0.0
        %2247 = vmatmul.mubr.f32.gmra.mrb[0].mxu0 %v1097
        %v2248 = vpop.f32.mrb[0].mxu0
        %v2249 = vadd.f32 %v622, %v2248
        %v2250 = vpop.f32.mrb[0].mxu0
        %2251 = vmatprep.mubr.f32.mxu0 0.0
        %2252 = vmatmul.mubr.f32.gmra.mrb[0].mxu0 %v1100
        %v2253 = vpop.f32.mrb[0].mxu0
        %v2254 = vadd.f32 %v622, %v2253
        %v2255 = vpop.f32.mrb[0].mxu0
        %2256 = vmatprep.mubr.f32.mxu0 0.0
        %2257 = vmatmul.mubr.f32.gmra.mrb[0].mxu0 %v1103
        %v2258 = vpop.f32.mrb[0].mxu0
        %v2259 = vadd.f32 %v622, %v2258
        %v2260 = vpop.f32.mrb[0].mxu0
        %2261 = vmatprep.mubr.f32.mxu0 0.0
        %2262 = vmatmul.mubr.f32.gmra.mrb[0].mxu0 %v1106
        %v2263 = vpop.f32.mrb[0].mxu0
        %v2264 = vadd.f32 %v622, %v2263
        %v2265 = vpop.f32.mrb[0].mxu0
        %2266 = vmatprep.mubr.f32.mxu0 0.0
        %2267 = vmatmul.mubr.f32.gmra.mrb[0].mxu0 %v1109
        %v2268 = vpop.f32.mrb[0].mxu0
        %v2269 = vadd.f32 %v622, %v2268
        %v2270 = vpop.f32.mrb[0].mxu0
        %2271 = vmatprep.mubr.f32.mxu0 0.0
        %2272 = vmatmul.mubr.f32.gmra.mrb[0].mxu0 %v1112
        %v2273 = vpop.f32.mrb[0].mxu0
        %v2274 = vadd.f32 %v622, %v2273
        %v2275 = vpop.f32.mrb[0].mxu0
        %2276 = vmatprep.mubr.f32.mxu0 0.0
        %2277 = vmatmul.mubr.f32.gmra.mrb[0].mxu0 %v1115
        %v2278 = vpop.f32.mrb[0].mxu0
        %v2279 = vadd.f32 %v622, %v2278
        %v2280 = vpop.f32.mrb[0].mxu0
        %2281 = vmatprep.mubr.f32.mxu0 0.0
        %2282 = vmatmul.mubr.f32.gmra.mrb[0].mxu0 %v1118
        %v2283 = vpop.f32.mrb[0].mxu0
        %v2284 = vadd.f32 %v622, %v2283
        %v2285 = vpop.f32.mrb[0].mxu0
        %2286 = vmatprep.mubr.f32.mxu0 0.0
        %2287 = vmatmul.mubr.f32.gmra.mrb[0].mxu0 %v1121
        %v2288 = vpop.f32.mrb[0].mxu0
        %v2289 = vadd.f32 %v622, %v2288
        %v2290 = vpop.f32.mrb[0].mxu0
        %2291 = vmatprep.mubr.f32.mxu0 0.0
        %2292 = vmatmul.mubr.f32.gmra.mrb[0].mxu0 %v1124
        %v2293 = vpop.f32.mrb[0].mxu0
        %v2294 = vadd.f32 %v622, %v2293
        %v2295 = vpop.f32.mrb[0].mxu0
        %2296 = vmatprep.mubr.f32.mxu0 0.0
        %2297 = vmatmul.mubr.f32.gmra.mrb[0].mxu0 %v1127
        %v2298 = vpop.f32.mrb[0].mxu0
        %v2299 = vadd.f32 %v622, %v2298
        %v2300 = vpop.f32.mrb[0].mxu0
        %2301 = vmatprep.mubr.f32.mxu0 0.0
        %2302 = vmatmul.mubr.f32.gmra.mrb[0].mxu0 %v1130
        %v2303 = vpop.f32.mrb[0].mxu0
        %v2304 = vadd.f32 %v622, %v2303
        %v2305 = vpop.f32.mrb[0].mxu0
        %2306 = vmatprep.mubr.f32.mxu0 0.0
        %2307 = vmatmul.mubr.f32.gmra.mrb[0].mxu0 %v1133
        %v2308 = vpop.f32.mrb[0].mxu0
        %v2309 = vadd.f32 %v622, %v2308
        %v2310 = vpop.f32.mrb[0].mxu0
        %2311 = vmatprep.mubr.f32.mxu0 0.0
        %2312 = vmatmul.mubr.f32.gmra.mrb[0].mxu0 %v1136
        %v2313 = vpop.f32.mrb[0].mxu0
        %v2314 = vadd.f32 %v622, %v2313
        %v2315 = vpop.f32.mrb[0].mxu0
        %2316 = vmatprep.mubr.f32.mxu0 0.0
        %2317 = vmatmul.mubr.f32.gmra.mrb[0].mxu0 %v1139
        %v2318 = vpop.f32.mrb[0].mxu0
        %v2319 = vadd.f32 %v622, %v2318
        %v2320 = vpop.f32.mrb[0].mxu0
        %2321 = vmatprep.mubr.f32.mxu0 0.0
        %2322 = vmatmul.mubr.f32.gmra.mrb[0].mxu0 %v1142
        %v2323 = vpop.f32.mrb[0].mxu0
        %v2324 = vadd.f32 %v622, %v2323
        %v2325 = vpop.f32.mrb[0].mxu0
        %2326 = vmatprep.mubr.f32.mxu0 0.0
        %2327 = vmatmul.mubr.f32.gmra.mrb[0].mxu0 %v1145
        %v2328 = vpop.f32.mrb[0].mxu0
        %v2329 = vadd.f32 %v622, %v2328
        %v2330 = vpop.f32.mrb[0].mxu0
        %2331 = vmatprep.mubr.f32.mxu0 0.0
        %2332 = vmatmul.mubr.f32.gmra.mrb[0].mxu0 %v1148
        %v2333 = vpop.f32.mrb[0].mxu0
        %v2334 = vadd.f32 %v622, %v2333
        %v2335 = vpop.f32.mrb[0].mxu0
        %2336 = vmatprep.mubr.f32.mxu0 0.0
        %2337 = vmatmul.mubr.f32.gmra.mrb[0].mxu0 %v1151
        %v2338 = vpop.f32.mrb[0].mxu0
        %v2339 = vadd.f32 %v622, %v2338
        %v2340 = vpop.f32.mrb[0].mxu0
        %2341 = vmatprep.mubr.f32.mxu0 0.0
        %2342 = vmatmul.mubr.f32.gmra.mrb[0].mxu0 %v1154
        %v2343 = vpop.f32.mrb[0].mxu0
        %v2344 = vadd.f32 %v622, %v2343
        %v2345 = vpop.f32.mrb[0].mxu0
        %2346 = vmatprep.mubr.f32.mxu0 0.0
        %2347 = vmatmul.mubr.f32.gmra.mrb[0].mxu0 %v1157
        %v2348 = vpop.f32.mrb[0].mxu0
        %v2349 = vadd.f32 %v622, %v2348
        %v2350 = vpop.f32.mrb[0].mxu0
        %2351 = vmatprep.mubr.f32.mxu0 0.0
        %2352 = vmatmul.mubr.f32.gmra.mrb[0].mxu0 %v1160
        %v2353 = vpop.f32.mrb[0].mxu0
        %v2354 = vadd.f32 %v622, %v2353
        %v2355 = vpop.f32.mrb[0].mxu0
        %2356 = vmatprep.mubr.f32.mxu0 0.0
        %2357 = vmatmul.mubr.f32.gmra.mrb[0].mxu0 %v1163
        %v2358 = vpop.f32.mrb[0].mxu0
        %v2359 = vadd.f32 %v622, %v2358
        %v2360 = vpop.f32.mrb[0].mxu0
        %2361 = vmatprep.mubr.f32.mxu0 0.0
        %2362 = vmatmul.mubr.f32.gmra.mrb[0].mxu0 %v1166
        %v2363 = vpop.f32.mrb[0].mxu0
        %v2364 = vadd.f32 %v622, %v2363
        %v2365 = vpop.f32.mrb[0].mxu0
        %2366 = vmatprep.mubr.f32.mxu0 0.0
        %2367 = vmatmul.mubr.f32.gmra.mrb[0].mxu0 %v1169
        %v2368 = vpop.f32.mrb[0].mxu0
        %v2369 = vadd.f32 %v622, %v2368
        %v2370 = vpop.f32.mrb[0].mxu0
        %2371 = vmatprep.mubr.f32.mxu0 0.0
        %2372 = vmatmul.mubr.f32.gmra.mrb[0].mxu0 %v1172
        %v2373 = vpop.f32.mrb[0].mxu0
        %v2374 = vadd.f32 %v622, %v2373
        %v2375 = vpop.f32.mrb[0].mxu0
        %2376 = vmatprep.mubr.f32.mxu0 0.0
        %2377 = vmatmul.mubr.f32.gmra.mrb[0].mxu0 %v1175
        %v2378 = vpop.f32.mrb[0].mxu0
        %v2379 = vadd.f32 %v622, %v2378
        %v2380 = vpop.f32.mrb[0].mxu0
        %2381 = vmatprep.mubr.f32.mxu0 0.0
        %2382 = vmatmul.mubr.f32.gmra.mrb[0].mxu0 %v1178
        %v2383 = vpop.f32.mrb[0].mxu0
        %v2384 = vadd.f32 %v622, %v2383
        %v2385 = vpop.f32.mrb[0].mxu0
        %2386 = vmatprep.mubr.f32.mxu0 0.0
        %2387 = vmatmul.mubr.f32.gmra.mrb[0].mxu0 %v1181
        %v2388 = vpop.f32.mrb[0].mxu0
        %v2389 = vadd.f32 %v622, %v2388
        %v2390 = vpop.f32.mrb[0].mxu0
        %2391 = vmatprep.mubr.f32.mxu0 0.0
        %2392 = vmatmul.mubr.f32.gmra.mrb[0].mxu0 %v1184
        %v2393 = vpop.f32.mrb[0].mxu0
        %v2394 = vadd.f32 %v622, %v2393
        %v2395 = vpop.f32.mrb[0].mxu0
        %2396 = vmatprep.mubr.f32.mxu0 0.0
        %2397 = vmatmul.mubr.f32.gmra.mrb[0].mxu0 %v1187
        %v2398 = vpop.f32.mrb[0].mxu0
        %v2399 = vadd.f32 %v622, %v2398
        %v2400 = vpop.f32.mrb[0].mxu0
        %2401 = vmatprep.mubr.f32.mxu0 0.0
        %2402 = vmatmul.mubr.f32.gmra.mrb[0].mxu0 %v1190
        %v2403 = vpop.f32.mrb[0].mxu0
        %v2404 = vadd.f32 %v622, %v2403
        %v2405 = vpop.f32.mrb[0].mxu0
        %2406 = vmatprep.mubr.f32.mxu0 0.0
        %2407 = vmatmul.mubr.f32.gmra.mrb[0].mxu0 %v1193
        %v2408 = vpop.f32.mrb[0].mxu0
        %v2409 = vadd.f32 %v622, %v2408
        %v2410 = vpop.f32.mrb[0].mxu0
        %2411 = vmatprep.mubr.f32.mxu0 0.0
        %2412 = vmatmul.mubr.f32.gmra.mrb[0].mxu0 %v1196
        %v2413 = vpop.f32.mrb[0].mxu0
        %v2414 = vadd.f32 %v622, %v2413
        %v2415 = vpop.f32.mrb[0].mxu0
        %2416 = vmatprep.mubr.f32.mxu0 0.0
        %2417 = vmatmul.mubr.f32.gmra.mrb[0].mxu0 %v1199
        %v2418 = vpop.f32.mrb[0].mxu0
        %v2419 = vadd.f32 %v622, %v2418
        %v2420 = vpop.f32.mrb[0].mxu0
        %2421 = vmatprep.mubr.f32.mxu0 0.0
        %2422 = vmatmul.mubr.f32.gmra.mrb[0].mxu0 %v1202
        %v2423 = vpop.f32.mrb[0].mxu0
        %v2424 = vadd.f32 %v622, %v2423
        %v2425 = vpop.f32.mrb[0].mxu0
        %2426 = vmatprep.mubr.f32.mxu0 0.0
        %2427 = vmatmul.mubr.f32.gmra.mrb[0].mxu0 %v1205
        %v2428 = vpop.f32.mrb[0].mxu0
        %v2429 = vadd.f32 %v622, %v2428
        %v2430 = vpop.f32.mrb[0].mxu0
        %2431 = vmatprep.mubr.f32.mxu0 0.0
        %2432 = vmatmul.mubr.f32.gmra.mrb[0].mxu0 %v1208
        %v2433 = vpop.f32.mrb[0].mxu0
        %v2434 = vadd.f32 %v622, %v2433
        %v2435 = vpop.f32.mrb[0].mxu0
        %2436 = vmatprep.mubr.f32.mxu0 0.0
        %2437 = vmatmul.mubr.f32.gmra.mrb[0].mxu0 %v1211
        %v2438 = vpop.f32.mrb[0].mxu0
        %v2439 = vadd.f32 %v622, %v2438
        %v2440 = vpop.f32.mrb[0].mxu0
        %2441 = vmatprep.mubr.f32.mxu0 0.0
        %2442 = vmatmul.mubr.f32.gmra.mrb[0].mxu0 %v1214
        %v2443 = vpop.f32.mrb[0].mxu0
        %v2444 = vadd.f32 %v622, %v2443
        %v2445 = vpop.f32.mrb[0].mxu0
        %2446 = vmatprep.mubr.f32.mxu0 0.0
        %2447 = vmatmul.mubr.f32.gmra.mrb[0].mxu0 %v1217
        %v2448 = vpop.f32.mrb[0].mxu0
        %v2449 = vadd.f32 %v622, %v2448
        %v2450 = vpop.f32.mrb[0].mxu0
        %2451 = vmatprep.mubr.f32.mxu0 0.0
        %2452 = vmatmul.mubr.f32.gmra.mrb[0].mxu0 %v1220
        %v2453 = vpop.f32.mrb[0].mxu0
        %v2454 = vadd.f32 %v622, %v2453
        %v2455 = vpop.f32.mrb[0].mxu0
        %2456 = vmatprep.mubr.f32.mxu0 0.0
        %2457 = vmatmul.mubr.f32.gmra.mrb[0].mxu0 %v1223
        %v2458 = vpop.f32.mrb[0].mxu0
        %v2459 = vadd.f32 %v622, %v2458
        %v2460 = vpop.f32.mrb[0].mxu0
        %2461 = vmatprep.mubr.f32.mxu0 0.0
        %2462 = vmatmul.mubr.f32.gmra.mrb[0].mxu0 %v1226
        %v2463 = vpop.f32.mrb[0].mxu0
        %v2464 = vadd.f32 %v622, %v2463
        %v2465 = vpop.f32.mrb[0].mxu0
        %2466 = vmatprep.mubr.f32.mxu0 0.0
        %2467 = vmatmul.mubr.f32.gmra.mrb[0].mxu0 %v1229
        %v2468 = vpop.f32.mrb[0].mxu0
        %v2469 = vadd.f32 %v622, %v2468
        %v2470 = vpop.f32.mrb[0].mxu0
        %2471 = vmatprep.mubr.f32.mxu0 0.0
        %2472 = vmatmul.mubr.f32.gmra.mrb[0].mxu0 %v1232
        %v2473 = vpop.f32.mrb[0].mxu0
        %v2474 = vadd.f32 %v622, %v2473
        %v2475 = vpop.f32.mrb[0].mxu0
        %2476 = vmatprep.mubr.f32.mxu0 0.0
        %2477 = vmatmul.mubr.f32.gmra.mrb[0].mxu0 %v1235
        %v2478 = vpop.f32.mrb[0].mxu0
        %v2479 = vadd.f32 %v622, %v2478
        %v2480 = vpop.f32.mrb[0].mxu0
        %2481 = vmatprep.mubr.f32.mxu0 0.0
        %2482 = vmatmul.mubr.f32.gmra.mrb[0].mxu0 %v1238
        %v2483 = vpop.f32.mrb[0].mxu0
        %v2484 = vadd.f32 %v622, %v2483
        %v2485 = vpop.f32.mrb[0].mxu0
        %2486 = vmatprep.mubr.f32.mxu0 0.0
        %2487 = vmatmul.mubr.f32.gmra.mrb[0].mxu0 %v1241
        %v2488 = vpop.f32.mrb[0].mxu0
        %v2489 = vadd.f32 %v622, %v2488
        %v2490 = vpop.f32.mrb[0].mxu0
        %2491 = vmatprep.mubr.f32.mxu0 0.0
        %2492 = vmatmul.mubr.f32.gmra.mrb[0].mxu0 %v1244
        %v2493 = vpop.f32.mrb[0].mxu0
        %v2494 = vadd.f32 %v622, %v2493
        %v2495 = vpop.f32.mrb[0].mxu0
        %2496 = vmatprep.mubr.f32.mxu0 0.0
        %2497 = vmatmul.mubr.f32.gmra.mrb[0].mxu0 %v1247
        %v2498 = vpop.f32.mrb[0].mxu0
        %v2499 = vadd.f32 %v622, %v2498
        %v2500 = vpop.f32.mrb[0].mxu0
        %2501 = vmatprep.mubr.f32.mxu0 0.0
        %2502 = vmatmul.mubr.f32.gmra.mrb[0].mxu0 %v1250
        %v2503 = vpop.f32.mrb[0].mxu0
        %v2504 = vadd.f32 %v622, %v2503
        %v2505 = vpop.f32.mrb[0].mxu0
        %2506 = vmatprep.mubr.f32.mxu0 0.0
        %2507 = vmatmul.mubr.f32.gmra.mrb[0].mxu0 %v1253
        %v2508 = vpop.f32.mrb[0].mxu0
        %v2509 = vadd.f32 %v622, %v2508
        %v2510 = vpop.f32.mrb[0].mxu0
        %2511 = vmatprep.mubr.f32.mxu0 0.0
        %2512 = vmatmul.mubr.f32.gmra.mrb[0].mxu0 %v1256
        %v2513 = vpop.f32.mrb[0].mxu0
        %v2514 = vadd.f32 %v622, %v2513
        %v2515 = vpop.f32.mrb[0].mxu0
        %2516 = vmatprep.mubr.f32.mxu0 0.0
        %2517 = vmatmul.mubr.f32.gmra.mrb[0].mxu0 %v1259
        %v2518 = vpop.f32.mrb[0].mxu0
        %v2519 = vadd.f32 %v622, %v2518
        %v2520 = vpop.f32.mrb[0].mxu0
        %2521 = vmatprep.mubr.f32.mxu0 0.0
        %2522 = vmatmul.mubr.f32.gmra.mrb[0].mxu0 %v1262
        %v2523 = vpop.f32.mrb[0].mxu0
        %v2524 = vadd.f32 %v622, %v2523
        %v2525 = vpop.f32.mrb[0].mxu0
        %2526 = vmatprep.mubr.f32.mxu0 0.0
        %2527 = vmatmul.mubr.f32.gmra.mrb[0].mxu0 %v1265
        %v2528 = vpop.f32.mrb[0].mxu0
        %v2529 = vadd.f32 %v622, %v2528
        %v2530 = vpop.f32.mrb[0].mxu0
        %2531 = vmatprep.mubr.f32.mxu0 0.0
        %2532 = vmatmul.mubr.f32.gmra.mrb[0].mxu0 %v1268
        %v2533 = vpop.f32.mrb[0].mxu0
        %v2534 = vadd.f32 %v622, %v2533
        %v2535 = vpop.f32.mrb[0].mxu0
        %2536 = vmatprep.mubr.f32.mxu0 0.0
        %2537 = vmatmul.mubr.f32.gmra.mrb[0].mxu0 %v1271
        %v2538 = vpop.f32.mrb[0].mxu0
        %v2539 = vadd.f32 %v622, %v2538
        %v2540 = vpop.f32.mrb[0].mxu0
        %2541 = vmatprep.mubr.f32.mxu0 0.0
        %2542 = vmatmul.mubr.f32.gmra.mrb[0].mxu0 %v1274
        %v2543 = vpop.f32.mrb[0].mxu0
        %v2544 = vadd.f32 %v622, %v2543
        %v2545 = vpop.f32.mrb[0].mxu0
        %2546 = vmatprep.mubr.f32.mxu0 0.0
        %2547 = vmatmul.mubr.f32.gmra.mrb[0].mxu0 %v1277
        %v2548 = vpop.f32.mrb[0].mxu0
        %v2549 = vadd.f32 %v622, %v2548
        %v2550 = vpop.f32.mrb[0].mxu0
        %2551 = vmatprep.mubr.f32.mxu0 0.0
        %2552 = vmatmul.mubr.f32.gmra.mrb[0].mxu0 %v1280
        %v2553 = vpop.f32.mrb[0].mxu0
        %v2554 = vadd.f32 %v622, %v2553
        %v2555 = vpop.f32.mrb[0].mxu0
        %2556 = vmatprep.mubr.f32.mxu0 0.0
        %2557 = vmatmul.mubr.f32.gmra.mrb[0].mxu0 %v1283
        %v2558 = vpop.f32.mrb[0].mxu0
        %v2559 = vadd.f32 %v622, %v2558
        %v2560 = vpop.f32.mrb[0].mxu0
        %2561 = vmatprep.mubr.f32.mxu0 0.0
        %2562 = vmatmul.mubr.f32.gmra.mrb[0].mxu0 %v1286
        %v2563 = vpop.f32.mrb[0].mxu0
        %v2564 = vadd.f32 %v622, %v2563
        %v2565 = vpop.f32.mrb[0].mxu0
        %2566 = vmatprep.mubr.f32.mxu0 0.0
        %2567 = vmatmul.mubr.f32.gmra.mrb[0].mxu0 %v1289
        %v2568 = vpop.f32.mrb[0].mxu0
        %v2569 = vadd.f32 %v622, %v2568
        %v2570 = vpop.f32.mrb[0].mxu0
        %2571 = vmatprep.mubr.f32.mxu0 0.0
        %2572 = vmatmul.mubr.f32.gmra.mrb[0].mxu0 %v1292
        %v2573 = vpop.f32.mrb[0].mxu0
        %v2574 = vadd.f32 %v622, %v2573
        %v2575 = vpop.f32.mrb[0].mxu0
        %2576 = vmatprep.mubr.f32.mxu0 0.0
        %2577 = vmatmul.mubr.f32.gmra.mrb[0].mxu0 %v1295
        %v2578 = vpop.f32.mrb[0].mxu0
        %v2579 = vadd.f32 %v622, %v2578
        %v2580 = vpop.f32.mrb[0].mxu0
        %2581 = vmatprep.mubr.f32.mxu0 0.0
        %2582 = vmatmul.mubr.f32.gmra.mrb[0].mxu0 %v1298
        %v2583 = vpop.f32.mrb[0].mxu0
        %v2584 = vadd.f32 %v622, %v2583
        %v2585 = vpop.f32.mrb[0].mxu0
        %2586 = vmatprep.mubr.f32.mxu0 0.0
        %2587 = vmatmul.mubr.f32.gmra.mrb[0].mxu0 %v1301
        %v2588 = vpop.f32.mrb[0].mxu0
        %v2589 = vadd.f32 %v622, %v2588
        %v2590 = vpop.f32.mrb[0].mxu0
        %2591 = vmatprep.mubr.f32.mxu0 0.0
        %2592 = vmatmul.mubr.f32.gmra.mrb[0].mxu0 %v1304
        %v2593 = vpop.f32.mrb[0].mxu0
        %v2594 = vadd.f32 %v622, %v2593
        %v2595 = vpop.f32.mrb[0].mxu0
        %2596 = vmatprep.mubr.f32.mxu0 0.0
        %2597 = vmatmul.mubr.f32.gmra.mrb[0].mxu0 %v1307
        %v2598 = vpop.f32.mrb[0].mxu0
        %v2599 = vadd.f32 %v622, %v2598
        %v2600 = vpop.f32.mrb[0].mxu0
        %2601 = vmatprep.mubr.f32.mxu0 0.0
        %2602 = vmatmul.mubr.f32.gmra.mrb[0].mxu0 %v1310
        %v2603 = vpop.f32.mrb[0].mxu0
        %v2604 = vadd.f32 %v622, %v2603
        %v2605 = vpop.f32.mrb[0].mxu0
        %2606 = vmatprep.mubr.f32.mxu0 0.0
        %2607 = vmatmul.mubr.f32.gmra.mrb[0].mxu0 %v1313
        %v2608 = vpop.f32.mrb[0].mxu0
        %v2609 = vadd.f32 %v622, %v2608
        %v2610 = vpop.f32.mrb[0].mxu0
        %2611 = vmatprep.mubr.f32.mxu0 0.0
        %2612 = vmatmul.mubr.f32.gmra.mrb[0].mxu0 %v1316
        %v2613 = vpop.f32.mrb[0].mxu0
        %v2614 = vadd.f32 %v622, %v2613
        %v2615 = vpop.f32.mrb[0].mxu0
        %2616 = vmatprep.mubr.f32.mxu0 0.0
        %2617 = vmatmul.mubr.f32.gmra.mrb[0].mxu0 %v1319
        %v2618 = vpop.f32.mrb[0].mxu0
        %v2619 = vadd.f32 %v622, %v2618
        %v2620 = vpop.f32.mrb[0].mxu0
        %2621 = vmatprep.mubr.f32.mxu0 0.0
        %2622 = vmatmul.mubr.f32.gmra.mrb[0].mxu0 %v1322
        %v2623 = vpop.f32.mrb[0].mxu0
        %v2624 = vadd.f32 %v622, %v2623
        %v2625 = vpop.f32.mrb[0].mxu0
        %2626 = vmatprep.mubr.f32.mxu0 0.0
        %2627 = vmatmul.mubr.f32.gmra.mrb[0].mxu0 %v1325
        %v2628 = vpop.f32.mrb[0].mxu0
        %v2629 = vadd.f32 %v622, %v2628
        %v2630 = vpop.f32.mrb[0].mxu0
        %2631 = vmatprep.mubr.f32.mxu0 0.0
        %2632 = vmatmul.mubr.f32.gmra.mrb[0].mxu0 %v1328
        %v2633 = vpop.f32.mrb[0].mxu0
        %v2634 = vadd.f32 %v622, %v2633
        %v2635 = vpop.f32.mrb[0].mxu0
        %2636 = vmatprep.mubr.f32.mxu0 0.0
        %2637 = vmatmul.mubr.f32.gmra.mrb[0].mxu0 %v1331
        %v2638 = vpop.f32.mrb[0].mxu0
        %v2639 = vadd.f32 %v622, %v2638
        %v2640 = vpop.f32.mrb[0].mxu0
        %2641 = vmatprep.mubr.f32.mxu0 0.0
        %2642 = vmatmul.mubr.f32.gmra.mrb[0].mxu0 %v1334
        %v2643 = vpop.f32.mrb[0].mxu0
        %v2644 = vadd.f32 %v622, %v2643
        %v2645 = vpop.f32.mrb[0].mxu0
        %2646 = vmatprep.mubr.f32.mxu0 0.0
        %2647 = vmatmul.mubr.f32.gmra.mrb[0].mxu0 %v1337
        %v2648 = vpop.f32.mrb[0].mxu0
        %v2649 = vadd.f32 %v622, %v2648
        %v2650 = vpop.f32.mrb[0].mxu0
        %2651 = vmatprep.mubr.f32.mxu0 0.0
        %2652 = vmatmul.mubr.f32.gmra.mrb[0].mxu0 %v1340
        %v2653 = vpop.f32.mrb[0].mxu0
        %v2654 = vadd.f32 %v622, %v2653
        %v2655 = vpop.f32.mrb[0].mxu0
        %2656 = vmatprep.mubr.f32.mxu0 0.0
        %2657 = vmatmul.mubr.f32.gmra.mrb[0].mxu0 %v1343
        %v2658 = vpop.f32.mrb[0].mxu0
        %v2659 = vadd.f32 %v622, %v2658
        %v2660 = vpop.f32.mrb[0].mxu0
        %2661 = vmatprep.mubr.f32.mxu0 0.0
        %2662 = vmatmul.mubr.f32.gmra.mrb[0].mxu0 %v1346
        %v2663 = vpop.f32.mrb[0].mxu0
        %v2664 = vadd.f32 %v622, %v2663
        %v2665 = vpop.f32.mrb[0].mxu0
        %2666 = vmatprep.mubr.f32.mxu0 0.0
        %2667 = vmatmul.mubr.f32.gmra.mrb[0].mxu0 %v1349
        %v2668 = vpop.f32.mrb[0].mxu0
        %v2669 = vadd.f32 %v622, %v2668
        %v2670 = vpop.f32.mrb[0].mxu0
        %2671 = vmatprep.mubr.f32.mxu0 0.0
        %2672 = vmatmul.mubr.f32.gmra.mrb[0].mxu0 %v1352
        %v2673 = vpop.f32.mrb[0].mxu0
        %v2674 = vadd.f32 %v622, %v2673
        %v2675 = vpop.f32.mrb[0].mxu0
        %2676 = vmatprep.mubr.f32.mxu0 0.0
        %2677 = vmatmul.mubr.f32.gmra.mrb[0].mxu0 %v1355
        %v2678 = vpop.f32.mrb[0].mxu0
        %v2679 = vadd.f32 %v622, %v2678
        %v2680 = vpop.f32.mrb[0].mxu0
        %2681 = vmatprep.mubr.f32.mxu0 0.0
        %2682 = vmatmul.mubr.f32.gmra.mrb[0].mxu0 %v1358
        %v2683 = vpop.f32.mrb[0].mxu0
        %v2684 = vadd.f32 %v622, %v2683
        %v2685 = vpop.f32.mrb[0].mxu0
        %2686 = vmatprep.mubr.f32.mxu0 0.0
        %2687 = vmatmul.mubr.f32.gmra.mrb[0].mxu0 %v1361
        %v2688 = vpop.f32.mrb[0].mxu0
        %v2689 = vadd.f32 %v622, %v2688
        %v2690 = vpop.f32.mrb[0].mxu0
        %2691 = vmatprep.mubr.f32.mxu0 0.0
        %2692 = vmatmul.mubr.f32.gmra.mrb[0].mxu0 %v1364
        %v2693 = vpop.f32.mrb[0].mxu0
        %v2694 = vadd.f32 %v622, %v2693
        %v2695 = vpop.f32.mrb[0].mxu0
        %2696 = vmatprep.mubr.f32.mxu0 0.0
        %2697 = vmatmul.mubr.f32.gmra.mrb[0].mxu0 %v1367
        %v2698 = vpop.f32.mrb[0].mxu0
        %v2699 = vadd.f32 %v622, %v2698
        %v2700 = vpop.f32.mrb[0].mxu0
        %2701 = vmatprep.mubr.f32.mxu0 0.0
        %2702 = vmatmul.mubr.f32.gmra.mrb[0].mxu0 %v1370
        %v2703 = vpop.f32.mrb[0].mxu0
        %v2704 = vadd.f32 %v622, %v2703
        %v2705 = vpop.f32.mrb[0].mxu0
        %2706 = vmatprep.mubr.f32.mxu0 0.0
        %2707 = vmatmul.mubr.f32.gmra.mrb[0].mxu0 %v1373
        %v2708 = vpop.f32.mrb[0].mxu0
        %v2709 = vadd.f32 %v622, %v2708
        %v2710 = vpop.f32.mrb[0].mxu0
        %2711 = vmatprep.mubr.f32.mxu0 0.0
        %2712 = vmatmul.mubr.f32.gmra.mrb[0].mxu0 %v1376
        %v2713 = vpop.f32.mrb[0].mxu0
        %v2714 = vadd.f32 %v622, %v2713
        %v2715 = vpop.f32.mrb[0].mxu0
        %2716 = vmatprep.mubr.f32.mxu0 0.0
        %2717 = vmatmul.mubr.f32.gmra.mrb[0].mxu0 %v1379
        %v2718 = vpop.f32.mrb[0].mxu0
        %v2719 = vadd.f32 %v622, %v2718
        %v2720 = vpop.f32.mrb[0].mxu0
        %2721 = vmatprep.mubr.f32.mxu0 0.0
        %2722 = vmatmul.mubr.f32.gmra.mrb[0].mxu0 %v1382
        %v2723 = vpop.f32.mrb[0].mxu0
        %v2724 = vadd.f32 %v622, %v2723
        %v2725 = vpop.f32.mrb[0].mxu0
        %2726 = vmatprep.mubr.f32.mxu0 0.0
        %2727 = vmatmul.mubr.f32.gmra.mrb[0].mxu0 %v1385
        %v2728 = vpop.f32.mrb[0].mxu0
        %v2729 = vadd.f32 %v622, %v2728
        %v2730 = vpop.f32.mrb[0].mxu0
        %2731 = vmatprep.mubr.f32.mxu0 0.0
        %2732 = vmatmul.mubr.f32.gmra.mrb[0].mxu0 %v1388
        %v2733 = vpop.f32.mrb[0].mxu0
        %v2734 = vadd.f32 %v622, %v2733
        %v2735 = vpop.f32.mrb[0].mxu0
        %2736 = vmatprep.mubr.f32.mxu0 0.0
        %2737 = vmatmul.mubr.f32.gmra.mrb[0].mxu0 %v1391
        %v2738 = vpop.f32.mrb[0].mxu0
        %v2739 = vadd.f32 %v622, %v2738
        %v2740 = vpop.f32.mrb[0].mxu0
        %2741 = vdwg.mxu0
        %v2742 = vmax.f32 %v1464, 0.0
        %v2743 = vmax.f32 %v1469, 0.0
        %v2744 = vmax.f32 %v1474, 0.0
        %v2745 = vmax.f32 %v1479, 0.0
        %v2746 = vmax.f32 %v1484, 0.0
        %v2747 = vmax.f32 %v1489, 0.0
        %v2748 = vmax.f32 %v1494, 0.0
        %v2749 = vmax.f32 %v1499, 0.0
        %v2750 = vmax.f32 %v1504, 0.0
        %v2751 = vmax.f32 %v1509, 0.0
        %v2752 = vmax.f32 %v1514, 0.0
        %v2753 = vmax.f32 %v1519, 0.0
        %v2754 = vmax.f32 %v1524, 0.0
        %v2755 = vmax.f32 %v1529, 0.0
        %v2756 = vmax.f32 %v1534, 0.0
        %v2757 = vmax.f32 %v1539, 0.0
        %v2758 = vmax.f32 %v1544, 0.0
        %v2759 = vmax.f32 %v1549, 0.0
        %v2760 = vmax.f32 %v1554, 0.0
        %v2761 = vmax.f32 %v1559, 0.0
        %v2762 = vmax.f32 %v1564, 0.0
        %v2763 = vmax.f32 %v1569, 0.0
        %v2764 = vmax.f32 %v1574, 0.0
        %v2765 = vmax.f32 %v1579, 0.0
        %v2766 = vmax.f32 %v1584, 0.0
        %v2767 = vmax.f32 %v1589, 0.0
        %v2768 = vmax.f32 %v1594, 0.0
        %v2769 = vmax.f32 %v1599, 0.0
        %v2770 = vmax.f32 %v1604, 0.0
        %v2771 = vmax.f32 %v1609, 0.0
        %v2772 = vmax.f32 %v1614, 0.0
        %v2773 = vmax.f32 %v1619, 0.0
        %v2774 = vmax.f32 %v1624, 0.0
        %v2775 = vmax.f32 %v1629, 0.0
        %v2776 = vmax.f32 %v1634, 0.0
        %v2777 = vmax.f32 %v1639, 0.0
        %v2778 = vmax.f32 %v1644, 0.0
        %v2779 = vmax.f32 %v1649, 0.0
        %v2780 = vmax.f32 %v1654, 0.0
        %v2781 = vmax.f32 %v1659, 0.0
        %v2782 = vmax.f32 %v1664, 0.0
        %v2783 = vmax.f32 %v1669, 0.0
        %v2784 = vmax.f32 %v1674, 0.0
        %v2785 = vmax.f32 %v1679, 0.0
        %v2786 = vmax.f32 %v1684, 0.0
        %v2787 = vmax.f32 %v1689, 0.0
        %v2788 = vmax.f32 %v1694, 0.0
        %v2789 = vmax.f32 %v1699, 0.0
        %v2790 = vmax.f32 %v1704, 0.0
        %v2791 = vmax.f32 %v1709, 0.0
        %v2792 = vmax.f32 %v1714, 0.0
        %v2793 = vmax.f32 %v1719, 0.0
        %v2794 = vmax.f32 %v1724, 0.0
        %v2795 = vmax.f32 %v1729, 0.0
        %v2796 = vmax.f32 %v1734, 0.0
        %v2797 = vmax.f32 %v1739, 0.0
        %v2798 = vmax.f32 %v1744, 0.0
        %v2799 = vmax.f32 %v1749, 0.0
        %v2800 = vmax.f32 %v1754, 0.0
        %v2801 = vmax.f32 %v1759, 0.0
        %v2802 = vmax.f32 %v1764, 0.0
        %v2803 = vmax.f32 %v1769, 0.0
        %v2804 = vmax.f32 %v1774, 0.0
        %v2805 = vmax.f32 %v1779, 0.0
        %v2806 = vmax.f32 %v1784, 0.0
        %v2807 = vmax.f32 %v1789, 0.0
        %v2808 = vmax.f32 %v1794, 0.0
        %v2809 = vmax.f32 %v1799, 0.0
        %v2810 = vmax.f32 %v1804, 0.0
        %v2811 = vmax.f32 %v1809, 0.0
        %v2812 = vmax.f32 %v1814, 0.0
        %v2813 = vmax.f32 %v1819, 0.0
        %v2814 = vmax.f32 %v1824, 0.0
        %v2815 = vmax.f32 %v1829, 0.0
        %v2816 = vmax.f32 %v1834, 0.0
        %v2817 = vmax.f32 %v1839, 0.0
        %v2818 = vmax.f32 %v1844, 0.0
        %v2819 = vmax.f32 %v1849, 0.0
        %v2820 = vmax.f32 %v1854, 0.0
        %v2821 = vmax.f32 %v1859, 0.0
        %v2822 = vmax.f32 %v1864, 0.0
        %v2823 = vmax.f32 %v1869, 0.0
        %v2824 = vmax.f32 %v1874, 0.0
        %v2825 = vmax.f32 %v1879, 0.0
        %v2826 = vmax.f32 %v1884, 0.0
        %v2827 = vmax.f32 %v1889, 0.0
        %v2828 = vmax.f32 %v1894, 0.0
        %v2829 = vmax.f32 %v1899, 0.0
        %v2830 = vmax.f32 %v1904, 0.0
        %v2831 = vmax.f32 %v1909, 0.0
        %v2832 = vmax.f32 %v1914, 0.0
        %v2833 = vmax.f32 %v1919, 0.0
        %v2834 = vmax.f32 %v1924, 0.0
        %v2835 = vmax.f32 %v1929, 0.0
        %v2836 = vmax.f32 %v1934, 0.0
        %v2837 = vmax.f32 %v1939, 0.0
        %v2838 = vmax.f32 %v1944, 0.0
        %v2839 = vmax.f32 %v1949, 0.0
        %v2840 = vmax.f32 %v1954, 0.0
        %v2841 = vmax.f32 %v1959, 0.0
        %v2842 = vmax.f32 %v1964, 0.0
        %v2843 = vmax.f32 %v1969, 0.0
        %v2844 = vmax.f32 %v1974, 0.0
        %v2845 = vmax.f32 %v1979, 0.0
        %v2846 = vmax.f32 %v1984, 0.0
        %v2847 = vmax.f32 %v1989, 0.0
        %v2848 = vmax.f32 %v1994, 0.0
        %v2849 = vmax.f32 %v1999, 0.0
        %v2850 = vmax.f32 %v2004, 0.0
        %v2851 = vmax.f32 %v2009, 0.0
        %v2852 = vmax.f32 %v2014, 0.0
        %v2853 = vmax.f32 %v2019, 0.0
        %v2854 = vmax.f32 %v2024, 0.0
        %v2855 = vmax.f32 %v2029, 0.0
        %v2856 = vmax.f32 %v2034, 0.0
        %v2857 = vmax.f32 %v2039, 0.0
        %v2858 = vmax.f32 %v2044, 0.0
        %v2859 = vmax.f32 %v2049, 0.0
        %v2860 = vmax.f32 %v2054, 0.0
        %v2861 = vmax.f32 %v2059, 0.0
        %v2862 = vmax.f32 %v2064, 0.0
        %v2863 = vmax.f32 %v2069, 0.0
        %v2864 = vmax.f32 %v2074, 0.0
        %v2865 = vmax.f32 %v2079, 0.0
        %v2866 = vmax.f32 %v2084, 0.0
        %v2867 = vmax.f32 %v2089, 0.0
        %v2868 = vmax.f32 %v2094, 0.0
        %v2869 = vmax.f32 %v2099, 0.0
        %v2870 = vmax.f32 %v2104, 0.0
        %v2871 = vmax.f32 %v2109, 0.0
        %v2872 = vmax.f32 %v2114, 0.0
        %v2873 = vmax.f32 %v2119, 0.0
        %v2874 = vmax.f32 %v2124, 0.0
        %v2875 = vmax.f32 %v2129, 0.0
        %v2876 = vmax.f32 %v2134, 0.0
        %v2877 = vmax.f32 %v2139, 0.0
        %v2878 = vmax.f32 %v2144, 0.0
        %v2879 = vmax.f32 %v2149, 0.0
        %v2880 = vmax.f32 %v2154, 0.0
        %v2881 = vmax.f32 %v2159, 0.0
        %v2882 = vmax.f32 %v2164, 0.0
        %v2883 = vmax.f32 %v2169, 0.0
        %v2884 = vmax.f32 %v2174, 0.0
        %v2885 = vmax.f32 %v2179, 0.0
        %v2886 = vmax.f32 %v2184, 0.0
        %v2887 = vmax.f32 %v2189, 0.0
        %v2888 = vmax.f32 %v2194, 0.0
        %v2889 = vmax.f32 %v2199, 0.0
        %v2890 = vmax.f32 %v2204, 0.0
        %v2891 = vmax.f32 %v2209, 0.0
        %v2892 = vmax.f32 %v2214, 0.0
        %v2893 = vmax.f32 %v2219, 0.0
        %v2894 = vmax.f32 %v2224, 0.0
        %v2895 = vmax.f32 %v2229, 0.0
        %v2896 = vmax.f32 %v2234, 0.0
        %v2897 = vmax.f32 %v2239, 0.0
        %v2898 = vmax.f32 %v2244, 0.0
        %v2899 = vmax.f32 %v2249, 0.0
        %v2900 = vmax.f32 %v2254, 0.0
        %v2901 = vmax.f32 %v2259, 0.0
        %v2902 = vmax.f32 %v2264, 0.0
        %v2903 = vmax.f32 %v2269, 0.0
        %v2904 = vmax.f32 %v2274, 0.0
        %v2905 = vmax.f32 %v2279, 0.0
        %v2906 = vmax.f32 %v2284, 0.0
        %v2907 = vmax.f32 %v2289, 0.0
        %v2908 = vmax.f32 %v2294, 0.0
        %v2909 = vmax.f32 %v2299, 0.0
        %v2910 = vmax.f32 %v2304, 0.0
        %v2911 = vmax.f32 %v2309, 0.0
        %v2912 = vmax.f32 %v2314, 0.0
        %v2913 = vmax.f32 %v2319, 0.0
        %v2914 = vmax.f32 %v2324, 0.0
        %v2915 = vmax.f32 %v2329, 0.0
        %v2916 = vmax.f32 %v2334, 0.0
        %v2917 = vmax.f32 %v2339, 0.0
        %v2918 = vmax.f32 %v2344, 0.0
        %v2919 = vmax.f32 %v2349, 0.0
        %v2920 = vmax.f32 %v2354, 0.0
        %v2921 = vmax.f32 %v2359, 0.0
        %v2922 = vmax.f32 %v2364, 0.0
        %v2923 = vmax.f32 %v2369, 0.0
        %v2924 = vmax.f32 %v2374, 0.0
        %v2925 = vmax.f32 %v2379, 0.0
        %v2926 = vmax.f32 %v2384, 0.0
        %v2927 = vmax.f32 %v2389, 0.0
        %v2928 = vmax.f32 %v2394, 0.0
        %v2929 = vmax.f32 %v2399, 0.0
        %v2930 = vmax.f32 %v2404, 0.0
        %v2931 = vmax.f32 %v2409, 0.0
        %v2932 = vmax.f32 %v2414, 0.0
        %v2933 = vmax.f32 %v2419, 0.0
        %v2934 = vmax.f32 %v2424, 0.0
        %v2935 = vmax.f32 %v2429, 0.0
        %v2936 = vmax.f32 %v2434, 0.0
        %v2937 = vmax.f32 %v2439, 0.0
        %v2938 = vmax.f32 %v2444, 0.0
        %v2939 = vmax.f32 %v2449, 0.0
        %v2940 = vmax.f32 %v2454, 0.0
        %v2941 = vmax.f32 %v2459, 0.0
        %v2942 = vmax.f32 %v2464, 0.0
        %v2943 = vmax.f32 %v2469, 0.0
        %v2944 = vmax.f32 %v2474, 0.0
        %v2945 = vmax.f32 %v2479, 0.0
        %v2946 = vmax.f32 %v2484, 0.0
        %v2947 = vmax.f32 %v2489, 0.0
        %v2948 = vmax.f32 %v2494, 0.0
        %v2949 = vmax.f32 %v2499, 0.0
        %v2950 = vmax.f32 %v2504, 0.0
        %v2951 = vmax.f32 %v2509, 0.0
        %v2952 = vmax.f32 %v2514, 0.0
        %v2953 = vmax.f32 %v2519, 0.0
        %v2954 = vmax.f32 %v2524, 0.0
        %v2955 = vmax.f32 %v2529, 0.0
        %v2956 = vmax.f32 %v2534, 0.0
        %v2957 = vmax.f32 %v2539, 0.0
        %v2958 = vmax.f32 %v2544, 0.0
        %v2959 = vmax.f32 %v2549, 0.0
        %v2960 = vmax.f32 %v2554, 0.0
        %v2961 = vmax.f32 %v2559, 0.0
        %v2962 = vmax.f32 %v2564, 0.0
        %v2963 = vmax.f32 %v2569, 0.0
        %v2964 = vmax.f32 %v2574, 0.0
        %v2965 = vmax.f32 %v2579, 0.0
        %v2966 = vmax.f32 %v2584, 0.0
        %v2967 = vmax.f32 %v2589, 0.0
        %v2968 = vmax.f32 %v2594, 0.0
        %v2969 = vmax.f32 %v2599, 0.0
        %v2970 = vmax.f32 %v2604, 0.0
        %v2971 = vmax.f32 %v2609, 0.0
        %v2972 = vmax.f32 %v2614, 0.0
        %v2973 = vmax.f32 %v2619, 0.0
        %v2974 = vmax.f32 %v2624, 0.0
        %v2975 = vmax.f32 %v2629, 0.0
        %v2976 = vmax.f32 %v2634, 0.0
        %v2977 = vmax.f32 %v2639, 0.0
        %v2978 = vmax.f32 %v2644, 0.0
        %v2979 = vmax.f32 %v2649, 0.0
        %v2980 = vmax.f32 %v2654, 0.0
        %v2981 = vmax.f32 %v2659, 0.0
        %v2982 = vmax.f32 %v2664, 0.0
        %v2983 = vmax.f32 %v2669, 0.0
        %v2984 = vmax.f32 %v2674, 0.0
        %v2985 = vmax.f32 %v2679, 0.0
        %v2986 = vmax.f32 %v2684, 0.0
        %v2987 = vmax.f32 %v2689, 0.0
        %v2988 = vmax.f32 %v2694, 0.0
        %v2989 = vmax.f32 %v2699, 0.0
        %v2990 = vmax.f32 %v2704, 0.0
        %v2991 = vmax.f32 %v2709, 0.0
        %v2992 = vmax.f32 %v2714, 0.0
        %v2993 = vmax.f32 %v2719, 0.0
        %v2994 = vmax.f32 %v2724, 0.0
        %v2995 = vmax.f32 %v2729, 0.0
        %v2996 = vmax.f32 %v2734, 0.0
        %v2997 = vmax.f32 %v2739, 0.0
        %v2998 = vmax.f32 %v2742, %v2758
        %v2999 = vmax.f32 %v2743, %v2759
        %v3000 = vmax.f32 %v2744, %v2760
        %v3001 = vmax.f32 %v2745, %v2761
        %v3002 = vmax.f32 %v2746, %v2762
        %v3003 = vmax.f32 %v2747, %v2763
        %v3004 = vmax.f32 %v2748, %v2764
        %v3005 = vmax.f32 %v2749, %v2765
        %v3006 = vmax.f32 %v2750, %v2766
        %v3007 = vmax.f32 %v2751, %v2767
        %v3008 = vmax.f32 %v2752, %v2768
        %v3009 = vmax.f32 %v2753, %v2769
        %v3010 = vmax.f32 %v2754, %v2770
        %v3011 = vmax.f32 %v2755, %v2771
        %v3012 = vmax.f32 %v2756, %v2772
        %v3013 = vmax.f32 %v2757, %v2773
        %v3014 = vmax.f32 %v2774, %v2790
        %v3015 = vmax.f32 %v2775, %v2791
        %v3016 = vmax.f32 %v2776, %v2792
        %v3017 = vmax.f32 %v2777, %v2793
        %v3018 = vmax.f32 %v2778, %v2794
        %v3019 = vmax.f32 %v2779, %v2795
        %v3020 = vmax.f32 %v2780, %v2796
        %v3021 = vmax.f32 %v2781, %v2797
        %v3022 = vmax.f32 %v2782, %v2798
        %v3023 = vmax.f32 %v2783, %v2799
        %v3024 = vmax.f32 %v2784, %v2800
        %v3025 = vmax.f32 %v2785, %v2801
        %v3026 = vmax.f32 %v2786, %v2802
        %v3027 = vmax.f32 %v2787, %v2803
        %v3028 = vmax.f32 %v2788, %v2804
        %v3029 = vmax.f32 %v2789, %v2805
        %v3030 = vmax.f32 %v2806, %v2822
        %v3031 = vmax.f32 %v2807, %v2823
        %v3032 = vmax.f32 %v2808, %v2824
        %v3033 = vmax.f32 %v2809, %v2825
        %v3034 = vmax.f32 %v2810, %v2826
        %v3035 = vmax.f32 %v2811, %v2827
        %v3036 = vmax.f32 %v2812, %v2828
        %v3037 = vmax.f32 %v2813, %v2829
        %v3038 = vmax.f32 %v2814, %v2830
        %v3039 = vmax.f32 %v2815, %v2831
        %v3040 = vmax.f32 %v2816, %v2832
        %v3041 = vmax.f32 %v2817, %v2833
        %v3042 = vmax.f32 %v2818, %v2834
        %v3043 = vmax.f32 %v2819, %v2835
        %v3044 = vmax.f32 %v2820, %v2836
        %v3045 = vmax.f32 %v2821, %v2837
        %v3046 = vmax.f32 %v2838, %v2854
        %v3047 = vmax.f32 %v2839, %v2855
        %v3048 = vmax.f32 %v2840, %v2856
        %v3049 = vmax.f32 %v2841, %v2857
        %v3050 = vmax.f32 %v2842, %v2858
        %v3051 = vmax.f32 %v2843, %v2859
        %v3052 = vmax.f32 %v2844, %v2860
        %v3053 = vmax.f32 %v2845, %v2861
        %v3054 = vmax.f32 %v2846, %v2862
        %v3055 = vmax.f32 %v2847, %v2863
        %v3056 = vmax.f32 %v2848, %v2864
        %v3057 = vmax.f32 %v2849, %v2865
        %v3058 = vmax.f32 %v2850, %v2866
        %v3059 = vmax.f32 %v2851, %v2867
        %v3060 = vmax.f32 %v2852, %v2868
        %v3061 = vmax.f32 %v2853, %v2869
        %v3062 = vmax.f32 %v2870, %v2886
        %v3063 = vmax.f32 %v2871, %v2887
        %v3064 = vmax.f32 %v2872, %v2888
        %v3065 = vmax.f32 %v2873, %v2889
        %v3066 = vmax.f32 %v2874, %v2890
        %v3067 = vmax.f32 %v2875, %v2891
        %v3068 = vmax.f32 %v2876, %v2892
        %v3069 = vmax.f32 %v2877, %v2893
        %v3070 = vmax.f32 %v2878, %v2894
        %v3071 = vmax.f32 %v2879, %v2895
        %v3072 = vmax.f32 %v2880, %v2896
        %v3073 = vmax.f32 %v2881, %v2897
        %v3074 = vmax.f32 %v2882, %v2898
        %v3075 = vmax.f32 %v2883, %v2899
        %v3076 = vmax.f32 %v2884, %v2900
        %v3077 = vmax.f32 %v2885, %v2901
        %v3078 = vmax.f32 %v2902, %v2918
        %v3079 = vmax.f32 %v2903, %v2919
        %v3080 = vmax.f32 %v2904, %v2920
        %v3081 = vmax.f32 %v2905, %v2921
        %v3082 = vmax.f32 %v2906, %v2922
        %v3083 = vmax.f32 %v2907, %v2923
        %v3084 = vmax.f32 %v2908, %v2924
        %v3085 = vmax.f32 %v2909, %v2925
        %v3086 = vmax.f32 %v2910, %v2926
        %v3087 = vmax.f32 %v2911, %v2927
        %v3088 = vmax.f32 %v2912, %v2928
        %v3089 = vmax.f32 %v2913, %v2929
        %v3090 = vmax.f32 %v2914, %v2930
        %v3091 = vmax.f32 %v2915, %v2931
        %v3092 = vmax.f32 %v2916, %v2932
        %v3093 = vmax.f32 %v2917, %v2933
        %v3094 = vmax.f32 %v2934, %v2950
        %v3095 = vmax.f32 %v2935, %v2951
        %v3096 = vmax.f32 %v2936, %v2952
        %v3097 = vmax.f32 %v2937, %v2953
        %v3098 = vmax.f32 %v2938, %v2954
        %v3099 = vmax.f32 %v2939, %v2955
        %v3100 = vmax.f32 %v2940, %v2956
        %v3101 = vmax.f32 %v2941, %v2957
        %v3102 = vmax.f32 %v2942, %v2958
        %v3103 = vmax.f32 %v2943, %v2959
        %v3104 = vmax.f32 %v2944, %v2960
        %v3105 = vmax.f32 %v2945, %v2961
        %v3106 = vmax.f32 %v2946, %v2962
        %v3107 = vmax.f32 %v2947, %v2963
        %v3108 = vmax.f32 %v2948, %v2964
        %v3109 = vmax.f32 %v2949, %v2965
        %v3110 = vmax.f32 %v2966, %v2982
        %v3111 = vmax.f32 %v2967, %v2983
        %v3112 = vmax.f32 %v2968, %v2984
        %v3113 = vmax.f32 %v2969, %v2985
        %v3114 = vmax.f32 %v2970, %v2986
        %v3115 = vmax.f32 %v2971, %v2987
        %v3116 = vmax.f32 %v2972, %v2988
        %v3117 = vmax.f32 %v2973, %v2989
        %v3118 = vmax.f32 %v2974, %v2990
        %v3119 = vmax.f32 %v2975, %v2991
        %v3120 = vmax.f32 %v2976, %v2992
        %v3121 = vmax.f32 %v2977, %v2993
        %v3122 = vmax.f32 %v2978, %v2994
        %v3123 = vmax.f32 %v2979, %v2995
        %v3124 = vmax.f32 %v2980, %v2996
        %v3125 = vmax.f32 %v2981, %v2997
        %v3126 = vmax.f32 %v2998, %v2999
        %v3127 = vmax.f32 %v3000, %v3001
        %v3128 = vmax.f32 %v3002, %v3003
        %v3129 = vmax.f32 %v3004, %v3005
        %v3130 = vmax.f32 %v3006, %v3007
        %v3131 = vmax.f32 %v3008, %v3009
        %v3132 = vmax.f32 %v3010, %v3011
        %v3133 = vmax.f32 %v3012, %v3013
        %v3134 = vmax.f32 %v3014, %v3015
        %v3135 = vmax.f32 %v3016, %v3017
        %v3136 = vmax.f32 %v3018, %v3019
        %v3137 = vmax.f32 %v3020, %v3021
        %v3138 = vmax.f32 %v3022, %v3023
        %v3139 = vmax.f32 %v3024, %v3025
        %v3140 = vmax.f32 %v3026, %v3027
        %v3141 = vmax.f32 %v3028, %v3029
        %v3142 = vmax.f32 %v3030, %v3031
        %v3143 = vmax.f32 %v3032, %v3033
        %v3144 = vmax.f32 %v3034, %v3035
        %v3145 = vmax.f32 %v3036, %v3037
        %v3146 = vmax.f32 %v3038, %v3039
        %v3147 = vmax.f32 %v3040, %v3041
        %v3148 = vmax.f32 %v3042, %v3043
        %v3149 = vmax.f32 %v3044, %v3045
        %v3150 = vmax.f32 %v3046, %v3047
        %v3151 = vmax.f32 %v3048, %v3049
        %v3152 = vmax.f32 %v3050, %v3051
        %v3153 = vmax.f32 %v3052, %v3053
        %v3154 = vmax.f32 %v3054, %v3055
        %v3155 = vmax.f32 %v3056, %v3057
        %v3156 = vmax.f32 %v3058, %v3059
        %v3157 = vmax.f32 %v3060, %v3061
        %v3158 = vmax.f32 %v3062, %v3063
        %v3159 = vmax.f32 %v3064, %v3065
        %v3160 = vmax.f32 %v3066, %v3067
        %v3161 = vmax.f32 %v3068, %v3069
        %v3162 = vmax.f32 %v3070, %v3071
        %v3163 = vmax.f32 %v3072, %v3073
        %v3164 = vmax.f32 %v3074, %v3075
        %v3165 = vmax.f32 %v3076, %v3077
        %v3166 = vmax.f32 %v3078, %v3079
        %v3167 = vmax.f32 %v3080, %v3081
        %v3168 = vmax.f32 %v3082, %v3083
        %v3169 = vmax.f32 %v3084, %v3085
        %v3170 = vmax.f32 %v3086, %v3087
        %v3171 = vmax.f32 %v3088, %v3089
        %v3172 = vmax.f32 %v3090, %v3091
        %v3173 = vmax.f32 %v3092, %v3093
        %v3174 = vmax.f32 %v3094, %v3095
        %v3175 = vmax.f32 %v3096, %v3097
        %v3176 = vmax.f32 %v3098, %v3099
        %v3177 = vmax.f32 %v3100, %v3101
        %v3178 = vmax.f32 %v3102, %v3103
        %v3179 = vmax.f32 %v3104, %v3105
        %v3180 = vmax.f32 %v3106, %v3107
        %v3181 = vmax.f32 %v3108, %v3109
        %v3182 = vmax.f32 %v3110, %v3111
        %v3183 = vmax.f32 %v3112, %v3113
        %v3184 = vmax.f32 %v3114, %v3115
        %v3185 = vmax.f32 %v3116, %v3117
        %v3186 = vmax.f32 %v3118, %v3119
        %v3187 = vmax.f32 %v3120, %v3121
        %v3188 = vmax.f32 %v3122, %v3123
        %v3189 = vmax.f32 %v3124, %v3125
        %vm3190 = vcmask 130048
        %3191 = vst.msk [vmem:[#allocation2] sm:$0xff] %vm3190, 0.0
        %3192 = vst.msk [vmem:[#allocation2 + $0x8] sm:$0xff] %vm3190, 0.0
        %3193 = vst.msk [vmem:[#allocation2 + $0x10] sm:$0xff] %vm3190, 0.0
        %3194 = vst.msk [vmem:[#allocation2 + $0x18] sm:$0xff] %vm3190, 0.0
        %3195 = vst.msk [vmem:[#allocation2 + $0x20] sm:$0xff] %vm3190, 0.0
        %3196 = vst.msk [vmem:[#allocation2 + $0x28] sm:$0xff] %vm3190, 0.0
        %3197 = vst.msk [vmem:[#allocation2 + $0x30] sm:$0xff] %vm3190, 0.0
        %3198 = vst.msk [vmem:[#allocation2 + $0x38] sm:$0xff] %vm3190, 0.0
        %3199 = vst.msk [vmem:[#allocation2 + $0x40] sm:$0xff] %vm3190, 0.0
        %3200 = vst.msk [vmem:[#allocation2 + $0x48] sm:$0xff] %vm3190, 0.0
        %3201 = vst.msk [vmem:[#allocation2 + $0x50] sm:$0xff] %vm3190, 0.0
        %3202 = vst.msk [vmem:[#allocation2 + $0x58] sm:$0xff] %vm3190, 0.0
        %3203 = vst.msk [vmem:[#allocation2 + $0x60] sm:$0xff] %vm3190, 0.0
        %3204 = vst.msk [vmem:[#allocation2 + $0x68] sm:$0xff] %vm3190, 0.0
        %3205 = vst.msk [vmem:[#allocation2 + $0x70] sm:$0xff] %vm3190, 0.0
        %3206 = vst.msk [vmem:[#allocation2 + $0x78] sm:$0xff] %vm3190, 0.0
        %3207 = vst.msk [vmem:[#allocation2 + $0x80] sm:$0xff] %vm3190, 0.0
        %3208 = vst.msk [vmem:[#allocation2 + $0x88] sm:$0xff] %vm3190, 0.0
        %3209 = vst.msk [vmem:[#allocation2 + $0x90] sm:$0xff] %vm3190, %v3126
        %3210 = vst.msk [vmem:[#allocation2 + $0x98] sm:$0xff] %vm3190, %v3127
        %3211 = vst.msk [vmem:[#allocation2 + $0xa0] sm:$0xff] %vm3190, %v3128
        %3212 = vst.msk [vmem:[#allocation2 + $0xa8] sm:$0xff] %vm3190, %v3129
        %3213 = vst.msk [vmem:[#allocation2 + $0xb0] sm:$0xff] %vm3190, %v3130
        %3214 = vst.msk [vmem:[#allocation2 + $0xb8] sm:$0xff] %vm3190, %v3131
        %3215 = vst.msk [vmem:[#allocation2 + $0xc0] sm:$0xff] %vm3190, 0.0
        %3216 = vst.msk [vmem:[#allocation2 + $0xc8] sm:$0xff] %vm3190, 0.0
        %3217 = vst.msk [vmem:[#allocation2 + $0xd0] sm:$0xff] %vm3190, %v3134
        %3218 = vst.msk [vmem:[#allocation2 + $0xd8] sm:$0xff] %vm3190, %v3135
        %3219 = vst.msk [vmem:[#allocation2 + $0xe0] sm:$0xff] %vm3190, %v3136
        %3220 = vst.msk [vmem:[#allocation2 + $0xe8] sm:$0xff] %vm3190, %v3137
        %3221 = vst.msk [vmem:[#allocation2 + $0xf0] sm:$0xff] %vm3190, %v3138
        %3222 = vst.msk [vmem:[#allocation2 + $0xf8] sm:$0xff] %vm3190, %v3139
        %3223 = vst.msk [vmem:[#allocation2 + $0x100] sm:$0xff] %vm3190, 0.0
        %3224 = vst.msk [vmem:[#allocation2 + $0x108] sm:$0xff] %vm3190, 0.0
        %3225 = vst.msk [vmem:[#allocation2 + $0x110] sm:$0xff] %vm3190, %v3142
        %3226 = vst.msk [vmem:[#allocation2 + $0x118] sm:$0xff] %vm3190, %v3143
        %3227 = vst.msk [vmem:[#allocation2 + $0x120] sm:$0xff] %vm3190, %v3144
        %3228 = vst.msk [vmem:[#allocation2 + $0x128] sm:$0xff] %vm3190, %v3145
        %3229 = vst.msk [vmem:[#allocation2 + $0x130] sm:$0xff] %vm3190, %v3146
        %3230 = vst.msk [vmem:[#allocation2 + $0x138] sm:$0xff] %vm3190, %v3147
        %3231 = vst.msk [vmem:[#allocation2 + $0x140] sm:$0xff] %vm3190, 0.0
        %3232 = vst.msk [vmem:[#allocation2 + $0x148] sm:$0xff] %vm3190, 0.0
        %3233 = vst.msk [vmem:[#allocation2 + $0x150] sm:$0xff] %vm3190, %v3150
        %3234 = vst.msk [vmem:[#allocation2 + $0x158] sm:$0xff] %vm3190, %v3151
        %3235 = vst.msk [vmem:[#allocation2 + $0x160] sm:$0xff] %vm3190, %v3152
        %3236 = vst.msk [vmem:[#allocation2 + $0x168] sm:$0xff] %vm3190, %v3153
        %3237 = vst.msk [vmem:[#allocation2 + $0x170] sm:$0xff] %vm3190, %v3154
        %3238 = vst.msk [vmem:[#allocation2 + $0x178] sm:$0xff] %vm3190, %v3155
        %3239 = vst.msk [vmem:[#allocation2 + $0x180] sm:$0xff] %vm3190, 0.0
        %3240 = vst.msk [vmem:[#allocation2 + $0x188] sm:$0xff] %vm3190, 0.0
        %3241 = vst.msk [vmem:[#allocation2 + $0x190] sm:$0xff] %vm3190, %v3158
        %3242 = vst.msk [vmem:[#allocation2 + $0x198] sm:$0xff] %vm3190, %v3159
        %3243 = vst.msk [vmem:[#allocation2 + $0x1a0] sm:$0xff] %vm3190, %v3160
        %3244 = vst.msk [vmem:[#allocation2 + $0x1a8] sm:$0xff] %vm3190, %v3161
        %3245 = vst.msk [vmem:[#allocation2 + $0x1b0] sm:$0xff] %vm3190, %v3162
        %3246 = vst.msk [vmem:[#allocation2 + $0x1b8] sm:$0xff] %vm3190, %v3163
        %3247 = vst.msk [vmem:[#allocation2 + $0x1c0] sm:$0xff] %vm3190, 0.0
        %3248 = vst.msk [vmem:[#allocation2 + $0x1c8] sm:$0xff] %vm3190, 0.0
        %3249 = vst.msk [vmem:[#allocation2 + $0x1d0] sm:$0xff] %vm3190, %v3166
        %3250 = vst.msk [vmem:[#allocation2 + $0x1d8] sm:$0xff] %vm3190, %v3167
        %3251 = vst.msk [vmem:[#allocation2 + $0x1e0] sm:$0xff] %vm3190, %v3168
        %3252 = vst.msk [vmem:[#allocation2 + $0x1e8] sm:$0xff] %vm3190, %v3169
        %3253 = vst.msk [vmem:[#allocation2 + $0x1f0] sm:$0xff] %vm3190, %v3170
        %3254 = vst.msk [vmem:[#allocation2 + $0x1f8] sm:$0xff] %vm3190, %v3171
        %3255 = vst.msk [vmem:[#allocation2 + $0x200] sm:$0xff] %vm3190, 0.0
        %3256 = vst.msk [vmem:[#allocation2 + $0x208] sm:$0xff] %vm3190, 0.0
        %3257 = vst.msk [vmem:[#allocation2 + $0x210] sm:$0xff] %vm3190, %v3174
        %3258 = vst.msk [vmem:[#allocation2 + $0x218] sm:$0xff] %vm3190, %v3175
        %3259 = vst.msk [vmem:[#allocation2 + $0x220] sm:$0xff] %vm3190, %v3176
        %3260 = vst.msk [vmem:[#allocation2 + $0x228] sm:$0xff] %vm3190, %v3177
        %3261 = vst.msk [vmem:[#allocation2 + $0x230] sm:$0xff] %vm3190, %v3178
        %3262 = vst.msk [vmem:[#allocation2 + $0x238] sm:$0xff] %vm3190, %v3179
        %3263 = vst.msk [vmem:[#allocation2 + $0x240] sm:$0xff] %vm3190, 0.0
        %3264 = vst.msk [vmem:[#allocation2 + $0x248] sm:$0xff] %vm3190, 0.0
        %3265 = vst.msk [vmem:[#allocation2 + $0x250] sm:$0xff] %vm3190, %v3182
        %3266 = vst.msk [vmem:[#allocation2 + $0x258] sm:$0xff] %vm3190, %v3183
        %3267 = vst.msk [vmem:[#allocation2 + $0x260] sm:$0xff] %vm3190, %v3184
        %3268 = vst.msk [vmem:[#allocation2 + $0x268] sm:$0xff] %vm3190, %v3185
        %3269 = vst.msk [vmem:[#allocation2 + $0x270] sm:$0xff] %vm3190, %v3186
        %3270 = vst.msk [vmem:[#allocation2 + $0x278] sm:$0xff] %vm3190, %v3187
        %3271 = vst.msk [vmem:[#allocation2 + $0x280] sm:$0xff] %vm3190, 0.0
        %3272 = vst.msk [vmem:[#allocation2 + $0x288] sm:$0xff] %vm3190, 0.0
        %3273 = vst.msk [vmem:[#allocation2 + $0x290] sm:$0xff] %vm3190, 0.0
        %3274 = vst.msk [vmem:[#allocation2 + $0x298] sm:$0xff] %vm3190, 0.0
        %3275 = vst.msk [vmem:[#allocation2 + $0x2a0] sm:$0xff] %vm3190, 0.0
        %3276 = vst.msk [vmem:[#allocation2 + $0x2a8] sm:$0xff] %vm3190, 0.0
        %3277 = vst.msk [vmem:[#allocation2 + $0x2b0] sm:$0xff] %vm3190, 0.0
        %3278 = vst.msk [vmem:[#allocation2 + $0x2b8] sm:$0xff] %vm3190, 0.0
        %3279 = vst.msk [vmem:[#allocation2 + $0x2c0] sm:$0xff] %vm3190, 0.0
        %3280 = vst.msk [vmem:[#allocation2 + $0x2c8] sm:$0xff] %vm3190, 0.0
        %3281 = vst.msk [vmem:[#allocation2 + $0x2d0] sm:$0xff] %vm3190, 0.0
        %3282 = vst.msk [vmem:[#allocation2 + $0x2d8] sm:$0xff] %vm3190, 0.0
        %3283 = vst.msk [vmem:[#allocation2 + $0x2e0] sm:$0xff] %vm3190, 0.0
        %3284 = vst.msk [vmem:[#allocation2 + $0x2e8] sm:$0xff] %vm3190, 0.0
        %3285 = vst.msk [vmem:[#allocation2 + $0x2f0] sm:$0xff] %vm3190, 0.0
        %3286 = vst.msk [vmem:[#allocation2 + $0x2f8] sm:$0xff] %vm3190, 0.0
        %3344 = vrot.lane.b32.xlu0 0.0, 16
        %v3345 = vpop.permute.xlu0 %3344
        %3346 = vrot.lane.b32.xlu0 %v3126, 16
        %v3347 = vpop.permute.xlu0 %3346
        %3348 = vrot.lane.b32.xlu0 %v3127, 16
        %v3349 = vpop.permute.xlu0 %3348
        %3350 = vrot.lane.b32.xlu0 %v3128, 16
        %v3351 = vpop.permute.xlu0 %3350
        %3352 = vrot.lane.b32.xlu0 %v3129, 16
        %v3353 = vpop.permute.xlu0 %3352
        %3354 = vrot.lane.b32.xlu0 %v3130, 16
        %v3355 = vpop.permute.xlu0 %3354
        %3356 = vrot.lane.b32.xlu0 %v3131, 16
        %v3357 = vpop.permute.xlu0 %3356
        %3358 = vrot.lane.b32.xlu0 %v3132, 16
        %v3359 = vpop.permute.xlu0 %3358
        %3360 = vrot.lane.b32.xlu0 %v3134, 16
        %v3361 = vpop.permute.xlu0 %3360
        %3362 = vrot.lane.b32.xlu0 %v3135, 16
        %v3363 = vpop.permute.xlu0 %3362
        %3364 = vrot.lane.b32.xlu0 %v3136, 16
        %v3365 = vpop.permute.xlu0 %3364
        %3366 = vrot.lane.b32.xlu0 %v3137, 16
        %v3367 = vpop.permute.xlu0 %3366
        %3368 = vrot.lane.b32.xlu0 %v3138, 16
        %v3369 = vpop.permute.xlu0 %3368
        %3370 = vrot.lane.b32.xlu0 %v3139, 16
        %v3371 = vpop.permute.xlu0 %3370
        %3372 = vrot.lane.b32.xlu0 %v3140, 16
        %v3373 = vpop.permute.xlu0 %3372
        %3374 = vrot.lane.b32.xlu0 %v3142, 16
        %v3375 = vpop.permute.xlu0 %3374
        %3376 = vrot.lane.b32.xlu0 %v3143, 16
        %v3377 = vpop.permute.xlu0 %3376
        %3378 = vrot.lane.b32.xlu0 %v3144, 16
        %v3379 = vpop.permute.xlu0 %3378
        %3380 = vrot.lane.b32.xlu0 %v3145, 16
        %v3381 = vpop.permute.xlu0 %3380
        %3382 = vrot.lane.b32.xlu0 %v3146, 16
        %v3383 = vpop.permute.xlu0 %3382
        %3384 = vrot.lane.b32.xlu0 %v3147, 16
        %v3385 = vpop.permute.xlu0 %3384
        %3386 = vrot.lane.b32.xlu0 %v3148, 16
        %v3387 = vpop.permute.xlu0 %3386
        %3388 = vrot.lane.b32.xlu0 %v3150, 16
        %v3389 = vpop.permute.xlu0 %3388
        %3390 = vrot.lane.b32.xlu0 %v3151, 16
        %v3391 = vpop.permute.xlu0 %3390
        %3392 = vrot.lane.b32.xlu0 %v3152, 16
        %v3393 = vpop.permute.xlu0 %3392
        %3394 = vrot.lane.b32.xlu0 %v3153, 16
        %v3395 = vpop.permute.xlu0 %3394
        %3396 = vrot.lane.b32.xlu0 %v3154, 16
        %v3397 = vpop.permute.xlu0 %3396
        %3398 = vrot.lane.b32.xlu0 %v3155, 16
        %v3399 = vpop.permute.xlu0 %3398
        %3400 = vrot.lane.b32.xlu0 %v3156, 16
        %v3401 = vpop.permute.xlu0 %3400
        %3402 = vrot.lane.b32.xlu0 %v3158, 16
        %v3403 = vpop.permute.xlu0 %3402
        %3404 = vrot.lane.b32.xlu0 %v3159, 16
        %v3405 = vpop.permute.xlu0 %3404
        %3406 = vrot.lane.b32.xlu0 %v3160, 16
        %v3407 = vpop.permute.xlu0 %3406
        %3408 = vrot.lane.b32.xlu0 %v3161, 16
        %v3409 = vpop.permute.xlu0 %3408
        %3410 = vrot.lane.b32.xlu0 %v3162, 16
        %v3411 = vpop.permute.xlu0 %3410
        %3412 = vrot.lane.b32.xlu0 %v3163, 16
        %v3413 = vpop.permute.xlu0 %3412
        %3414 = vrot.lane.b32.xlu0 %v3164, 16
        %v3415 = vpop.permute.xlu0 %3414
        %3416 = vrot.lane.b32.xlu0 %v3166, 16
        %v3417 = vpop.permute.xlu0 %3416
        %3418 = vrot.lane.b32.xlu0 %v3167, 16
        %v3419 = vpop.permute.xlu0 %3418
        %3420 = vrot.lane.b32.xlu0 %v3168, 16
        %v3421 = vpop.permute.xlu0 %3420
        %3422 = vrot.lane.b32.xlu0 %v3169, 16
        %v3423 = vpop.permute.xlu0 %3422
        %3424 = vrot.lane.b32.xlu0 %v3170, 16
        %v3425 = vpop.permute.xlu0 %3424
        %3426 = vrot.lane.b32.xlu0 %v3171, 16
        %v3427 = vpop.permute.xlu0 %3426
        %3428 = vrot.lane.b32.xlu0 %v3172, 16
        %v3429 = vpop.permute.xlu0 %3428
        %3430 = vrot.lane.b32.xlu0 %v3174, 16
        %v3431 = vpop.permute.xlu0 %3430
        %3432 = vrot.lane.b32.xlu0 %v3175, 16
        %v3433 = vpop.permute.xlu0 %3432
        %3434 = vrot.lane.b32.xlu0 %v3176, 16
        %v3435 = vpop.permute.xlu0 %3434
        %3436 = vrot.lane.b32.xlu0 %v3177, 16
        %v3437 = vpop.permute.xlu0 %3436
        %3438 = vrot.lane.b32.xlu0 %v3178, 16
        %v3439 = vpop.permute.xlu0 %3438
        %3440 = vrot.lane.b32.xlu0 %v3179, 16
        %v3441 = vpop.permute.xlu0 %3440
        %3442 = vrot.lane.b32.xlu0 %v3180, 16
        %v3443 = vpop.permute.xlu0 %3442
        %3444 = vrot.lane.b32.xlu0 %v3182, 16
        %v3445 = vpop.permute.xlu0 %3444
        %3446 = vrot.lane.b32.xlu0 %v3183, 16
        %v3447 = vpop.permute.xlu0 %3446
        %3448 = vrot.lane.b32.xlu0 %v3184, 16
        %v3449 = vpop.permute.xlu0 %3448
        %3450 = vrot.lane.b32.xlu0 %v3185, 16
        %v3451 = vpop.permute.xlu0 %3450
        %3452 = vrot.lane.b32.xlu0 %v3186, 16
        %v3453 = vpop.permute.xlu0 %3452
        %3454 = vrot.lane.b32.xlu0 %v3187, 16
        %v3455 = vpop.permute.xlu0 %3454
        %3456 = vrot.lane.b32.xlu0 %v3188, 16
        %v3457 = vpop.permute.xlu0 %3456
        %vm3515 = vcmask 261248
        %3516 = vst.msk [vmem:[#allocation2] sm:$0xff] %vm3515, %v3345
        %3517 = vst.msk [vmem:[#allocation2 + $0x8] sm:$0xff] %vm3515, %v3345
        %3518 = vst.msk [vmem:[#allocation2 + $0x10] sm:$0xff] %vm3515, %v3345
        %3519 = vst.msk [vmem:[#allocation2 + $0x18] sm:$0xff] %vm3515, %v3345
        %3520 = vst.msk [vmem:[#allocation2 + $0x20] sm:$0xff] %vm3515, %v3345
        %3521 = vst.msk [vmem:[#allocation2 + $0x28] sm:$0xff] %vm3515, %v3345
        %3522 = vst.msk [vmem:[#allocation2 + $0x30] sm:$0xff] %vm3515, %v3345
        %3523 = vst.msk [vmem:[#allocation2 + $0x38] sm:$0xff] %vm3515, %v3345
        %3524 = vst.msk [vmem:[#allocation2 + $0x40] sm:$0xff] %vm3515, %v3345
        %3525 = vst.msk [vmem:[#allocation2 + $0x48] sm:$0xff] %vm3515, %v3345
        %3526 = vst.msk [vmem:[#allocation2 + $0x50] sm:$0xff] %vm3515, %v3345
        %3527 = vst.msk [vmem:[#allocation2 + $0x58] sm:$0xff] %vm3515, %v3345
        %3528 = vst.msk [vmem:[#allocation2 + $0x60] sm:$0xff] %vm3515, %v3345
        %3529 = vst.msk [vmem:[#allocation2 + $0x68] sm:$0xff] %vm3515, %v3345
        %3530 = vst.msk [vmem:[#allocation2 + $0x70] sm:$0xff] %vm3515, %v3345
        %3531 = vst.msk [vmem:[#allocation2 + $0x78] sm:$0xff] %vm3515, %v3345
        %3532 = vst.msk [vmem:[#allocation2 + $0x80] sm:$0xff] %vm3515, %v3345
        %3533 = vst.msk [vmem:[#allocation2 + $0x88] sm:$0xff] %vm3515, %v3347
        %3534 = vst.msk [vmem:[#allocation2 + $0x90] sm:$0xff] %vm3515, %v3349
        %3535 = vst.msk [vmem:[#allocation2 + $0x98] sm:$0xff] %vm3515, %v3351
        %3536 = vst.msk [vmem:[#allocation2 + $0xa0] sm:$0xff] %vm3515, %v3353
        %3537 = vst.msk [vmem:[#allocation2 + $0xa8] sm:$0xff] %vm3515, %v3355
        %3538 = vst.msk [vmem:[#allocation2 + $0xb0] sm:$0xff] %vm3515, %v3357
        %3539 = vst.msk [vmem:[#allocation2 + $0xb8] sm:$0xff] %vm3515, %v3359
        %3540 = vst.msk [vmem:[#allocation2 + $0xc0] sm:$0xff] %vm3515, %v3345
        %3541 = vst.msk [vmem:[#allocation2 + $0xc8] sm:$0xff] %vm3515, %v3361
        %3542 = vst.msk [vmem:[#allocation2 + $0xd0] sm:$0xff] %vm3515, %v3363
        %3543 = vst.msk [vmem:[#allocation2 + $0xd8] sm:$0xff] %vm3515, %v3365
        %3544 = vst.msk [vmem:[#allocation2 + $0xe0] sm:$0xff] %vm3515, %v3367
        %3545 = vst.msk [vmem:[#allocation2 + $0xe8] sm:$0xff] %vm3515, %v3369
        %3546 = vst.msk [vmem:[#allocation2 + $0xf0] sm:$0xff] %vm3515, %v3371
        %3547 = vst.msk [vmem:[#allocation2 + $0xf8] sm:$0xff] %vm3515, %v3373
        %3548 = vst.msk [vmem:[#allocation2 + $0x100] sm:$0xff] %vm3515, %v3345
        %3549 = vst.msk [vmem:[#allocation2 + $0x108] sm:$0xff] %vm3515, %v3375
        %3550 = vst.msk [vmem:[#allocation2 + $0x110] sm:$0xff] %vm3515, %v3377
        %3551 = vst.msk [vmem:[#allocation2 + $0x118] sm:$0xff] %vm3515, %v3379
        %3552 = vst.msk [vmem:[#allocation2 + $0x120] sm:$0xff] %vm3515, %v3381
        %3553 = vst.msk [vmem:[#allocation2 + $0x128] sm:$0xff] %vm3515, %v3383
        %3554 = vst.msk [vmem:[#allocation2 + $0x130] sm:$0xff] %vm3515, %v3385
        %3555 = vst.msk [vmem:[#allocation2 + $0x138] sm:$0xff] %vm3515, %v3387
        %3556 = vst.msk [vmem:[#allocation2 + $0x140] sm:$0xff] %vm3515, %v3345
        %3557 = vst.msk [vmem:[#allocation2 + $0x148] sm:$0xff] %vm3515, %v3389
        %3558 = vst.msk [vmem:[#allocation2 + $0x150] sm:$0xff] %vm3515, %v3391
        %3559 = vst.msk [vmem:[#allocation2 + $0x158] sm:$0xff] %vm3515, %v3393
        %3560 = vst.msk [vmem:[#allocation2 + $0x160] sm:$0xff] %vm3515, %v3395
        %3561 = vst.msk [vmem:[#allocation2 + $0x168] sm:$0xff] %vm3515, %v3397
        %3562 = vst.msk [vmem:[#allocation2 + $0x170] sm:$0xff] %vm3515, %v3399
        %3563 = vst.msk [vmem:[#allocation2 + $0x178] sm:$0xff] %vm3515, %v3401
        %3564 = vst.msk [vmem:[#allocation2 + $0x180] sm:$0xff] %vm3515, %v3345
        %3565 = vst.msk [vmem:[#allocation2 + $0x188] sm:$0xff] %vm3515, %v3403
        %3566 = vst.msk [vmem:[#allocation2 + $0x190] sm:$0xff] %vm3515, %v3405
        %3567 = vst.msk [vmem:[#allocation2 + $0x198] sm:$0xff] %vm3515, %v3407
        %3568 = vst.msk [vmem:[#allocation2 + $0x1a0] sm:$0xff] %vm3515, %v3409
        %3569 = vst.msk [vmem:[#allocation2 + $0x1a8] sm:$0xff] %vm3515, %v3411
        %3570 = vst.msk [vmem:[#allocation2 + $0x1b0] sm:$0xff] %vm3515, %v3413
        %3571 = vst.msk [vmem:[#allocation2 + $0x1b8] sm:$0xff] %vm3515, %v3415
        %3572 = vst.msk [vmem:[#allocation2 + $0x1c0] sm:$0xff] %vm3515, %v3345
        %3573 = vst.msk [vmem:[#allocation2 + $0x1c8] sm:$0xff] %vm3515, %v3417
        %3574 = vst.msk [vmem:[#allocation2 + $0x1d0] sm:$0xff] %vm3515, %v3419
        %3575 = vst.msk [vmem:[#allocation2 + $0x1d8] sm:$0xff] %vm3515, %v3421
        %3576 = vst.msk [vmem:[#allocation2 + $0x1e0] sm:$0xff] %vm3515, %v3423
        %3577 = vst.msk [vmem:[#allocation2 + $0x1e8] sm:$0xff] %vm3515, %v3425
        %3578 = vst.msk [vmem:[#allocation2 + $0x1f0] sm:$0xff] %vm3515, %v3427
        %3579 = vst.msk [vmem:[#allocation2 + $0x1f8] sm:$0xff] %vm3515, %v3429
        %3580 = vst.msk [vmem:[#allocation2 + $0x200] sm:$0xff] %vm3515, %v3345
        %3581 = vst.msk [vmem:[#allocation2 + $0x208] sm:$0xff] %vm3515, %v3431
        %3582 = vst.msk [vmem:[#allocation2 + $0x210] sm:$0xff] %vm3515, %v3433
        %3583 = vst.msk [vmem:[#allocation2 + $0x218] sm:$0xff] %vm3515, %v3435
        %3584 = vst.msk [vmem:[#allocation2 + $0x220] sm:$0xff] %vm3515, %v3437
        %3585 = vst.msk [vmem:[#allocation2 + $0x228] sm:$0xff] %vm3515, %v3439
        %3586 = vst.msk [vmem:[#allocation2 + $0x230] sm:$0xff] %vm3515, %v3441
        %3587 = vst.msk [vmem:[#allocation2 + $0x238] sm:$0xff] %vm3515, %v3443
        %3588 = vst.msk [vmem:[#allocation2 + $0x240] sm:$0xff] %vm3515, %v3345
        %3589 = vst.msk [vmem:[#allocation2 + $0x248] sm:$0xff] %vm3515, %v3445
        %3590 = vst.msk [vmem:[#allocation2 + $0x250] sm:$0xff] %vm3515, %v3447
        %3591 = vst.msk [vmem:[#allocation2 + $0x258] sm:$0xff] %vm3515, %v3449
        %3592 = vst.msk [vmem:[#allocation2 + $0x260] sm:$0xff] %vm3515, %v3451
        %3593 = vst.msk [vmem:[#allocation2 + $0x268] sm:$0xff] %vm3515, %v3453
        %3594 = vst.msk [vmem:[#allocation2 + $0x270] sm:$0xff] %vm3515, %v3455
        %3595 = vst.msk [vmem:[#allocation2 + $0x278] sm:$0xff] %vm3515, %v3457
        %3596 = vst.msk [vmem:[#allocation2 + $0x280] sm:$0xff] %vm3515, %v3345
        %3597 = vst.msk [vmem:[#allocation2 + $0x288] sm:$0xff] %vm3515, %v3345
        %3598 = vst.msk [vmem:[#allocation2 + $0x290] sm:$0xff] %vm3515, %v3345
        %3599 = vst.msk [vmem:[#allocation2 + $0x298] sm:$0xff] %vm3515, %v3345
        %3600 = vst.msk [vmem:[#allocation2 + $0x2a0] sm:$0xff] %vm3515, %v3345
        %3601 = vst.msk [vmem:[#allocation2 + $0x2a8] sm:$0xff] %vm3515, %v3345
        %3602 = vst.msk [vmem:[#allocation2 + $0x2b0] sm:$0xff] %vm3515, %v3345
        %3603 = vst.msk [vmem:[#allocation2 + $0x2b8] sm:$0xff] %vm3515, %v3345
        %3604 = vst.msk [vmem:[#allocation2 + $0x2c0] sm:$0xff] %vm3515, %v3345
        %3605 = vst.msk [vmem:[#allocation2 + $0x2c8] sm:$0xff] %vm3515, %v3345
        %3606 = vst.msk [vmem:[#allocation2 + $0x2d0] sm:$0xff] %vm3515, %v3345
        %3607 = vst.msk [vmem:[#allocation2 + $0x2d8] sm:$0xff] %vm3515, %v3345
        %3608 = vst.msk [vmem:[#allocation2 + $0x2e0] sm:$0xff] %vm3515, %v3345
        %3609 = vst.msk [vmem:[#allocation2 + $0x2e8] sm:$0xff] %vm3515, %v3345
        %3610 = vst.msk [vmem:[#allocation2 + $0x2f0] sm:$0xff] %vm3515, %v3345
        %3611 = vst.msk [vmem:[#allocation2 + $0x2f8] sm:$0xff] %vm3515, %v3345
        %3620 = vrot.lane.b32.xlu0 0.0, 32
        %v3621 = vpop.permute.xlu0 %3620
        %3622 = vrot.lane.b32.xlu0 %v3126, 32
        %v3623 = vpop.permute.xlu0 %3622
        %3624 = vrot.lane.b32.xlu0 %v3127, 32
        %v3625 = vpop.permute.xlu0 %3624
        %3626 = vrot.lane.b32.xlu0 %v3128, 32
        %v3627 = vpop.permute.xlu0 %3626
        %3628 = vrot.lane.b32.xlu0 %v3129, 32
        %v3629 = vpop.permute.xlu0 %3628
        %3630 = vrot.lane.b32.xlu0 %v3130, 32
        %v3631 = vpop.permute.xlu0 %3630
        %3632 = vrot.lane.b32.xlu0 %v3131, 32
        %v3633 = vpop.permute.xlu0 %3632
        %3634 = vrot.lane.b32.xlu0 %v3132, 32
        %v3635 = vpop.permute.xlu0 %3634
        %3636 = vrot.lane.b32.xlu0 %v3133, 32
        %v3637 = vpop.permute.xlu0 %3636
        %3638 = vrot.lane.b32.xlu0 %v3134, 32
        %v3639 = vpop.permute.xlu0 %3638
        %3640 = vrot.lane.b32.xlu0 %v3135, 32
        %v3641 = vpop.permute.xlu0 %3640
        %3642 = vrot.lane.b32.xlu0 %v3136, 32
        %v3643 = vpop.permute.xlu0 %3642
        %3644 = vrot.lane.b32.xlu0 %v3137, 32
        %v3645 = vpop.permute.xlu0 %3644
        %3646 = vrot.lane.b32.xlu0 %v3138, 32
        %v3647 = vpop.permute.xlu0 %3646
        %3648 = vrot.lane.b32.xlu0 %v3139, 32
        %v3649 = vpop.permute.xlu0 %3648
        %3650 = vrot.lane.b32.xlu0 %v3140, 32
        %v3651 = vpop.permute.xlu0 %3650
        %3652 = vrot.lane.b32.xlu0 %v3141, 32
        %v3653 = vpop.permute.xlu0 %3652
        %3654 = vrot.lane.b32.xlu0 %v3142, 32
        %v3655 = vpop.permute.xlu0 %3654
        %3656 = vrot.lane.b32.xlu0 %v3143, 32
        %v3657 = vpop.permute.xlu0 %3656
        %3658 = vrot.lane.b32.xlu0 %v3144, 32
        %v3659 = vpop.permute.xlu0 %3658
        %3660 = vrot.lane.b32.xlu0 %v3145, 32
        %v3661 = vpop.permute.xlu0 %3660
        %3662 = vrot.lane.b32.xlu0 %v3146, 32
        %v3663 = vpop.permute.xlu0 %3662
        %3664 = vrot.lane.b32.xlu0 %v3147, 32
        %v3665 = vpop.permute.xlu0 %3664
        %3666 = vrot.lane.b32.xlu0 %v3148, 32
        %v3667 = vpop.permute.xlu0 %3666
        %3668 = vrot.lane.b32.xlu0 %v3149, 32
        %v3669 = vpop.permute.xlu0 %3668
        %3670 = vrot.lane.b32.xlu0 %v3150, 32
        %v3671 = vpop.permute.xlu0 %3670
        %3672 = vrot.lane.b32.xlu0 %v3151, 32
        %v3673 = vpop.permute.xlu0 %3672
        %3674 = vrot.lane.b32.xlu0 %v3152, 32
        %v3675 = vpop.permute.xlu0 %3674
        %3676 = vrot.lane.b32.xlu0 %v3153, 32
        %v3677 = vpop.permute.xlu0 %3676
        %3678 = vrot.lane.b32.xlu0 %v3154, 32
        %v3679 = vpop.permute.xlu0 %3678
        %3680 = vrot.lane.b32.xlu0 %v3155, 32
        %v3681 = vpop.permute.xlu0 %3680
        %3682 = vrot.lane.b32.xlu0 %v3156, 32
        %v3683 = vpop.permute.xlu0 %3682
        %3684 = vrot.lane.b32.xlu0 %v3157, 32
        %v3685 = vpop.permute.xlu0 %3684
        %3686 = vrot.lane.b32.xlu0 %v3158, 32
        %v3687 = vpop.permute.xlu0 %3686
        %3688 = vrot.lane.b32.xlu0 %v3159, 32
        %v3689 = vpop.permute.xlu0 %3688
        %3690 = vrot.lane.b32.xlu0 %v3160, 32
        %v3691 = vpop.permute.xlu0 %3690
        %3692 = vrot.lane.b32.xlu0 %v3161, 32
        %v3693 = vpop.permute.xlu0 %3692
        %3694 = vrot.lane.b32.xlu0 %v3162, 32
        %v3695 = vpop.permute.xlu0 %3694
        %3696 = vrot.lane.b32.xlu0 %v3163, 32
        %v3697 = vpop.permute.xlu0 %3696
        %3698 = vrot.lane.b32.xlu0 %v3164, 32
        %v3699 = vpop.permute.xlu0 %3698
        %3700 = vrot.lane.b32.xlu0 %v3165, 32
        %v3701 = vpop.permute.xlu0 %3700
        %3702 = vrot.lane.b32.xlu0 %v3166, 32
        %v3703 = vpop.permute.xlu0 %3702
        %3704 = vrot.lane.b32.xlu0 %v3167, 32
        %v3705 = vpop.permute.xlu0 %3704
        %3706 = vrot.lane.b32.xlu0 %v3168, 32
        %v3707 = vpop.permute.xlu0 %3706
        %3708 = vrot.lane.b32.xlu0 %v3169, 32
        %v3709 = vpop.permute.xlu0 %3708
        %3710 = vrot.lane.b32.xlu0 %v3170, 32
        %v3711 = vpop.permute.xlu0 %3710
        %3712 = vrot.lane.b32.xlu0 %v3171, 32
        %v3713 = vpop.permute.xlu0 %3712
        %3714 = vrot.lane.b32.xlu0 %v3172, 32
        %v3715 = vpop.permute.xlu0 %3714
        %3716 = vrot.lane.b32.xlu0 %v3173, 32
        %v3717 = vpop.permute.xlu0 %3716
        %3718 = vrot.lane.b32.xlu0 %v3174, 32
        %v3719 = vpop.permute.xlu0 %3718
        %3720 = vrot.lane.b32.xlu0 %v3175, 32
        %v3721 = vpop.permute.xlu0 %3720
        %3722 = vrot.lane.b32.xlu0 %v3176, 32
        %v3723 = vpop.permute.xlu0 %3722
        %3724 = vrot.lane.b32.xlu0 %v3177, 32
        %v3725 = vpop.permute.xlu0 %3724
        %3726 = vrot.lane.b32.xlu0 %v3178, 32
        %v3727 = vpop.permute.xlu0 %3726
        %3728 = vrot.lane.b32.xlu0 %v3179, 32
        %v3729 = vpop.permute.xlu0 %3728
        %3730 = vrot.lane.b32.xlu0 %v3180, 32
        %v3731 = vpop.permute.xlu0 %3730
        %3732 = vrot.lane.b32.xlu0 %v3181, 32
        %v3733 = vpop.permute.xlu0 %3732
        %3734 = vrot.lane.b32.xlu0 %v3182, 32
        %v3735 = vpop.permute.xlu0 %3734
        %3736 = vrot.lane.b32.xlu0 %v3183, 32
        %v3737 = vpop.permute.xlu0 %3736
        %3738 = vrot.lane.b32.xlu0 %v3184, 32
        %v3739 = vpop.permute.xlu0 %3738
        %3740 = vrot.lane.b32.xlu0 %v3185, 32
        %v3741 = vpop.permute.xlu0 %3740
        %3742 = vrot.lane.b32.xlu0 %v3186, 32
        %v3743 = vpop.permute.xlu0 %3742
        %3744 = vrot.lane.b32.xlu0 %v3187, 32
        %v3745 = vpop.permute.xlu0 %3744
        %3746 = vrot.lane.b32.xlu0 %v3188, 32
        %v3747 = vpop.permute.xlu0 %3746
        %3748 = vrot.lane.b32.xlu0 %v3189, 32
        %v3749 = vpop.permute.xlu0 %3748
        %vm3815 = vcmask 392448
        %3816 = vst.msk [vmem:[#allocation2] sm:$0xff] %vm3815, %v3621
        %3817 = vst.msk [vmem:[#allocation2 + $0x8] sm:$0xff] %vm3815, %v3621
        %3818 = vst.msk [vmem:[#allocation2 + $0x10] sm:$0xff] %vm3815, %v3621
        %3819 = vst.msk [vmem:[#allocation2 + $0x18] sm:$0xff] %vm3815, %v3621
        %3820 = vst.msk [vmem:[#allocation2 + $0x20] sm:$0xff] %vm3815, %v3621
        %3821 = vst.msk [vmem:[#allocation2 + $0x28] sm:$0xff] %vm3815, %v3621
        %3822 = vst.msk [vmem:[#allocation2 + $0x30] sm:$0xff] %vm3815, %v3621
        %3823 = vst.msk [vmem:[#allocation2 + $0x38] sm:$0xff] %vm3815, %v3621
        %3824 = vst.msk [vmem:[#allocation2 + $0x40] sm:$0xff] %vm3815, %v3621
        %3825 = vst.msk [vmem:[#allocation2 + $0x48] sm:$0xff] %vm3815, %v3621
        %3826 = vst.msk [vmem:[#allocation2 + $0x50] sm:$0xff] %vm3815, %v3621
        %3827 = vst.msk [vmem:[#allocation2 + $0x58] sm:$0xff] %vm3815, %v3621
        %3828 = vst.msk [vmem:[#allocation2 + $0x60] sm:$0xff] %vm3815, %v3621
        %3829 = vst.msk [vmem:[#allocation2 + $0x68] sm:$0xff] %vm3815, %v3621
        %3830 = vst.msk [vmem:[#allocation2 + $0x70] sm:$0xff] %vm3815, %v3621
        %3831 = vst.msk [vmem:[#allocation2 + $0x78] sm:$0xff] %vm3815, %v3621
        %3832 = vst.msk [vmem:[#allocation2 + $0x80] sm:$0xff] %vm3815, %v3623
        %3833 = vst.msk [vmem:[#allocation2 + $0x88] sm:$0xff] %vm3815, %v3625
        %3834 = vst.msk [vmem:[#allocation2 + $0x90] sm:$0xff] %vm3815, %v3627
        %3835 = vst.msk [vmem:[#allocation2 + $0x98] sm:$0xff] %vm3815, %v3629
        %3836 = vst.msk [vmem:[#allocation2 + $0xa0] sm:$0xff] %vm3815, %v3631
        %3837 = vst.msk [vmem:[#allocation2 + $0xa8] sm:$0xff] %vm3815, %v3633
        %3838 = vst.msk [vmem:[#allocation2 + $0xb0] sm:$0xff] %vm3815, %v3635
        %3839 = vst.msk [vmem:[#allocation2 + $0xb8] sm:$0xff] %vm3815, %v3637
        %3840 = vst.msk [vmem:[#allocation2 + $0xc0] sm:$0xff] %vm3815, %v3639
        %3841 = vst.msk [vmem:[#allocation2 + $0xc8] sm:$0xff] %vm3815, %v3641
        %3842 = vst.msk [vmem:[#allocation2 + $0xd0] sm:$0xff] %vm3815, %v3643
        %3843 = vst.msk [vmem:[#allocation2 + $0xd8] sm:$0xff] %vm3815, %v3645
        %3844 = vst.msk [vmem:[#allocation2 + $0xe0] sm:$0xff] %vm3815, %v3647
        %3845 = vst.msk [vmem:[#allocation2 + $0xe8] sm:$0xff] %vm3815, %v3649
        %3846 = vst.msk [vmem:[#allocation2 + $0xf0] sm:$0xff] %vm3815, %v3651
        %3847 = vst.msk [vmem:[#allocation2 + $0xf8] sm:$0xff] %vm3815, %v3653
        %3848 = vst.msk [vmem:[#allocation2 + $0x100] sm:$0xff] %vm3815, %v3655
        %3849 = vst.msk [vmem:[#allocation2 + $0x108] sm:$0xff] %vm3815, %v3657
        %3850 = vst.msk [vmem:[#allocation2 + $0x110] sm:$0xff] %vm3815, %v3659
        %3851 = vst.msk [vmem:[#allocation2 + $0x118] sm:$0xff] %vm3815, %v3661
        %3852 = vst.msk [vmem:[#allocation2 + $0x120] sm:$0xff] %vm3815, %v3663
        %3853 = vst.msk [vmem:[#allocation2 + $0x128] sm:$0xff] %vm3815, %v3665
        %3854 = vst.msk [vmem:[#allocation2 + $0x130] sm:$0xff] %vm3815, %v3667
        %3855 = vst.msk [vmem:[#allocation2 + $0x138] sm:$0xff] %vm3815, %v3669
        %3856 = vst.msk [vmem:[#allocation2 + $0x140] sm:$0xff] %vm3815, %v3671
        %3857 = vst.msk [vmem:[#allocation2 + $0x148] sm:$0xff] %vm3815, %v3673
        %3858 = vst.msk [vmem:[#allocation2 + $0x150] sm:$0xff] %vm3815, %v3675
        %3859 = vst.msk [vmem:[#allocation2 + $0x158] sm:$0xff] %vm3815, %v3677
        %3860 = vst.msk [vmem:[#allocation2 + $0x160] sm:$0xff] %vm3815, %v3679
        %3861 = vst.msk [vmem:[#allocation2 + $0x168] sm:$0xff] %vm3815, %v3681
        %3862 = vst.msk [vmem:[#allocation2 + $0x170] sm:$0xff] %vm3815, %v3683
        %3863 = vst.msk [vmem:[#allocation2 + $0x178] sm:$0xff] %vm3815, %v3685
        %3864 = vst.msk [vmem:[#allocation2 + $0x180] sm:$0xff] %vm3815, %v3687
        %3865 = vst.msk [vmem:[#allocation2 + $0x188] sm:$0xff] %vm3815, %v3689
        %3866 = vst.msk [vmem:[#allocation2 + $0x190] sm:$0xff] %vm3815, %v3691
        %3867 = vst.msk [vmem:[#allocation2 + $0x198] sm:$0xff] %vm3815, %v3693
        %3868 = vst.msk [vmem:[#allocation2 + $0x1a0] sm:$0xff] %vm3815, %v3695
        %3869 = vst.msk [vmem:[#allocation2 + $0x1a8] sm:$0xff] %vm3815, %v3697
        %3870 = vst.msk [vmem:[#allocation2 + $0x1b0] sm:$0xff] %vm3815, %v3699
        %3871 = vst.msk [vmem:[#allocation2 + $0x1b8] sm:$0xff] %vm3815, %v3701
        %3872 = vst.msk [vmem:[#allocation2 + $0x1c0] sm:$0xff] %vm3815, %v3703
        %3873 = vst.msk [vmem:[#allocation2 + $0x1c8] sm:$0xff] %vm3815, %v3705
        %3874 = vst.msk [vmem:[#allocation2 + $0x1d0] sm:$0xff] %vm3815, %v3707
        %3875 = vst.msk [vmem:[#allocation2 + $0x1d8] sm:$0xff] %vm3815, %v3709
        %3876 = vst.msk [vmem:[#allocation2 + $0x1e0] sm:$0xff] %vm3815, %v3711
        %3877 = vst.msk [vmem:[#allocation2 + $0x1e8] sm:$0xff] %vm3815, %v3713
        %3878 = vst.msk [vmem:[#allocation2 + $0x1f0] sm:$0xff] %vm3815, %v3715
        %3879 = vst.msk [vmem:[#allocation2 + $0x1f8] sm:$0xff] %vm3815, %v3717
        %3880 = vst.msk [vmem:[#allocation2 + $0x200] sm:$0xff] %vm3815, %v3719
        %3881 = vst.msk [vmem:[#allocation2 + $0x208] sm:$0xff] %vm3815, %v3721
        %3882 = vst.msk [vmem:[#allocation2 + $0x210] sm:$0xff] %vm3815, %v3723
        %3883 = vst.msk [vmem:[#allocation2 + $0x218] sm:$0xff] %vm3815, %v3725
        %3884 = vst.msk [vmem:[#allocation2 + $0x220] sm:$0xff] %vm3815, %v3727
        %3885 = vst.msk [vmem:[#allocation2 + $0x228] sm:$0xff] %vm3815, %v3729
        %3886 = vst.msk [vmem:[#allocation2 + $0x230] sm:$0xff] %vm3815, %v3731
        %3887 = vst.msk [vmem:[#allocation2 + $0x238] sm:$0xff] %vm3815, %v3733
        %3888 = vst.msk [vmem:[#allocation2 + $0x240] sm:$0xff] %vm3815, %v3735
        %3889 = vst.msk [vmem:[#allocation2 + $0x248] sm:$0xff] %vm3815, %v3737
        %3890 = vst.msk [vmem:[#allocation2 + $0x250] sm:$0xff] %vm3815, %v3739
        %3891 = vst.msk [vmem:[#allocation2 + $0x258] sm:$0xff] %vm3815, %v3741
        %3892 = vst.msk [vmem:[#allocation2 + $0x260] sm:$0xff] %vm3815, %v3743
        %3893 = vst.msk [vmem:[#allocation2 + $0x268] sm:$0xff] %vm3815, %v3745
        %3894 = vst.msk [vmem:[#allocation2 + $0x270] sm:$0xff] %vm3815, %v3747
        %3895 = vst.msk [vmem:[#allocation2 + $0x278] sm:$0xff] %vm3815, %v3749
        %3896 = vst.msk [vmem:[#allocation2 + $0x280] sm:$0xff] %vm3815, %v3621
        %3897 = vst.msk [vmem:[#allocation2 + $0x288] sm:$0xff] %vm3815, %v3621
        %3898 = vst.msk [vmem:[#allocation2 + $0x290] sm:$0xff] %vm3815, %v3621
        %3899 = vst.msk [vmem:[#allocation2 + $0x298] sm:$0xff] %vm3815, %v3621
        %3900 = vst.msk [vmem:[#allocation2 + $0x2a0] sm:$0xff] %vm3815, %v3621
        %3901 = vst.msk [vmem:[#allocation2 + $0x2a8] sm:$0xff] %vm3815, %v3621
        %3902 = vst.msk [vmem:[#allocation2 + $0x2b0] sm:$0xff] %vm3815, %v3621
        %3903 = vst.msk [vmem:[#allocation2 + $0x2b8] sm:$0xff] %vm3815, %v3621
        %3904 = vst.msk [vmem:[#allocation2 + $0x2c0] sm:$0xff] %vm3815, %v3621
        %3905 = vst.msk [vmem:[#allocation2 + $0x2c8] sm:$0xff] %vm3815, %v3621
        %3906 = vst.msk [vmem:[#allocation2 + $0x2d0] sm:$0xff] %vm3815, %v3621
        %3907 = vst.msk [vmem:[#allocation2 + $0x2d8] sm:$0xff] %vm3815, %v3621
        %3908 = vst.msk [vmem:[#allocation2 + $0x2e0] sm:$0xff] %vm3815, %v3621
        %3909 = vst.msk [vmem:[#allocation2 + $0x2e8] sm:$0xff] %vm3815, %v3621
        %3910 = vst.msk [vmem:[#allocation2 + $0x2f0] sm:$0xff] %vm3815, %v3621
        %3911 = vst.msk [vmem:[#allocation2 + $0x2f8] sm:$0xff] %vm3815, %v3621
        %3912 = vrot.lane.b32.xlu0 0.0, 48
        %v3913 = vpop.permute.xlu0 %3912
        %3914 = vrot.lane.b32.xlu0 %v3127, 48
        %v3915 = vpop.permute.xlu0 %3914
        %3916 = vrot.lane.b32.xlu0 %v3128, 48
        %v3917 = vpop.permute.xlu0 %3916
        %3918 = vrot.lane.b32.xlu0 %v3129, 48
        %v3919 = vpop.permute.xlu0 %3918
        %3920 = vrot.lane.b32.xlu0 %v3130, 48
        %v3921 = vpop.permute.xlu0 %3920
        %3922 = vrot.lane.b32.xlu0 %v3131, 48
        %v3923 = vpop.permute.xlu0 %3922
        %3924 = vrot.lane.b32.xlu0 %v3132, 48
        %v3925 = vpop.permute.xlu0 %3924
        %3926 = vrot.lane.b32.xlu0 %v3133, 48
        %v3927 = vpop.permute.xlu0 %3926
        %3928 = vrot.lane.b32.xlu0 %v3135, 48
        %v3929 = vpop.permute.xlu0 %3928
        %3930 = vrot.lane.b32.xlu0 %v3136, 48
        %v3931 = vpop.permute.xlu0 %3930
        %3932 = vrot.lane.b32.xlu0 %v3137, 48
        %v3933 = vpop.permute.xlu0 %3932
        %3934 = vrot.lane.b32.xlu0 %v3138, 48
        %v3935 = vpop.permute.xlu0 %3934
        %3936 = vrot.lane.b32.xlu0 %v3139, 48
        %v3937 = vpop.permute.xlu0 %3936
        %3938 = vrot.lane.b32.xlu0 %v3140, 48
        %v3939 = vpop.permute.xlu0 %3938
        %3940 = vrot.lane.b32.xlu0 %v3141, 48
        %v3941 = vpop.permute.xlu0 %3940
        %3942 = vrot.lane.b32.xlu0 %v3143, 48
        %v3943 = vpop.permute.xlu0 %3942
        %3944 = vrot.lane.b32.xlu0 %v3144, 48
        %v3945 = vpop.permute.xlu0 %3944
        %3946 = vrot.lane.b32.xlu0 %v3145, 48
        %v3947 = vpop.permute.xlu0 %3946
        %3948 = vrot.lane.b32.xlu0 %v3146, 48
        %v3949 = vpop.permute.xlu0 %3948
        %3950 = vrot.lane.b32.xlu0 %v3147, 48
        %v3951 = vpop.permute.xlu0 %3950
        %3952 = vrot.lane.b32.xlu0 %v3148, 48
        %v3953 = vpop.permute.xlu0 %3952
        %3954 = vrot.lane.b32.xlu0 %v3149, 48
        %v3955 = vpop.permute.xlu0 %3954
        %3956 = vrot.lane.b32.xlu0 %v3151, 48
        %v3957 = vpop.permute.xlu0 %3956
        %3958 = vrot.lane.b32.xlu0 %v3152, 48
        %v3959 = vpop.permute.xlu0 %3958
        %3960 = vrot.lane.b32.xlu0 %v3153, 48
        %v3961 = vpop.permute.xlu0 %3960
        %3962 = vrot.lane.b32.xlu0 %v3154, 48
        %v3963 = vpop.permute.xlu0 %3962
        %3964 = vrot.lane.b32.xlu0 %v3155, 48
        %v3965 = vpop.permute.xlu0 %3964
        %3966 = vrot.lane.b32.xlu0 %v3156, 48
        %v3967 = vpop.permute.xlu0 %3966
        %3968 = vrot.lane.b32.xlu0 %v3157, 48
        %v3969 = vpop.permute.xlu0 %3968
        %3970 = vrot.lane.b32.xlu0 %v3159, 48
        %v3971 = vpop.permute.xlu0 %3970
        %3972 = vrot.lane.b32.xlu0 %v3160, 48
        %v3973 = vpop.permute.xlu0 %3972
        %3974 = vrot.lane.b32.xlu0 %v3161, 48
        %v3975 = vpop.permute.xlu0 %3974
        %3976 = vrot.lane.b32.xlu0 %v3162, 48
        %v3977 = vpop.permute.xlu0 %3976
        %3978 = vrot.lane.b32.xlu0 %v3163, 48
        %v3979 = vpop.permute.xlu0 %3978
        %3980 = vrot.lane.b32.xlu0 %v3164, 48
        %v3981 = vpop.permute.xlu0 %3980
        %3982 = vrot.lane.b32.xlu0 %v3165, 48
        %v3983 = vpop.permute.xlu0 %3982
        %3984 = vrot.lane.b32.xlu0 %v3167, 48
        %v3985 = vpop.permute.xlu0 %3984
        %3986 = vrot.lane.b32.xlu0 %v3168, 48
        %v3987 = vpop.permute.xlu0 %3986
        %3988 = vrot.lane.b32.xlu0 %v3169, 48
        %v3989 = vpop.permute.xlu0 %3988
        %3990 = vrot.lane.b32.xlu0 %v3170, 48
        %v3991 = vpop.permute.xlu0 %3990
        %3992 = vrot.lane.b32.xlu0 %v3171, 48
        %v3993 = vpop.permute.xlu0 %3992
        %3994 = vrot.lane.b32.xlu0 %v3172, 48
        %v3995 = vpop.permute.xlu0 %3994
        %3996 = vrot.lane.b32.xlu0 %v3173, 48
        %v3997 = vpop.permute.xlu0 %3996
        %3998 = vrot.lane.b32.xlu0 %v3175, 48
        %v3999 = vpop.permute.xlu0 %3998
        %4000 = vrot.lane.b32.xlu0 %v3176, 48
        %v4001 = vpop.permute.xlu0 %4000
        %4002 = vrot.lane.b32.xlu0 %v3177, 48
        %v4003 = vpop.permute.xlu0 %4002
        %4004 = vrot.lane.b32.xlu0 %v3178, 48
        %v4005 = vpop.permute.xlu0 %4004
        %4006 = vrot.lane.b32.xlu0 %v3179, 48
        %v4007 = vpop.permute.xlu0 %4006
        %4008 = vrot.lane.b32.xlu0 %v3180, 48
        %v4009 = vpop.permute.xlu0 %4008
        %4010 = vrot.lane.b32.xlu0 %v3181, 48
        %v4011 = vpop.permute.xlu0 %4010
        %4012 = vrot.lane.b32.xlu0 %v3183, 48
        %v4013 = vpop.permute.xlu0 %4012
        %4014 = vrot.lane.b32.xlu0 %v3184, 48
        %v4015 = vpop.permute.xlu0 %4014
        %4016 = vrot.lane.b32.xlu0 %v3185, 48
        %v4017 = vpop.permute.xlu0 %4016
        %4018 = vrot.lane.b32.xlu0 %v3186, 48
        %v4019 = vpop.permute.xlu0 %4018
        %4020 = vrot.lane.b32.xlu0 %v3187, 48
        %v4021 = vpop.permute.xlu0 %4020
        %4022 = vrot.lane.b32.xlu0 %v3188, 48
        %v4023 = vpop.permute.xlu0 %4022
        %4024 = vrot.lane.b32.xlu0 %v3189, 48
        %v4025 = vpop.permute.xlu0 %4024
        %vm4083 = vcmask 523648
        %4084 = vst.msk [vmem:[#allocation2] sm:$0xff] %vm4083, %v3913
        %4085 = vst.msk [vmem:[#allocation2 + $0x8] sm:$0xff] %vm4083, %v3913
        %4086 = vst.msk [vmem:[#allocation2 + $0x10] sm:$0xff] %vm4083, %v3913
        %4087 = vst.msk [vmem:[#allocation2 + $0x18] sm:$0xff] %vm4083, %v3913
        %4088 = vst.msk [vmem:[#allocation2 + $0x20] sm:$0xff] %vm4083, %v3913
        %4089 = vst.msk [vmem:[#allocation2 + $0x28] sm:$0xff] %vm4083, %v3913
        %4090 = vst.msk [vmem:[#allocation2 + $0x30] sm:$0xff] %vm4083, %v3913
        %4091 = vst.msk [vmem:[#allocation2 + $0x38] sm:$0xff] %vm4083, %v3913
        %4092 = vst.msk [vmem:[#allocation2 + $0x40] sm:$0xff] %vm4083, %v3913
        %4093 = vst.msk [vmem:[#allocation2 + $0x48] sm:$0xff] %vm4083, %v3913
        %4094 = vst.msk [vmem:[#allocation2 + $0x50] sm:$0xff] %vm4083, %v3913
        %4095 = vst.msk [vmem:[#allocation2 + $0x58] sm:$0xff] %vm4083, %v3913
        %4096 = vst.msk [vmem:[#allocation2 + $0x60] sm:$0xff] %vm4083, %v3913
        %4097 = vst.msk [vmem:[#allocation2 + $0x68] sm:$0xff] %vm4083, %v3913
        %4098 = vst.msk [vmem:[#allocation2 + $0x70] sm:$0xff] %vm4083, %v3913
        %4099 = vst.msk [vmem:[#allocation2 + $0x78] sm:$0xff] %vm4083, %v3913
        %4100 = vst.msk [vmem:[#allocation2 + $0x80] sm:$0xff] %vm4083, %v3915
        %4101 = vst.msk [vmem:[#allocation2 + $0x88] sm:$0xff] %vm4083, %v3917
        %4102 = vst.msk [vmem:[#allocation2 + $0x90] sm:$0xff] %vm4083, %v3919
        %4103 = vst.msk [vmem:[#allocation2 + $0x98] sm:$0xff] %vm4083, %v3921
        %4104 = vst.msk [vmem:[#allocation2 + $0xa0] sm:$0xff] %vm4083, %v3923
        %4105 = vst.msk [vmem:[#allocation2 + $0xa8] sm:$0xff] %vm4083, %v3925
        %4106 = vst.msk [vmem:[#allocation2 + $0xb0] sm:$0xff] %vm4083, %v3927
        %4107 = vst.msk [vmem:[#allocation2 + $0xb8] sm:$0xff] %vm4083, %v3913
        %4108 = vst.msk [vmem:[#allocation2 + $0xc0] sm:$0xff] %vm4083, %v3929
        %4109 = vst.msk [vmem:[#allocation2 + $0xc8] sm:$0xff] %vm4083, %v3931
        %4110 = vst.msk [vmem:[#allocation2 + $0xd0] sm:$0xff] %vm4083, %v3933
        %4111 = vst.msk [vmem:[#allocation2 + $0xd8] sm:$0xff] %vm4083, %v3935
        %4112 = vst.msk [vmem:[#allocation2 + $0xe0] sm:$0xff] %vm4083, %v3937
        %4113 = vst.msk [vmem:[#allocation2 + $0xe8] sm:$0xff] %vm4083, %v3939
        %4114 = vst.msk [vmem:[#allocation2 + $0xf0] sm:$0xff] %vm4083, %v3941
        %4115 = vst.msk [vmem:[#allocation2 + $0xf8] sm:$0xff] %vm4083, %v3913
        %4116 = vst.msk [vmem:[#allocation2 + $0x100] sm:$0xff] %vm4083, %v3943
        %4117 = vst.msk [vmem:[#allocation2 + $0x108] sm:$0xff] %vm4083, %v3945
        %4118 = vst.msk [vmem:[#allocation2 + $0x110] sm:$0xff] %vm4083, %v3947
        %4119 = vst.msk [vmem:[#allocation2 + $0x118] sm:$0xff] %vm4083, %v3949
        %4120 = vst.msk [vmem:[#allocation2 + $0x120] sm:$0xff] %vm4083, %v3951
        %4121 = vst.msk [vmem:[#allocation2 + $0x128] sm:$0xff] %vm4083, %v3953
        %4122 = vst.msk [vmem:[#allocation2 + $0x130] sm:$0xff] %vm4083, %v3955
        %4123 = vst.msk [vmem:[#allocation2 + $0x138] sm:$0xff] %vm4083, %v3913
        %4124 = vst.msk [vmem:[#allocation2 + $0x140] sm:$0xff] %vm4083, %v3957
        %4125 = vst.msk [vmem:[#allocation2 + $0x148] sm:$0xff] %vm4083, %v3959
        %4126 = vst.msk [vmem:[#allocation2 + $0x150] sm:$0xff] %vm4083, %v3961
        %4127 = vst.msk [vmem:[#allocation2 + $0x158] sm:$0xff] %vm4083, %v3963
        %4128 = vst.msk [vmem:[#allocation2 + $0x160] sm:$0xff] %vm4083, %v3965
        %4129 = vst.msk [vmem:[#allocation2 + $0x168] sm:$0xff] %vm4083, %v3967
        %4130 = vst.msk [vmem:[#allocation2 + $0x170] sm:$0xff] %vm4083, %v3969
        %4131 = vst.msk [vmem:[#allocation2 + $0x178] sm:$0xff] %vm4083, %v3913
        %4132 = vst.msk [vmem:[#allocation2 + $0x180] sm:$0xff] %vm4083, %v3971
        %4133 = vst.msk [vmem:[#allocation2 + $0x188] sm:$0xff] %vm4083, %v3973
        %4134 = vst.msk [vmem:[#allocation2 + $0x190] sm:$0xff] %vm4083, %v3975
        %4135 = vst.msk [vmem:[#allocation2 + $0x198] sm:$0xff] %vm4083, %v3977
        %4136 = vst.msk [vmem:[#allocation2 + $0x1a0] sm:$0xff] %vm4083, %v3979
        %4137 = vst.msk [vmem:[#allocation2 + $0x1a8] sm:$0xff] %vm4083, %v3981
        %4138 = vst.msk [vmem:[#allocation2 + $0x1b0] sm:$0xff] %vm4083, %v3983
        %4139 = vst.msk [vmem:[#allocation2 + $0x1b8] sm:$0xff] %vm4083, %v3913
        %4140 = vst.msk [vmem:[#allocation2 + $0x1c0] sm:$0xff] %vm4083, %v3985
        %4141 = vst.msk [vmem:[#allocation2 + $0x1c8] sm:$0xff] %vm4083, %v3987
        %4142 = vst.msk [vmem:[#allocation2 + $0x1d0] sm:$0xff] %vm4083, %v3989
        %4143 = vst.msk [vmem:[#allocation2 + $0x1d8] sm:$0xff] %vm4083, %v3991
        %4144 = vst.msk [vmem:[#allocation2 + $0x1e0] sm:$0xff] %vm4083, %v3993
        %4145 = vst.msk [vmem:[#allocation2 + $0x1e8] sm:$0xff] %vm4083, %v3995
        %4146 = vst.msk [vmem:[#allocation2 + $0x1f0] sm:$0xff] %vm4083, %v3997
        %4147 = vst.msk [vmem:[#allocation2 + $0x1f8] sm:$0xff] %vm4083, %v3913
        %4148 = vst.msk [vmem:[#allocation2 + $0x200] sm:$0xff] %vm4083, %v3999
        %4149 = vst.msk [vmem:[#allocation2 + $0x208] sm:$0xff] %vm4083, %v4001
        %4150 = vst.msk [vmem:[#allocation2 + $0x210] sm:$0xff] %vm4083, %v4003
        %4151 = vst.msk [vmem:[#allocation2 + $0x218] sm:$0xff] %vm4083, %v4005
        %4152 = vst.msk [vmem:[#allocation2 + $0x220] sm:$0xff] %vm4083, %v4007
        %4153 = vst.msk [vmem:[#allocation2 + $0x228] sm:$0xff] %vm4083, %v4009
        %4154 = vst.msk [vmem:[#allocation2 + $0x230] sm:$0xff] %vm4083, %v4011
        %4155 = vst.msk [vmem:[#allocation2 + $0x238] sm:$0xff] %vm4083, %v3913
        %4156 = vst.msk [vmem:[#allocation2 + $0x240] sm:$0xff] %vm4083, %v4013
        %4157 = vst.msk [vmem:[#allocation2 + $0x248] sm:$0xff] %vm4083, %v4015
        %4158 = vst.msk [vmem:[#allocation2 + $0x250] sm:$0xff] %vm4083, %v4017
        %4159 = vst.msk [vmem:[#allocation2 + $0x258] sm:$0xff] %vm4083, %v4019
        %4160 = vst.msk [vmem:[#allocation2 + $0x260] sm:$0xff] %vm4083, %v4021
        %4161 = vst.msk [vmem:[#allocation2 + $0x268] sm:$0xff] %vm4083, %v4023
        %4162 = vst.msk [vmem:[#allocation2 + $0x270] sm:$0xff] %vm4083, %v4025
        %4163 = vst.msk [vmem:[#allocation2 + $0x278] sm:$0xff] %vm4083, %v3913
        %4164 = vst.msk [vmem:[#allocation2 + $0x280] sm:$0xff] %vm4083, %v3913
        %4165 = vst.msk [vmem:[#allocation2 + $0x288] sm:$0xff] %vm4083, %v3913
        %4166 = vst.msk [vmem:[#allocation2 + $0x290] sm:$0xff] %vm4083, %v3913
        %4167 = vst.msk [vmem:[#allocation2 + $0x298] sm:$0xff] %vm4083, %v3913
        %4168 = vst.msk [vmem:[#allocation2 + $0x2a0] sm:$0xff] %vm4083, %v3913
        %4169 = vst.msk [vmem:[#allocation2 + $0x2a8] sm:$0xff] %vm4083, %v3913
        %4170 = vst.msk [vmem:[#allocation2 + $0x2b0] sm:$0xff] %vm4083, %v3913
        %4171 = vst.msk [vmem:[#allocation2 + $0x2b8] sm:$0xff] %vm4083, %v3913
        %4172 = vst.msk [vmem:[#allocation2 + $0x2c0] sm:$0xff] %vm4083, %v3913
        %4173 = vst.msk [vmem:[#allocation2 + $0x2c8] sm:$0xff] %vm4083, %v3913
        %4174 = vst.msk [vmem:[#allocation2 + $0x2d0] sm:$0xff] %vm4083, %v3913
        %4175 = vst.msk [vmem:[#allocation2 + $0x2d8] sm:$0xff] %vm4083, %v3913
        %4176 = vst.msk [vmem:[#allocation2 + $0x2e0] sm:$0xff] %vm4083, %v3913
        %4177 = vst.msk [vmem:[#allocation2 + $0x2e8] sm:$0xff] %vm4083, %v3913
        %4178 = vst.msk [vmem:[#allocation2 + $0x2f0] sm:$0xff] %vm4083, %v3913
        %4179 = vst.msk [vmem:[#allocation2 + $0x2f8] sm:$0xff] %vm4083, %v3913
        %4180 = vrot.lane.b32.xlu0 0.0, 64
        %v4181 = vpop.permute.xlu0 %4180
        %4182 = vrot.lane.b32.xlu0 %v3128, 64
        %v4183 = vpop.permute.xlu0 %4182
        %4184 = vrot.lane.b32.xlu0 %v3129, 64
        %v4185 = vpop.permute.xlu0 %4184
        %4186 = vrot.lane.b32.xlu0 %v3130, 64
        %v4187 = vpop.permute.xlu0 %4186
        %4188 = vrot.lane.b32.xlu0 %v3131, 64
        %v4189 = vpop.permute.xlu0 %4188
        %4190 = vrot.lane.b32.xlu0 %v3132, 64
        %v4191 = vpop.permute.xlu0 %4190
        %4192 = vrot.lane.b32.xlu0 %v3133, 64
        %v4193 = vpop.permute.xlu0 %4192
        %4194 = vrot.lane.b32.xlu0 %v3136, 64
        %v4195 = vpop.permute.xlu0 %4194
        %4196 = vrot.lane.b32.xlu0 %v3137, 64
        %v4197 = vpop.permute.xlu0 %4196
        %4198 = vrot.lane.b32.xlu0 %v3138, 64
        %v4199 = vpop.permute.xlu0 %4198
        %4200 = vrot.lane.b32.xlu0 %v3139, 64
        %v4201 = vpop.permute.xlu0 %4200
        %4202 = vrot.lane.b32.xlu0 %v3140, 64
        %v4203 = vpop.permute.xlu0 %4202
        %4204 = vrot.lane.b32.xlu0 %v3141, 64
        %v4205 = vpop.permute.xlu0 %4204
        %4206 = vrot.lane.b32.xlu0 %v3144, 64
        %v4207 = vpop.permute.xlu0 %4206
        %4208 = vrot.lane.b32.xlu0 %v3145, 64
        %v4209 = vpop.permute.xlu0 %4208
        %4210 = vrot.lane.b32.xlu0 %v3146, 64
        %v4211 = vpop.permute.xlu0 %4210
        %4212 = vrot.lane.b32.xlu0 %v3147, 64
        %v4213 = vpop.permute.xlu0 %4212
        %4214 = vrot.lane.b32.xlu0 %v3148, 64
        %v4215 = vpop.permute.xlu0 %4214
        %4216 = vrot.lane.b32.xlu0 %v3149, 64
        %v4217 = vpop.permute.xlu0 %4216
        %4218 = vrot.lane.b32.xlu0 %v3152, 64
        %v4219 = vpop.permute.xlu0 %4218
        %4220 = vrot.lane.b32.xlu0 %v3153, 64
        %v4221 = vpop.permute.xlu0 %4220
        %4222 = vrot.lane.b32.xlu0 %v3154, 64
        %v4223 = vpop.permute.xlu0 %4222
        %4224 = vrot.lane.b32.xlu0 %v3155, 64
        %v4225 = vpop.permute.xlu0 %4224
        %4226 = vrot.lane.b32.xlu0 %v3156, 64
        %v4227 = vpop.permute.xlu0 %4226
        %4228 = vrot.lane.b32.xlu0 %v3157, 64
        %v4229 = vpop.permute.xlu0 %4228
        %4230 = vrot.lane.b32.xlu0 %v3160, 64
        %v4231 = vpop.permute.xlu0 %4230
        %4232 = vrot.lane.b32.xlu0 %v3161, 64
        %v4233 = vpop.permute.xlu0 %4232
        %4234 = vrot.lane.b32.xlu0 %v3162, 64
        %v4235 = vpop.permute.xlu0 %4234
        %4236 = vrot.lane.b32.xlu0 %v3163, 64
        %v4237 = vpop.permute.xlu0 %4236
        %4238 = vrot.lane.b32.xlu0 %v3164, 64
        %v4239 = vpop.permute.xlu0 %4238
        %4240 = vrot.lane.b32.xlu0 %v3165, 64
        %v4241 = vpop.permute.xlu0 %4240
        %4242 = vrot.lane.b32.xlu0 %v3168, 64
        %v4243 = vpop.permute.xlu0 %4242
        %4244 = vrot.lane.b32.xlu0 %v3169, 64
        %v4245 = vpop.permute.xlu0 %4244
        %4246 = vrot.lane.b32.xlu0 %v3170, 64
        %v4247 = vpop.permute.xlu0 %4246
        %4248 = vrot.lane.b32.xlu0 %v3171, 64
        %v4249 = vpop.permute.xlu0 %4248
        %4250 = vrot.lane.b32.xlu0 %v3172, 64
        %v4251 = vpop.permute.xlu0 %4250
        %4252 = vrot.lane.b32.xlu0 %v3173, 64
        %v4253 = vpop.permute.xlu0 %4252
        %4254 = vrot.lane.b32.xlu0 %v3176, 64
        %v4255 = vpop.permute.xlu0 %4254
        %4256 = vrot.lane.b32.xlu0 %v3177, 64
        %v4257 = vpop.permute.xlu0 %4256
        %4258 = vrot.lane.b32.xlu0 %v3178, 64
        %v4259 = vpop.permute.xlu0 %4258
        %4260 = vrot.lane.b32.xlu0 %v3179, 64
        %v4261 = vpop.permute.xlu0 %4260
        %4262 = vrot.lane.b32.xlu0 %v3180, 64
        %v4263 = vpop.permute.xlu0 %4262
        %4264 = vrot.lane.b32.xlu0 %v3181, 64
        %v4265 = vpop.permute.xlu0 %4264
        %4266 = vrot.lane.b32.xlu0 %v3184, 64
        %v4267 = vpop.permute.xlu0 %4266
        %4268 = vrot.lane.b32.xlu0 %v3185, 64
        %v4269 = vpop.permute.xlu0 %4268
        %4270 = vrot.lane.b32.xlu0 %v3186, 64
        %v4271 = vpop.permute.xlu0 %4270
        %4272 = vrot.lane.b32.xlu0 %v3187, 64
        %v4273 = vpop.permute.xlu0 %4272
        %4274 = vrot.lane.b32.xlu0 %v3188, 64
        %v4275 = vpop.permute.xlu0 %4274
        %4276 = vrot.lane.b32.xlu0 %v3189, 64
        %v4277 = vpop.permute.xlu0 %4276
        %vm4327 = vcmask 654848
        %4328 = vst.msk [vmem:[#allocation2] sm:$0xff] %vm4327, %v4181
        %4329 = vst.msk [vmem:[#allocation2 + $0x8] sm:$0xff] %vm4327, %v4181
        %4330 = vst.msk [vmem:[#allocation2 + $0x10] sm:$0xff] %vm4327, %v4181
        %4331 = vst.msk [vmem:[#allocation2 + $0x18] sm:$0xff] %vm4327, %v4181
        %4332 = vst.msk [vmem:[#allocation2 + $0x20] sm:$0xff] %vm4327, %v4181
        %4333 = vst.msk [vmem:[#allocation2 + $0x28] sm:$0xff] %vm4327, %v4181
        %4334 = vst.msk [vmem:[#allocation2 + $0x30] sm:$0xff] %vm4327, %v4181
        %4335 = vst.msk [vmem:[#allocation2 + $0x38] sm:$0xff] %vm4327, %v4181
        %4336 = vst.msk [vmem:[#allocation2 + $0x40] sm:$0xff] %vm4327, %v4181
        %4337 = vst.msk [vmem:[#allocation2 + $0x48] sm:$0xff] %vm4327, %v4181
        %4338 = vst.msk [vmem:[#allocation2 + $0x50] sm:$0xff] %vm4327, %v4181
        %4339 = vst.msk [vmem:[#allocation2 + $0x58] sm:$0xff] %vm4327, %v4181
        %4340 = vst.msk [vmem:[#allocation2 + $0x60] sm:$0xff] %vm4327, %v4181
        %4341 = vst.msk [vmem:[#allocation2 + $0x68] sm:$0xff] %vm4327, %v4181
        %4342 = vst.msk [vmem:[#allocation2 + $0x70] sm:$0xff] %vm4327, %v4181
        %4343 = vst.msk [vmem:[#allocation2 + $0x78] sm:$0xff] %vm4327, %v4181
        %4344 = vst.msk [vmem:[#allocation2 + $0x80] sm:$0xff] %vm4327, %v4183
        %4345 = vst.msk [vmem:[#allocation2 + $0x88] sm:$0xff] %vm4327, %v4185
        %4346 = vst.msk [vmem:[#allocation2 + $0x90] sm:$0xff] %vm4327, %v4187
        %4347 = vst.msk [vmem:[#allocation2 + $0x98] sm:$0xff] %vm4327, %v4189
        %4348 = vst.msk [vmem:[#allocation2 + $0xa0] sm:$0xff] %vm4327, %v4191
        %4349 = vst.msk [vmem:[#allocation2 + $0xa8] sm:$0xff] %vm4327, %v4193
        %4350 = vst.msk [vmem:[#allocation2 + $0xb0] sm:$0xff] %vm4327, %v4181
        %4351 = vst.msk [vmem:[#allocation2 + $0xb8] sm:$0xff] %vm4327, %v4181
        %4352 = vst.msk [vmem:[#allocation2 + $0xc0] sm:$0xff] %vm4327, %v4195
        %4353 = vst.msk [vmem:[#allocation2 + $0xc8] sm:$0xff] %vm4327, %v4197
        %4354 = vst.msk [vmem:[#allocation2 + $0xd0] sm:$0xff] %vm4327, %v4199
        %4355 = vst.msk [vmem:[#allocation2 + $0xd8] sm:$0xff] %vm4327, %v4201
        %4356 = vst.msk [vmem:[#allocation2 + $0xe0] sm:$0xff] %vm4327, %v4203
        %4357 = vst.msk [vmem:[#allocation2 + $0xe8] sm:$0xff] %vm4327, %v4205
        %4358 = vst.msk [vmem:[#allocation2 + $0xf0] sm:$0xff] %vm4327, %v4181
        %4359 = vst.msk [vmem:[#allocation2 + $0xf8] sm:$0xff] %vm4327, %v4181
        %4360 = vst.msk [vmem:[#allocation2 + $0x100] sm:$0xff] %vm4327, %v4207
        %4361 = vst.msk [vmem:[#allocation2 + $0x108] sm:$0xff] %vm4327, %v4209
        %4362 = vst.msk [vmem:[#allocation2 + $0x110] sm:$0xff] %vm4327, %v4211
        %4363 = vst.msk [vmem:[#allocation2 + $0x118] sm:$0xff] %vm4327, %v4213
        %4364 = vst.msk [vmem:[#allocation2 + $0x120] sm:$0xff] %vm4327, %v4215
        %4365 = vst.msk [vmem:[#allocation2 + $0x128] sm:$0xff] %vm4327, %v4217
        %4366 = vst.msk [vmem:[#allocation2 + $0x130] sm:$0xff] %vm4327, %v4181
        %4367 = vst.msk [vmem:[#allocation2 + $0x138] sm:$0xff] %vm4327, %v4181
        %4368 = vst.msk [vmem:[#allocation2 + $0x140] sm:$0xff] %vm4327, %v4219
        %4369 = vst.msk [vmem:[#allocation2 + $0x148] sm:$0xff] %vm4327, %v4221
        %4370 = vst.msk [vmem:[#allocation2 + $0x150] sm:$0xff] %vm4327, %v4223
        %4371 = vst.msk [vmem:[#allocation2 + $0x158] sm:$0xff] %vm4327, %v4225
        %4372 = vst.msk [vmem:[#allocation2 + $0x160] sm:$0xff] %vm4327, %v4227
        %4373 = vst.msk [vmem:[#allocation2 + $0x168] sm:$0xff] %vm4327, %v4229
        %4374 = vst.msk [vmem:[#allocation2 + $0x170] sm:$0xff] %vm4327, %v4181
        %4375 = vst.msk [vmem:[#allocation2 + $0x178] sm:$0xff] %vm4327, %v4181
        %4376 = vst.msk [vmem:[#allocation2 + $0x180] sm:$0xff] %vm4327, %v4231
        %4377 = vst.msk [vmem:[#allocation2 + $0x188] sm:$0xff] %vm4327, %v4233
        %4378 = vst.msk [vmem:[#allocation2 + $0x190] sm:$0xff] %vm4327, %v4235
        %4379 = vst.msk [vmem:[#allocation2 + $0x198] sm:$0xff] %vm4327, %v4237
        %4380 = vst.msk [vmem:[#allocation2 + $0x1a0] sm:$0xff] %vm4327, %v4239
        %4381 = vst.msk [vmem:[#allocation2 + $0x1a8] sm:$0xff] %vm4327, %v4241
        %4382 = vst.msk [vmem:[#allocation2 + $0x1b0] sm:$0xff] %vm4327, %v4181
        %4383 = vst.msk [vmem:[#allocation2 + $0x1b8] sm:$0xff] %vm4327, %v4181
        %4384 = vst.msk [vmem:[#allocation2 + $0x1c0] sm:$0xff] %vm4327, %v4243
        %4385 = vst.msk [vmem:[#allocation2 + $0x1c8] sm:$0xff] %vm4327, %v4245
        %4386 = vst.msk [vmem:[#allocation2 + $0x1d0] sm:$0xff] %vm4327, %v4247
        %4387 = vst.msk [vmem:[#allocation2 + $0x1d8] sm:$0xff] %vm4327, %v4249
        %4388 = vst.msk [vmem:[#allocation2 + $0x1e0] sm:$0xff] %vm4327, %v4251
        %4389 = vst.msk [vmem:[#allocation2 + $0x1e8] sm:$0xff] %vm4327, %v4253
        %4390 = vst.msk [vmem:[#allocation2 + $0x1f0] sm:$0xff] %vm4327, %v4181
        %4391 = vst.msk [vmem:[#allocation2 + $0x1f8] sm:$0xff] %vm4327, %v4181
        %4392 = vst.msk [vmem:[#allocation2 + $0x200] sm:$0xff] %vm4327, %v4255
        %4393 = vst.msk [vmem:[#allocation2 + $0x208] sm:$0xff] %vm4327, %v4257
        %4394 = vst.msk [vmem:[#allocation2 + $0x210] sm:$0xff] %vm4327, %v4259
        %4395 = vst.msk [vmem:[#allocation2 + $0x218] sm:$0xff] %vm4327, %v4261
        %4396 = vst.msk [vmem:[#allocation2 + $0x220] sm:$0xff] %vm4327, %v4263
        %4397 = vst.msk [vmem:[#allocation2 + $0x228] sm:$0xff] %vm4327, %v4265
        %4398 = vst.msk [vmem:[#allocation2 + $0x230] sm:$0xff] %vm4327, %v4181
        %4399 = vst.msk [vmem:[#allocation2 + $0x238] sm:$0xff] %vm4327, %v4181
        %4400 = vst.msk [vmem:[#allocation2 + $0x240] sm:$0xff] %vm4327, %v4267
        %4401 = vst.msk [vmem:[#allocation2 + $0x248] sm:$0xff] %vm4327, %v4269
        %4402 = vst.msk [vmem:[#allocation2 + $0x250] sm:$0xff] %vm4327, %v4271
        %4403 = vst.msk [vmem:[#allocation2 + $0x258] sm:$0xff] %vm4327, %v4273
        %4404 = vst.msk [vmem:[#allocation2 + $0x260] sm:$0xff] %vm4327, %v4275
        %4405 = vst.msk [vmem:[#allocation2 + $0x268] sm:$0xff] %vm4327, %v4277
        %4406 = vst.msk [vmem:[#allocation2 + $0x270] sm:$0xff] %vm4327, %v4181
        %4407 = vst.msk [vmem:[#allocation2 + $0x278] sm:$0xff] %vm4327, %v4181
        %4408 = vst.msk [vmem:[#allocation2 + $0x280] sm:$0xff] %vm4327, %v4181
        %4409 = vst.msk [vmem:[#allocation2 + $0x288] sm:$0xff] %vm4327, %v4181
        %4410 = vst.msk [vmem:[#allocation2 + $0x290] sm:$0xff] %vm4327, %v4181
        %4411 = vst.msk [vmem:[#allocation2 + $0x298] sm:$0xff] %vm4327, %v4181
        %4412 = vst.msk [vmem:[#allocation2 + $0x2a0] sm:$0xff] %vm4327, %v4181
        %4413 = vst.msk [vmem:[#allocation2 + $0x2a8] sm:$0xff] %vm4327, %v4181
        %4414 = vst.msk [vmem:[#allocation2 + $0x2b0] sm:$0xff] %vm4327, %v4181
        %4415 = vst.msk [vmem:[#allocation2 + $0x2b8] sm:$0xff] %vm4327, %v4181
        %4416 = vst.msk [vmem:[#allocation2 + $0x2c0] sm:$0xff] %vm4327, %v4181
        %4417 = vst.msk [vmem:[#allocation2 + $0x2c8] sm:$0xff] %vm4327, %v4181
        %4418 = vst.msk [vmem:[#allocation2 + $0x2d0] sm:$0xff] %vm4327, %v4181
        %4419 = vst.msk [vmem:[#allocation2 + $0x2d8] sm:$0xff] %vm4327, %v4181
        %4420 = vst.msk [vmem:[#allocation2 + $0x2e0] sm:$0xff] %vm4327, %v4181
        %4421 = vst.msk [vmem:[#allocation2 + $0x2e8] sm:$0xff] %vm4327, %v4181
        %4422 = vst.msk [vmem:[#allocation2 + $0x2f0] sm:$0xff] %vm4327, %v4181
        %4423 = vst.msk [vmem:[#allocation2 + $0x2f8] sm:$0xff] %vm4327, %v4181
        %v4424 = vld [vmem:[#allocation2] sm:$0xff]
        %v4425 = vld [vmem:[#allocation2 + $0x8] sm:$0xff]
        %v4426 = vld [vmem:[#allocation2 + $0x10] sm:$0xff]
        %v4427 = vld [vmem:[#allocation2 + $0x18] sm:$0xff]
        %v4428 = vld [vmem:[#allocation2 + $0x20] sm:$0xff]
        %v4429 = vld [vmem:[#allocation2 + $0x28] sm:$0xff]
        %v4430 = vld [vmem:[#allocation2 + $0x30] sm:$0xff]
        %v4431 = vld [vmem:[#allocation2 + $0x38] sm:$0xff]
        %v4432 = vld [vmem:[#allocation2 + $0x40] sm:$0xff]
        %v4433 = vld [vmem:[#allocation2 + $0x48] sm:$0xff]
        %v4434 = vld [vmem:[#allocation2 + $0x50] sm:$0xff]
        %v4435 = vld [vmem:[#allocation2 + $0x58] sm:$0xff]
        %v4436 = vld [vmem:[#allocation2 + $0x60] sm:$0xff]
        %v4437 = vld [vmem:[#allocation2 + $0x68] sm:$0xff]
        %v4438 = vld [vmem:[#allocation2 + $0x70] sm:$0xff]
        %v4439 = vld [vmem:[#allocation2 + $0x78] sm:$0xff]
        %v4440 = vld [vmem:[#allocation2 + $0x80] sm:$0xff]
        %v4441 = vld [vmem:[#allocation2 + $0x88] sm:$0xff]
        %v4442 = vld [vmem:[#allocation2 + $0x90] sm:$0xff]
        %v4443 = vld [vmem:[#allocation2 + $0x98] sm:$0xff]
        %v4444 = vld [vmem:[#allocation2 + $0xa0] sm:$0xff]
        %v4445 = vld [vmem:[#allocation2 + $0xa8] sm:$0xff]
        %v4446 = vld [vmem:[#allocation2 + $0xb0] sm:$0xff]
        %v4447 = vld [vmem:[#allocation2 + $0xb8] sm:$0xff]
        %v4448 = vld [vmem:[#allocation2 + $0xc0] sm:$0xff]
        %v4449 = vld [vmem:[#allocation2 + $0xc8] sm:$0xff]
        %v4450 = vld [vmem:[#allocation2 + $0xd0] sm:$0xff]
        %v4451 = vld [vmem:[#allocation2 + $0xd8] sm:$0xff]
        %v4452 = vld [vmem:[#allocation2 + $0xe0] sm:$0xff]
        %v4453 = vld [vmem:[#allocation2 + $0xe8] sm:$0xff]
        %v4454 = vld [vmem:[#allocation2 + $0xf0] sm:$0xff]
        %v4455 = vld [vmem:[#allocation2 + $0xf8] sm:$0xff]
        %v4456 = vld [vmem:[#allocation2 + $0x100] sm:$0xff]
        %v4457 = vld [vmem:[#allocation2 + $0x108] sm:$0xff]
        %v4458 = vld [vmem:[#allocation2 + $0x110] sm:$0xff]
        %v4459 = vld [vmem:[#allocation2 + $0x118] sm:$0xff]
        %v4460 = vld [vmem:[#allocation2 + $0x120] sm:$0xff]
        %v4461 = vld [vmem:[#allocation2 + $0x128] sm:$0xff]
        %v4462 = vld [vmem:[#allocation2 + $0x130] sm:$0xff]
        %v4463 = vld [vmem:[#allocation2 + $0x138] sm:$0xff]
        %v4464 = vld [vmem:[#allocation2 + $0x140] sm:$0xff]
        %v4465 = vld [vmem:[#allocation2 + $0x148] sm:$0xff]
        %v4466 = vld [vmem:[#allocation2 + $0x150] sm:$0xff]
        %v4467 = vld [vmem:[#allocation2 + $0x158] sm:$0xff]
        %v4468 = vld [vmem:[#allocation2 + $0x160] sm:$0xff]
        %v4469 = vld [vmem:[#allocation2 + $0x168] sm:$0xff]
        %v4470 = vld [vmem:[#allocation2 + $0x170] sm:$0xff]
        %v4471 = vld [vmem:[#allocation2 + $0x178] sm:$0xff]
        %v4472 = vld [vmem:[#allocation2 + $0x180] sm:$0xff]
        %v4473 = vld [vmem:[#allocation2 + $0x188] sm:$0xff]
        %v4474 = vld [vmem:[#allocation2 + $0x190] sm:$0xff]
        %v4475 = vld [vmem:[#allocation2 + $0x198] sm:$0xff]
        %v4476 = vld [vmem:[#allocation2 + $0x1a0] sm:$0xff]
        %v4477 = vld [vmem:[#allocation2 + $0x1a8] sm:$0xff]
        %v4478 = vld [vmem:[#allocation2 + $0x1b0] sm:$0xff]
        %v4479 = vld [vmem:[#allocation2 + $0x1b8] sm:$0xff]
        %v4480 = vld [vmem:[#allocation2 + $0x1c0] sm:$0xff]
        %v4481 = vld [vmem:[#allocation2 + $0x1c8] sm:$0xff]
        %v4482 = vld [vmem:[#allocation2 + $0x1d0] sm:$0xff]
        %v4483 = vld [vmem:[#allocation2 + $0x1d8] sm:$0xff]
        %v4484 = vld [vmem:[#allocation2 + $0x1e0] sm:$0xff]
        %v4485 = vld [vmem:[#allocation2 + $0x1e8] sm:$0xff]
        %v4486 = vld [vmem:[#allocation2 + $0x1f0] sm:$0xff]
        %v4487 = vld [vmem:[#allocation2 + $0x1f8] sm:$0xff]
        %v4488 = vld [vmem:[%s3] sm:$0xff]
        %v4489 = vld [vmem:[%s3 + $0x8] sm:$0xff]
        %v4490 = vld [vmem:[%s3 + $0x10] sm:$0xff]
        %v4491 = vld [vmem:[%s3 + $0x18] sm:$0xff]
        %v4492 = vld [vmem:[%s3 + $0x20] sm:$0xff]
        %v4493 = vld [vmem:[%s3 + $0x28] sm:$0xff]
        %v4494 = vld [vmem:[%s3 + $0x30] sm:$0xff]
        %v4495 = vld [vmem:[%s3 + $0x38] sm:$0xff]
        %v4496 = vld [vmem:[%s3 + $0x40] sm:$0xff]
        %v4497 = vld [vmem:[%s3 + $0x48] sm:$0xff]
        %s4498 = scalar_lea.vmem [#allocation2], 64
        %v4499 = vld [vmem:[%s4498] sm:$0xff]
        %v4500 = vld [vmem:[%s4498 + $0x8] sm:$0xff]
        %v4501 = vld [vmem:[%s4498 + $0x10] sm:$0xff]
        %v4502 = vld [vmem:[%s4498 + $0x18] sm:$0xff]
        %v4503 = vld [vmem:[%s4498 + $0x20] sm:$0xff]
        %v4504 = vld [vmem:[%s4498 + $0x28] sm:$0xff]
        %v4505 = vld [vmem:[%s4498 + $0x30] sm:$0xff]
        %v4506 = vld [vmem:[%s4498 + $0x38] sm:$0xff]
        %v4507 = vld [vmem:[%s4498 + $0x40] sm:$0xff]
        %v4508 = vld [vmem:[%s4498 + $0x48] sm:$0xff]
        %v4509 = vld [vmem:[%s4498 + $0x50] sm:$0xff]
        %v4510 = vld [vmem:[%s4498 + $0x58] sm:$0xff]
        %v4511 = vld [vmem:[%s4498 + $0x60] sm:$0xff]
        %v4512 = vld [vmem:[%s4498 + $0x68] sm:$0xff]
        %v4513 = vld [vmem:[%s4498 + $0x70] sm:$0xff]
        %v4514 = vld [vmem:[%s4498 + $0x78] sm:$0xff]
        %v4515 = vld [vmem:[%s4498 + $0x80] sm:$0xff]
        %v4516 = vld [vmem:[%s4498 + $0x88] sm:$0xff]
        %v4517 = vld [vmem:[%s4498 + $0x90] sm:$0xff]
        %v4518 = vld [vmem:[%s4498 + $0x98] sm:$0xff]
        %v4519 = vld [vmem:[%s4498 + $0xa0] sm:$0xff]
        %v4520 = vld [vmem:[%s4498 + $0xa8] sm:$0xff]
        %v4521 = vld [vmem:[%s4498 + $0xb0] sm:$0xff]
        %v4522 = vld [vmem:[%s4498 + $0xb8] sm:$0xff]
        %v4523 = vld [vmem:[%s4498 + $0xc0] sm:$0xff]
        %v4524 = vld [vmem:[%s4498 + $0xc8] sm:$0xff]
        %v4525 = vld [vmem:[%s4498 + $0xd0] sm:$0xff]
        %v4526 = vld [vmem:[%s4498 + $0xd8] sm:$0xff]
        %v4527 = vld [vmem:[%s4498 + $0xe0] sm:$0xff]
        %v4528 = vld [vmem:[%s4498 + $0xe8] sm:$0xff]
        %v4529 = vld [vmem:[%s4498 + $0xf0] sm:$0xff]
        %v4530 = vld [vmem:[%s4498 + $0xf8] sm:$0xff]
        %v4531 = vld [vmem:[%s4498 + $0x100] sm:$0xff]
        %v4532 = vld [vmem:[%s4498 + $0x108] sm:$0xff]
        %v4533 = vld [vmem:[%s4498 + $0x110] sm:$0xff]
        %v4534 = vld [vmem:[%s4498 + $0x118] sm:$0xff]
        %v4535 = vld [vmem:[%s4498 + $0x120] sm:$0xff]
        %v4536 = vld [vmem:[%s4498 + $0x128] sm:$0xff]
        %v4537 = vld [vmem:[%s4498 + $0x130] sm:$0xff]
        %v4538 = vld [vmem:[%s4498 + $0x138] sm:$0xff]
        %v4539 = vld [vmem:[%s4498 + $0x140] sm:$0xff]
        %v4540 = vld [vmem:[%s4498 + $0x148] sm:$0xff]
        %v4541 = vld [vmem:[%s4498 + $0x150] sm:$0xff]
        %v4542 = vld [vmem:[%s4498 + $0x158] sm:$0xff]
        %v4543 = vld [vmem:[%s4498 + $0x160] sm:$0xff]
        %v4544 = vld [vmem:[%s4498 + $0x168] sm:$0xff]
        %v4545 = vld [vmem:[%s4498 + $0x170] sm:$0xff]
        %v4546 = vld [vmem:[%s4498 + $0x178] sm:$0xff]
        %v4547 = vld [vmem:[%s4498 + $0x180] sm:$0xff]
        %v4548 = vld [vmem:[%s4498 + $0x188] sm:$0xff]
        %v4549 = vld [vmem:[%s4498 + $0x190] sm:$0xff]
        %v4550 = vld [vmem:[%s4498 + $0x198] sm:$0xff]
        %v4551 = vld [vmem:[%s4498 + $0x1a0] sm:$0xff]
        %v4552 = vld [vmem:[%s4498 + $0x1a8] sm:$0xff]
        %v4553 = vld [vmem:[%s4498 + $0x1b0] sm:$0xff]
        %v4554 = vld [vmem:[%s4498 + $0x1b8] sm:$0xff]
        %v4555 = vld [vmem:[%s4498 + $0x1c0] sm:$0xff]
        %v4556 = vld [vmem:[%s4498 + $0x1c8] sm:$0xff]
        %v4557 = vld [vmem:[%s4498 + $0x1d0] sm:$0xff]
        %v4558 = vld [vmem:[%s4498 + $0x1d8] sm:$0xff]
        %v4559 = vld [vmem:[%s4498 + $0x1e0] sm:$0xff]
        %v4560 = vld [vmem:[%s4498 + $0x1e8] sm:$0xff]
        %v4561 = vld [vmem:[%s4498 + $0x1f0] sm:$0xff]
        %v4562 = vld [vmem:[%s4498 + $0x1f8] sm:$0xff]
        %s4563 = scalar_lea.vmem %s3, 80
        %v4564 = vld [vmem:[%s4563] sm:$0xff]
        %v4565 = vld [vmem:[%s4563 + $0x8] sm:$0xff]
        %v4566 = vld [vmem:[%s4563 + $0x10] sm:$0xff]
        %v4567 = vld [vmem:[%s4563 + $0x18] sm:$0xff]
        %v4568 = vld [vmem:[%s4563 + $0x20] sm:$0xff]
        %v4569 = vld [vmem:[%s4563 + $0x28] sm:$0xff]
        %v4570 = vld [vmem:[%s4563 + $0x30] sm:$0xff]
        %v4571 = vld [vmem:[%s4563 + $0x38] sm:$0xff]
        %v4572 = vld [vmem:[%s4563 + $0x40] sm:$0xff]
        %v4573 = vld [vmem:[%s4563 + $0x48] sm:$0xff]
        %vm4574 = vcmask 654336
        %v4576 = vsel %vm4574, %v4499, 0
        %v4579 = vsel %vm4574, %v4500, 0
        %v4582 = vsel %vm4574, %v4501, 0
        %v4585 = vsel %vm4574, %v4502, 0
        %v4588 = vsel %vm4574, %v4503, 0
        %v4591 = vsel %vm4574, %v4504, 0
        %v4594 = vsel %vm4574, %v4505, 0
        %v4597 = vsel %vm4574, %v4506, 0
        %v4600 = vsel %vm4574, %v4507, 0
        %v4603 = vsel %vm4574, %v4508, 0
        %v4606 = vsel %vm4574, %v4509, 0
        %v4609 = vsel %vm4574, %v4510, 0
        %v4612 = vsel %vm4574, %v4511, 0
        %v4615 = vsel %vm4574, %v4512, 0
        %v4618 = vsel %vm4574, %v4513, 0
        %v4621 = vsel %vm4574, %v4514, 0
        %v4624 = vsel %vm4574, %v4515, 0
        %v4627 = vsel %vm4574, %v4516, 0
        %v4630 = vsel %vm4574, %v4517, 0
        %v4633 = vsel %vm4574, %v4518, 0
        %v4636 = vsel %vm4574, %v4519, 0
        %v4639 = vsel %vm4574, %v4520, 0
        %v4642 = vsel %vm4574, %v4521, 0
        %v4645 = vsel %vm4574, %v4522, 0
        %v4648 = vsel %vm4574, %v4523, 0
        %v4651 = vsel %vm4574, %v4524, 0
        %v4654 = vsel %vm4574, %v4525, 0
        %v4657 = vsel %vm4574, %v4526, 0
        %v4660 = vsel %vm4574, %v4527, 0
        %v4663 = vsel %vm4574, %v4528, 0
        %v4666 = vsel %vm4574, %v4529, 0
        %v4669 = vsel %vm4574, %v4530, 0
        %v4672 = vsel %vm4574, %v4531, 0
        %v4675 = vsel %vm4574, %v4532, 0
        %v4678 = vsel %vm4574, %v4533, 0
        %v4681 = vsel %vm4574, %v4534, 0
        %v4684 = vsel %vm4574, %v4535, 0
        %v4687 = vsel %vm4574, %v4536, 0
        %v4690 = vsel %vm4574, %v4537, 0
        %v4693 = vsel %vm4574, %v4538, 0
        %v4696 = vsel %vm4574, %v4539, 0
        %v4699 = vsel %vm4574, %v4540, 0
        %v4702 = vsel %vm4574, %v4541, 0
        %v4705 = vsel %vm4574, %v4542, 0
        %v4708 = vsel %vm4574, %v4543, 0
        %v4711 = vsel %vm4574, %v4544, 0
        %v4714 = vsel %vm4574, %v4545, 0
        %v4717 = vsel %vm4574, %v4546, 0
        %v4720 = vsel %vm4574, %v4547, 0
        %v4723 = vsel %vm4574, %v4548, 0
        %v4726 = vsel %vm4574, %v4549, 0
        %v4729 = vsel %vm4574, %v4550, 0
        %v4732 = vsel %vm4574, %v4551, 0
        %v4735 = vsel %vm4574, %v4552, 0
        %v4738 = vsel %vm4574, %v4553, 0
        %v4741 = vsel %vm4574, %v4554, 0
        %v4744 = vsel %vm4574, %v4555, 0
        %v4747 = vsel %vm4574, %v4556, 0
        %v4750 = vsel %vm4574, %v4557, 0
        %v4753 = vsel %vm4574, %v4558, 0
        %v4756 = vsel %vm4574, %v4559, 0
        %v4759 = vsel %vm4574, %v4560, 0
        %v4762 = vsel %vm4574, %v4561, 0
        %v4765 = vsel %vm4574, %v4562, 0
        %4767 = vmatprep.subr.mxu0 0.0
        %4768 = vmatpush1.msra.mxu0 %v4564
        %4769 = vmatprep.subr.mxu0 0.0
        %4770 = vmatpush1.msra.mxu0 %v4565
        %4771 = vmatprep.subr.mxu0 0.0
        %4772 = vmatpush1.msra.mxu0 %v4566
        %4773 = vmatprep.subr.mxu0 0.0
        %4774 = vmatpush1.msra.mxu0 %v4567
        %4775 = vmatprep.subr.mxu0 0.0
        %4776 = vmatpush1.msra.mxu0 %v4568
        %4777 = vmatprep.subr.mxu0 0.0
        %4778 = vmatpush1.msra.mxu0 %v4569
        %4779 = vmatprep.subr.mxu0 0.0
        %4780 = vmatpush1.msra.mxu0 %v4570
        %4781 = vmatprep.subr.mxu0 0.0
        %4782 = vmatpush1.msra.mxu0 %v4571
        %4783 = vmatprep.subr.mxu0 0.0
        %4784 = vmatpush1.msra.mxu0 %v4572
        %4785 = vmatprep.subr.mxu0 0.0
        %4786 = vmatpush1.msra.mxu0 %v4573
        %4787 = vmatprep.subr.mxu0 0.0
        %4788 = vmatpush1.msra.mxu0 0.0
        %4789 = vmatprep.subr.mxu0 0.0
        %4790 = vmatpush1.msra.mxu0 0.0
        %4791 = vmatprep.subr.mxu0 0.0
        %4792 = vmatpush1.msra.mxu0 0.0
        %4793 = vmatprep.subr.mxu0 0.0
        %4794 = vmatpush1.msra.mxu0 0.0
        %4795 = vmatprep.subr.mxu0 0.0
        %4796 = vmatpush1.msra.mxu0 0.0
        %4797 = vmatprep.subr.mxu0 0.0
        %4798 = vmatpush1.msra.mxu0 0.0
        %4799 = vmatprep.subr.mxu0 0.0
        %4800 = vmatpush1.msra.mxu0 0.0
        %4801 = vmatprep.subr.mxu0 0.0
        %4802 = vmatpush1.msra.mxu0 0.0
        %4803 = vmatprep.subr.mxu0 0.0
        %4804 = vmatpush1.msra.mxu0 0.0
        %4805 = vmatprep.subr.mxu0 0.0
        %4806 = vmatpush1.msra.mxu0 0.0
        %4807 = vmatprep.subr.mxu0 0.0
        %4808 = vmatpush1.msra.mxu0 0.0
        %4809 = vmatprep.subr.mxu0 0.0
        %4810 = vmatpush1.msra.mxu0 0.0
        %4811 = vmatprep.subr.mxu0 0.0
        %4812 = vmatpush1.msra.mxu0 0.0
        %4813 = vmatprep.subr.mxu0 0.0
        %4814 = vmatpush1.msra.mxu0 0.0
        %4815 = vmatprep.subr.mxu0 0.0
        %4816 = vmatpush1.msra.mxu0 0.0
        %4817 = vmatprep.subr.mxu0 0.0
        %4818 = vmatpush1.msra.mxu0 0.0
        %4819 = vmatprep.subr.mxu0 0.0
        %4820 = vmatpush1.msra.mxu0 0.0
        %4821 = vmatprep.subr.mxu0 0.0
        %4822 = vmatpush1.msra.mxu0 0.0
        %4823 = vmatprep.subr.mxu0 0.0
        %4824 = vmatpush1.msra.mxu0 0.0
        %4825 = vmatprep.subr.mxu0 0.0
        %4826 = vmatpush1.msra.mxu0 0.0
        %4827 = vmatprep.subr.mxu0 0.0
        %4828 = vmatpush1.msra.mxu0 0.0
        %4829 = vmatprep.subr.mxu0 0.0
        %4830 = vmatpush1.msra.mxu0 0.0
        %4831 = vmatprep.mubr.f32.mxu0 0.0
        %4832 = vmatmul.mubr.f32.gmra.mrb[0].mxu0 %v4576
        %v4833 = vpop.f32.mrb[0].mxu0
        %v4834 = vadd.f32 0.0, %v4833
        %v4835 = vpop.f32.mrb[0].mxu0
        %4836 = vmatprep.mubr.f32.mxu0 0.0
        %4837 = vmatmul.mubr.f32.gmra.mrb[0].mxu0 %v4579
        %v4838 = vpop.f32.mrb[0].mxu0
        %v4839 = vadd.f32 0.0, %v4838
        %v4840 = vpop.f32.mrb[0].mxu0
        %4841 = vmatprep.mubr.f32.mxu0 0.0
        %4842 = vmatmul.mubr.f32.gmra.mrb[0].mxu0 %v4582
        %v4843 = vpop.f32.mrb[0].mxu0
        %v4844 = vadd.f32 0.0, %v4843
        %v4845 = vpop.f32.mrb[0].mxu0
        %4846 = vmatprep.mubr.f32.mxu0 0.0
        %4847 = vmatmul.mubr.f32.gmra.mrb[0].mxu0 %v4585
        %v4848 = vpop.f32.mrb[0].mxu0
        %v4849 = vadd.f32 0.0, %v4848
        %v4850 = vpop.f32.mrb[0].mxu0
        %4851 = vmatprep.mubr.f32.mxu0 0.0
        %4852 = vmatmul.mubr.f32.gmra.mrb[0].mxu0 %v4588
        %v4853 = vpop.f32.mrb[0].mxu0
        %v4854 = vadd.f32 0.0, %v4853
        %v4855 = vpop.f32.mrb[0].mxu0
        %4856 = vmatprep.mubr.f32.mxu0 0.0
        %4857 = vmatmul.mubr.f32.gmra.mrb[0].mxu0 %v4591
        %v4858 = vpop.f32.mrb[0].mxu0
        %v4859 = vadd.f32 0.0, %v4858
        %v4860 = vpop.f32.mrb[0].mxu0
        %4861 = vmatprep.mubr.f32.mxu0 0.0
        %4862 = vmatmul.mubr.f32.gmra.mrb[0].mxu0 %v4594
        %v4863 = vpop.f32.mrb[0].mxu0
        %v4864 = vadd.f32 0.0, %v4863
        %v4865 = vpop.f32.mrb[0].mxu0
        %4866 = vmatprep.mubr.f32.mxu0 0.0
        %4867 = vmatmul.mubr.f32.gmra.mrb[0].mxu0 %v4597
        %v4868 = vpop.f32.mrb[0].mxu0
        %v4869 = vadd.f32 0.0, %v4868
        %v4870 = vpop.f32.mrb[0].mxu0
        %4871 = vmatprep.mubr.f32.mxu0 0.0
        %4872 = vmatmul.mubr.f32.gmra.mrb[0].mxu0 %v4600
        %v4873 = vpop.f32.mrb[0].mxu0
        %v4874 = vadd.f32 0.0, %v4873
        %v4875 = vpop.f32.mrb[0].mxu0
        %4876 = vmatprep.mubr.f32.mxu0 0.0
        %4877 = vmatmul.mubr.f32.gmra.mrb[0].mxu0 %v4603
        %v4878 = vpop.f32.mrb[0].mxu0
        %v4879 = vadd.f32 0.0, %v4878
        %v4880 = vpop.f32.mrb[0].mxu0
        %4881 = vmatprep.mubr.f32.mxu0 0.0
        %4882 = vmatmul.mubr.f32.gmra.mrb[0].mxu0 %v4606
        %v4883 = vpop.f32.mrb[0].mxu0
        %v4884 = vadd.f32 0.0, %v4883
        %v4885 = vpop.f32.mrb[0].mxu0
        %4886 = vmatprep.mubr.f32.mxu0 0.0
        %4887 = vmatmul.mubr.f32.gmra.mrb[0].mxu0 %v4609
        %v4888 = vpop.f32.mrb[0].mxu0
        %v4889 = vadd.f32 0.0, %v4888
        %v4890 = vpop.f32.mrb[0].mxu0
        %4891 = vmatprep.mubr.f32.mxu0 0.0
        %4892 = vmatmul.mubr.f32.gmra.mrb[0].mxu0 %v4612
        %v4893 = vpop.f32.mrb[0].mxu0
        %v4894 = vadd.f32 0.0, %v4893
        %v4895 = vpop.f32.mrb[0].mxu0
        %4896 = vmatprep.mubr.f32.mxu0 0.0
        %4897 = vmatmul.mubr.f32.gmra.mrb[0].mxu0 %v4615
        %v4898 = vpop.f32.mrb[0].mxu0
        %v4899 = vadd.f32 0.0, %v4898
        %v4900 = vpop.f32.mrb[0].mxu0
        %4901 = vmatprep.mubr.f32.mxu0 0.0
        %4902 = vmatmul.mubr.f32.gmra.mrb[0].mxu0 %v4618
        %v4903 = vpop.f32.mrb[0].mxu0
        %v4904 = vadd.f32 0.0, %v4903
        %v4905 = vpop.f32.mrb[0].mxu0
        %4906 = vmatprep.mubr.f32.mxu0 0.0
        %4907 = vmatmul.mubr.f32.gmra.mrb[0].mxu0 %v4621
        %v4908 = vpop.f32.mrb[0].mxu0
        %v4909 = vadd.f32 0.0, %v4908
        %v4910 = vpop.f32.mrb[0].mxu0
        %4911 = vmatprep.mubr.f32.mxu0 0.0
        %4912 = vmatmul.mubr.f32.gmra.mrb[0].mxu0 %v4624
        %v4913 = vpop.f32.mrb[0].mxu0
        %v4914 = vadd.f32 0.0, %v4913
        %v4915 = vpop.f32.mrb[0].mxu0
        %4916 = vmatprep.mubr.f32.mxu0 0.0
        %4917 = vmatmul.mubr.f32.gmra.mrb[0].mxu0 %v4627
        %v4918 = vpop.f32.mrb[0].mxu0
        %v4919 = vadd.f32 0.0, %v4918
        %v4920 = vpop.f32.mrb[0].mxu0
        %4921 = vmatprep.mubr.f32.mxu0 0.0
        %4922 = vmatmul.mubr.f32.gmra.mrb[0].mxu0 %v4630
        %v4923 = vpop.f32.mrb[0].mxu0
        %v4924 = vadd.f32 0.0, %v4923
        %v4925 = vpop.f32.mrb[0].mxu0
        %4926 = vmatprep.mubr.f32.mxu0 0.0
        %4927 = vmatmul.mubr.f32.gmra.mrb[0].mxu0 %v4633
        %v4928 = vpop.f32.mrb[0].mxu0
        %v4929 = vadd.f32 0.0, %v4928
        %v4930 = vpop.f32.mrb[0].mxu0
        %4931 = vmatprep.mubr.f32.mxu0 0.0
        %4932 = vmatmul.mubr.f32.gmra.mrb[0].mxu0 %v4636
        %v4933 = vpop.f32.mrb[0].mxu0
        %v4934 = vadd.f32 0.0, %v4933
        %v4935 = vpop.f32.mrb[0].mxu0
        %4936 = vmatprep.mubr.f32.mxu0 0.0
        %4937 = vmatmul.mubr.f32.gmra.mrb[0].mxu0 %v4639
        %v4938 = vpop.f32.mrb[0].mxu0
        %v4939 = vadd.f32 0.0, %v4938
        %v4940 = vpop.f32.mrb[0].mxu0
        %4941 = vmatprep.mubr.f32.mxu0 0.0
        %4942 = vmatmul.mubr.f32.gmra.mrb[0].mxu0 %v4642
        %v4943 = vpop.f32.mrb[0].mxu0
        %v4944 = vadd.f32 0.0, %v4943
        %v4945 = vpop.f32.mrb[0].mxu0
        %4946 = vmatprep.mubr.f32.mxu0 0.0
        %4947 = vmatmul.mubr.f32.gmra.mrb[0].mxu0 %v4645
        %v4948 = vpop.f32.mrb[0].mxu0
        %v4949 = vadd.f32 0.0, %v4948
        %v4950 = vpop.f32.mrb[0].mxu0
        %4951 = vmatprep.mubr.f32.mxu0 0.0
        %4952 = vmatmul.mubr.f32.gmra.mrb[0].mxu0 %v4648
        %v4953 = vpop.f32.mrb[0].mxu0
        %v4954 = vadd.f32 0.0, %v4953
        %v4955 = vpop.f32.mrb[0].mxu0
        %4956 = vmatprep.mubr.f32.mxu0 0.0
        %4957 = vmatmul.mubr.f32.gmra.mrb[0].mxu0 %v4651
        %v4958 = vpop.f32.mrb[0].mxu0
        %v4959 = vadd.f32 0.0, %v4958
        %v4960 = vpop.f32.mrb[0].mxu0
        %4961 = vmatprep.mubr.f32.mxu0 0.0
        %4962 = vmatmul.mubr.f32.gmra.mrb[0].mxu0 %v4654
        %v4963 = vpop.f32.mrb[0].mxu0
        %v4964 = vadd.f32 0.0, %v4963
        %v4965 = vpop.f32.mrb[0].mxu0
        %4966 = vmatprep.mubr.f32.mxu0 0.0
        %4967 = vmatmul.mubr.f32.gmra.mrb[0].mxu0 %v4657
        %v4968 = vpop.f32.mrb[0].mxu0
        %v4969 = vadd.f32 0.0, %v4968
        %v4970 = vpop.f32.mrb[0].mxu0
        %4971 = vmatprep.mubr.f32.mxu0 0.0
        %4972 = vmatmul.mubr.f32.gmra.mrb[0].mxu0 %v4660
        %v4973 = vpop.f32.mrb[0].mxu0
        %v4974 = vadd.f32 0.0, %v4973
        %v4975 = vpop.f32.mrb[0].mxu0
        %4976 = vmatprep.mubr.f32.mxu0 0.0
        %4977 = vmatmul.mubr.f32.gmra.mrb[0].mxu0 %v4663
        %v4978 = vpop.f32.mrb[0].mxu0
        %v4979 = vadd.f32 0.0, %v4978
        %v4980 = vpop.f32.mrb[0].mxu0
        %4981 = vmatprep.mubr.f32.mxu0 0.0
        %4982 = vmatmul.mubr.f32.gmra.mrb[0].mxu0 %v4666
        %v4983 = vpop.f32.mrb[0].mxu0
        %v4984 = vadd.f32 0.0, %v4983
        %v4985 = vpop.f32.mrb[0].mxu0
        %4986 = vmatprep.mubr.f32.mxu0 0.0
        %4987 = vmatmul.mubr.f32.gmra.mrb[0].mxu0 %v4669
        %v4988 = vpop.f32.mrb[0].mxu0
        %v4989 = vadd.f32 0.0, %v4988
        %v4990 = vpop.f32.mrb[0].mxu0
        %4991 = vmatprep.mubr.f32.mxu0 0.0
        %4992 = vmatmul.mubr.f32.gmra.mrb[0].mxu0 %v4672
        %v4993 = vpop.f32.mrb[0].mxu0
        %v4994 = vadd.f32 0.0, %v4993
        %v4995 = vpop.f32.mrb[0].mxu0
        %4996 = vmatprep.mubr.f32.mxu0 0.0
        %4997 = vmatmul.mubr.f32.gmra.mrb[0].mxu0 %v4675
        %v4998 = vpop.f32.mrb[0].mxu0
        %v4999 = vadd.f32 0.0, %v4998
        %v5000 = vpop.f32.mrb[0].mxu0
        %5001 = vmatprep.mubr.f32.mxu0 0.0
        %5002 = vmatmul.mubr.f32.gmra.mrb[0].mxu0 %v4678
        %v5003 = vpop.f32.mrb[0].mxu0
        %v5004 = vadd.f32 0.0, %v5003
        %v5005 = vpop.f32.mrb[0].mxu0
        %5006 = vmatprep.mubr.f32.mxu0 0.0
        %5007 = vmatmul.mubr.f32.gmra.mrb[0].mxu0 %v4681
        %v5008 = vpop.f32.mrb[0].mxu0
        %v5009 = vadd.f32 0.0, %v5008
        %v5010 = vpop.f32.mrb[0].mxu0
        %5011 = vmatprep.mubr.f32.mxu0 0.0
        %5012 = vmatmul.mubr.f32.gmra.mrb[0].mxu0 %v4684
        %v5013 = vpop.f32.mrb[0].mxu0
        %v5014 = vadd.f32 0.0, %v5013
        %v5015 = vpop.f32.mrb[0].mxu0
        %5016 = vmatprep.mubr.f32.mxu0 0.0
        %5017 = vmatmul.mubr.f32.gmra.mrb[0].mxu0 %v4687
        %v5018 = vpop.f32.mrb[0].mxu0
        %v5019 = vadd.f32 0.0, %v5018
        %v5020 = vpop.f32.mrb[0].mxu0
        %5021 = vmatprep.mubr.f32.mxu0 0.0
        %5022 = vmatmul.mubr.f32.gmra.mrb[0].mxu0 %v4690
        %v5023 = vpop.f32.mrb[0].mxu0
        %v5024 = vadd.f32 0.0, %v5023
        %v5025 = vpop.f32.mrb[0].mxu0
        %5026 = vmatprep.mubr.f32.mxu0 0.0
        %5027 = vmatmul.mubr.f32.gmra.mrb[0].mxu0 %v4693
        %v5028 = vpop.f32.mrb[0].mxu0
        %v5029 = vadd.f32 0.0, %v5028
        %v5030 = vpop.f32.mrb[0].mxu0
        %5031 = vmatprep.mubr.f32.mxu0 0.0
        %5032 = vmatmul.mubr.f32.gmra.mrb[0].mxu0 %v4696
        %v5033 = vpop.f32.mrb[0].mxu0
        %v5034 = vadd.f32 0.0, %v5033
        %v5035 = vpop.f32.mrb[0].mxu0
        %5036 = vmatprep.mubr.f32.mxu0 0.0
        %5037 = vmatmul.mubr.f32.gmra.mrb[0].mxu0 %v4699
        %v5038 = vpop.f32.mrb[0].mxu0
        %v5039 = vadd.f32 0.0, %v5038
        %v5040 = vpop.f32.mrb[0].mxu0
        %5041 = vmatprep.mubr.f32.mxu0 0.0
        %5042 = vmatmul.mubr.f32.gmra.mrb[0].mxu0 %v4702
        %v5043 = vpop.f32.mrb[0].mxu0
        %v5044 = vadd.f32 0.0, %v5043
        %v5045 = vpop.f32.mrb[0].mxu0
        %5046 = vmatprep.mubr.f32.mxu0 0.0
        %5047 = vmatmul.mubr.f32.gmra.mrb[0].mxu0 %v4705
        %v5048 = vpop.f32.mrb[0].mxu0
        %v5049 = vadd.f32 0.0, %v5048
        %v5050 = vpop.f32.mrb[0].mxu0
        %5051 = vmatprep.mubr.f32.mxu0 0.0
        %5052 = vmatmul.mubr.f32.gmra.mrb[0].mxu0 %v4708
        %v5053 = vpop.f32.mrb[0].mxu0
        %v5054 = vadd.f32 0.0, %v5053
        %v5055 = vpop.f32.mrb[0].mxu0
        %5056 = vmatprep.mubr.f32.mxu0 0.0
        %5057 = vmatmul.mubr.f32.gmra.mrb[0].mxu0 %v4711
        %v5058 = vpop.f32.mrb[0].mxu0
        %v5059 = vadd.f32 0.0, %v5058
        %v5060 = vpop.f32.mrb[0].mxu0
        %5061 = vmatprep.mubr.f32.mxu0 0.0
        %5062 = vmatmul.mubr.f32.gmra.mrb[0].mxu0 %v4714
        %v5063 = vpop.f32.mrb[0].mxu0
        %v5064 = vadd.f32 0.0, %v5063
        %v5065 = vpop.f32.mrb[0].mxu0
        %5066 = vmatprep.mubr.f32.mxu0 0.0
        %5067 = vmatmul.mubr.f32.gmra.mrb[0].mxu0 %v4717
        %v5068 = vpop.f32.mrb[0].mxu0
        %v5069 = vadd.f32 0.0, %v5068
        %v5070 = vpop.f32.mrb[0].mxu0
        %5071 = vmatprep.mubr.f32.mxu0 0.0
        %5072 = vmatmul.mubr.f32.gmra.mrb[0].mxu0 %v4720
        %v5073 = vpop.f32.mrb[0].mxu0
        %v5074 = vadd.f32 0.0, %v5073
        %v5075 = vpop.f32.mrb[0].mxu0
        %5076 = vmatprep.mubr.f32.mxu0 0.0
        %5077 = vmatmul.mubr.f32.gmra.mrb[0].mxu0 %v4723
        %v5078 = vpop.f32.mrb[0].mxu0
        %v5079 = vadd.f32 0.0, %v5078
        %v5080 = vpop.f32.mrb[0].mxu0
        %5081 = vmatprep.mubr.f32.mxu0 0.0
        %5082 = vmatmul.mubr.f32.gmra.mrb[0].mxu0 %v4726
        %v5083 = vpop.f32.mrb[0].mxu0
        %v5084 = vadd.f32 0.0, %v5083
        %v5085 = vpop.f32.mrb[0].mxu0
        %5086 = vmatprep.mubr.f32.mxu0 0.0
        %5087 = vmatmul.mubr.f32.gmra.mrb[0].mxu0 %v4729
        %v5088 = vpop.f32.mrb[0].mxu0
        %v5089 = vadd.f32 0.0, %v5088
        %v5090 = vpop.f32.mrb[0].mxu0
        %5091 = vmatprep.mubr.f32.mxu0 0.0
        %5092 = vmatmul.mubr.f32.gmra.mrb[0].mxu0 %v4732
        %v5093 = vpop.f32.mrb[0].mxu0
        %v5094 = vadd.f32 0.0, %v5093
        %v5095 = vpop.f32.mrb[0].mxu0
        %5096 = vmatprep.mubr.f32.mxu0 0.0
        %5097 = vmatmul.mubr.f32.gmra.mrb[0].mxu0 %v4735
        %v5098 = vpop.f32.mrb[0].mxu0
        %v5099 = vadd.f32 0.0, %v5098
        %v5100 = vpop.f32.mrb[0].mxu0
        %5101 = vmatprep.mubr.f32.mxu0 0.0
        %5102 = vmatmul.mubr.f32.gmra.mrb[0].mxu0 %v4738
        %v5103 = vpop.f32.mrb[0].mxu0
        %v5104 = vadd.f32 0.0, %v5103
        %v5105 = vpop.f32.mrb[0].mxu0
        %5106 = vmatprep.mubr.f32.mxu0 0.0
        %5107 = vmatmul.mubr.f32.gmra.mrb[0].mxu0 %v4741
        %v5108 = vpop.f32.mrb[0].mxu0
        %v5109 = vadd.f32 0.0, %v5108
        %v5110 = vpop.f32.mrb[0].mxu0
        %5111 = vmatprep.mubr.f32.mxu0 0.0
        %5112 = vmatmul.mubr.f32.gmra.mrb[0].mxu0 %v4744
        %v5113 = vpop.f32.mrb[0].mxu0
        %v5114 = vadd.f32 0.0, %v5113
        %v5115 = vpop.f32.mrb[0].mxu0
        %5116 = vmatprep.mubr.f32.mxu0 0.0
        %5117 = vmatmul.mubr.f32.gmra.mrb[0].mxu0 %v4747
        %v5118 = vpop.f32.mrb[0].mxu0
        %v5119 = vadd.f32 0.0, %v5118
        %v5120 = vpop.f32.mrb[0].mxu0
        %5121 = vmatprep.mubr.f32.mxu0 0.0
        %5122 = vmatmul.mubr.f32.gmra.mrb[0].mxu0 %v4750
        %v5123 = vpop.f32.mrb[0].mxu0
        %v5124 = vadd.f32 0.0, %v5123
        %v5125 = vpop.f32.mrb[0].mxu0
        %5126 = vmatprep.mubr.f32.mxu0 0.0
        %5127 = vmatmul.mubr.f32.gmra.mrb[0].mxu0 %v4753
        %v5128 = vpop.f32.mrb[0].mxu0
        %v5129 = vadd.f32 0.0, %v5128
        %v5130 = vpop.f32.mrb[0].mxu0
        %5131 = vmatprep.mubr.f32.mxu0 0.0
        %5132 = vmatmul.mubr.f32.gmra.mrb[0].mxu0 %v4756
        %v5133 = vpop.f32.mrb[0].mxu0
        %v5134 = vadd.f32 0.0, %v5133
        %v5135 = vpop.f32.mrb[0].mxu0
        %5136 = vmatprep.mubr.f32.mxu0 0.0
        %5137 = vmatmul.mubr.f32.gmra.mrb[0].mxu0 %v4759
        %v5138 = vpop.f32.mrb[0].mxu0
        %v5139 = vadd.f32 0.0, %v5138
        %v5140 = vpop.f32.mrb[0].mxu0
        %5141 = vmatprep.mubr.f32.mxu0 0.0
        %5142 = vmatmul.mubr.f32.gmra.mrb[0].mxu0 %v4762
        %v5143 = vpop.f32.mrb[0].mxu0
        %v5144 = vadd.f32 0.0, %v5143
        %v5145 = vpop.f32.mrb[0].mxu0
        %5146 = vmatprep.mubr.f32.mxu0 0.0
        %5147 = vmatmul.mubr.f32.gmra.mrb[0].mxu0 %v4765
        %v5148 = vpop.f32.mrb[0].mxu0
        %v5149 = vadd.f32 0.0, %v5148
        %v5150 = vpop.f32.mrb[0].mxu0
        %5151 = vdwg.mxu0
        %v5153 = vsel %vm4574, %v4424, 0
        %v5156 = vsel %vm4574, %v4425, 0
        %v5159 = vsel %vm4574, %v4426, 0
        %v5162 = vsel %vm4574, %v4427, 0
        %v5165 = vsel %vm4574, %v4428, 0
        %v5168 = vsel %vm4574, %v4429, 0
        %v5171 = vsel %vm4574, %v4430, 0
        %v5174 = vsel %vm4574, %v4431, 0
        %v5177 = vsel %vm4574, %v4432, 0
        %v5180 = vsel %vm4574, %v4433, 0
        %v5183 = vsel %vm4574, %v4434, 0
        %v5186 = vsel %vm4574, %v4435, 0
        %v5189 = vsel %vm4574, %v4436, 0
        %v5192 = vsel %vm4574, %v4437, 0
        %v5195 = vsel %vm4574, %v4438, 0
        %v5198 = vsel %vm4574, %v4439, 0
        %v5201 = vsel %vm4574, %v4440, 0
        %v5204 = vsel %vm4574, %v4441, 0
        %v5207 = vsel %vm4574, %v4442, 0
        %v5210 = vsel %vm4574, %v4443, 0
        %v5213 = vsel %vm4574, %v4444, 0
        %v5216 = vsel %vm4574, %v4445, 0
        %v5219 = vsel %vm4574, %v4446, 0
        %v5222 = vsel %vm4574, %v4447, 0
        %v5225 = vsel %vm4574, %v4448, 0
        %v5228 = vsel %vm4574, %v4449, 0
        %v5231 = vsel %vm4574, %v4450, 0
        %v5234 = vsel %vm4574, %v4451, 0
        %v5237 = vsel %vm4574, %v4452, 0
        %v5240 = vsel %vm4574, %v4453, 0
        %v5243 = vsel %vm4574, %v4454, 0
        %v5246 = vsel %vm4574, %v4455, 0
        %v5249 = vsel %vm4574, %v4456, 0
        %v5252 = vsel %vm4574, %v4457, 0
        %v5255 = vsel %vm4574, %v4458, 0
        %v5258 = vsel %vm4574, %v4459, 0
        %v5261 = vsel %vm4574, %v4460, 0
        %v5264 = vsel %vm4574, %v4461, 0
        %v5267 = vsel %vm4574, %v4462, 0
        %v5270 = vsel %vm4574, %v4463, 0
        %v5273 = vsel %vm4574, %v4464, 0
        %v5276 = vsel %vm4574, %v4465, 0
        %v5279 = vsel %vm4574, %v4466, 0
        %v5282 = vsel %vm4574, %v4467, 0
        %v5285 = vsel %vm4574, %v4468, 0
        %v5288 = vsel %vm4574, %v4469, 0
        %v5291 = vsel %vm4574, %v4470, 0
        %v5294 = vsel %vm4574, %v4471, 0
        %v5297 = vsel %vm4574, %v4472, 0
        %v5300 = vsel %vm4574, %v4473, 0
        %v5303 = vsel %vm4574, %v4474, 0
        %v5306 = vsel %vm4574, %v4475, 0
        %v5309 = vsel %vm4574, %v4476, 0
        %v5312 = vsel %vm4574, %v4477, 0
        %v5315 = vsel %vm4574, %v4478, 0
        %v5318 = vsel %vm4574, %v4479, 0
        %v5321 = vsel %vm4574, %v4480, 0
        %v5324 = vsel %vm4574, %v4481, 0
        %v5327 = vsel %vm4574, %v4482, 0
        %v5330 = vsel %vm4574, %v4483, 0
        %v5333 = vsel %vm4574, %v4484, 0
        %v5336 = vsel %vm4574, %v4485, 0
        %v5339 = vsel %vm4574, %v4486, 0
        %v5342 = vsel %vm4574, %v4487, 0
        %5344 = vmatprep.subr.mxu0 0.0
        %5345 = vmatpush1.msra.mxu0 %v4488
        %5346 = vmatprep.subr.mxu0 0.0
        %5347 = vmatpush1.msra.mxu0 %v4489
        %5348 = vmatprep.subr.mxu0 0.0
        %5349 = vmatpush1.msra.mxu0 %v4490
        %5350 = vmatprep.subr.mxu0 0.0
        %5351 = vmatpush1.msra.mxu0 %v4491
        %5352 = vmatprep.subr.mxu0 0.0
        %5353 = vmatpush1.msra.mxu0 %v4492
        %5354 = vmatprep.subr.mxu0 0.0
        %5355 = vmatpush1.msra.mxu0 %v4493
        %5356 = vmatprep.subr.mxu0 0.0
        %5357 = vmatpush1.msra.mxu0 %v4494
        %5358 = vmatprep.subr.mxu0 0.0
        %5359 = vmatpush1.msra.mxu0 %v4495
        %5360 = vmatprep.subr.mxu0 0.0
        %5361 = vmatpush1.msra.mxu0 %v4496
        %5362 = vmatprep.subr.mxu0 0.0
        %5363 = vmatpush1.msra.mxu0 %v4497
        %5364 = vmatprep.subr.mxu0 0.0
        %5365 = vmatpush1.msra.mxu0 0.0
        %5366 = vmatprep.subr.mxu0 0.0
        %5367 = vmatpush1.msra.mxu0 0.0
        %5368 = vmatprep.subr.mxu0 0.0
        %5369 = vmatpush1.msra.mxu0 0.0
        %5370 = vmatprep.subr.mxu0 0.0
        %5371 = vmatpush1.msra.mxu0 0.0
        %5372 = vmatprep.subr.mxu0 0.0
        %5373 = vmatpush1.msra.mxu0 0.0
        %5374 = vmatprep.subr.mxu0 0.0
        %5375 = vmatpush1.msra.mxu0 0.0
        %5376 = vmatprep.subr.mxu0 0.0
        %5377 = vmatpush1.msra.mxu0 0.0
        %5378 = vmatprep.subr.mxu0 0.0
        %5379 = vmatpush1.msra.mxu0 0.0
        %5380 = vmatprep.subr.mxu0 0.0
        %5381 = vmatpush1.msra.mxu0 0.0
        %5382 = vmatprep.subr.mxu0 0.0
        %5383 = vmatpush1.msra.mxu0 0.0
        %5384 = vmatprep.subr.mxu0 0.0
        %5385 = vmatpush1.msra.mxu0 0.0
        %5386 = vmatprep.subr.mxu0 0.0
        %5387 = vmatpush1.msra.mxu0 0.0
        %5388 = vmatprep.subr.mxu0 0.0
        %5389 = vmatpush1.msra.mxu0 0.0
        %5390 = vmatprep.subr.mxu0 0.0
        %5391 = vmatpush1.msra.mxu0 0.0
        %5392 = vmatprep.subr.mxu0 0.0
        %5393 = vmatpush1.msra.mxu0 0.0
        %5394 = vmatprep.subr.mxu0 0.0
        %5395 = vmatpush1.msra.mxu0 0.0
        %5396 = vmatprep.subr.mxu0 0.0
        %5397 = vmatpush1.msra.mxu0 0.0
        %5398 = vmatprep.subr.mxu0 0.0
        %5399 = vmatpush1.msra.mxu0 0.0
        %5400 = vmatprep.subr.mxu0 0.0
        %5401 = vmatpush1.msra.mxu0 0.0
        %5402 = vmatprep.subr.mxu0 0.0
        %5403 = vmatpush1.msra.mxu0 0.0
        %5404 = vmatprep.subr.mxu0 0.0
        %5405 = vmatpush1.msra.mxu0 0.0
        %5406 = vmatprep.subr.mxu0 0.0
        %5407 = vmatpush1.msra.mxu0 0.0
        %5408 = vmatprep.mubr.f32.mxu0 0.0
        %5409 = vmatmul.mubr.f32.gmra.mrb[0].mxu0 %v5153
        %v5410 = vpop.f32.mrb[0].mxu0
        %v5411 = vadd.f32 %v4834, %v5410
        %v5412 = vpop.f32.mrb[0].mxu0
        %5413 = vmatprep.mubr.f32.mxu0 0.0
        %5414 = vmatmul.mubr.f32.gmra.mrb[0].mxu0 %v5156
        %v5415 = vpop.f32.mrb[0].mxu0
        %v5416 = vadd.f32 %v4839, %v5415
        %v5417 = vpop.f32.mrb[0].mxu0
        %5418 = vmatprep.mubr.f32.mxu0 0.0
        %5419 = vmatmul.mubr.f32.gmra.mrb[0].mxu0 %v5159
        %v5420 = vpop.f32.mrb[0].mxu0
        %v5421 = vadd.f32 %v4844, %v5420
        %v5422 = vpop.f32.mrb[0].mxu0
        %5423 = vmatprep.mubr.f32.mxu0 0.0
        %5424 = vmatmul.mubr.f32.gmra.mrb[0].mxu0 %v5162
        %v5425 = vpop.f32.mrb[0].mxu0
        %v5426 = vadd.f32 %v4849, %v5425
        %v5427 = vpop.f32.mrb[0].mxu0
        %5428 = vmatprep.mubr.f32.mxu0 0.0
        %5429 = vmatmul.mubr.f32.gmra.mrb[0].mxu0 %v5165
        %v5430 = vpop.f32.mrb[0].mxu0
        %v5431 = vadd.f32 %v4854, %v5430
        %v5432 = vpop.f32.mrb[0].mxu0
        %5433 = vmatprep.mubr.f32.mxu0 0.0
        %5434 = vmatmul.mubr.f32.gmra.mrb[0].mxu0 %v5168
        %v5435 = vpop.f32.mrb[0].mxu0
        %v5436 = vadd.f32 %v4859, %v5435
        %v5437 = vpop.f32.mrb[0].mxu0
        %5438 = vmatprep.mubr.f32.mxu0 0.0
        %5439 = vmatmul.mubr.f32.gmra.mrb[0].mxu0 %v5171
        %v5440 = vpop.f32.mrb[0].mxu0
        %v5441 = vadd.f32 %v4864, %v5440
        %v5442 = vpop.f32.mrb[0].mxu0
        %5443 = vmatprep.mubr.f32.mxu0 0.0
        %5444 = vmatmul.mubr.f32.gmra.mrb[0].mxu0 %v5174
        %v5445 = vpop.f32.mrb[0].mxu0
        %v5446 = vadd.f32 %v4869, %v5445
        %v5447 = vpop.f32.mrb[0].mxu0
        %5448 = vmatprep.mubr.f32.mxu0 0.0
        %5449 = vmatmul.mubr.f32.gmra.mrb[0].mxu0 %v5177
        %v5450 = vpop.f32.mrb[0].mxu0
        %v5451 = vadd.f32 %v4874, %v5450
        %v5452 = vpop.f32.mrb[0].mxu0
        %5453 = vmatprep.mubr.f32.mxu0 0.0
        %5454 = vmatmul.mubr.f32.gmra.mrb[0].mxu0 %v5180
        %v5455 = vpop.f32.mrb[0].mxu0
        %v5456 = vadd.f32 %v4879, %v5455
        %v5457 = vpop.f32.mrb[0].mxu0
        %5458 = vmatprep.mubr.f32.mxu0 0.0
        %5459 = vmatmul.mubr.f32.gmra.mrb[0].mxu0 %v5183
        %v5460 = vpop.f32.mrb[0].mxu0
        %v5461 = vadd.f32 %v4884, %v5460
        %v5462 = vpop.f32.mrb[0].mxu0
        %5463 = vmatprep.mubr.f32.mxu0 0.0
        %5464 = vmatmul.mubr.f32.gmra.mrb[0].mxu0 %v5186
        %v5465 = vpop.f32.mrb[0].mxu0
        %v5466 = vadd.f32 %v4889, %v5465
        %v5467 = vpop.f32.mrb[0].mxu0
        %5468 = vmatprep.mubr.f32.mxu0 0.0
        %5469 = vmatmul.mubr.f32.gmra.mrb[0].mxu0 %v5189
        %v5470 = vpop.f32.mrb[0].mxu0
        %v5471 = vadd.f32 %v4894, %v5470
        %v5472 = vpop.f32.mrb[0].mxu0
        %5473 = vmatprep.mubr.f32.mxu0 0.0
        %5474 = vmatmul.mubr.f32.gmra.mrb[0].mxu0 %v5192
        %v5475 = vpop.f32.mrb[0].mxu0
        %v5476 = vadd.f32 %v4899, %v5475
        %v5477 = vpop.f32.mrb[0].mxu0
        %5478 = vmatprep.mubr.f32.mxu0 0.0
        %5479 = vmatmul.mubr.f32.gmra.mrb[0].mxu0 %v5195
        %v5480 = vpop.f32.mrb[0].mxu0
        %v5481 = vadd.f32 %v4904, %v5480
        %v5482 = vpop.f32.mrb[0].mxu0
        %5483 = vmatprep.mubr.f32.mxu0 0.0
        %5484 = vmatmul.mubr.f32.gmra.mrb[0].mxu0 %v5198
        %v5485 = vpop.f32.mrb[0].mxu0
        %v5486 = vadd.f32 %v4909, %v5485
        %v5487 = vpop.f32.mrb[0].mxu0
        %5488 = vmatprep.mubr.f32.mxu0 0.0
        %5489 = vmatmul.mubr.f32.gmra.mrb[0].mxu0 %v5201
        %v5490 = vpop.f32.mrb[0].mxu0
        %v5491 = vadd.f32 %v4914, %v5490
        %v5492 = vpop.f32.mrb[0].mxu0
        %5493 = vmatprep.mubr.f32.mxu0 0.0
        %5494 = vmatmul.mubr.f32.gmra.mrb[0].mxu0 %v5204
        %v5495 = vpop.f32.mrb[0].mxu0
        %v5496 = vadd.f32 %v4919, %v5495
        %v5497 = vpop.f32.mrb[0].mxu0
        %5498 = vmatprep.mubr.f32.mxu0 0.0
        %5499 = vmatmul.mubr.f32.gmra.mrb[0].mxu0 %v5207
        %v5500 = vpop.f32.mrb[0].mxu0
        %v5501 = vadd.f32 %v4924, %v5500
        %v5502 = vpop.f32.mrb[0].mxu0
        %5503 = vmatprep.mubr.f32.mxu0 0.0
        %5504 = vmatmul.mubr.f32.gmra.mrb[0].mxu0 %v5210
        %v5505 = vpop.f32.mrb[0].mxu0
        %v5506 = vadd.f32 %v4929, %v5505
        %v5507 = vpop.f32.mrb[0].mxu0
        %5508 = vmatprep.mubr.f32.mxu0 0.0
        %5509 = vmatmul.mubr.f32.gmra.mrb[0].mxu0 %v5213
        %v5510 = vpop.f32.mrb[0].mxu0
        %v5511 = vadd.f32 %v4934, %v5510
        %v5512 = vpop.f32.mrb[0].mxu0
        %5513 = vmatprep.mubr.f32.mxu0 0.0
        %5514 = vmatmul.mubr.f32.gmra.mrb[0].mxu0 %v5216
        %v5515 = vpop.f32.mrb[0].mxu0
        %v5516 = vadd.f32 %v4939, %v5515
        %v5517 = vpop.f32.mrb[0].mxu0
        %5518 = vmatprep.mubr.f32.mxu0 0.0
        %5519 = vmatmul.mubr.f32.gmra.mrb[0].mxu0 %v5219
        %v5520 = vpop.f32.mrb[0].mxu0
        %v5521 = vadd.f32 %v4944, %v5520
        %v5522 = vpop.f32.mrb[0].mxu0
        %5523 = vmatprep.mubr.f32.mxu0 0.0
        %5524 = vmatmul.mubr.f32.gmra.mrb[0].mxu0 %v5222
        %v5525 = vpop.f32.mrb[0].mxu0
        %v5526 = vadd.f32 %v4949, %v5525
        %v5527 = vpop.f32.mrb[0].mxu0
        %5528 = vmatprep.mubr.f32.mxu0 0.0
        %5529 = vmatmul.mubr.f32.gmra.mrb[0].mxu0 %v5225
        %v5530 = vpop.f32.mrb[0].mxu0
        %v5531 = vadd.f32 %v4954, %v5530
        %v5532 = vpop.f32.mrb[0].mxu0
        %5533 = vmatprep.mubr.f32.mxu0 0.0
        %5534 = vmatmul.mubr.f32.gmra.mrb[0].mxu0 %v5228
        %v5535 = vpop.f32.mrb[0].mxu0
        %v5536 = vadd.f32 %v4959, %v5535
        %v5537 = vpop.f32.mrb[0].mxu0
        %5538 = vmatprep.mubr.f32.mxu0 0.0
        %5539 = vmatmul.mubr.f32.gmra.mrb[0].mxu0 %v5231
        %v5540 = vpop.f32.mrb[0].mxu0
        %v5541 = vadd.f32 %v4964, %v5540
        %v5542 = vpop.f32.mrb[0].mxu0
        %5543 = vmatprep.mubr.f32.mxu0 0.0
        %5544 = vmatmul.mubr.f32.gmra.mrb[0].mxu0 %v5234
        %v5545 = vpop.f32.mrb[0].mxu0
        %v5546 = vadd.f32 %v4969, %v5545
        %v5547 = vpop.f32.mrb[0].mxu0
        %5548 = vmatprep.mubr.f32.mxu0 0.0
        %5549 = vmatmul.mubr.f32.gmra.mrb[0].mxu0 %v5237
        %v5550 = vpop.f32.mrb[0].mxu0
        %v5551 = vadd.f32 %v4974, %v5550
        %v5552 = vpop.f32.mrb[0].mxu0
        %5553 = vmatprep.mubr.f32.mxu0 0.0
        %5554 = vmatmul.mubr.f32.gmra.mrb[0].mxu0 %v5240
        %v5555 = vpop.f32.mrb[0].mxu0
        %v5556 = vadd.f32 %v4979, %v5555
        %v5557 = vpop.f32.mrb[0].mxu0
        %5558 = vmatprep.mubr.f32.mxu0 0.0
        %5559 = vmatmul.mubr.f32.gmra.mrb[0].mxu0 %v5243
        %v5560 = vpop.f32.mrb[0].mxu0
        %v5561 = vadd.f32 %v4984, %v5560
        %v5562 = vpop.f32.mrb[0].mxu0
        %5563 = vmatprep.mubr.f32.mxu0 0.0
        %5564 = vmatmul.mubr.f32.gmra.mrb[0].mxu0 %v5246
        %v5565 = vpop.f32.mrb[0].mxu0
        %v5566 = vadd.f32 %v4989, %v5565
        %v5567 = vpop.f32.mrb[0].mxu0
        %5568 = vmatprep.mubr.f32.mxu0 0.0
        %5569 = vmatmul.mubr.f32.gmra.mrb[0].mxu0 %v5249
        %v5570 = vpop.f32.mrb[0].mxu0
        %v5571 = vadd.f32 %v4994, %v5570
        %v5572 = vpop.f32.mrb[0].mxu0
        %5573 = vmatprep.mubr.f32.mxu0 0.0
        %5574 = vmatmul.mubr.f32.gmra.mrb[0].mxu0 %v5252
        %v5575 = vpop.f32.mrb[0].mxu0
        %v5576 = vadd.f32 %v4999, %v5575
        %v5577 = vpop.f32.mrb[0].mxu0
        %5578 = vmatprep.mubr.f32.mxu0 0.0
        %5579 = vmatmul.mubr.f32.gmra.mrb[0].mxu0 %v5255
        %v5580 = vpop.f32.mrb[0].mxu0
        %v5581 = vadd.f32 %v5004, %v5580
        %v5582 = vpop.f32.mrb[0].mxu0
        %5583 = vmatprep.mubr.f32.mxu0 0.0
        %5584 = vmatmul.mubr.f32.gmra.mrb[0].mxu0 %v5258
        %v5585 = vpop.f32.mrb[0].mxu0
        %v5586 = vadd.f32 %v5009, %v5585
        %v5587 = vpop.f32.mrb[0].mxu0
        %5588 = vmatprep.mubr.f32.mxu0 0.0
        %5589 = vmatmul.mubr.f32.gmra.mrb[0].mxu0 %v5261
        %v5590 = vpop.f32.mrb[0].mxu0
        %v5591 = vadd.f32 %v5014, %v5590
        %v5592 = vpop.f32.mrb[0].mxu0
        %5593 = vmatprep.mubr.f32.mxu0 0.0
        %5594 = vmatmul.mubr.f32.gmra.mrb[0].mxu0 %v5264
        %v5595 = vpop.f32.mrb[0].mxu0
        %v5596 = vadd.f32 %v5019, %v5595
        %v5597 = vpop.f32.mrb[0].mxu0
        %5598 = vmatprep.mubr.f32.mxu0 0.0
        %5599 = vmatmul.mubr.f32.gmra.mrb[0].mxu0 %v5267
        %v5600 = vpop.f32.mrb[0].mxu0
        %v5601 = vadd.f32 %v5024, %v5600
        %v5602 = vpop.f32.mrb[0].mxu0
        %5603 = vmatprep.mubr.f32.mxu0 0.0
        %5604 = vmatmul.mubr.f32.gmra.mrb[0].mxu0 %v5270
        %v5605 = vpop.f32.mrb[0].mxu0
        %v5606 = vadd.f32 %v5029, %v5605
        %v5607 = vpop.f32.mrb[0].mxu0
        %5608 = vmatprep.mubr.f32.mxu0 0.0
        %5609 = vmatmul.mubr.f32.gmra.mrb[0].mxu0 %v5273
        %v5610 = vpop.f32.mrb[0].mxu0
        %v5611 = vadd.f32 %v5034, %v5610
        %v5612 = vpop.f32.mrb[0].mxu0
        %5613 = vmatprep.mubr.f32.mxu0 0.0
        %5614 = vmatmul.mubr.f32.gmra.mrb[0].mxu0 %v5276
        %v5615 = vpop.f32.mrb[0].mxu0
        %v5616 = vadd.f32 %v5039, %v5615
        %v5617 = vpop.f32.mrb[0].mxu0
        %5618 = vmatprep.mubr.f32.mxu0 0.0
        %5619 = vmatmul.mubr.f32.gmra.mrb[0].mxu0 %v5279
        %v5620 = vpop.f32.mrb[0].mxu0
        %v5621 = vadd.f32 %v5044, %v5620
        %v5622 = vpop.f32.mrb[0].mxu0
        %5623 = vmatprep.mubr.f32.mxu0 0.0
        %5624 = vmatmul.mubr.f32.gmra.mrb[0].mxu0 %v5282
        %v5625 = vpop.f32.mrb[0].mxu0
        %v5626 = vadd.f32 %v5049, %v5625
        %v5627 = vpop.f32.mrb[0].mxu0
        %5628 = vmatprep.mubr.f32.mxu0 0.0
        %5629 = vmatmul.mubr.f32.gmra.mrb[0].mxu0 %v5285
        %v5630 = vpop.f32.mrb[0].mxu0
        %v5631 = vadd.f32 %v5054, %v5630
        %v5632 = vpop.f32.mrb[0].mxu0
        %5633 = vmatprep.mubr.f32.mxu0 0.0
        %5634 = vmatmul.mubr.f32.gmra.mrb[0].mxu0 %v5288
        %v5635 = vpop.f32.mrb[0].mxu0
        %v5636 = vadd.f32 %v5059, %v5635
        %v5637 = vpop.f32.mrb[0].mxu0
        %5638 = vmatprep.mubr.f32.mxu0 0.0
        %5639 = vmatmul.mubr.f32.gmra.mrb[0].mxu0 %v5291
        %v5640 = vpop.f32.mrb[0].mxu0
        %v5641 = vadd.f32 %v5064, %v5640
        %v5642 = vpop.f32.mrb[0].mxu0
        %5643 = vmatprep.mubr.f32.mxu0 0.0
        %5644 = vmatmul.mubr.f32.gmra.mrb[0].mxu0 %v5294
        %v5645 = vpop.f32.mrb[0].mxu0
        %v5646 = vadd.f32 %v5069, %v5645
        %v5647 = vpop.f32.mrb[0].mxu0
        %5648 = vmatprep.mubr.f32.mxu0 0.0
        %5649 = vmatmul.mubr.f32.gmra.mrb[0].mxu0 %v5297
        %v5650 = vpop.f32.mrb[0].mxu0
        %v5651 = vadd.f32 %v5074, %v5650
        %v5652 = vpop.f32.mrb[0].mxu0
        %5653 = vmatprep.mubr.f32.mxu0 0.0
        %5654 = vmatmul.mubr.f32.gmra.mrb[0].mxu0 %v5300
        %v5655 = vpop.f32.mrb[0].mxu0
        %v5656 = vadd.f32 %v5079, %v5655
        %v5657 = vpop.f32.mrb[0].mxu0
        %5658 = vmatprep.mubr.f32.mxu0 0.0
        %5659 = vmatmul.mubr.f32.gmra.mrb[0].mxu0 %v5303
        %v5660 = vpop.f32.mrb[0].mxu0
        %v5661 = vadd.f32 %v5084, %v5660
        %v5662 = vpop.f32.mrb[0].mxu0
        %5663 = vmatprep.mubr.f32.mxu0 0.0
        %5664 = vmatmul.mubr.f32.gmra.mrb[0].mxu0 %v5306
        %v5665 = vpop.f32.mrb[0].mxu0
        %v5666 = vadd.f32 %v5089, %v5665
        %v5667 = vpop.f32.mrb[0].mxu0
        %5668 = vmatprep.mubr.f32.mxu0 0.0
        %5669 = vmatmul.mubr.f32.gmra.mrb[0].mxu0 %v5309
        %v5670 = vpop.f32.mrb[0].mxu0
        %v5671 = vadd.f32 %v5094, %v5670
        %v5672 = vpop.f32.mrb[0].mxu0
        %5673 = vmatprep.mubr.f32.mxu0 0.0
        %5674 = vmatmul.mubr.f32.gmra.mrb[0].mxu0 %v5312
        %v5675 = vpop.f32.mrb[0].mxu0
        %v5676 = vadd.f32 %v5099, %v5675
        %v5677 = vpop.f32.mrb[0].mxu0
        %5678 = vmatprep.mubr.f32.mxu0 0.0
        %5679 = vmatmul.mubr.f32.gmra.mrb[0].mxu0 %v5315
        %v5680 = vpop.f32.mrb[0].mxu0
        %v5681 = vadd.f32 %v5104, %v5680
        %v5682 = vpop.f32.mrb[0].mxu0
        %5683 = vmatprep.mubr.f32.mxu0 0.0
        %5684 = vmatmul.mubr.f32.gmra.mrb[0].mxu0 %v5318
        %v5685 = vpop.f32.mrb[0].mxu0
        %v5686 = vadd.f32 %v5109, %v5685
        %v5687 = vpop.f32.mrb[0].mxu0
        %5688 = vmatprep.mubr.f32.mxu0 0.0
        %5689 = vmatmul.mubr.f32.gmra.mrb[0].mxu0 %v5321
        %v5690 = vpop.f32.mrb[0].mxu0
        %v5691 = vadd.f32 %v5114, %v5690
        %v5692 = vpop.f32.mrb[0].mxu0
        %5693 = vmatprep.mubr.f32.mxu0 0.0
        %5694 = vmatmul.mubr.f32.gmra.mrb[0].mxu0 %v5324
        %v5695 = vpop.f32.mrb[0].mxu0
        %v5696 = vadd.f32 %v5119, %v5695
        %v5697 = vpop.f32.mrb[0].mxu0
        %5698 = vmatprep.mubr.f32.mxu0 0.0
        %5699 = vmatmul.mubr.f32.gmra.mrb[0].mxu0 %v5327
        %v5700 = vpop.f32.mrb[0].mxu0
        %v5701 = vadd.f32 %v5124, %v5700
        %v5702 = vpop.f32.mrb[0].mxu0
        %5703 = vmatprep.mubr.f32.mxu0 0.0
        %5704 = vmatmul.mubr.f32.gmra.mrb[0].mxu0 %v5330
        %v5705 = vpop.f32.mrb[0].mxu0
        %v5706 = vadd.f32 %v5129, %v5705
        %v5707 = vpop.f32.mrb[0].mxu0
        %5708 = vmatprep.mubr.f32.mxu0 0.0
        %5709 = vmatmul.mubr.f32.gmra.mrb[0].mxu0 %v5333
        %v5710 = vpop.f32.mrb[0].mxu0
        %v5711 = vadd.f32 %v5134, %v5710
        %v5712 = vpop.f32.mrb[0].mxu0
        %5713 = vmatprep.mubr.f32.mxu0 0.0
        %5714 = vmatmul.mubr.f32.gmra.mrb[0].mxu0 %v5336
        %v5715 = vpop.f32.mrb[0].mxu0
        %v5716 = vadd.f32 %v5139, %v5715
        %v5717 = vpop.f32.mrb[0].mxu0
        %5718 = vmatprep.mubr.f32.mxu0 0.0
        %5719 = vmatmul.mubr.f32.gmra.mrb[0].mxu0 %v5339
        %v5720 = vpop.f32.mrb[0].mxu0
        %v5721 = vadd.f32 %v5144, %v5720
        %v5722 = vpop.f32.mrb[0].mxu0
        %5723 = vmatprep.mubr.f32.mxu0 0.0
        %5724 = vmatmul.mubr.f32.gmra.mrb[0].mxu0 %v5342
        %v5725 = vpop.f32.mrb[0].mxu0
        %v5726 = vadd.f32 %v5149, %v5725
        %v5727 = vpop.f32.mrb[0].mxu0
        %5728 = vdwg.mxu0
        %s5729 = scalar_lea.vmem [#allocation2], 128
        %v5730 = vld [vmem:[%s5729] sm:$0xff]
        %v5731 = vld [vmem:[%s5729 + $0x8] sm:$0xff]
        %v5732 = vld [vmem:[%s5729 + $0x10] sm:$0xff]
        %v5733 = vld [vmem:[%s5729 + $0x18] sm:$0xff]
        %v5734 = vld [vmem:[%s5729 + $0x20] sm:$0xff]
        %v5735 = vld [vmem:[%s5729 + $0x28] sm:$0xff]
        %v5736 = vld [vmem:[%s5729 + $0x30] sm:$0xff]
        %v5737 = vld [vmem:[%s5729 + $0x38] sm:$0xff]
        %v5738 = vld [vmem:[%s5729 + $0x40] sm:$0xff]
        %v5739 = vld [vmem:[%s5729 + $0x48] sm:$0xff]
        %v5740 = vld [vmem:[%s5729 + $0x50] sm:$0xff]
        %v5741 = vld [vmem:[%s5729 + $0x58] sm:$0xff]
        %v5742 = vld [vmem:[%s5729 + $0x60] sm:$0xff]
        %v5743 = vld [vmem:[%s5729 + $0x68] sm:$0xff]
        %v5744 = vld [vmem:[%s5729 + $0x70] sm:$0xff]
        %v5745 = vld [vmem:[%s5729 + $0x78] sm:$0xff]
        %v5746 = vld [vmem:[%s5729 + $0x80] sm:$0xff]
        %v5747 = vld [vmem:[%s5729 + $0x88] sm:$0xff]
        %v5748 = vld [vmem:[%s5729 + $0x90] sm:$0xff]
        %v5749 = vld [vmem:[%s5729 + $0x98] sm:$0xff]
        %v5750 = vld [vmem:[%s5729 + $0xa0] sm:$0xff]
        %v5751 = vld [vmem:[%s5729 + $0xa8] sm:$0xff]
        %v5752 = vld [vmem:[%s5729 + $0xb0] sm:$0xff]
        %v5753 = vld [vmem:[%s5729 + $0xb8] sm:$0xff]
        %v5754 = vld [vmem:[%s5729 + $0xc0] sm:$0xff]
        %v5755 = vld [vmem:[%s5729 + $0xc8] sm:$0xff]
        %v5756 = vld [vmem:[%s5729 + $0xd0] sm:$0xff]
        %v5757 = vld [vmem:[%s5729 + $0xd8] sm:$0xff]
        %v5758 = vld [vmem:[%s5729 + $0xe0] sm:$0xff]
        %v5759 = vld [vmem:[%s5729 + $0xe8] sm:$0xff]
        %v5760 = vld [vmem:[%s5729 + $0xf0] sm:$0xff]
        %v5761 = vld [vmem:[%s5729 + $0xf8] sm:$0xff]
        %v5762 = vld [vmem:[%s5729 + $0x100] sm:$0xff]
        %v5763 = vld [vmem:[%s5729 + $0x108] sm:$0xff]
        %v5764 = vld [vmem:[%s5729 + $0x110] sm:$0xff]
        %v5765 = vld [vmem:[%s5729 + $0x118] sm:$0xff]
        %v5766 = vld [vmem:[%s5729 + $0x120] sm:$0xff]
        %v5767 = vld [vmem:[%s5729 + $0x128] sm:$0xff]
        %v5768 = vld [vmem:[%s5729 + $0x130] sm:$0xff]
        %v5769 = vld [vmem:[%s5729 + $0x138] sm:$0xff]
        %v5770 = vld [vmem:[%s5729 + $0x140] sm:$0xff]
        %v5771 = vld [vmem:[%s5729 + $0x148] sm:$0xff]
        %v5772 = vld [vmem:[%s5729 + $0x150] sm:$0xff]
        %v5773 = vld [vmem:[%s5729 + $0x158] sm:$0xff]
        %v5774 = vld [vmem:[%s5729 + $0x160] sm:$0xff]
        %v5775 = vld [vmem:[%s5729 + $0x168] sm:$0xff]
        %v5776 = vld [vmem:[%s5729 + $0x170] sm:$0xff]
        %v5777 = vld [vmem:[%s5729 + $0x178] sm:$0xff]
        %v5778 = vld [vmem:[%s5729 + $0x180] sm:$0xff]
        %v5779 = vld [vmem:[%s5729 + $0x188] sm:$0xff]
        %v5780 = vld [vmem:[%s5729 + $0x190] sm:$0xff]
        %v5781 = vld [vmem:[%s5729 + $0x198] sm:$0xff]
        %v5782 = vld [vmem:[%s5729 + $0x1a0] sm:$0xff]
        %v5783 = vld [vmem:[%s5729 + $0x1a8] sm:$0xff]
        %v5784 = vld [vmem:[%s5729 + $0x1b0] sm:$0xff]
        %v5785 = vld [vmem:[%s5729 + $0x1b8] sm:$0xff]
        %v5786 = vld [vmem:[%s5729 + $0x1c0] sm:$0xff]
        %v5787 = vld [vmem:[%s5729 + $0x1c8] sm:$0xff]
        %v5788 = vld [vmem:[%s5729 + $0x1d0] sm:$0xff]
        %v5789 = vld [vmem:[%s5729 + $0x1d8] sm:$0xff]
        %v5790 = vld [vmem:[%s5729 + $0x1e0] sm:$0xff]
        %v5791 = vld [vmem:[%s5729 + $0x1e8] sm:$0xff]
        %v5792 = vld [vmem:[%s5729 + $0x1f0] sm:$0xff]
        %v5793 = vld [vmem:[%s5729 + $0x1f8] sm:$0xff]
        %s5794 = scalar_lea.vmem %s3, 160
        %v5795 = vld [vmem:[%s5794] sm:$0xff]
        %v5796 = vld [vmem:[%s5794 + $0x8] sm:$0xff]
        %v5797 = vld [vmem:[%s5794 + $0x10] sm:$0xff]
        %v5798 = vld [vmem:[%s5794 + $0x18] sm:$0xff]
        %v5799 = vld [vmem:[%s5794 + $0x20] sm:$0xff]
        %v5800 = vld [vmem:[%s5794 + $0x28] sm:$0xff]
        %v5801 = vld [vmem:[%s5794 + $0x30] sm:$0xff]
        %v5802 = vld [vmem:[%s5794 + $0x38] sm:$0xff]
        %v5803 = vld [vmem:[%s5794 + $0x40] sm:$0xff]
        %v5804 = vld [vmem:[%s5794 + $0x48] sm:$0xff]
        %v5806 = vsel %vm4574, %v5730, 0
        %v5809 = vsel %vm4574, %v5731, 0
        %v5812 = vsel %vm4574, %v5732, 0
        %v5815 = vsel %vm4574, %v5733, 0
        %v5818 = vsel %vm4574, %v5734, 0
        %v5821 = vsel %vm4574, %v5735, 0
        %v5824 = vsel %vm4574, %v5736, 0
        %v5827 = vsel %vm4574, %v5737, 0
        %v5830 = vsel %vm4574, %v5738, 0
        %v5833 = vsel %vm4574, %v5739, 0
        %v5836 = vsel %vm4574, %v5740, 0
        %v5839 = vsel %vm4574, %v5741, 0
        %v5842 = vsel %vm4574, %v5742, 0
        %v5845 = vsel %vm4574, %v5743, 0
        %v5848 = vsel %vm4574, %v5744, 0
        %v5851 = vsel %vm4574, %v5745, 0
        %v5854 = vsel %vm4574, %v5746, 0
        %v5857 = vsel %vm4574, %v5747, 0
        %v5860 = vsel %vm4574, %v5748, 0
        %v5863 = vsel %vm4574, %v5749, 0
        %v5866 = vsel %vm4574, %v5750, 0
        %v5869 = vsel %vm4574, %v5751, 0
        %v5872 = vsel %vm4574, %v5752, 0
        %v5875 = vsel %vm4574, %v5753, 0
        %v5878 = vsel %vm4574, %v5754, 0
        %v5881 = vsel %vm4574, %v5755, 0
        %v5884 = vsel %vm4574, %v5756, 0
        %v5887 = vsel %vm4574, %v5757, 0
        %v5890 = vsel %vm4574, %v5758, 0
        %v5893 = vsel %vm4574, %v5759, 0
        %v5896 = vsel %vm4574, %v5760, 0
        %v5899 = vsel %vm4574, %v5761, 0
        %v5902 = vsel %vm4574, %v5762, 0
        %v5905 = vsel %vm4574, %v5763, 0
        %v5908 = vsel %vm4574, %v5764, 0
        %v5911 = vsel %vm4574, %v5765, 0
        %v5914 = vsel %vm4574, %v5766, 0
        %v5917 = vsel %vm4574, %v5767, 0
        %v5920 = vsel %vm4574, %v5768, 0
        %v5923 = vsel %vm4574, %v5769, 0
        %v5926 = vsel %vm4574, %v5770, 0
        %v5929 = vsel %vm4574, %v5771, 0
        %v5932 = vsel %vm4574, %v5772, 0
        %v5935 = vsel %vm4574, %v5773, 0
        %v5938 = vsel %vm4574, %v5774, 0
        %v5941 = vsel %vm4574, %v5775, 0
        %v5944 = vsel %vm4574, %v5776, 0
        %v5947 = vsel %vm4574, %v5777, 0
        %v5950 = vsel %vm4574, %v5778, 0
        %v5953 = vsel %vm4574, %v5779, 0
        %v5956 = vsel %vm4574, %v5780, 0
        %v5959 = vsel %vm4574, %v5781, 0
        %v5962 = vsel %vm4574, %v5782, 0
        %v5965 = vsel %vm4574, %v5783, 0
        %v5968 = vsel %vm4574, %v5784, 0
        %v5971 = vsel %vm4574, %v5785, 0
        %v5974 = vsel %vm4574, %v5786, 0
        %v5977 = vsel %vm4574, %v5787, 0
        %v5980 = vsel %vm4574, %v5788, 0
        %v5983 = vsel %vm4574, %v5789, 0
        %v5986 = vsel %vm4574, %v5790, 0
        %v5989 = vsel %vm4574, %v5791, 0
        %v5992 = vsel %vm4574, %v5792, 0
        %v5995 = vsel %vm4574, %v5793, 0
        %5997 = vmatprep.subr.mxu0 0.0
        %5998 = vmatpush1.msra.mxu0 %v5795
        %5999 = vmatprep.subr.mxu0 0.0
        %6000 = vmatpush1.msra.mxu0 %v5796
        %6001 = vmatprep.subr.mxu0 0.0
        %6002 = vmatpush1.msra.mxu0 %v5797
        %6003 = vmatprep.subr.mxu0 0.0
        %6004 = vmatpush1.msra.mxu0 %v5798
        %6005 = vmatprep.subr.mxu0 0.0
        %6006 = vmatpush1.msra.mxu0 %v5799
        %6007 = vmatprep.subr.mxu0 0.0
        %6008 = vmatpush1.msra.mxu0 %v5800
        %6009 = vmatprep.subr.mxu0 0.0
        %6010 = vmatpush1.msra.mxu0 %v5801
        %6011 = vmatprep.subr.mxu0 0.0
        %6012 = vmatpush1.msra.mxu0 %v5802
        %6013 = vmatprep.subr.mxu0 0.0
        %6014 = vmatpush1.msra.mxu0 %v5803
        %6015 = vmatprep.subr.mxu0 0.0
        %6016 = vmatpush1.msra.mxu0 %v5804
        %6017 = vmatprep.subr.mxu0 0.0
        %6018 = vmatpush1.msra.mxu0 0.0
        %6019 = vmatprep.subr.mxu0 0.0
        %6020 = vmatpush1.msra.mxu0 0.0
        %6021 = vmatprep.subr.mxu0 0.0
        %6022 = vmatpush1.msra.mxu0 0.0
        %6023 = vmatprep.subr.mxu0 0.0
        %6024 = vmatpush1.msra.mxu0 0.0
        %6025 = vmatprep.subr.mxu0 0.0
        %6026 = vmatpush1.msra.mxu0 0.0
        %6027 = vmatprep.subr.mxu0 0.0
        %6028 = vmatpush1.msra.mxu0 0.0
        %6029 = vmatprep.subr.mxu0 0.0
        %6030 = vmatpush1.msra.mxu0 0.0
        %6031 = vmatprep.subr.mxu0 0.0
        %6032 = vmatpush1.msra.mxu0 0.0
        %6033 = vmatprep.subr.mxu0 0.0
        %6034 = vmatpush1.msra.mxu0 0.0
        %6035 = vmatprep.subr.mxu0 0.0
        %6036 = vmatpush1.msra.mxu0 0.0
        %6037 = vmatprep.subr.mxu0 0.0
        %6038 = vmatpush1.msra.mxu0 0.0
        %6039 = vmatprep.subr.mxu0 0.0
        %6040 = vmatpush1.msra.mxu0 0.0
        %6041 = vmatprep.subr.mxu0 0.0
        %6042 = vmatpush1.msra.mxu0 0.0
        %6043 = vmatprep.subr.mxu0 0.0
        %6044 = vmatpush1.msra.mxu0 0.0
        %6045 = vmatprep.subr.mxu0 0.0
        %6046 = vmatpush1.msra.mxu0 0.0
        %6047 = vmatprep.subr.mxu0 0.0
        %6048 = vmatpush1.msra.mxu0 0.0
        %6049 = vmatprep.subr.mxu0 0.0
        %6050 = vmatpush1.msra.mxu0 0.0
        %6051 = vmatprep.subr.mxu0 0.0
        %6052 = vmatpush1.msra.mxu0 0.0
        %6053 = vmatprep.subr.mxu0 0.0
        %6054 = vmatpush1.msra.mxu0 0.0
        %6055 = vmatprep.subr.mxu0 0.0
        %6056 = vmatpush1.msra.mxu0 0.0
        %6057 = vmatprep.subr.mxu0 0.0
        %6058 = vmatpush1.msra.mxu0 0.0
        %6059 = vmatprep.subr.mxu0 0.0
        %6060 = vmatpush1.msra.mxu0 0.0
        %6061 = vmatprep.mubr.f32.mxu0 0.0
        %6062 = vmatmul.mubr.f32.gmra.mrb[0].mxu0 %v5806
        %v6063 = vpop.f32.mrb[0].mxu0
        %v6064 = vadd.f32 0.0, %v6063
        %v6065 = vpop.f32.mrb[0].mxu0
        %6066 = vmatprep.mubr.f32.mxu0 0.0
        %6067 = vmatmul.mubr.f32.gmra.mrb[0].mxu0 %v5809
        %v6068 = vpop.f32.mrb[0].mxu0
        %v6069 = vadd.f32 0.0, %v6068
        %v6070 = vpop.f32.mrb[0].mxu0
        %6071 = vmatprep.mubr.f32.mxu0 0.0
        %6072 = vmatmul.mubr.f32.gmra.mrb[0].mxu0 %v5812
        %v6073 = vpop.f32.mrb[0].mxu0
        %v6074 = vadd.f32 0.0, %v6073
        %v6075 = vpop.f32.mrb[0].mxu0
        %6076 = vmatprep.mubr.f32.mxu0 0.0
        %6077 = vmatmul.mubr.f32.gmra.mrb[0].mxu0 %v5815
        %v6078 = vpop.f32.mrb[0].mxu0
        %v6079 = vadd.f32 0.0, %v6078
        %v6080 = vpop.f32.mrb[0].mxu0
        %6081 = vmatprep.mubr.f32.mxu0 0.0
        %6082 = vmatmul.mubr.f32.gmra.mrb[0].mxu0 %v5818
        %v6083 = vpop.f32.mrb[0].mxu0
        %v6084 = vadd.f32 0.0, %v6083
        %v6085 = vpop.f32.mrb[0].mxu0
        %6086 = vmatprep.mubr.f32.mxu0 0.0
        %6087 = vmatmul.mubr.f32.gmra.mrb[0].mxu0 %v5821
        %v6088 = vpop.f32.mrb[0].mxu0
        %v6089 = vadd.f32 0.0, %v6088
        %v6090 = vpop.f32.mrb[0].mxu0
        %6091 = vmatprep.mubr.f32.mxu0 0.0
        %6092 = vmatmul.mubr.f32.gmra.mrb[0].mxu0 %v5824
        %v6093 = vpop.f32.mrb[0].mxu0
        %v6094 = vadd.f32 0.0, %v6093
        %v6095 = vpop.f32.mrb[0].mxu0
        %6096 = vmatprep.mubr.f32.mxu0 0.0
        %6097 = vmatmul.mubr.f32.gmra.mrb[0].mxu0 %v5827
        %v6098 = vpop.f32.mrb[0].mxu0
        %v6099 = vadd.f32 0.0, %v6098
        %v6100 = vpop.f32.mrb[0].mxu0
        %6101 = vmatprep.mubr.f32.mxu0 0.0
        %6102 = vmatmul.mubr.f32.gmra.mrb[0].mxu0 %v5830
        %v6103 = vpop.f32.mrb[0].mxu0
        %v6104 = vadd.f32 0.0, %v6103
        %v6105 = vpop.f32.mrb[0].mxu0
        %6106 = vmatprep.mubr.f32.mxu0 0.0
        %6107 = vmatmul.mubr.f32.gmra.mrb[0].mxu0 %v5833
        %v6108 = vpop.f32.mrb[0].mxu0
        %v6109 = vadd.f32 0.0, %v6108
        %v6110 = vpop.f32.mrb[0].mxu0
        %6111 = vmatprep.mubr.f32.mxu0 0.0
        %6112 = vmatmul.mubr.f32.gmra.mrb[0].mxu0 %v5836
        %v6113 = vpop.f32.mrb[0].mxu0
        %v6114 = vadd.f32 0.0, %v6113
        %v6115 = vpop.f32.mrb[0].mxu0
        %6116 = vmatprep.mubr.f32.mxu0 0.0
        %6117 = vmatmul.mubr.f32.gmra.mrb[0].mxu0 %v5839
        %v6118 = vpop.f32.mrb[0].mxu0
        %v6119 = vadd.f32 0.0, %v6118
        %v6120 = vpop.f32.mrb[0].mxu0
        %6121 = vmatprep.mubr.f32.mxu0 0.0
        %6122 = vmatmul.mubr.f32.gmra.mrb[0].mxu0 %v5842
        %v6123 = vpop.f32.mrb[0].mxu0
        %v6124 = vadd.f32 0.0, %v6123
        %v6125 = vpop.f32.mrb[0].mxu0
        %6126 = vmatprep.mubr.f32.mxu0 0.0
        %6127 = vmatmul.mubr.f32.gmra.mrb[0].mxu0 %v5845
        %v6128 = vpop.f32.mrb[0].mxu0
        %v6129 = vadd.f32 0.0, %v6128
        %v6130 = vpop.f32.mrb[0].mxu0
        %6131 = vmatprep.mubr.f32.mxu0 0.0
        %6132 = vmatmul.mubr.f32.gmra.mrb[0].mxu0 %v5848
        %v6133 = vpop.f32.mrb[0].mxu0
        %v6134 = vadd.f32 0.0, %v6133
        %v6135 = vpop.f32.mrb[0].mxu0
        %6136 = vmatprep.mubr.f32.mxu0 0.0
        %6137 = vmatmul.mubr.f32.gmra.mrb[0].mxu0 %v5851
        %v6138 = vpop.f32.mrb[0].mxu0
        %v6139 = vadd.f32 0.0, %v6138
        %v6140 = vpop.f32.mrb[0].mxu0
        %6141 = vmatprep.mubr.f32.mxu0 0.0
        %6142 = vmatmul.mubr.f32.gmra.mrb[0].mxu0 %v5854
        %v6143 = vpop.f32.mrb[0].mxu0
        %v6144 = vadd.f32 0.0, %v6143
        %v6145 = vpop.f32.mrb[0].mxu0
        %6146 = vmatprep.mubr.f32.mxu0 0.0
        %6147 = vmatmul.mubr.f32.gmra.mrb[0].mxu0 %v5857
        %v6148 = vpop.f32.mrb[0].mxu0
        %v6149 = vadd.f32 0.0, %v6148
        %v6150 = vpop.f32.mrb[0].mxu0
        %6151 = vmatprep.mubr.f32.mxu0 0.0
        %6152 = vmatmul.mubr.f32.gmra.mrb[0].mxu0 %v5860
        %v6153 = vpop.f32.mrb[0].mxu0
        %v6154 = vadd.f32 0.0, %v6153
        %v6155 = vpop.f32.mrb[0].mxu0
        %6156 = vmatprep.mubr.f32.mxu0 0.0
        %6157 = vmatmul.mubr.f32.gmra.mrb[0].mxu0 %v5863
        %v6158 = vpop.f32.mrb[0].mxu0
        %v6159 = vadd.f32 0.0, %v6158
        %v6160 = vpop.f32.mrb[0].mxu0
        %6161 = vmatprep.mubr.f32.mxu0 0.0
        %6162 = vmatmul.mubr.f32.gmra.mrb[0].mxu0 %v5866
        %v6163 = vpop.f32.mrb[0].mxu0
        %v6164 = vadd.f32 0.0, %v6163
        %v6165 = vpop.f32.mrb[0].mxu0
        %6166 = vmatprep.mubr.f32.mxu0 0.0
        %6167 = vmatmul.mubr.f32.gmra.mrb[0].mxu0 %v5869
        %v6168 = vpop.f32.mrb[0].mxu0
        %v6169 = vadd.f32 0.0, %v6168
        %v6170 = vpop.f32.mrb[0].mxu0
        %6171 = vmatprep.mubr.f32.mxu0 0.0
        %6172 = vmatmul.mubr.f32.gmra.mrb[0].mxu0 %v5872
        %v6173 = vpop.f32.mrb[0].mxu0
        %v6174 = vadd.f32 0.0, %v6173
        %v6175 = vpop.f32.mrb[0].mxu0
        %6176 = vmatprep.mubr.f32.mxu0 0.0
        %6177 = vmatmul.mubr.f32.gmra.mrb[0].mxu0 %v5875
        %v6178 = vpop.f32.mrb[0].mxu0
        %v6179 = vadd.f32 0.0, %v6178
        %v6180 = vpop.f32.mrb[0].mxu0
        %6181 = vmatprep.mubr.f32.mxu0 0.0
        %6182 = vmatmul.mubr.f32.gmra.mrb[0].mxu0 %v5878
        %v6183 = vpop.f32.mrb[0].mxu0
        %v6184 = vadd.f32 0.0, %v6183
        %v6185 = vpop.f32.mrb[0].mxu0
        %6186 = vmatprep.mubr.f32.mxu0 0.0
        %6187 = vmatmul.mubr.f32.gmra.mrb[0].mxu0 %v5881
        %v6188 = vpop.f32.mrb[0].mxu0
        %v6189 = vadd.f32 0.0, %v6188
        %v6190 = vpop.f32.mrb[0].mxu0
        %6191 = vmatprep.mubr.f32.mxu0 0.0
        %6192 = vmatmul.mubr.f32.gmra.mrb[0].mxu0 %v5884
        %v6193 = vpop.f32.mrb[0].mxu0
        %v6194 = vadd.f32 0.0, %v6193
        %v6195 = vpop.f32.mrb[0].mxu0
        %6196 = vmatprep.mubr.f32.mxu0 0.0
        %6197 = vmatmul.mubr.f32.gmra.mrb[0].mxu0 %v5887
        %v6198 = vpop.f32.mrb[0].mxu0
        %v6199 = vadd.f32 0.0, %v6198
        %v6200 = vpop.f32.mrb[0].mxu0
        %6201 = vmatprep.mubr.f32.mxu0 0.0
        %6202 = vmatmul.mubr.f32.gmra.mrb[0].mxu0 %v5890
        %v6203 = vpop.f32.mrb[0].mxu0
        %v6204 = vadd.f32 0.0, %v6203
        %v6205 = vpop.f32.mrb[0].mxu0
        %6206 = vmatprep.mubr.f32.mxu0 0.0
        %6207 = vmatmul.mubr.f32.gmra.mrb[0].mxu0 %v5893
        %v6208 = vpop.f32.mrb[0].mxu0
        %v6209 = vadd.f32 0.0, %v6208
        %v6210 = vpop.f32.mrb[0].mxu0
        %6211 = vmatprep.mubr.f32.mxu0 0.0
        %6212 = vmatmul.mubr.f32.gmra.mrb[0].mxu0 %v5896
        %v6213 = vpop.f32.mrb[0].mxu0
        %v6214 = vadd.f32 0.0, %v6213
        %v6215 = vpop.f32.mrb[0].mxu0
        %6216 = vmatprep.mubr.f32.mxu0 0.0
        %6217 = vmatmul.mubr.f32.gmra.mrb[0].mxu0 %v5899
        %v6218 = vpop.f32.mrb[0].mxu0
        %v6219 = vadd.f32 0.0, %v6218
        %v6220 = vpop.f32.mrb[0].mxu0
        %6221 = vmatprep.mubr.f32.mxu0 0.0
        %6222 = vmatmul.mubr.f32.gmra.mrb[0].mxu0 %v5902
        %v6223 = vpop.f32.mrb[0].mxu0
        %v6224 = vadd.f32 0.0, %v6223
        %v6225 = vpop.f32.mrb[0].mxu0
        %6226 = vmatprep.mubr.f32.mxu0 0.0
        %6227 = vmatmul.mubr.f32.gmra.mrb[0].mxu0 %v5905
        %v6228 = vpop.f32.mrb[0].mxu0
        %v6229 = vadd.f32 0.0, %v6228
        %v6230 = vpop.f32.mrb[0].mxu0
        %6231 = vmatprep.mubr.f32.mxu0 0.0
        %6232 = vmatmul.mubr.f32.gmra.mrb[0].mxu0 %v5908
        %v6233 = vpop.f32.mrb[0].mxu0
        %v6234 = vadd.f32 0.0, %v6233
        %v6235 = vpop.f32.mrb[0].mxu0
        %6236 = vmatprep.mubr.f32.mxu0 0.0
        %6237 = vmatmul.mubr.f32.gmra.mrb[0].mxu0 %v5911
        %v6238 = vpop.f32.mrb[0].mxu0
        %v6239 = vadd.f32 0.0, %v6238
        %v6240 = vpop.f32.mrb[0].mxu0
        %6241 = vmatprep.mubr.f32.mxu0 0.0
        %6242 = vmatmul.mubr.f32.gmra.mrb[0].mxu0 %v5914
        %v6243 = vpop.f32.mrb[0].mxu0
        %v6244 = vadd.f32 0.0, %v6243
        %v6245 = vpop.f32.mrb[0].mxu0
        %6246 = vmatprep.mubr.f32.mxu0 0.0
        %6247 = vmatmul.mubr.f32.gmra.mrb[0].mxu0 %v5917
        %v6248 = vpop.f32.mrb[0].mxu0
        %v6249 = vadd.f32 0.0, %v6248
        %v6250 = vpop.f32.mrb[0].mxu0
        %6251 = vmatprep.mubr.f32.mxu0 0.0
        %6252 = vmatmul.mubr.f32.gmra.mrb[0].mxu0 %v5920
        %v6253 = vpop.f32.mrb[0].mxu0
        %v6254 = vadd.f32 0.0, %v6253
        %v6255 = vpop.f32.mrb[0].mxu0
        %6256 = vmatprep.mubr.f32.mxu0 0.0
        %6257 = vmatmul.mubr.f32.gmra.mrb[0].mxu0 %v5923
        %v6258 = vpop.f32.mrb[0].mxu0
        %v6259 = vadd.f32 0.0, %v6258
        %v6260 = vpop.f32.mrb[0].mxu0
        %6261 = vmatprep.mubr.f32.mxu0 0.0
        %6262 = vmatmul.mubr.f32.gmra.mrb[0].mxu0 %v5926
        %v6263 = vpop.f32.mrb[0].mxu0
        %v6264 = vadd.f32 0.0, %v6263
        %v6265 = vpop.f32.mrb[0].mxu0
        %6266 = vmatprep.mubr.f32.mxu0 0.0
        %6267 = vmatmul.mubr.f32.gmra.mrb[0].mxu0 %v5929
        %v6268 = vpop.f32.mrb[0].mxu0
        %v6269 = vadd.f32 0.0, %v6268
        %v6270 = vpop.f32.mrb[0].mxu0
        %6271 = vmatprep.mubr.f32.mxu0 0.0
        %6272 = vmatmul.mubr.f32.gmra.mrb[0].mxu0 %v5932
        %v6273 = vpop.f32.mrb[0].mxu0
        %v6274 = vadd.f32 0.0, %v6273
        %v6275 = vpop.f32.mrb[0].mxu0
        %6276 = vmatprep.mubr.f32.mxu0 0.0
        %6277 = vmatmul.mubr.f32.gmra.mrb[0].mxu0 %v5935
        %v6278 = vpop.f32.mrb[0].mxu0
        %v6279 = vadd.f32 0.0, %v6278
        %v6280 = vpop.f32.mrb[0].mxu0
        %6281 = vmatprep.mubr.f32.mxu0 0.0
        %6282 = vmatmul.mubr.f32.gmra.mrb[0].mxu0 %v5938
        %v6283 = vpop.f32.mrb[0].mxu0
        %v6284 = vadd.f32 0.0, %v6283
        %v6285 = vpop.f32.mrb[0].mxu0
        %6286 = vmatprep.mubr.f32.mxu0 0.0
        %6287 = vmatmul.mubr.f32.gmra.mrb[0].mxu0 %v5941
        %v6288 = vpop.f32.mrb[0].mxu0
        %v6289 = vadd.f32 0.0, %v6288
        %v6290 = vpop.f32.mrb[0].mxu0
        %6291 = vmatprep.mubr.f32.mxu0 0.0
        %6292 = vmatmul.mubr.f32.gmra.mrb[0].mxu0 %v5944
        %v6293 = vpop.f32.mrb[0].mxu0
        %v6294 = vadd.f32 0.0, %v6293
        %v6295 = vpop.f32.mrb[0].mxu0
        %6296 = vmatprep.mubr.f32.mxu0 0.0
        %6297 = vmatmul.mubr.f32.gmra.mrb[0].mxu0 %v5947
        %v6298 = vpop.f32.mrb[0].mxu0
        %v6299 = vadd.f32 0.0, %v6298
        %v6300 = vpop.f32.mrb[0].mxu0
        %6301 = vmatprep.mubr.f32.mxu0 0.0
        %6302 = vmatmul.mubr.f32.gmra.mrb[0].mxu0 %v5950
        %v6303 = vpop.f32.mrb[0].mxu0
        %v6304 = vadd.f32 0.0, %v6303
        %v6305 = vpop.f32.mrb[0].mxu0
        %6306 = vmatprep.mubr.f32.mxu0 0.0
        %6307 = vmatmul.mubr.f32.gmra.mrb[0].mxu0 %v5953
        %v6308 = vpop.f32.mrb[0].mxu0
        %v6309 = vadd.f32 0.0, %v6308
        %v6310 = vpop.f32.mrb[0].mxu0
        %6311 = vmatprep.mubr.f32.mxu0 0.0
        %6312 = vmatmul.mubr.f32.gmra.mrb[0].mxu0 %v5956
        %v6313 = vpop.f32.mrb[0].mxu0
        %v6314 = vadd.f32 0.0, %v6313
        %v6315 = vpop.f32.mrb[0].mxu0
        %6316 = vmatprep.mubr.f32.mxu0 0.0
        %6317 = vmatmul.mubr.f32.gmra.mrb[0].mxu0 %v5959
        %v6318 = vpop.f32.mrb[0].mxu0
        %v6319 = vadd.f32 0.0, %v6318
        %v6320 = vpop.f32.mrb[0].mxu0
        %6321 = vmatprep.mubr.f32.mxu0 0.0
        %6322 = vmatmul.mubr.f32.gmra.mrb[0].mxu0 %v5962
        %v6323 = vpop.f32.mrb[0].mxu0
        %v6324 = vadd.f32 0.0, %v6323
        %v6325 = vpop.f32.mrb[0].mxu0
        %6326 = vmatprep.mubr.f32.mxu0 0.0
        %6327 = vmatmul.mubr.f32.gmra.mrb[0].mxu0 %v5965
        %v6328 = vpop.f32.mrb[0].mxu0
        %v6329 = vadd.f32 0.0, %v6328
        %v6330 = vpop.f32.mrb[0].mxu0
        %6331 = vmatprep.mubr.f32.mxu0 0.0
        %6332 = vmatmul.mubr.f32.gmra.mrb[0].mxu0 %v5968
        %v6333 = vpop.f32.mrb[0].mxu0
        %v6334 = vadd.f32 0.0, %v6333
        %v6335 = vpop.f32.mrb[0].mxu0
        %6336 = vmatprep.mubr.f32.mxu0 0.0
        %6337 = vmatmul.mubr.f32.gmra.mrb[0].mxu0 %v5971
        %v6338 = vpop.f32.mrb[0].mxu0
        %v6339 = vadd.f32 0.0, %v6338
        %v6340 = vpop.f32.mrb[0].mxu0
        %6341 = vmatprep.mubr.f32.mxu0 0.0
        %6342 = vmatmul.mubr.f32.gmra.mrb[0].mxu0 %v5974
        %v6343 = vpop.f32.mrb[0].mxu0
        %v6344 = vadd.f32 0.0, %v6343
        %v6345 = vpop.f32.mrb[0].mxu0
        %6346 = vmatprep.mubr.f32.mxu0 0.0
        %6347 = vmatmul.mubr.f32.gmra.mrb[0].mxu0 %v5977
        %v6348 = vpop.f32.mrb[0].mxu0
        %v6349 = vadd.f32 0.0, %v6348
        %v6350 = vpop.f32.mrb[0].mxu0
        %6351 = vmatprep.mubr.f32.mxu0 0.0
        %6352 = vmatmul.mubr.f32.gmra.mrb[0].mxu0 %v5980
        %v6353 = vpop.f32.mrb[0].mxu0
        %v6354 = vadd.f32 0.0, %v6353
        %v6355 = vpop.f32.mrb[0].mxu0
        %6356 = vmatprep.mubr.f32.mxu0 0.0
        %6357 = vmatmul.mubr.f32.gmra.mrb[0].mxu0 %v5983
        %v6358 = vpop.f32.mrb[0].mxu0
        %v6359 = vadd.f32 0.0, %v6358
        %v6360 = vpop.f32.mrb[0].mxu0
        %6361 = vmatprep.mubr.f32.mxu0 0.0
        %6362 = vmatmul.mubr.f32.gmra.mrb[0].mxu0 %v5986
        %v6363 = vpop.f32.mrb[0].mxu0
        %v6364 = vadd.f32 0.0, %v6363
        %v6365 = vpop.f32.mrb[0].mxu0
        %6366 = vmatprep.mubr.f32.mxu0 0.0
        %6367 = vmatmul.mubr.f32.gmra.mrb[0].mxu0 %v5989
        %v6368 = vpop.f32.mrb[0].mxu0
        %v6369 = vadd.f32 0.0, %v6368
        %v6370 = vpop.f32.mrb[0].mxu0
        %6371 = vmatprep.mubr.f32.mxu0 0.0
        %6372 = vmatmul.mubr.f32.gmra.mrb[0].mxu0 %v5992
        %v6373 = vpop.f32.mrb[0].mxu0
        %v6374 = vadd.f32 0.0, %v6373
        %v6375 = vpop.f32.mrb[0].mxu0
        %6376 = vmatprep.mubr.f32.mxu0 0.0
        %6377 = vmatmul.mubr.f32.gmra.mrb[0].mxu0 %v5995
        %v6378 = vpop.f32.mrb[0].mxu0
        %v6379 = vadd.f32 0.0, %v6378
        %v6380 = vpop.f32.mrb[0].mxu0
        %6381 = vdwg.mxu0
        %v6382 = vadd.f32 %v5411, %v6064
        %v6383 = vadd.f32 %v5416, %v6069
        %v6384 = vadd.f32 %v5421, %v6074
        %v6385 = vadd.f32 %v5426, %v6079
        %v6386 = vadd.f32 %v5431, %v6084
        %v6387 = vadd.f32 %v5436, %v6089
        %v6388 = vadd.f32 %v5441, %v6094
        %v6389 = vadd.f32 %v5446, %v6099
        %v6390 = vadd.f32 %v5451, %v6104
        %v6391 = vadd.f32 %v5456, %v6109
        %v6392 = vadd.f32 %v5461, %v6114
        %v6393 = vadd.f32 %v5466, %v6119
        %v6394 = vadd.f32 %v5471, %v6124
        %v6395 = vadd.f32 %v5476, %v6129
        %v6396 = vadd.f32 %v5481, %v6134
        %v6397 = vadd.f32 %v5486, %v6139
        %v6398 = vadd.f32 %v5491, %v6144
        %v6399 = vadd.f32 %v5496, %v6149
        %v6400 = vadd.f32 %v5501, %v6154
        %v6401 = vadd.f32 %v5506, %v6159
        %v6402 = vadd.f32 %v5511, %v6164
        %v6403 = vadd.f32 %v5516, %v6169
        %v6404 = vadd.f32 %v5521, %v6174
        %v6405 = vadd.f32 %v5526, %v6179
        %v6406 = vadd.f32 %v5531, %v6184
        %v6407 = vadd.f32 %v5536, %v6189
        %v6408 = vadd.f32 %v5541, %v6194
        %v6409 = vadd.f32 %v5546, %v6199
        %v6410 = vadd.f32 %v5551, %v6204
        %v6411 = vadd.f32 %v5556, %v6209
        %v6412 = vadd.f32 %v5561, %v6214
        %v6413 = vadd.f32 %v5566, %v6219
        %v6414 = vadd.f32 %v5571, %v6224
        %v6415 = vadd.f32 %v5576, %v6229
        %v6416 = vadd.f32 %v5581, %v6234
        %v6417 = vadd.f32 %v5586, %v6239
        %v6418 = vadd.f32 %v5591, %v6244
        %v6419 = vadd.f32 %v5596, %v6249
        %v6420 = vadd.f32 %v5601, %v6254
        %v6421 = vadd.f32 %v5606, %v6259
        %v6422 = vadd.f32 %v5611, %v6264
        %v6423 = vadd.f32 %v5616, %v6269
        %v6424 = vadd.f32 %v5621, %v6274
        %v6425 = vadd.f32 %v5626, %v6279
        %v6426 = vadd.f32 %v5631, %v6284
        %v6427 = vadd.f32 %v5636, %v6289
        %v6428 = vadd.f32 %v5641, %v6294
        %v6429 = vadd.f32 %v5646, %v6299
        %v6430 = vadd.f32 %v5651, %v6304
        %v6431 = vadd.f32 %v5656, %v6309
        %v6432 = vadd.f32 %v5661, %v6314
        %v6433 = vadd.f32 %v5666, %v6319
        %v6434 = vadd.f32 %v5671, %v6324
        %v6435 = vadd.f32 %v5676, %v6329
        %v6436 = vadd.f32 %v5681, %v6334
        %v6437 = vadd.f32 %v5686, %v6339
        %v6438 = vadd.f32 %v5691, %v6344
        %v6439 = vadd.f32 %v5696, %v6349
        %v6440 = vadd.f32 %v5701, %v6354
        %v6441 = vadd.f32 %v5706, %v6359
        %v6442 = vadd.f32 %v5711, %v6364
        %v6443 = vadd.f32 %v5716, %v6369
        %v6444 = vadd.f32 %v5721, %v6374
        %v6445 = vadd.f32 %v5726, %v6379
        %s6446 = scalar_lea.vmem [#allocation2], 192
        %v6447 = vld [vmem:[%s6446] sm:$0xff]
        %v6448 = vld [vmem:[%s6446 + $0x8] sm:$0xff]
        %v6449 = vld [vmem:[%s6446 + $0x10] sm:$0xff]
        %v6450 = vld [vmem:[%s6446 + $0x18] sm:$0xff]
        %v6451 = vld [vmem:[%s6446 + $0x20] sm:$0xff]
        %v6452 = vld [vmem:[%s6446 + $0x28] sm:$0xff]
        %v6453 = vld [vmem:[%s6446 + $0x30] sm:$0xff]
        %v6454 = vld [vmem:[%s6446 + $0x38] sm:$0xff]
        %v6455 = vld [vmem:[%s6446 + $0x40] sm:$0xff]
        %v6456 = vld [vmem:[%s6446 + $0x48] sm:$0xff]
        %v6457 = vld [vmem:[%s6446 + $0x50] sm:$0xff]
        %v6458 = vld [vmem:[%s6446 + $0x58] sm:$0xff]
        %v6459 = vld [vmem:[%s6446 + $0x60] sm:$0xff]
        %v6460 = vld [vmem:[%s6446 + $0x68] sm:$0xff]
        %v6461 = vld [vmem:[%s6446 + $0x70] sm:$0xff]
        %v6462 = vld [vmem:[%s6446 + $0x78] sm:$0xff]
        %v6463 = vld [vmem:[%s6446 + $0x80] sm:$0xff]
        %v6464 = vld [vmem:[%s6446 + $0x88] sm:$0xff]
        %v6465 = vld [vmem:[%s6446 + $0x90] sm:$0xff]
        %v6466 = vld [vmem:[%s6446 + $0x98] sm:$0xff]
        %v6467 = vld [vmem:[%s6446 + $0xa0] sm:$0xff]
        %v6468 = vld [vmem:[%s6446 + $0xa8] sm:$0xff]
        %v6469 = vld [vmem:[%s6446 + $0xb0] sm:$0xff]
        %v6470 = vld [vmem:[%s6446 + $0xb8] sm:$0xff]
        %v6471 = vld [vmem:[%s6446 + $0xc0] sm:$0xff]
        %v6472 = vld [vmem:[%s6446 + $0xc8] sm:$0xff]
        %v6473 = vld [vmem:[%s6446 + $0xd0] sm:$0xff]
        %v6474 = vld [vmem:[%s6446 + $0xd8] sm:$0xff]
        %v6475 = vld [vmem:[%s6446 + $0xe0] sm:$0xff]
        %v6476 = vld [vmem:[%s6446 + $0xe8] sm:$0xff]
        %v6477 = vld [vmem:[%s6446 + $0xf0] sm:$0xff]
        %v6478 = vld [vmem:[%s6446 + $0xf8] sm:$0xff]
        %v6479 = vld [vmem:[%s6446 + $0x100] sm:$0xff]
        %v6480 = vld [vmem:[%s6446 + $0x108] sm:$0xff]
        %v6481 = vld [vmem:[%s6446 + $0x110] sm:$0xff]
        %v6482 = vld [vmem:[%s6446 + $0x118] sm:$0xff]
        %v6483 = vld [vmem:[%s6446 + $0x120] sm:$0xff]
        %v6484 = vld [vmem:[%s6446 + $0x128] sm:$0xff]
        %v6485 = vld [vmem:[%s6446 + $0x130] sm:$0xff]
        %v6486 = vld [vmem:[%s6446 + $0x138] sm:$0xff]
        %v6487 = vld [vmem:[%s6446 + $0x140] sm:$0xff]
        %v6488 = vld [vmem:[%s6446 + $0x148] sm:$0xff]
        %v6489 = vld [vmem:[%s6446 + $0x150] sm:$0xff]
        %v6490 = vld [vmem:[%s6446 + $0x158] sm:$0xff]
        %v6491 = vld [vmem:[%s6446 + $0x160] sm:$0xff]
        %v6492 = vld [vmem:[%s6446 + $0x168] sm:$0xff]
        %v6493 = vld [vmem:[%s6446 + $0x170] sm:$0xff]
        %v6494 = vld [vmem:[%s6446 + $0x178] sm:$0xff]
        %v6495 = vld [vmem:[%s6446 + $0x180] sm:$0xff]
        %v6496 = vld [vmem:[%s6446 + $0x188] sm:$0xff]
        %v6497 = vld [vmem:[%s6446 + $0x190] sm:$0xff]
        %v6498 = vld [vmem:[%s6446 + $0x198] sm:$0xff]
        %v6499 = vld [vmem:[%s6446 + $0x1a0] sm:$0xff]
        %v6500 = vld [vmem:[%s6446 + $0x1a8] sm:$0xff]
        %v6501 = vld [vmem:[%s6446 + $0x1b0] sm:$0xff]
        %v6502 = vld [vmem:[%s6446 + $0x1b8] sm:$0xff]
        %v6503 = vld [vmem:[%s6446 + $0x1c0] sm:$0xff]
        %v6504 = vld [vmem:[%s6446 + $0x1c8] sm:$0xff]
        %v6505 = vld [vmem:[%s6446 + $0x1d0] sm:$0xff]
        %v6506 = vld [vmem:[%s6446 + $0x1d8] sm:$0xff]
        %v6507 = vld [vmem:[%s6446 + $0x1e0] sm:$0xff]
        %v6508 = vld [vmem:[%s6446 + $0x1e8] sm:$0xff]
        %v6509 = vld [vmem:[%s6446 + $0x1f0] sm:$0xff]
        %v6510 = vld [vmem:[%s6446 + $0x1f8] sm:$0xff]
        %s6511 = scalar_lea.vmem %s3, 240
        %v6512 = vld [vmem:[%s6511] sm:$0xff]
        %v6513 = vld [vmem:[%s6511 + $0x8] sm:$0xff]
        %v6514 = vld [vmem:[%s6511 + $0x10] sm:$0xff]
        %v6515 = vld [vmem:[%s6511 + $0x18] sm:$0xff]
        %v6516 = vld [vmem:[%s6511 + $0x20] sm:$0xff]
        %v6517 = vld [vmem:[%s6511 + $0x28] sm:$0xff]
        %v6518 = vld [vmem:[%s6511 + $0x30] sm:$0xff]
        %v6519 = vld [vmem:[%s6511 + $0x38] sm:$0xff]
        %v6520 = vld [vmem:[%s6511 + $0x40] sm:$0xff]
        %v6521 = vld [vmem:[%s6511 + $0x48] sm:$0xff]
        %v6523 = vsel %vm4574, %v6447, 0
        %v6526 = vsel %vm4574, %v6448, 0
        %v6529 = vsel %vm4574, %v6449, 0
        %v6532 = vsel %vm4574, %v6450, 0
        %v6535 = vsel %vm4574, %v6451, 0
        %v6538 = vsel %vm4574, %v6452, 0
        %v6541 = vsel %vm4574, %v6453, 0
        %v6544 = vsel %vm4574, %v6454, 0
        %v6547 = vsel %vm4574, %v6455, 0
        %v6550 = vsel %vm4574, %v6456, 0
        %v6553 = vsel %vm4574, %v6457, 0
        %v6556 = vsel %vm4574, %v6458, 0
        %v6559 = vsel %vm4574, %v6459, 0
        %v6562 = vsel %vm4574, %v6460, 0
        %v6565 = vsel %vm4574, %v6461, 0
        %v6568 = vsel %vm4574, %v6462, 0
        %v6571 = vsel %vm4574, %v6463, 0
        %v6574 = vsel %vm4574, %v6464, 0
        %v6577 = vsel %vm4574, %v6465, 0
        %v6580 = vsel %vm4574, %v6466, 0
        %v6583 = vsel %vm4574, %v6467, 0
        %v6586 = vsel %vm4574, %v6468, 0
        %v6589 = vsel %vm4574, %v6469, 0
        %v6592 = vsel %vm4574, %v6470, 0
        %v6595 = vsel %vm4574, %v6471, 0
        %v6598 = vsel %vm4574, %v6472, 0
        %v6601 = vsel %vm4574, %v6473, 0
        %v6604 = vsel %vm4574, %v6474, 0
        %v6607 = vsel %vm4574, %v6475, 0
        %v6610 = vsel %vm4574, %v6476, 0
        %v6613 = vsel %vm4574, %v6477, 0
        %v6616 = vsel %vm4574, %v6478, 0
        %v6619 = vsel %vm4574, %v6479, 0
        %v6622 = vsel %vm4574, %v6480, 0
        %v6625 = vsel %vm4574, %v6481, 0
        %v6628 = vsel %vm4574, %v6482, 0
        %v6631 = vsel %vm4574, %v6483, 0
        %v6634 = vsel %vm4574, %v6484, 0
        %v6637 = vsel %vm4574, %v6485, 0
        %v6640 = vsel %vm4574, %v6486, 0
        %v6643 = vsel %vm4574, %v6487, 0
        %v6646 = vsel %vm4574, %v6488, 0
        %v6649 = vsel %vm4574, %v6489, 0
        %v6652 = vsel %vm4574, %v6490, 0
        %v6655 = vsel %vm4574, %v6491, 0
        %v6658 = vsel %vm4574, %v6492, 0
        %v6661 = vsel %vm4574, %v6493, 0
        %v6664 = vsel %vm4574, %v6494, 0
        %v6667 = vsel %vm4574, %v6495, 0
        %v6670 = vsel %vm4574, %v6496, 0
        %v6673 = vsel %vm4574, %v6497, 0
        %v6676 = vsel %vm4574, %v6498, 0
        %v6679 = vsel %vm4574, %v6499, 0
        %v6682 = vsel %vm4574, %v6500, 0
        %v6685 = vsel %vm4574, %v6501, 0
        %v6688 = vsel %vm4574, %v6502, 0
        %v6691 = vsel %vm4574, %v6503, 0
        %v6694 = vsel %vm4574, %v6504, 0
        %v6697 = vsel %vm4574, %v6505, 0
        %v6700 = vsel %vm4574, %v6506, 0
        %v6703 = vsel %vm4574, %v6507, 0
        %v6706 = vsel %vm4574, %v6508, 0
        %v6709 = vsel %vm4574, %v6509, 0
        %v6712 = vsel %vm4574, %v6510, 0
        %6714 = vmatprep.subr.mxu0 0.0
        %6715 = vmatpush1.msra.mxu0 %v6512
        %6716 = vmatprep.subr.mxu0 0.0
        %6717 = vmatpush1.msra.mxu0 %v6513
        %6718 = vmatprep.subr.mxu0 0.0
        %6719 = vmatpush1.msra.mxu0 %v6514
        %6720 = vmatprep.subr.mxu0 0.0
        %6721 = vmatpush1.msra.mxu0 %v6515
        %6722 = vmatprep.subr.mxu0 0.0
        %6723 = vmatpush1.msra.mxu0 %v6516
        %6724 = vmatprep.subr.mxu0 0.0
        %6725 = vmatpush1.msra.mxu0 %v6517
        %6726 = vmatprep.subr.mxu0 0.0
        %6727 = vmatpush1.msra.mxu0 %v6518
        %6728 = vmatprep.subr.mxu0 0.0
        %6729 = vmatpush1.msra.mxu0 %v6519
        %6730 = vmatprep.subr.mxu0 0.0
        %6731 = vmatpush1.msra.mxu0 %v6520
        %6732 = vmatprep.subr.mxu0 0.0
        %6733 = vmatpush1.msra.mxu0 %v6521
        %6734 = vmatprep.subr.mxu0 0.0
        %6735 = vmatpush1.msra.mxu0 0.0
        %6736 = vmatprep.subr.mxu0 0.0
        %6737 = vmatpush1.msra.mxu0 0.0
        %6738 = vmatprep.subr.mxu0 0.0
        %6739 = vmatpush1.msra.mxu0 0.0
        %6740 = vmatprep.subr.mxu0 0.0
        %6741 = vmatpush1.msra.mxu0 0.0
        %6742 = vmatprep.subr.mxu0 0.0
        %6743 = vmatpush1.msra.mxu0 0.0
        %6744 = vmatprep.subr.mxu0 0.0
        %6745 = vmatpush1.msra.mxu0 0.0
        %6746 = vmatprep.subr.mxu0 0.0
        %6747 = vmatpush1.msra.mxu0 0.0
        %6748 = vmatprep.subr.mxu0 0.0
        %6749 = vmatpush1.msra.mxu0 0.0
        %6750 = vmatprep.subr.mxu0 0.0
        %6751 = vmatpush1.msra.mxu0 0.0
        %6752 = vmatprep.subr.mxu0 0.0
        %6753 = vmatpush1.msra.mxu0 0.0
        %6754 = vmatprep.subr.mxu0 0.0
        %6755 = vmatpush1.msra.mxu0 0.0
        %6756 = vmatprep.subr.mxu0 0.0
        %6757 = vmatpush1.msra.mxu0 0.0
        %6758 = vmatprep.subr.mxu0 0.0
        %6759 = vmatpush1.msra.mxu0 0.0
        %6760 = vmatprep.subr.mxu0 0.0
        %6761 = vmatpush1.msra.mxu0 0.0
        %6762 = vmatprep.subr.mxu0 0.0
        %6763 = vmatpush1.msra.mxu0 0.0
        %6764 = vmatprep.subr.mxu0 0.0
        %6765 = vmatpush1.msra.mxu0 0.0
        %6766 = vmatprep.subr.mxu0 0.0
        %6767 = vmatpush1.msra.mxu0 0.0
        %6768 = vmatprep.subr.mxu0 0.0
        %6769 = vmatpush1.msra.mxu0 0.0
        %6770 = vmatprep.subr.mxu0 0.0
        %6771 = vmatpush1.msra.mxu0 0.0
        %6772 = vmatprep.subr.mxu0 0.0
        %6773 = vmatpush1.msra.mxu0 0.0
        %6774 = vmatprep.subr.mxu0 0.0
        %6775 = vmatpush1.msra.mxu0 0.0
        %6776 = vmatprep.subr.mxu0 0.0
        %6777 = vmatpush1.msra.mxu0 0.0
        %6778 = vmatprep.mubr.f32.mxu0 0.0
        %6779 = vmatmul.mubr.f32.gmra.mrb[0].mxu0 %v6523
        %v6780 = vpop.f32.mrb[0].mxu0
        %v6781 = vadd.f32 0.0, %v6780
        %v6782 = vpop.f32.mrb[0].mxu0
        %6783 = vmatprep.mubr.f32.mxu0 0.0
        %6784 = vmatmul.mubr.f32.gmra.mrb[0].mxu0 %v6526
        %v6785 = vpop.f32.mrb[0].mxu0
        %v6786 = vadd.f32 0.0, %v6785
        %v6787 = vpop.f32.mrb[0].mxu0
        %6788 = vmatprep.mubr.f32.mxu0 0.0
        %6789 = vmatmul.mubr.f32.gmra.mrb[0].mxu0 %v6529
        %v6790 = vpop.f32.mrb[0].mxu0
        %v6791 = vadd.f32 0.0, %v6790
        %v6792 = vpop.f32.mrb[0].mxu0
        %6793 = vmatprep.mubr.f32.mxu0 0.0
        %6794 = vmatmul.mubr.f32.gmra.mrb[0].mxu0 %v6532
        %v6795 = vpop.f32.mrb[0].mxu0
        %v6796 = vadd.f32 0.0, %v6795
        %v6797 = vpop.f32.mrb[0].mxu0
        %6798 = vmatprep.mubr.f32.mxu0 0.0
        %6799 = vmatmul.mubr.f32.gmra.mrb[0].mxu0 %v6535
        %v6800 = vpop.f32.mrb[0].mxu0
        %v6801 = vadd.f32 0.0, %v6800
        %v6802 = vpop.f32.mrb[0].mxu0
        %6803 = vmatprep.mubr.f32.mxu0 0.0
        %6804 = vmatmul.mubr.f32.gmra.mrb[0].mxu0 %v6538
        %v6805 = vpop.f32.mrb[0].mxu0
        %v6806 = vadd.f32 0.0, %v6805
        %v6807 = vpop.f32.mrb[0].mxu0
        %6808 = vmatprep.mubr.f32.mxu0 0.0
        %6809 = vmatmul.mubr.f32.gmra.mrb[0].mxu0 %v6541
        %v6810 = vpop.f32.mrb[0].mxu0
        %v6811 = vadd.f32 0.0, %v6810
        %v6812 = vpop.f32.mrb[0].mxu0
        %6813 = vmatprep.mubr.f32.mxu0 0.0
        %6814 = vmatmul.mubr.f32.gmra.mrb[0].mxu0 %v6544
        %v6815 = vpop.f32.mrb[0].mxu0
        %v6816 = vadd.f32 0.0, %v6815
        %v6817 = vpop.f32.mrb[0].mxu0
        %6818 = vmatprep.mubr.f32.mxu0 0.0
        %6819 = vmatmul.mubr.f32.gmra.mrb[0].mxu0 %v6547
        %v6820 = vpop.f32.mrb[0].mxu0
        %v6821 = vadd.f32 0.0, %v6820
        %v6822 = vpop.f32.mrb[0].mxu0
        %6823 = vmatprep.mubr.f32.mxu0 0.0
        %6824 = vmatmul.mubr.f32.gmra.mrb[0].mxu0 %v6550
        %v6825 = vpop.f32.mrb[0].mxu0
        %v6826 = vadd.f32 0.0, %v6825
        %v6827 = vpop.f32.mrb[0].mxu0
        %6828 = vmatprep.mubr.f32.mxu0 0.0
        %6829 = vmatmul.mubr.f32.gmra.mrb[0].mxu0 %v6553
        %v6830 = vpop.f32.mrb[0].mxu0
        %v6831 = vadd.f32 0.0, %v6830
        %v6832 = vpop.f32.mrb[0].mxu0
        %6833 = vmatprep.mubr.f32.mxu0 0.0
        %6834 = vmatmul.mubr.f32.gmra.mrb[0].mxu0 %v6556
        %v6835 = vpop.f32.mrb[0].mxu0
        %v6836 = vadd.f32 0.0, %v6835
        %v6837 = vpop.f32.mrb[0].mxu0
        %6838 = vmatprep.mubr.f32.mxu0 0.0
        %6839 = vmatmul.mubr.f32.gmra.mrb[0].mxu0 %v6559
        %v6840 = vpop.f32.mrb[0].mxu0
        %v6841 = vadd.f32 0.0, %v6840
        %v6842 = vpop.f32.mrb[0].mxu0
        %6843 = vmatprep.mubr.f32.mxu0 0.0
        %6844 = vmatmul.mubr.f32.gmra.mrb[0].mxu0 %v6562
        %v6845 = vpop.f32.mrb[0].mxu0
        %v6846 = vadd.f32 0.0, %v6845
        %v6847 = vpop.f32.mrb[0].mxu0
        %6848 = vmatprep.mubr.f32.mxu0 0.0
        %6849 = vmatmul.mubr.f32.gmra.mrb[0].mxu0 %v6565
        %v6850 = vpop.f32.mrb[0].mxu0
        %v6851 = vadd.f32 0.0, %v6850
        %v6852 = vpop.f32.mrb[0].mxu0
        %6853 = vmatprep.mubr.f32.mxu0 0.0
        %6854 = vmatmul.mubr.f32.gmra.mrb[0].mxu0 %v6568
        %v6855 = vpop.f32.mrb[0].mxu0
        %v6856 = vadd.f32 0.0, %v6855
        %v6857 = vpop.f32.mrb[0].mxu0
        %6858 = vmatprep.mubr.f32.mxu0 0.0
        %6859 = vmatmul.mubr.f32.gmra.mrb[0].mxu0 %v6571
        %v6860 = vpop.f32.mrb[0].mxu0
        %v6861 = vadd.f32 0.0, %v6860
        %v6862 = vpop.f32.mrb[0].mxu0
        %6863 = vmatprep.mubr.f32.mxu0 0.0
        %6864 = vmatmul.mubr.f32.gmra.mrb[0].mxu0 %v6574
        %v6865 = vpop.f32.mrb[0].mxu0
        %v6866 = vadd.f32 0.0, %v6865
        %v6867 = vpop.f32.mrb[0].mxu0
        %6868 = vmatprep.mubr.f32.mxu0 0.0
        %6869 = vmatmul.mubr.f32.gmra.mrb[0].mxu0 %v6577
        %v6870 = vpop.f32.mrb[0].mxu0
        %v6871 = vadd.f32 0.0, %v6870
        %v6872 = vpop.f32.mrb[0].mxu0
        %6873 = vmatprep.mubr.f32.mxu0 0.0
        %6874 = vmatmul.mubr.f32.gmra.mrb[0].mxu0 %v6580
        %v6875 = vpop.f32.mrb[0].mxu0
        %v6876 = vadd.f32 0.0, %v6875
        %v6877 = vpop.f32.mrb[0].mxu0
        %6878 = vmatprep.mubr.f32.mxu0 0.0
        %6879 = vmatmul.mubr.f32.gmra.mrb[0].mxu0 %v6583
        %v6880 = vpop.f32.mrb[0].mxu0
        %v6881 = vadd.f32 0.0, %v6880
        %v6882 = vpop.f32.mrb[0].mxu0
        %6883 = vmatprep.mubr.f32.mxu0 0.0
        %6884 = vmatmul.mubr.f32.gmra.mrb[0].mxu0 %v6586
        %v6885 = vpop.f32.mrb[0].mxu0
        %v6886 = vadd.f32 0.0, %v6885
        %v6887 = vpop.f32.mrb[0].mxu0
        %6888 = vmatprep.mubr.f32.mxu0 0.0
        %6889 = vmatmul.mubr.f32.gmra.mrb[0].mxu0 %v6589
        %v6890 = vpop.f32.mrb[0].mxu0
        %v6891 = vadd.f32 0.0, %v6890
        %v6892 = vpop.f32.mrb[0].mxu0
        %6893 = vmatprep.mubr.f32.mxu0 0.0
        %6894 = vmatmul.mubr.f32.gmra.mrb[0].mxu0 %v6592
        %v6895 = vpop.f32.mrb[0].mxu0
        %v6896 = vadd.f32 0.0, %v6895
        %v6897 = vpop.f32.mrb[0].mxu0
        %6898 = vmatprep.mubr.f32.mxu0 0.0
        %6899 = vmatmul.mubr.f32.gmra.mrb[0].mxu0 %v6595
        %v6900 = vpop.f32.mrb[0].mxu0
        %v6901 = vadd.f32 0.0, %v6900
        %v6902 = vpop.f32.mrb[0].mxu0
        %6903 = vmatprep.mubr.f32.mxu0 0.0
        %6904 = vmatmul.mubr.f32.gmra.mrb[0].mxu0 %v6598
        %v6905 = vpop.f32.mrb[0].mxu0
        %v6906 = vadd.f32 0.0, %v6905
        %v6907 = vpop.f32.mrb[0].mxu0
        %6908 = vmatprep.mubr.f32.mxu0 0.0
        %6909 = vmatmul.mubr.f32.gmra.mrb[0].mxu0 %v6601
        %v6910 = vpop.f32.mrb[0].mxu0
        %v6911 = vadd.f32 0.0, %v6910
        %v6912 = vpop.f32.mrb[0].mxu0
        %6913 = vmatprep.mubr.f32.mxu0 0.0
        %6914 = vmatmul.mubr.f32.gmra.mrb[0].mxu0 %v6604
        %v6915 = vpop.f32.mrb[0].mxu0
        %v6916 = vadd.f32 0.0, %v6915
        %v6917 = vpop.f32.mrb[0].mxu0
        %6918 = vmatprep.mubr.f32.mxu0 0.0
        %6919 = vmatmul.mubr.f32.gmra.mrb[0].mxu0 %v6607
        %v6920 = vpop.f32.mrb[0].mxu0
        %v6921 = vadd.f32 0.0, %v6920
        %v6922 = vpop.f32.mrb[0].mxu0
        %6923 = vmatprep.mubr.f32.mxu0 0.0
        %6924 = vmatmul.mubr.f32.gmra.mrb[0].mxu0 %v6610
        %v6925 = vpop.f32.mrb[0].mxu0
        %v6926 = vadd.f32 0.0, %v6925
        %v6927 = vpop.f32.mrb[0].mxu0
        %6928 = vmatprep.mubr.f32.mxu0 0.0
        %6929 = vmatmul.mubr.f32.gmra.mrb[0].mxu0 %v6613
        %v6930 = vpop.f32.mrb[0].mxu0
        %v6931 = vadd.f32 0.0, %v6930
        %v6932 = vpop.f32.mrb[0].mxu0
        %6933 = vmatprep.mubr.f32.mxu0 0.0
        %6934 = vmatmul.mubr.f32.gmra.mrb[0].mxu0 %v6616
        %v6935 = vpop.f32.mrb[0].mxu0
        %v6936 = vadd.f32 0.0, %v6935
        %v6937 = vpop.f32.mrb[0].mxu0
        %6938 = vmatprep.mubr.f32.mxu0 0.0
        %6939 = vmatmul.mubr.f32.gmra.mrb[0].mxu0 %v6619
        %v6940 = vpop.f32.mrb[0].mxu0
        %v6941 = vadd.f32 0.0, %v6940
        %v6942 = vpop.f32.mrb[0].mxu0
        %6943 = vmatprep.mubr.f32.mxu0 0.0
        %6944 = vmatmul.mubr.f32.gmra.mrb[0].mxu0 %v6622
        %v6945 = vpop.f32.mrb[0].mxu0
        %v6946 = vadd.f32 0.0, %v6945
        %v6947 = vpop.f32.mrb[0].mxu0
        %6948 = vmatprep.mubr.f32.mxu0 0.0
        %6949 = vmatmul.mubr.f32.gmra.mrb[0].mxu0 %v6625
        %v6950 = vpop.f32.mrb[0].mxu0
        %v6951 = vadd.f32 0.0, %v6950
        %v6952 = vpop.f32.mrb[0].mxu0
        %6953 = vmatprep.mubr.f32.mxu0 0.0
        %6954 = vmatmul.mubr.f32.gmra.mrb[0].mxu0 %v6628
        %v6955 = vpop.f32.mrb[0].mxu0
        %v6956 = vadd.f32 0.0, %v6955
        %v6957 = vpop.f32.mrb[0].mxu0
        %6958 = vmatprep.mubr.f32.mxu0 0.0
        %6959 = vmatmul.mubr.f32.gmra.mrb[0].mxu0 %v6631
        %v6960 = vpop.f32.mrb[0].mxu0
        %v6961 = vadd.f32 0.0, %v6960
        %v6962 = vpop.f32.mrb[0].mxu0
        %6963 = vmatprep.mubr.f32.mxu0 0.0
        %6964 = vmatmul.mubr.f32.gmra.mrb[0].mxu0 %v6634
        %v6965 = vpop.f32.mrb[0].mxu0
        %v6966 = vadd.f32 0.0, %v6965
        %v6967 = vpop.f32.mrb[0].mxu0
        %6968 = vmatprep.mubr.f32.mxu0 0.0
        %6969 = vmatmul.mubr.f32.gmra.mrb[0].mxu0 %v6637
        %v6970 = vpop.f32.mrb[0].mxu0
        %v6971 = vadd.f32 0.0, %v6970
        %v6972 = vpop.f32.mrb[0].mxu0
        %6973 = vmatprep.mubr.f32.mxu0 0.0
        %6974 = vmatmul.mubr.f32.gmra.mrb[0].mxu0 %v6640
        %v6975 = vpop.f32.mrb[0].mxu0
        %v6976 = vadd.f32 0.0, %v6975
        %v6977 = vpop.f32.mrb[0].mxu0
        %6978 = vmatprep.mubr.f32.mxu0 0.0
        %6979 = vmatmul.mubr.f32.gmra.mrb[0].mxu0 %v6643
        %v6980 = vpop.f32.mrb[0].mxu0
        %v6981 = vadd.f32 0.0, %v6980
        %v6982 = vpop.f32.mrb[0].mxu0
        %6983 = vmatprep.mubr.f32.mxu0 0.0
        %6984 = vmatmul.mubr.f32.gmra.mrb[0].mxu0 %v6646
        %v6985 = vpop.f32.mrb[0].mxu0
        %v6986 = vadd.f32 0.0, %v6985
        %v6987 = vpop.f32.mrb[0].mxu0
        %6988 = vmatprep.mubr.f32.mxu0 0.0
        %6989 = vmatmul.mubr.f32.gmra.mrb[0].mxu0 %v6649
        %v6990 = vpop.f32.mrb[0].mxu0
        %v6991 = vadd.f32 0.0, %v6990
        %v6992 = vpop.f32.mrb[0].mxu0
        %6993 = vmatprep.mubr.f32.mxu0 0.0
        %6994 = vmatmul.mubr.f32.gmra.mrb[0].mxu0 %v6652
        %v6995 = vpop.f32.mrb[0].mxu0
        %v6996 = vadd.f32 0.0, %v6995
        %v6997 = vpop.f32.mrb[0].mxu0
        %6998 = vmatprep.mubr.f32.mxu0 0.0
        %6999 = vmatmul.mubr.f32.gmra.mrb[0].mxu0 %v6655
        %v7000 = vpop.f32.mrb[0].mxu0
        %v7001 = vadd.f32 0.0, %v7000
        %v7002 = vpop.f32.mrb[0].mxu0
        %7003 = vmatprep.mubr.f32.mxu0 0.0
        %7004 = vmatmul.mubr.f32.gmra.mrb[0].mxu0 %v6658
        %v7005 = vpop.f32.mrb[0].mxu0
        %v7006 = vadd.f32 0.0, %v7005
        %v7007 = vpop.f32.mrb[0].mxu0
        %7008 = vmatprep.mubr.f32.mxu0 0.0
        %7009 = vmatmul.mubr.f32.gmra.mrb[0].mxu0 %v6661
        %v7010 = vpop.f32.mrb[0].mxu0
        %v7011 = vadd.f32 0.0, %v7010
        %v7012 = vpop.f32.mrb[0].mxu0
        %7013 = vmatprep.mubr.f32.mxu0 0.0
        %7014 = vmatmul.mubr.f32.gmra.mrb[0].mxu0 %v6664
        %v7015 = vpop.f32.mrb[0].mxu0
        %v7016 = vadd.f32 0.0, %v7015
        %v7017 = vpop.f32.mrb[0].mxu0
        %7018 = vmatprep.mubr.f32.mxu0 0.0
        %7019 = vmatmul.mubr.f32.gmra.mrb[0].mxu0 %v6667
        %v7020 = vpop.f32.mrb[0].mxu0
        %v7021 = vadd.f32 0.0, %v7020
        %v7022 = vpop.f32.mrb[0].mxu0
        %7023 = vmatprep.mubr.f32.mxu0 0.0
        %7024 = vmatmul.mubr.f32.gmra.mrb[0].mxu0 %v6670
        %v7025 = vpop.f32.mrb[0].mxu0
        %v7026 = vadd.f32 0.0, %v7025
        %v7027 = vpop.f32.mrb[0].mxu0
        %7028 = vmatprep.mubr.f32.mxu0 0.0
        %7029 = vmatmul.mubr.f32.gmra.mrb[0].mxu0 %v6673
        %v7030 = vpop.f32.mrb[0].mxu0
        %v7031 = vadd.f32 0.0, %v7030
        %v7032 = vpop.f32.mrb[0].mxu0
        %7033 = vmatprep.mubr.f32.mxu0 0.0
        %7034 = vmatmul.mubr.f32.gmra.mrb[0].mxu0 %v6676
        %v7035 = vpop.f32.mrb[0].mxu0
        %v7036 = vadd.f32 0.0, %v7035
        %v7037 = vpop.f32.mrb[0].mxu0
        %7038 = vmatprep.mubr.f32.mxu0 0.0
        %7039 = vmatmul.mubr.f32.gmra.mrb[0].mxu0 %v6679
        %v7040 = vpop.f32.mrb[0].mxu0
        %v7041 = vadd.f32 0.0, %v7040
        %v7042 = vpop.f32.mrb[0].mxu0
        %7043 = vmatprep.mubr.f32.mxu0 0.0
        %7044 = vmatmul.mubr.f32.gmra.mrb[0].mxu0 %v6682
        %v7045 = vpop.f32.mrb[0].mxu0
        %v7046 = vadd.f32 0.0, %v7045
        %v7047 = vpop.f32.mrb[0].mxu0
        %7048 = vmatprep.mubr.f32.mxu0 0.0
        %7049 = vmatmul.mubr.f32.gmra.mrb[0].mxu0 %v6685
        %v7050 = vpop.f32.mrb[0].mxu0
        %v7051 = vadd.f32 0.0, %v7050
        %v7052 = vpop.f32.mrb[0].mxu0
        %7053 = vmatprep.mubr.f32.mxu0 0.0
        %7054 = vmatmul.mubr.f32.gmra.mrb[0].mxu0 %v6688
        %v7055 = vpop.f32.mrb[0].mxu0
        %v7056 = vadd.f32 0.0, %v7055
        %v7057 = vpop.f32.mrb[0].mxu0
        %7058 = vmatprep.mubr.f32.mxu0 0.0
        %7059 = vmatmul.mubr.f32.gmra.mrb[0].mxu0 %v6691
        %v7060 = vpop.f32.mrb[0].mxu0
        %v7061 = vadd.f32 0.0, %v7060
        %v7062 = vpop.f32.mrb[0].mxu0
        %7063 = vmatprep.mubr.f32.mxu0 0.0
        %7064 = vmatmul.mubr.f32.gmra.mrb[0].mxu0 %v6694
        %v7065 = vpop.f32.mrb[0].mxu0
        %v7066 = vadd.f32 0.0, %v7065
        %v7067 = vpop.f32.mrb[0].mxu0
        %7068 = vmatprep.mubr.f32.mxu0 0.0
        %7069 = vmatmul.mubr.f32.gmra.mrb[0].mxu0 %v6697
        %v7070 = vpop.f32.mrb[0].mxu0
        %v7071 = vadd.f32 0.0, %v7070
        %v7072 = vpop.f32.mrb[0].mxu0
        %7073 = vmatprep.mubr.f32.mxu0 0.0
        %7074 = vmatmul.mubr.f32.gmra.mrb[0].mxu0 %v6700
        %v7075 = vpop.f32.mrb[0].mxu0
        %v7076 = vadd.f32 0.0, %v7075
        %v7077 = vpop.f32.mrb[0].mxu0
        %7078 = vmatprep.mubr.f32.mxu0 0.0
        %7079 = vmatmul.mubr.f32.gmra.mrb[0].mxu0 %v6703
        %v7080 = vpop.f32.mrb[0].mxu0
        %v7081 = vadd.f32 0.0, %v7080
        %v7082 = vpop.f32.mrb[0].mxu0
        %7083 = vmatprep.mubr.f32.mxu0 0.0
        %7084 = vmatmul.mubr.f32.gmra.mrb[0].mxu0 %v6706
        %v7085 = vpop.f32.mrb[0].mxu0
        %v7086 = vadd.f32 0.0, %v7085
        %v7087 = vpop.f32.mrb[0].mxu0
        %7088 = vmatprep.mubr.f32.mxu0 0.0
        %7089 = vmatmul.mubr.f32.gmra.mrb[0].mxu0 %v6709
        %v7090 = vpop.f32.mrb[0].mxu0
        %v7091 = vadd.f32 0.0, %v7090
        %v7092 = vpop.f32.mrb[0].mxu0
        %7093 = vmatprep.mubr.f32.mxu0 0.0
        %7094 = vmatmul.mubr.f32.gmra.mrb[0].mxu0 %v6712
        %v7095 = vpop.f32.mrb[0].mxu0
        %v7096 = vadd.f32 0.0, %v7095
        %v7097 = vpop.f32.mrb[0].mxu0
        %7098 = vdwg.mxu0
        %v7099 = vadd.f32 %v6382, %v6781
        %v7100 = vadd.f32 %v6383, %v6786
        %v7101 = vadd.f32 %v6384, %v6791
        %v7102 = vadd.f32 %v6385, %v6796
        %v7103 = vadd.f32 %v6386, %v6801
        %v7104 = vadd.f32 %v6387, %v6806
        %v7105 = vadd.f32 %v6388, %v6811
        %v7106 = vadd.f32 %v6389, %v6816
        %v7107 = vadd.f32 %v6390, %v6821
        %v7108 = vadd.f32 %v6391, %v6826
        %v7109 = vadd.f32 %v6392, %v6831
        %v7110 = vadd.f32 %v6393, %v6836
        %v7111 = vadd.f32 %v6394, %v6841
        %v7112 = vadd.f32 %v6395, %v6846
        %v7113 = vadd.f32 %v6396, %v6851
        %v7114 = vadd.f32 %v6397, %v6856
        %v7115 = vadd.f32 %v6398, %v6861
        %v7116 = vadd.f32 %v6399, %v6866
        %v7117 = vadd.f32 %v6400, %v6871
        %v7118 = vadd.f32 %v6401, %v6876
        %v7119 = vadd.f32 %v6402, %v6881
        %v7120 = vadd.f32 %v6403, %v6886
        %v7121 = vadd.f32 %v6404, %v6891
        %v7122 = vadd.f32 %v6405, %v6896
        %v7123 = vadd.f32 %v6406, %v6901
        %v7124 = vadd.f32 %v6407, %v6906
        %v7125 = vadd.f32 %v6408, %v6911
        %v7126 = vadd.f32 %v6409, %v6916
        %v7127 = vadd.f32 %v6410, %v6921
        %v7128 = vadd.f32 %v6411, %v6926
        %v7129 = vadd.f32 %v6412, %v6931
        %v7130 = vadd.f32 %v6413, %v6936
        %v7131 = vadd.f32 %v6414, %v6941
        %v7132 = vadd.f32 %v6415, %v6946
        %v7133 = vadd.f32 %v6416, %v6951
        %v7134 = vadd.f32 %v6417, %v6956
        %v7135 = vadd.f32 %v6418, %v6961
        %v7136 = vadd.f32 %v6419, %v6966
        %v7137 = vadd.f32 %v6420, %v6971
        %v7138 = vadd.f32 %v6421, %v6976
        %v7139 = vadd.f32 %v6422, %v6981
        %v7140 = vadd.f32 %v6423, %v6986
        %v7141 = vadd.f32 %v6424, %v6991
        %v7142 = vadd.f32 %v6425, %v6996
        %v7143 = vadd.f32 %v6426, %v7001
        %v7144 = vadd.f32 %v6427, %v7006
        %v7145 = vadd.f32 %v6428, %v7011
        %v7146 = vadd.f32 %v6429, %v7016
        %v7147 = vadd.f32 %v6430, %v7021
        %v7148 = vadd.f32 %v6431, %v7026
        %v7149 = vadd.f32 %v6432, %v7031
        %v7150 = vadd.f32 %v6433, %v7036
        %v7151 = vadd.f32 %v6434, %v7041
        %v7152 = vadd.f32 %v6435, %v7046
        %v7153 = vadd.f32 %v6436, %v7051
        %v7154 = vadd.f32 %v6437, %v7056
        %v7155 = vadd.f32 %v6438, %v7061
        %v7156 = vadd.f32 %v6439, %v7066
        %v7157 = vadd.f32 %v6440, %v7071
        %v7158 = vadd.f32 %v6441, %v7076
        %v7159 = vadd.f32 %v6442, %v7081
        %v7160 = vadd.f32 %v6443, %v7086
        %v7161 = vadd.f32 %v6444, %v7091
        %v7162 = vadd.f32 %v6445, %v7096
        %s7163 = scalar_lea.vmem [#allocation2], 256
        %v7164 = vld [vmem:[%s7163] sm:$0xff]
        %v7165 = vld [vmem:[%s7163 + $0x8] sm:$0xff]
        %v7166 = vld [vmem:[%s7163 + $0x10] sm:$0xff]
        %v7167 = vld [vmem:[%s7163 + $0x18] sm:$0xff]
        %v7168 = vld [vmem:[%s7163 + $0x20] sm:$0xff]
        %v7169 = vld [vmem:[%s7163 + $0x28] sm:$0xff]
        %v7170 = vld [vmem:[%s7163 + $0x30] sm:$0xff]
        %v7171 = vld [vmem:[%s7163 + $0x38] sm:$0xff]
        %v7172 = vld [vmem:[%s7163 + $0x40] sm:$0xff]
        %v7173 = vld [vmem:[%s7163 + $0x48] sm:$0xff]
        %v7174 = vld [vmem:[%s7163 + $0x50] sm:$0xff]
        %v7175 = vld [vmem:[%s7163 + $0x58] sm:$0xff]
        %v7176 = vld [vmem:[%s7163 + $0x60] sm:$0xff]
        %v7177 = vld [vmem:[%s7163 + $0x68] sm:$0xff]
        %v7178 = vld [vmem:[%s7163 + $0x70] sm:$0xff]
        %v7179 = vld [vmem:[%s7163 + $0x78] sm:$0xff]
        %v7180 = vld [vmem:[%s7163 + $0x80] sm:$0xff]
        %v7181 = vld [vmem:[%s7163 + $0x88] sm:$0xff]
        %v7182 = vld [vmem:[%s7163 + $0x90] sm:$0xff]
        %v7183 = vld [vmem:[%s7163 + $0x98] sm:$0xff]
        %v7184 = vld [vmem:[%s7163 + $0xa0] sm:$0xff]
        %v7185 = vld [vmem:[%s7163 + $0xa8] sm:$0xff]
        %v7186 = vld [vmem:[%s7163 + $0xb0] sm:$0xff]
        %v7187 = vld [vmem:[%s7163 + $0xb8] sm:$0xff]
        %v7188 = vld [vmem:[%s7163 + $0xc0] sm:$0xff]
        %v7189 = vld [vmem:[%s7163 + $0xc8] sm:$0xff]
        %v7190 = vld [vmem:[%s7163 + $0xd0] sm:$0xff]
        %v7191 = vld [vmem:[%s7163 + $0xd8] sm:$0xff]
        %v7192 = vld [vmem:[%s7163 + $0xe0] sm:$0xff]
        %v7193 = vld [vmem:[%s7163 + $0xe8] sm:$0xff]
        %v7194 = vld [vmem:[%s7163 + $0xf0] sm:$0xff]
        %v7195 = vld [vmem:[%s7163 + $0xf8] sm:$0xff]
        %v7196 = vld [vmem:[%s7163 + $0x100] sm:$0xff]
        %v7197 = vld [vmem:[%s7163 + $0x108] sm:$0xff]
        %v7198 = vld [vmem:[%s7163 + $0x110] sm:$0xff]
        %v7199 = vld [vmem:[%s7163 + $0x118] sm:$0xff]
        %v7200 = vld [vmem:[%s7163 + $0x120] sm:$0xff]
        %v7201 = vld [vmem:[%s7163 + $0x128] sm:$0xff]
        %v7202 = vld [vmem:[%s7163 + $0x130] sm:$0xff]
        %v7203 = vld [vmem:[%s7163 + $0x138] sm:$0xff]
        %v7204 = vld [vmem:[%s7163 + $0x140] sm:$0xff]
        %v7205 = vld [vmem:[%s7163 + $0x148] sm:$0xff]
        %v7206 = vld [vmem:[%s7163 + $0x150] sm:$0xff]
        %v7207 = vld [vmem:[%s7163 + $0x158] sm:$0xff]
        %v7208 = vld [vmem:[%s7163 + $0x160] sm:$0xff]
        %v7209 = vld [vmem:[%s7163 + $0x168] sm:$0xff]
        %v7210 = vld [vmem:[%s7163 + $0x170] sm:$0xff]
        %v7211 = vld [vmem:[%s7163 + $0x178] sm:$0xff]
        %v7212 = vld [vmem:[%s7163 + $0x180] sm:$0xff]
        %v7213 = vld [vmem:[%s7163 + $0x188] sm:$0xff]
        %v7214 = vld [vmem:[%s7163 + $0x190] sm:$0xff]
        %v7215 = vld [vmem:[%s7163 + $0x198] sm:$0xff]
        %v7216 = vld [vmem:[%s7163 + $0x1a0] sm:$0xff]
        %v7217 = vld [vmem:[%s7163 + $0x1a8] sm:$0xff]
        %v7218 = vld [vmem:[%s7163 + $0x1b0] sm:$0xff]
        %v7219 = vld [vmem:[%s7163 + $0x1b8] sm:$0xff]
        %v7220 = vld [vmem:[%s7163 + $0x1c0] sm:$0xff]
        %v7221 = vld [vmem:[%s7163 + $0x1c8] sm:$0xff]
        %v7222 = vld [vmem:[%s7163 + $0x1d0] sm:$0xff]
        %v7223 = vld [vmem:[%s7163 + $0x1d8] sm:$0xff]
        %v7224 = vld [vmem:[%s7163 + $0x1e0] sm:$0xff]
        %v7225 = vld [vmem:[%s7163 + $0x1e8] sm:$0xff]
        %v7226 = vld [vmem:[%s7163 + $0x1f0] sm:$0xff]
        %v7227 = vld [vmem:[%s7163 + $0x1f8] sm:$0xff]
        %s7228 = scalar_lea.vmem %s3, 320
        %v7229 = vld [vmem:[%s7228] sm:$0xff]
        %v7230 = vld [vmem:[%s7228 + $0x8] sm:$0xff]
        %v7231 = vld [vmem:[%s7228 + $0x10] sm:$0xff]
        %v7232 = vld [vmem:[%s7228 + $0x18] sm:$0xff]
        %v7233 = vld [vmem:[%s7228 + $0x20] sm:$0xff]
        %v7234 = vld [vmem:[%s7228 + $0x28] sm:$0xff]
        %v7235 = vld [vmem:[%s7228 + $0x30] sm:$0xff]
        %v7236 = vld [vmem:[%s7228 + $0x38] sm:$0xff]
        %v7237 = vld [vmem:[%s7228 + $0x40] sm:$0xff]
        %v7238 = vld [vmem:[%s7228 + $0x48] sm:$0xff]
        %v7240 = vsel %vm4574, %v7164, 0
        %v7243 = vsel %vm4574, %v7165, 0
        %v7246 = vsel %vm4574, %v7166, 0
        %v7249 = vsel %vm4574, %v7167, 0
        %v7252 = vsel %vm4574, %v7168, 0
        %v7255 = vsel %vm4574, %v7169, 0
        %v7258 = vsel %vm4574, %v7170, 0
        %v7261 = vsel %vm4574, %v7171, 0
        %v7264 = vsel %vm4574, %v7172, 0
        %v7267 = vsel %vm4574, %v7173, 0
        %v7270 = vsel %vm4574, %v7174, 0
        %v7273 = vsel %vm4574, %v7175, 0
        %v7276 = vsel %vm4574, %v7176, 0
        %v7279 = vsel %vm4574, %v7177, 0
        %v7282 = vsel %vm4574, %v7178, 0
        %v7285 = vsel %vm4574, %v7179, 0
        %v7288 = vsel %vm4574, %v7180, 0
        %v7291 = vsel %vm4574, %v7181, 0
        %v7294 = vsel %vm4574, %v7182, 0
        %v7297 = vsel %vm4574, %v7183, 0
        %v7300 = vsel %vm4574, %v7184, 0
        %v7303 = vsel %vm4574, %v7185, 0
        %v7306 = vsel %vm4574, %v7186, 0
        %v7309 = vsel %vm4574, %v7187, 0
        %v7312 = vsel %vm4574, %v7188, 0
        %v7315 = vsel %vm4574, %v7189, 0
        %v7318 = vsel %vm4574, %v7190, 0
        %v7321 = vsel %vm4574, %v7191, 0
        %v7324 = vsel %vm4574, %v7192, 0
        %v7327 = vsel %vm4574, %v7193, 0
        %v7330 = vsel %vm4574, %v7194, 0
        %v7333 = vsel %vm4574, %v7195, 0
        %v7336 = vsel %vm4574, %v7196, 0
        %v7339 = vsel %vm4574, %v7197, 0
        %v7342 = vsel %vm4574, %v7198, 0
        %v7345 = vsel %vm4574, %v7199, 0
        %v7348 = vsel %vm4574, %v7200, 0
        %v7351 = vsel %vm4574, %v7201, 0
        %v7354 = vsel %vm4574, %v7202, 0
        %v7357 = vsel %vm4574, %v7203, 0
        %v7360 = vsel %vm4574, %v7204, 0
        %v7363 = vsel %vm4574, %v7205, 0
        %v7366 = vsel %vm4574, %v7206, 0
        %v7369 = vsel %vm4574, %v7207, 0
        %v7372 = vsel %vm4574, %v7208, 0
        %v7375 = vsel %vm4574, %v7209, 0
        %v7378 = vsel %vm4574, %v7210, 0
        %v7381 = vsel %vm4574, %v7211, 0
        %v7384 = vsel %vm4574, %v7212, 0
        %v7387 = vsel %vm4574, %v7213, 0
        %v7390 = vsel %vm4574, %v7214, 0
        %v7393 = vsel %vm4574, %v7215, 0
        %v7396 = vsel %vm4574, %v7216, 0
        %v7399 = vsel %vm4574, %v7217, 0
        %v7402 = vsel %vm4574, %v7218, 0
        %v7405 = vsel %vm4574, %v7219, 0
        %v7408 = vsel %vm4574, %v7220, 0
        %v7411 = vsel %vm4574, %v7221, 0
        %v7414 = vsel %vm4574, %v7222, 0
        %v7417 = vsel %vm4574, %v7223, 0
        %v7420 = vsel %vm4574, %v7224, 0
        %v7423 = vsel %vm4574, %v7225, 0
        %v7426 = vsel %vm4574, %v7226, 0
        %v7429 = vsel %vm4574, %v7227, 0
        %7431 = vmatprep.subr.mxu0 0.0
        %7432 = vmatpush1.msra.mxu0 %v7229
        %7433 = vmatprep.subr.mxu0 0.0
        %7434 = vmatpush1.msra.mxu0 %v7230
        %7435 = vmatprep.subr.mxu0 0.0
        %7436 = vmatpush1.msra.mxu0 %v7231
        %7437 = vmatprep.subr.mxu0 0.0
        %7438 = vmatpush1.msra.mxu0 %v7232
        %7439 = vmatprep.subr.mxu0 0.0
        %7440 = vmatpush1.msra.mxu0 %v7233
        %7441 = vmatprep.subr.mxu0 0.0
        %7442 = vmatpush1.msra.mxu0 %v7234
        %7443 = vmatprep.subr.mxu0 0.0
        %7444 = vmatpush1.msra.mxu0 %v7235
        %7445 = vmatprep.subr.mxu0 0.0
        %7446 = vmatpush1.msra.mxu0 %v7236
        %7447 = vmatprep.subr.mxu0 0.0
        %7448 = vmatpush1.msra.mxu0 %v7237
        %7449 = vmatprep.subr.mxu0 0.0
        %7450 = vmatpush1.msra.mxu0 %v7238
        %7451 = vmatprep.subr.mxu0 0.0
        %7452 = vmatpush1.msra.mxu0 0.0
        %7453 = vmatprep.subr.mxu0 0.0
        %7454 = vmatpush1.msra.mxu0 0.0
        %7455 = vmatprep.subr.mxu0 0.0
        %7456 = vmatpush1.msra.mxu0 0.0
        %7457 = vmatprep.subr.mxu0 0.0
        %7458 = vmatpush1.msra.mxu0 0.0
        %7459 = vmatprep.subr.mxu0 0.0
        %7460 = vmatpush1.msra.mxu0 0.0
        %7461 = vmatprep.subr.mxu0 0.0
        %7462 = vmatpush1.msra.mxu0 0.0
        %7463 = vmatprep.subr.mxu0 0.0
        %7464 = vmatpush1.msra.mxu0 0.0
        %7465 = vmatprep.subr.mxu0 0.0
        %7466 = vmatpush1.msra.mxu0 0.0
        %7467 = vmatprep.subr.mxu0 0.0
        %7468 = vmatpush1.msra.mxu0 0.0
        %7469 = vmatprep.subr.mxu0 0.0
        %7470 = vmatpush1.msra.mxu0 0.0
        %7471 = vmatprep.subr.mxu0 0.0
        %7472 = vmatpush1.msra.mxu0 0.0
        %7473 = vmatprep.subr.mxu0 0.0
        %7474 = vmatpush1.msra.mxu0 0.0
        %7475 = vmatprep.subr.mxu0 0.0
        %7476 = vmatpush1.msra.mxu0 0.0
        %7477 = vmatprep.subr.mxu0 0.0
        %7478 = vmatpush1.msra.mxu0 0.0
        %7479 = vmatprep.subr.mxu0 0.0
        %7480 = vmatpush1.msra.mxu0 0.0
        %7481 = vmatprep.subr.mxu0 0.0
        %7482 = vmatpush1.msra.mxu0 0.0
        %7483 = vmatprep.subr.mxu0 0.0
        %7484 = vmatpush1.msra.mxu0 0.0
        %7485 = vmatprep.subr.mxu0 0.0
        %7486 = vmatpush1.msra.mxu0 0.0
        %7487 = vmatprep.subr.mxu0 0.0
        %7488 = vmatpush1.msra.mxu0 0.0
        %7489 = vmatprep.subr.mxu0 0.0
        %7490 = vmatpush1.msra.mxu0 0.0
        %7491 = vmatprep.subr.mxu0 0.0
        %7492 = vmatpush1.msra.mxu0 0.0
        %7493 = vmatprep.subr.mxu0 0.0
        %7494 = vmatpush1.msra.mxu0 0.0
        %7495 = vmatprep.mubr.f32.mxu0 0.0
        %7496 = vmatmul.mubr.f32.gmra.mrb[0].mxu0 %v7240
        %v7497 = vpop.f32.mrb[0].mxu0
        %v7498 = vadd.f32 0.0, %v7497
        %v7499 = vpop.f32.mrb[0].mxu0
        %7500 = vmatprep.mubr.f32.mxu0 0.0
        %7501 = vmatmul.mubr.f32.gmra.mrb[0].mxu0 %v7243
        %v7502 = vpop.f32.mrb[0].mxu0
        %v7503 = vadd.f32 0.0, %v7502
        %v7504 = vpop.f32.mrb[0].mxu0
        %7505 = vmatprep.mubr.f32.mxu0 0.0
        %7506 = vmatmul.mubr.f32.gmra.mrb[0].mxu0 %v7246
        %v7507 = vpop.f32.mrb[0].mxu0
        %v7508 = vadd.f32 0.0, %v7507
        %v7509 = vpop.f32.mrb[0].mxu0
        %7510 = vmatprep.mubr.f32.mxu0 0.0
        %7511 = vmatmul.mubr.f32.gmra.mrb[0].mxu0 %v7249
        %v7512 = vpop.f32.mrb[0].mxu0
        %v7513 = vadd.f32 0.0, %v7512
        %v7514 = vpop.f32.mrb[0].mxu0
        %7515 = vmatprep.mubr.f32.mxu0 0.0
        %7516 = vmatmul.mubr.f32.gmra.mrb[0].mxu0 %v7252
        %v7517 = vpop.f32.mrb[0].mxu0
        %v7518 = vadd.f32 0.0, %v7517
        %v7519 = vpop.f32.mrb[0].mxu0
        %7520 = vmatprep.mubr.f32.mxu0 0.0
        %7521 = vmatmul.mubr.f32.gmra.mrb[0].mxu0 %v7255
        %v7522 = vpop.f32.mrb[0].mxu0
        %v7523 = vadd.f32 0.0, %v7522
        %v7524 = vpop.f32.mrb[0].mxu0
        %7525 = vmatprep.mubr.f32.mxu0 0.0
        %7526 = vmatmul.mubr.f32.gmra.mrb[0].mxu0 %v7258
        %v7527 = vpop.f32.mrb[0].mxu0
        %v7528 = vadd.f32 0.0, %v7527
        %v7529 = vpop.f32.mrb[0].mxu0
        %7530 = vmatprep.mubr.f32.mxu0 0.0
        %7531 = vmatmul.mubr.f32.gmra.mrb[0].mxu0 %v7261
        %v7532 = vpop.f32.mrb[0].mxu0
        %v7533 = vadd.f32 0.0, %v7532
        %v7534 = vpop.f32.mrb[0].mxu0
        %7535 = vmatprep.mubr.f32.mxu0 0.0
        %7536 = vmatmul.mubr.f32.gmra.mrb[0].mxu0 %v7264
        %v7537 = vpop.f32.mrb[0].mxu0
        %v7538 = vadd.f32 0.0, %v7537
        %v7539 = vpop.f32.mrb[0].mxu0
        %7540 = vmatprep.mubr.f32.mxu0 0.0
        %7541 = vmatmul.mubr.f32.gmra.mrb[0].mxu0 %v7267
        %v7542 = vpop.f32.mrb[0].mxu0
        %v7543 = vadd.f32 0.0, %v7542
        %v7544 = vpop.f32.mrb[0].mxu0
        %7545 = vmatprep.mubr.f32.mxu0 0.0
        %7546 = vmatmul.mubr.f32.gmra.mrb[0].mxu0 %v7270
        %v7547 = vpop.f32.mrb[0].mxu0
        %v7548 = vadd.f32 0.0, %v7547
        %v7549 = vpop.f32.mrb[0].mxu0
        %7550 = vmatprep.mubr.f32.mxu0 0.0
        %7551 = vmatmul.mubr.f32.gmra.mrb[0].mxu0 %v7273
        %v7552 = vpop.f32.mrb[0].mxu0
        %v7553 = vadd.f32 0.0, %v7552
        %v7554 = vpop.f32.mrb[0].mxu0
        %7555 = vmatprep.mubr.f32.mxu0 0.0
        %7556 = vmatmul.mubr.f32.gmra.mrb[0].mxu0 %v7276
        %v7557 = vpop.f32.mrb[0].mxu0
        %v7558 = vadd.f32 0.0, %v7557
        %v7559 = vpop.f32.mrb[0].mxu0
        %7560 = vmatprep.mubr.f32.mxu0 0.0
        %7561 = vmatmul.mubr.f32.gmra.mrb[0].mxu0 %v7279
        %v7562 = vpop.f32.mrb[0].mxu0
        %v7563 = vadd.f32 0.0, %v7562
        %v7564 = vpop.f32.mrb[0].mxu0
        %7565 = vmatprep.mubr.f32.mxu0 0.0
        %7566 = vmatmul.mubr.f32.gmra.mrb[0].mxu0 %v7282
        %v7567 = vpop.f32.mrb[0].mxu0
        %v7568 = vadd.f32 0.0, %v7567
        %v7569 = vpop.f32.mrb[0].mxu0
        %7570 = vmatprep.mubr.f32.mxu0 0.0
        %7571 = vmatmul.mubr.f32.gmra.mrb[0].mxu0 %v7285
        %v7572 = vpop.f32.mrb[0].mxu0
        %v7573 = vadd.f32 0.0, %v7572
        %v7574 = vpop.f32.mrb[0].mxu0
        %7575 = vmatprep.mubr.f32.mxu0 0.0
        %7576 = vmatmul.mubr.f32.gmra.mrb[0].mxu0 %v7288
        %v7577 = vpop.f32.mrb[0].mxu0
        %v7578 = vadd.f32 0.0, %v7577
        %v7579 = vpop.f32.mrb[0].mxu0
        %7580 = vmatprep.mubr.f32.mxu0 0.0
        %7581 = vmatmul.mubr.f32.gmra.mrb[0].mxu0 %v7291
        %v7582 = vpop.f32.mrb[0].mxu0
        %v7583 = vadd.f32 0.0, %v7582
        %v7584 = vpop.f32.mrb[0].mxu0
        %7585 = vmatprep.mubr.f32.mxu0 0.0
        %7586 = vmatmul.mubr.f32.gmra.mrb[0].mxu0 %v7294
        %v7587 = vpop.f32.mrb[0].mxu0
        %v7588 = vadd.f32 0.0, %v7587
        %v7589 = vpop.f32.mrb[0].mxu0
        %7590 = vmatprep.mubr.f32.mxu0 0.0
        %7591 = vmatmul.mubr.f32.gmra.mrb[0].mxu0 %v7297
        %v7592 = vpop.f32.mrb[0].mxu0
        %v7593 = vadd.f32 0.0, %v7592
        %v7594 = vpop.f32.mrb[0].mxu0
        %7595 = vmatprep.mubr.f32.mxu0 0.0
        %7596 = vmatmul.mubr.f32.gmra.mrb[0].mxu0 %v7300
        %v7597 = vpop.f32.mrb[0].mxu0
        %v7598 = vadd.f32 0.0, %v7597
        %v7599 = vpop.f32.mrb[0].mxu0
        %7600 = vmatprep.mubr.f32.mxu0 0.0
        %7601 = vmatmul.mubr.f32.gmra.mrb[0].mxu0 %v7303
        %v7602 = vpop.f32.mrb[0].mxu0
        %v7603 = vadd.f32 0.0, %v7602
        %v7604 = vpop.f32.mrb[0].mxu0
        %7605 = vmatprep.mubr.f32.mxu0 0.0
        %7606 = vmatmul.mubr.f32.gmra.mrb[0].mxu0 %v7306
        %v7607 = vpop.f32.mrb[0].mxu0
        %v7608 = vadd.f32 0.0, %v7607
        %v7609 = vpop.f32.mrb[0].mxu0
        %7610 = vmatprep.mubr.f32.mxu0 0.0
        %7611 = vmatmul.mubr.f32.gmra.mrb[0].mxu0 %v7309
        %v7612 = vpop.f32.mrb[0].mxu0
        %v7613 = vadd.f32 0.0, %v7612
        %v7614 = vpop.f32.mrb[0].mxu0
        %7615 = vmatprep.mubr.f32.mxu0 0.0
        %7616 = vmatmul.mubr.f32.gmra.mrb[0].mxu0 %v7312
        %v7617 = vpop.f32.mrb[0].mxu0
        %v7618 = vadd.f32 0.0, %v7617
        %v7619 = vpop.f32.mrb[0].mxu0
        %7620 = vmatprep.mubr.f32.mxu0 0.0
        %7621 = vmatmul.mubr.f32.gmra.mrb[0].mxu0 %v7315
        %v7622 = vpop.f32.mrb[0].mxu0
        %v7623 = vadd.f32 0.0, %v7622
        %v7624 = vpop.f32.mrb[0].mxu0
        %7625 = vmatprep.mubr.f32.mxu0 0.0
        %7626 = vmatmul.mubr.f32.gmra.mrb[0].mxu0 %v7318
        %v7627 = vpop.f32.mrb[0].mxu0
        %v7628 = vadd.f32 0.0, %v7627
        %v7629 = vpop.f32.mrb[0].mxu0
        %7630 = vmatprep.mubr.f32.mxu0 0.0
        %7631 = vmatmul.mubr.f32.gmra.mrb[0].mxu0 %v7321
        %v7632 = vpop.f32.mrb[0].mxu0
        %v7633 = vadd.f32 0.0, %v7632
        %v7634 = vpop.f32.mrb[0].mxu0
        %7635 = vmatprep.mubr.f32.mxu0 0.0
        %7636 = vmatmul.mubr.f32.gmra.mrb[0].mxu0 %v7324
        %v7637 = vpop.f32.mrb[0].mxu0
        %v7638 = vadd.f32 0.0, %v7637
        %v7639 = vpop.f32.mrb[0].mxu0
        %7640 = vmatprep.mubr.f32.mxu0 0.0
        %7641 = vmatmul.mubr.f32.gmra.mrb[0].mxu0 %v7327
        %v7642 = vpop.f32.mrb[0].mxu0
        %v7643 = vadd.f32 0.0, %v7642
        %v7644 = vpop.f32.mrb[0].mxu0
        %7645 = vmatprep.mubr.f32.mxu0 0.0
        %7646 = vmatmul.mubr.f32.gmra.mrb[0].mxu0 %v7330
        %v7647 = vpop.f32.mrb[0].mxu0
        %v7648 = vadd.f32 0.0, %v7647
        %v7649 = vpop.f32.mrb[0].mxu0
        %7650 = vmatprep.mubr.f32.mxu0 0.0
        %7651 = vmatmul.mubr.f32.gmra.mrb[0].mxu0 %v7333
        %v7652 = vpop.f32.mrb[0].mxu0
        %v7653 = vadd.f32 0.0, %v7652
        %v7654 = vpop.f32.mrb[0].mxu0
        %7655 = vmatprep.mubr.f32.mxu0 0.0
        %7656 = vmatmul.mubr.f32.gmra.mrb[0].mxu0 %v7336
        %v7657 = vpop.f32.mrb[0].mxu0
        %v7658 = vadd.f32 0.0, %v7657
        %v7659 = vpop.f32.mrb[0].mxu0
        %7660 = vmatprep.mubr.f32.mxu0 0.0
        %7661 = vmatmul.mubr.f32.gmra.mrb[0].mxu0 %v7339
        %v7662 = vpop.f32.mrb[0].mxu0
        %v7663 = vadd.f32 0.0, %v7662
        %v7664 = vpop.f32.mrb[0].mxu0
        %7665 = vmatprep.mubr.f32.mxu0 0.0
        %7666 = vmatmul.mubr.f32.gmra.mrb[0].mxu0 %v7342
        %v7667 = vpop.f32.mrb[0].mxu0
        %v7668 = vadd.f32 0.0, %v7667
        %v7669 = vpop.f32.mrb[0].mxu0
        %7670 = vmatprep.mubr.f32.mxu0 0.0
        %7671 = vmatmul.mubr.f32.gmra.mrb[0].mxu0 %v7345
        %v7672 = vpop.f32.mrb[0].mxu0
        %v7673 = vadd.f32 0.0, %v7672
        %v7674 = vpop.f32.mrb[0].mxu0
        %7675 = vmatprep.mubr.f32.mxu0 0.0
        %7676 = vmatmul.mubr.f32.gmra.mrb[0].mxu0 %v7348
        %v7677 = vpop.f32.mrb[0].mxu0
        %v7678 = vadd.f32 0.0, %v7677
        %v7679 = vpop.f32.mrb[0].mxu0
        %7680 = vmatprep.mubr.f32.mxu0 0.0
        %7681 = vmatmul.mubr.f32.gmra.mrb[0].mxu0 %v7351
        %v7682 = vpop.f32.mrb[0].mxu0
        %v7683 = vadd.f32 0.0, %v7682
        %v7684 = vpop.f32.mrb[0].mxu0
        %7685 = vmatprep.mubr.f32.mxu0 0.0
        %7686 = vmatmul.mubr.f32.gmra.mrb[0].mxu0 %v7354
        %v7687 = vpop.f32.mrb[0].mxu0
        %v7688 = vadd.f32 0.0, %v7687
        %v7689 = vpop.f32.mrb[0].mxu0
        %7690 = vmatprep.mubr.f32.mxu0 0.0
        %7691 = vmatmul.mubr.f32.gmra.mrb[0].mxu0 %v7357
        %v7692 = vpop.f32.mrb[0].mxu0
        %v7693 = vadd.f32 0.0, %v7692
        %v7694 = vpop.f32.mrb[0].mxu0
        %7695 = vmatprep.mubr.f32.mxu0 0.0
        %7696 = vmatmul.mubr.f32.gmra.mrb[0].mxu0 %v7360
        %v7697 = vpop.f32.mrb[0].mxu0
        %v7698 = vadd.f32 0.0, %v7697
        %v7699 = vpop.f32.mrb[0].mxu0
        %7700 = vmatprep.mubr.f32.mxu0 0.0
        %7701 = vmatmul.mubr.f32.gmra.mrb[0].mxu0 %v7363
        %v7702 = vpop.f32.mrb[0].mxu0
        %v7703 = vadd.f32 0.0, %v7702
        %v7704 = vpop.f32.mrb[0].mxu0
        %7705 = vmatprep.mubr.f32.mxu0 0.0
        %7706 = vmatmul.mubr.f32.gmra.mrb[0].mxu0 %v7366
        %v7707 = vpop.f32.mrb[0].mxu0
        %v7708 = vadd.f32 0.0, %v7707
        %v7709 = vpop.f32.mrb[0].mxu0
        %7710 = vmatprep.mubr.f32.mxu0 0.0
        %7711 = vmatmul.mubr.f32.gmra.mrb[0].mxu0 %v7369
        %v7712 = vpop.f32.mrb[0].mxu0
        %v7713 = vadd.f32 0.0, %v7712
        %v7714 = vpop.f32.mrb[0].mxu0
        %7715 = vmatprep.mubr.f32.mxu0 0.0
        %7716 = vmatmul.mubr.f32.gmra.mrb[0].mxu0 %v7372
        %v7717 = vpop.f32.mrb[0].mxu0
        %v7718 = vadd.f32 0.0, %v7717
        %v7719 = vpop.f32.mrb[0].mxu0
        %7720 = vmatprep.mubr.f32.mxu0 0.0
        %7721 = vmatmul.mubr.f32.gmra.mrb[0].mxu0 %v7375
        %v7722 = vpop.f32.mrb[0].mxu0
        %v7723 = vadd.f32 0.0, %v7722
        %v7724 = vpop.f32.mrb[0].mxu0
        %7725 = vmatprep.mubr.f32.mxu0 0.0
        %7726 = vmatmul.mubr.f32.gmra.mrb[0].mxu0 %v7378
        %v7727 = vpop.f32.mrb[0].mxu0
        %v7728 = vadd.f32 0.0, %v7727
        %v7729 = vpop.f32.mrb[0].mxu0
        %7730 = vmatprep.mubr.f32.mxu0 0.0
        %7731 = vmatmul.mubr.f32.gmra.mrb[0].mxu0 %v7381
        %v7732 = vpop.f32.mrb[0].mxu0
        %v7733 = vadd.f32 0.0, %v7732
        %v7734 = vpop.f32.mrb[0].mxu0
        %7735 = vmatprep.mubr.f32.mxu0 0.0
        %7736 = vmatmul.mubr.f32.gmra.mrb[0].mxu0 %v7384
        %v7737 = vpop.f32.mrb[0].mxu0
        %v7738 = vadd.f32 0.0, %v7737
        %v7739 = vpop.f32.mrb[0].mxu0
        %7740 = vmatprep.mubr.f32.mxu0 0.0
        %7741 = vmatmul.mubr.f32.gmra.mrb[0].mxu0 %v7387
        %v7742 = vpop.f32.mrb[0].mxu0
        %v7743 = vadd.f32 0.0, %v7742
        %v7744 = vpop.f32.mrb[0].mxu0
        %7745 = vmatprep.mubr.f32.mxu0 0.0
        %7746 = vmatmul.mubr.f32.gmra.mrb[0].mxu0 %v7390
        %v7747 = vpop.f32.mrb[0].mxu0
        %v7748 = vadd.f32 0.0, %v7747
        %v7749 = vpop.f32.mrb[0].mxu0
        %7750 = vmatprep.mubr.f32.mxu0 0.0
        %7751 = vmatmul.mubr.f32.gmra.mrb[0].mxu0 %v7393
        %v7752 = vpop.f32.mrb[0].mxu0
        %v7753 = vadd.f32 0.0, %v7752
        %v7754 = vpop.f32.mrb[0].mxu0
        %7755 = vmatprep.mubr.f32.mxu0 0.0
        %7756 = vmatmul.mubr.f32.gmra.mrb[0].mxu0 %v7396
        %v7757 = vpop.f32.mrb[0].mxu0
        %v7758 = vadd.f32 0.0, %v7757
        %v7759 = vpop.f32.mrb[0].mxu0
        %7760 = vmatprep.mubr.f32.mxu0 0.0
        %7761 = vmatmul.mubr.f32.gmra.mrb[0].mxu0 %v7399
        %v7762 = vpop.f32.mrb[0].mxu0
        %v7763 = vadd.f32 0.0, %v7762
        %v7764 = vpop.f32.mrb[0].mxu0
        %7765 = vmatprep.mubr.f32.mxu0 0.0
        %7766 = vmatmul.mubr.f32.gmra.mrb[0].mxu0 %v7402
        %v7767 = vpop.f32.mrb[0].mxu0
        %v7768 = vadd.f32 0.0, %v7767
        %v7769 = vpop.f32.mrb[0].mxu0
        %7770 = vmatprep.mubr.f32.mxu0 0.0
        %7771 = vmatmul.mubr.f32.gmra.mrb[0].mxu0 %v7405
        %v7772 = vpop.f32.mrb[0].mxu0
        %v7773 = vadd.f32 0.0, %v7772
        %v7774 = vpop.f32.mrb[0].mxu0
        %7775 = vmatprep.mubr.f32.mxu0 0.0
        %7776 = vmatmul.mubr.f32.gmra.mrb[0].mxu0 %v7408
        %v7777 = vpop.f32.mrb[0].mxu0
        %v7778 = vadd.f32 0.0, %v7777
        %v7779 = vpop.f32.mrb[0].mxu0
        %7780 = vmatprep.mubr.f32.mxu0 0.0
        %7781 = vmatmul.mubr.f32.gmra.mrb[0].mxu0 %v7411
        %v7782 = vpop.f32.mrb[0].mxu0
        %v7783 = vadd.f32 0.0, %v7782
        %v7784 = vpop.f32.mrb[0].mxu0
        %7785 = vmatprep.mubr.f32.mxu0 0.0
        %7786 = vmatmul.mubr.f32.gmra.mrb[0].mxu0 %v7414
        %v7787 = vpop.f32.mrb[0].mxu0
        %v7788 = vadd.f32 0.0, %v7787
        %v7789 = vpop.f32.mrb[0].mxu0
        %7790 = vmatprep.mubr.f32.mxu0 0.0
        %7791 = vmatmul.mubr.f32.gmra.mrb[0].mxu0 %v7417
        %v7792 = vpop.f32.mrb[0].mxu0
        %v7793 = vadd.f32 0.0, %v7792
        %v7794 = vpop.f32.mrb[0].mxu0
        %7795 = vmatprep.mubr.f32.mxu0 0.0
        %7796 = vmatmul.mubr.f32.gmra.mrb[0].mxu0 %v7420
        %v7797 = vpop.f32.mrb[0].mxu0
        %v7798 = vadd.f32 0.0, %v7797
        %v7799 = vpop.f32.mrb[0].mxu0
        %7800 = vmatprep.mubr.f32.mxu0 0.0
        %7801 = vmatmul.mubr.f32.gmra.mrb[0].mxu0 %v7423
        %v7802 = vpop.f32.mrb[0].mxu0
        %v7803 = vadd.f32 0.0, %v7802
        %v7804 = vpop.f32.mrb[0].mxu0
        %7805 = vmatprep.mubr.f32.mxu0 0.0
        %7806 = vmatmul.mubr.f32.gmra.mrb[0].mxu0 %v7426
        %v7807 = vpop.f32.mrb[0].mxu0
        %v7808 = vadd.f32 0.0, %v7807
        %v7809 = vpop.f32.mrb[0].mxu0
        %7810 = vmatprep.mubr.f32.mxu0 0.0
        %7811 = vmatmul.mubr.f32.gmra.mrb[0].mxu0 %v7429
        %v7812 = vpop.f32.mrb[0].mxu0
        %v7813 = vadd.f32 0.0, %v7812
        %v7814 = vpop.f32.mrb[0].mxu0
        %7815 = vdwg.mxu0
        %v7816 = vadd.f32 %v7099, %v7498
        %v7817 = vadd.f32 %v7100, %v7503
        %v7818 = vadd.f32 %v7101, %v7508
        %v7819 = vadd.f32 %v7102, %v7513
        %v7820 = vadd.f32 %v7103, %v7518
        %v7821 = vadd.f32 %v7104, %v7523
        %v7822 = vadd.f32 %v7105, %v7528
        %v7823 = vadd.f32 %v7106, %v7533
        %v7824 = vadd.f32 %v7107, %v7538
        %v7825 = vadd.f32 %v7108, %v7543
        %v7826 = vadd.f32 %v7109, %v7548
        %v7827 = vadd.f32 %v7110, %v7553
        %v7828 = vadd.f32 %v7111, %v7558
        %v7829 = vadd.f32 %v7112, %v7563
        %v7830 = vadd.f32 %v7113, %v7568
        %v7831 = vadd.f32 %v7114, %v7573
        %v7832 = vadd.f32 %v7115, %v7578
        %v7833 = vadd.f32 %v7116, %v7583
        %v7834 = vadd.f32 %v7117, %v7588
        %v7835 = vadd.f32 %v7118, %v7593
        %v7836 = vadd.f32 %v7119, %v7598
        %v7837 = vadd.f32 %v7120, %v7603
        %v7838 = vadd.f32 %v7121, %v7608
        %v7839 = vadd.f32 %v7122, %v7613
        %v7840 = vadd.f32 %v7123, %v7618
        %v7841 = vadd.f32 %v7124, %v7623
        %v7842 = vadd.f32 %v7125, %v7628
        %v7843 = vadd.f32 %v7126, %v7633
        %v7844 = vadd.f32 %v7127, %v7638
        %v7845 = vadd.f32 %v7128, %v7643
        %v7846 = vadd.f32 %v7129, %v7648
        %v7847 = vadd.f32 %v7130, %v7653
        %v7848 = vadd.f32 %v7131, %v7658
        %v7849 = vadd.f32 %v7132, %v7663
        %v7850 = vadd.f32 %v7133, %v7668
        %v7851 = vadd.f32 %v7134, %v7673
        %v7852 = vadd.f32 %v7135, %v7678
        %v7853 = vadd.f32 %v7136, %v7683
        %v7854 = vadd.f32 %v7137, %v7688
        %v7855 = vadd.f32 %v7138, %v7693
        %v7856 = vadd.f32 %v7139, %v7698
        %v7857 = vadd.f32 %v7140, %v7703
        %v7858 = vadd.f32 %v7141, %v7708
        %v7859 = vadd.f32 %v7142, %v7713
        %v7860 = vadd.f32 %v7143, %v7718
        %v7861 = vadd.f32 %v7144, %v7723
        %v7862 = vadd.f32 %v7145, %v7728
        %v7863 = vadd.f32 %v7146, %v7733
        %v7864 = vadd.f32 %v7147, %v7738
        %v7865 = vadd.f32 %v7148, %v7743
        %v7866 = vadd.f32 %v7149, %v7748
        %v7867 = vadd.f32 %v7150, %v7753
        %v7868 = vadd.f32 %v7151, %v7758
        %v7869 = vadd.f32 %v7152, %v7763
        %v7870 = vadd.f32 %v7153, %v7768
        %v7871 = vadd.f32 %v7154, %v7773
        %v7872 = vadd.f32 %v7155, %v7778
        %v7873 = vadd.f32 %v7156, %v7783
        %v7874 = vadd.f32 %v7157, %v7788
        %v7875 = vadd.f32 %v7158, %v7793
        %v7876 = vadd.f32 %v7159, %v7798
        %v7877 = vadd.f32 %v7160, %v7803
        %v7878 = vadd.f32 %v7161, %v7808
        %v7879 = vadd.f32 %v7162, %v7813
        %v7880 = vld [vmem:[#allocation8] sm:$0x1]
        %v7882 = vlaneseq
        %v7883 = vshrl.u32 %v7882, 7
        %v7884 = vsub.s32 0, %v7883
        %v7885 = vrot.slane %v7880, %v7884
        %v7887 = vadd.f32 %v7816, %v7885
        %v7888 = vadd.f32 %v7817, %v7885
        %v7889 = vadd.f32 %v7818, %v7885
        %v7890 = vadd.f32 %v7819, %v7885
        %v7891 = vadd.f32 %v7820, %v7885
        %v7892 = vadd.f32 %v7821, %v7885
        %v7893 = vadd.f32 %v7822, %v7885
        %v7894 = vadd.f32 %v7823, %v7885
        %v7895 = vadd.f32 %v7824, %v7885
        %v7896 = vadd.f32 %v7825, %v7885
        %v7897 = vadd.f32 %v7826, %v7885
        %v7898 = vadd.f32 %v7827, %v7885
        %v7899 = vadd.f32 %v7828, %v7885
        %v7900 = vadd.f32 %v7829, %v7885
        %v7901 = vadd.f32 %v7830, %v7885
        %v7902 = vadd.f32 %v7831, %v7885
        %v7903 = vadd.f32 %v7832, %v7885
        %v7904 = vadd.f32 %v7833, %v7885
        %v7905 = vadd.f32 %v7834, %v7885
        %v7906 = vadd.f32 %v7835, %v7885
        %v7907 = vadd.f32 %v7836, %v7885
        %v7908 = vadd.f32 %v7837, %v7885
        %v7909 = vadd.f32 %v7838, %v7885
        %v7910 = vadd.f32 %v7839, %v7885
        %v7911 = vadd.f32 %v7840, %v7885
        %v7912 = vadd.f32 %v7841, %v7885
        %v7913 = vadd.f32 %v7842, %v7885
        %v7914 = vadd.f32 %v7843, %v7885
        %v7915 = vadd.f32 %v7844, %v7885
        %v7916 = vadd.f32 %v7845, %v7885
        %v7917 = vadd.f32 %v7846, %v7885
        %v7918 = vadd.f32 %v7847, %v7885
        %v7919 = vadd.f32 %v7848, %v7885
        %v7920 = vadd.f32 %v7849, %v7885
        %v7921 = vadd.f32 %v7850, %v7885
        %v7922 = vadd.f32 %v7851, %v7885
        %v7923 = vadd.f32 %v7852, %v7885
        %v7924 = vadd.f32 %v7853, %v7885
        %v7925 = vadd.f32 %v7854, %v7885
        %v7926 = vadd.f32 %v7855, %v7885
        %v7927 = vadd.f32 %v7856, %v7885
        %v7928 = vadd.f32 %v7857, %v7885
        %v7929 = vadd.f32 %v7858, %v7885
        %v7930 = vadd.f32 %v7859, %v7885
        %v7931 = vadd.f32 %v7860, %v7885
        %v7932 = vadd.f32 %v7861, %v7885
        %v7933 = vadd.f32 %v7862, %v7885
        %v7934 = vadd.f32 %v7863, %v7885
        %v7935 = vadd.f32 %v7864, %v7885
        %v7936 = vadd.f32 %v7865, %v7885
        %v7937 = vadd.f32 %v7866, %v7885
        %v7938 = vadd.f32 %v7867, %v7885
        %v7939 = vadd.f32 %v7868, %v7885
        %v7940 = vadd.f32 %v7869, %v7885
        %v7941 = vadd.f32 %v7870, %v7885
        %v7942 = vadd.f32 %v7871, %v7885
        %v7943 = vadd.f32 %v7872, %v7885
        %v7944 = vadd.f32 %v7873, %v7885
        %v7945 = vadd.f32 %v7874, %v7885
        %v7946 = vadd.f32 %v7875, %v7885
        %v7947 = vadd.f32 %v7876, %v7885
        %v7948 = vadd.f32 %v7877, %v7885
        %v7949 = vadd.f32 %v7878, %v7885
        %v7950 = vadd.f32 %v7879, %v7885
        %v7951 = vmax.f32 %v7887, 0.0
        %v7952 = vmax.f32 %v7888, 0.0
        %v7953 = vmax.f32 %v7889, 0.0
        %v7954 = vmax.f32 %v7890, 0.0
        %v7955 = vmax.f32 %v7891, 0.0
        %v7956 = vmax.f32 %v7892, 0.0
        %v7957 = vmax.f32 %v7893, 0.0
        %v7958 = vmax.f32 %v7894, 0.0
        %v7959 = vmax.f32 %v7895, 0.0
        %v7960 = vmax.f32 %v7896, 0.0
        %v7961 = vmax.f32 %v7897, 0.0
        %v7962 = vmax.f32 %v7898, 0.0
        %v7963 = vmax.f32 %v7899, 0.0
        %v7964 = vmax.f32 %v7900, 0.0
        %v7965 = vmax.f32 %v7901, 0.0
        %v7966 = vmax.f32 %v7902, 0.0
        %v7967 = vmax.f32 %v7903, 0.0
        %v7968 = vmax.f32 %v7904, 0.0
        %v7969 = vmax.f32 %v7905, 0.0
        %v7970 = vmax.f32 %v7906, 0.0
        %v7971 = vmax.f32 %v7907, 0.0
        %v7972 = vmax.f32 %v7908, 0.0
        %v7973 = vmax.f32 %v7909, 0.0
        %v7974 = vmax.f32 %v7910, 0.0
        %v7975 = vmax.f32 %v7911, 0.0
        %v7976 = vmax.f32 %v7912, 0.0
        %v7977 = vmax.f32 %v7913, 0.0
        %v7978 = vmax.f32 %v7914, 0.0
        %v7979 = vmax.f32 %v7915, 0.0
        %v7980 = vmax.f32 %v7916, 0.0
        %v7981 = vmax.f32 %v7917, 0.0
        %v7982 = vmax.f32 %v7918, 0.0
        %v7983 = vmax.f32 %v7919, 0.0
        %v7984 = vmax.f32 %v7920, 0.0
        %v7985 = vmax.f32 %v7921, 0.0
        %v7986 = vmax.f32 %v7922, 0.0
        %v7987 = vmax.f32 %v7923, 0.0
        %v7988 = vmax.f32 %v7924, 0.0
        %v7989 = vmax.f32 %v7925, 0.0
        %v7990 = vmax.f32 %v7926, 0.0
        %v7991 = vmax.f32 %v7927, 0.0
        %v7992 = vmax.f32 %v7928, 0.0
        %v7993 = vmax.f32 %v7929, 0.0
        %v7994 = vmax.f32 %v7930, 0.0
        %v7995 = vmax.f32 %v7931, 0.0
        %v7996 = vmax.f32 %v7932, 0.0
        %v7997 = vmax.f32 %v7933, 0.0
        %v7998 = vmax.f32 %v7934, 0.0
        %v7999 = vmax.f32 %v7935, 0.0
        %v8000 = vmax.f32 %v7936, 0.0
        %v8001 = vmax.f32 %v7937, 0.0
        %v8002 = vmax.f32 %v7938, 0.0
        %v8003 = vmax.f32 %v7939, 0.0
        %v8004 = vmax.f32 %v7940, 0.0
        %v8005 = vmax.f32 %v7941, 0.0
        %v8006 = vmax.f32 %v7942, 0.0
        %v8007 = vmax.f32 %v7943, 0.0
        %v8008 = vmax.f32 %v7944, 0.0
        %v8009 = vmax.f32 %v7945, 0.0
        %v8010 = vmax.f32 %v7946, 0.0
        %v8011 = vmax.f32 %v7947, 0.0
        %v8012 = vmax.f32 %v7948, 0.0
        %v8013 = vmax.f32 %v7949, 0.0
        %v8014 = vmax.f32 %v7950, 0.0
        %v8015 = vmax.f32 %v7951, %v7959
        %v8016 = vmax.f32 %v7952, %v7960
        %v8017 = vmax.f32 %v7953, %v7961
        %v8018 = vmax.f32 %v7954, %v7962
        %v8019 = vmax.f32 %v7955, %v7963
        %v8020 = vmax.f32 %v7956, %v7964
        %v8021 = vmax.f32 %v7957, %v7965
        %v8022 = vmax.f32 %v7958, %v7966
        %v8023 = vmax.f32 %v7967, %v7975
        %v8024 = vmax.f32 %v7968, %v7976
        %v8025 = vmax.f32 %v7969, %v7977
        %v8026 = vmax.f32 %v7970, %v7978
        %v8027 = vmax.f32 %v7971, %v7979
        %v8028 = vmax.f32 %v7972, %v7980
        %v8029 = vmax.f32 %v7973, %v7981
        %v8030 = vmax.f32 %v7974, %v7982
        %v8031 = vmax.f32 %v7983, %v7991
        %v8032 = vmax.f32 %v7984, %v7992
        %v8033 = vmax.f32 %v7985, %v7993
        %v8034 = vmax.f32 %v7986, %v7994
        %v8035 = vmax.f32 %v7987, %v7995
        %v8036 = vmax.f32 %v7988, %v7996
        %v8037 = vmax.f32 %v7989, %v7997
        %v8038 = vmax.f32 %v7990, %v7998
        %v8039 = vmax.f32 %v7999, %v8007
        %v8040 = vmax.f32 %v8000, %v8008
        %v8041 = vmax.f32 %v8001, %v8009
        %v8042 = vmax.f32 %v8002, %v8010
        %v8043 = vmax.f32 %v8003, %v8011
        %v8044 = vmax.f32 %v8004, %v8012
        %v8045 = vmax.f32 %v8005, %v8013
        %v8046 = vmax.f32 %v8006, %v8014
        %v8047 = vmax.f32 %v8015, %v8016
        %v8048 = vmax.f32 %v8017, %v8018
        %v8049 = vmax.f32 %v8019, %v8020
        %v8050 = vmax.f32 %v8021, %v8022
        %v8051 = vmax.f32 %v8023, %v8024
        %v8052 = vmax.f32 %v8025, %v8026
        %v8053 = vmax.f32 %v8027, %v8028
        %v8054 = vmax.f32 %v8029, %v8030
        %v8055 = vmax.f32 %v8031, %v8032
        %v8056 = vmax.f32 %v8033, %v8034
        %v8057 = vmax.f32 %v8035, %v8036
        %v8058 = vmax.f32 %v8037, %v8038
        %v8059 = vmax.f32 %v8039, %v8040
        %v8060 = vmax.f32 %v8041, %v8042
        %v8061 = vmax.f32 %v8043, %v8044
        %v8062 = vmax.f32 %v8045, %v8046
        %8064 = vrot.lane.b32.xlu0 %v8048, 16
        %v8065 = vpop.permute.xlu0 %8064
        %8068 = vrot.lane.b32.xlu0 %v8049, 32
        %v8069 = vpop.permute.xlu0 %8068
        %8072 = vrot.lane.b32.xlu0 %v8050, 48
        %v8073 = vpop.permute.xlu0 %8072
        %8076 = vrot.lane.b32.xlu0 %v8051, 64
        %v8077 = vpop.permute.xlu0 %8076
        %8080 = vrot.lane.b32.xlu0 %v8052, 80
        %v8081 = vpop.permute.xlu0 %8080
        %8084 = vrot.lane.b32.xlu0 %v8053, 96
        %v8085 = vpop.permute.xlu0 %8084
        %8088 = vrot.lane.b32.xlu0 %v8054, 112
        %v8089 = vpop.permute.xlu0 %8088
        %8092 = vrot.lane.b32.xlu0 %v8056, 16
        %v8093 = vpop.permute.xlu0 %8092
        %8096 = vrot.lane.b32.xlu0 %v8057, 32
        %v8097 = vpop.permute.xlu0 %8096
        %8100 = vrot.lane.b32.xlu0 %v8058, 48
        %v8101 = vpop.permute.xlu0 %8100
        %8104 = vrot.lane.b32.xlu0 %v8059, 64
        %v8105 = vpop.permute.xlu0 %8104
        %8108 = vrot.lane.b32.xlu0 %v8060, 80
        %v8109 = vpop.permute.xlu0 %8108
        %8112 = vrot.lane.b32.xlu0 %v8061, 96
        %v8113 = vpop.permute.xlu0 %8112
        %8116 = vrot.lane.b32.xlu0 %v8062, 112
        %v8117 = vpop.permute.xlu0 %8116
        %v8119 = vsel %vm3190, %v8047, %v8065
        %vm8120 = vcmask 261120
        %v8121 = vsel %vm8120, %v8119, %v8069
        %vm8122 = vcmask 392192
        %v8123 = vsel %vm8122, %v8121, %v8073
        %vm8124 = vcmask 523264
        %v8125 = vsel %vm8124, %v8123, %v8077
        %v8126 = vsel %vm4574, %v8125, %v8081
        %vm8127 = vcmask 785408
        %v8128 = vsel %vm8127, %v8126, %v8085
        %vm8129 = vcmask 916480
        %v8130 = vsel %vm8129, %v8128, %v8089
        %v8131 = vsel %vm3190, %v8055, %v8093
        %v8132 = vsel %vm8120, %v8131, %v8097
        %v8133 = vsel %vm8122, %v8132, %v8101
        %v8134 = vsel %vm8124, %v8133, %v8105
        %v8135 = vsel %vm4574, %v8134, %v8109
        %v8136 = vsel %vm8127, %v8135, %v8113
        %v8137 = vsel %vm8129, %v8136, %v8117
        %v8138 = vld [vmem:[#allocation9] sm:$0xff]
        %v8139 = vld [vmem:[#allocation9 + $0x8] sm:$0xff]
        %v8140 = vld [vmem:[#allocation9 + $0x10] sm:$0xff]
        %v8141 = vld [vmem:[#allocation9 + $0x18] sm:$0xff]
        %v8142 = vld [vmem:[#allocation9 + $0x20] sm:$0xff]
        %v8143 = vld [vmem:[#allocation9 + $0x28] sm:$0xff]
        %v8144 = vld [vmem:[#allocation9 + $0x30] sm:$0xff]
        %v8145 = vld [vmem:[#allocation9 + $0x38] sm:$0xff]
        %v8146 = vld [vmem:[#allocation9 + $0x40] sm:$0xff]
        %v8147 = vld [vmem:[#allocation9 + $0x48] sm:$0xff]
        %v8148 = vld [vmem:[#allocation9 + $0x50] sm:$0xff]
        %v8149 = vld [vmem:[#allocation9 + $0x58] sm:$0xff]
        %v8150 = vld [vmem:[#allocation9 + $0x60] sm:$0xff]
        %v8151 = vld [vmem:[#allocation9 + $0x68] sm:$0xff]
        %v8152 = vld [vmem:[#allocation9 + $0x70] sm:$0xff]
        %v8153 = vld [vmem:[#allocation9 + $0x78] sm:$0xff]
        %v8154 = vld [vmem:[#allocation9 + $0x80] sm:$0xff]
        %v8155 = vld [vmem:[#allocation9 + $0x88] sm:$0xff]
        %v8156 = vld [vmem:[#allocation9 + $0x90] sm:$0xff]
        %v8157 = vld [vmem:[#allocation9 + $0x98] sm:$0xff]
        %v8158 = vld [vmem:[#allocation9 + $0xa0] sm:$0xff]
        %v8159 = vld [vmem:[#allocation9 + $0xa8] sm:$0xff]
        %v8160 = vld [vmem:[#allocation9 + $0xb0] sm:$0xff]
        %v8161 = vld [vmem:[#allocation9 + $0xb8] sm:$0xff]
        %v8162 = vld [vmem:[#allocation9 + $0xc0] sm:$0xff]
        %v8163 = vld [vmem:[#allocation9 + $0xc8] sm:$0xff]
        %v8164 = vld [vmem:[#allocation9 + $0xd0] sm:$0xff]
        %v8165 = vld [vmem:[#allocation9 + $0xd8] sm:$0xff]
        %v8166 = vld [vmem:[#allocation9 + $0xe0] sm:$0xff]
        %v8167 = vld [vmem:[#allocation9 + $0xe8] sm:$0xff]
        %v8168 = vld [vmem:[#allocation9 + $0xf0] sm:$0xff]
        %v8169 = vld [vmem:[#allocation9 + $0xf8] sm:$0xff]
        %v8170 = vld [vmem:[#allocation11] sm:$0x1]
        %v8172 = vlaneseq
        %v8173 = vshrl.u32 %v8172, 7
        %v8174 = vsub.s32 0, %v8173
        %v8175 = vrot.slane %v8170, %v8174
        %8177 = vmatprep.subr.mxu0 0.0
        %8178 = vmatpush1.msra.mxu0 %v8138
        %8179 = vmatprep.subr.mxu0 0.0
        %8180 = vmatpush1.msra.mxu0 %v8139
        %8181 = vmatprep.subr.mxu0 0.0
        %8182 = vmatpush1.msra.mxu0 %v8140
        %8183 = vmatprep.subr.mxu0 0.0
        %8184 = vmatpush1.msra.mxu0 %v8141
        %8185 = vmatprep.subr.mxu0 0.0
        %8186 = vmatpush1.msra.mxu0 %v8142
        %8187 = vmatprep.subr.mxu0 0.0
        %8188 = vmatpush1.msra.mxu0 %v8143
        %8189 = vmatprep.subr.mxu0 0.0
        %8190 = vmatpush1.msra.mxu0 %v8144
        %8191 = vmatprep.subr.mxu0 0.0
        %8192 = vmatpush1.msra.mxu0 %v8145
        %8193 = vmatprep.subr.mxu0 0.0
        %8194 = vmatpush1.msra.mxu0 %v8146
        %8195 = vmatprep.subr.mxu0 0.0
        %8196 = vmatpush1.msra.mxu0 %v8147
        %8197 = vmatprep.subr.mxu0 0.0
        %8198 = vmatpush1.msra.mxu0 %v8148
        %8199 = vmatprep.subr.mxu0 0.0
        %8200 = vmatpush1.msra.mxu0 %v8149
        %8201 = vmatprep.subr.mxu0 0.0
        %8202 = vmatpush1.msra.mxu0 %v8150
        %8203 = vmatprep.subr.mxu0 0.0
        %8204 = vmatpush1.msra.mxu0 %v8151
        %8205 = vmatprep.subr.mxu0 0.0
        %8206 = vmatpush1.msra.mxu0 %v8152
        %8207 = vmatprep.subr.mxu0 0.0
        %8208 = vmatpush1.msra.mxu0 %v8153
        %8209 = vmatprep.subr.mxu0 0.0
        %8210 = vmatpush1.msra.mxu0 %v8154
        %8211 = vmatprep.subr.mxu0 0.0
        %8212 = vmatpush1.msra.mxu0 %v8155
        %8213 = vmatprep.subr.mxu0 0.0
        %8214 = vmatpush1.msra.mxu0 %v8156
        %8215 = vmatprep.subr.mxu0 0.0
        %8216 = vmatpush1.msra.mxu0 %v8157
        %8217 = vmatprep.subr.mxu0 0.0
        %8218 = vmatpush1.msra.mxu0 %v8158
        %8219 = vmatprep.subr.mxu0 0.0
        %8220 = vmatpush1.msra.mxu0 %v8159
        %8221 = vmatprep.subr.mxu0 0.0
        %8222 = vmatpush1.msra.mxu0 %v8160
        %8223 = vmatprep.subr.mxu0 0.0
        %8224 = vmatpush1.msra.mxu0 %v8161
        %8225 = vmatprep.subr.mxu0 0.0
        %8226 = vmatpush1.msra.mxu0 %v8162
        %8227 = vmatprep.subr.mxu0 0.0
        %8228 = vmatpush1.msra.mxu0 %v8163
        %8229 = vmatprep.subr.mxu0 0.0
        %8230 = vmatpush1.msra.mxu0 %v8164
        %8231 = vmatprep.subr.mxu0 0.0
        %8232 = vmatpush1.msra.mxu0 %v8165
        %8233 = vmatprep.subr.mxu0 0.0
        %8234 = vmatpush1.msra.mxu0 %v8166
        %8235 = vmatprep.subr.mxu0 0.0
        %8236 = vmatpush1.msra.mxu0 %v8167
        %8237 = vmatprep.subr.mxu0 0.0
        %8238 = vmatpush1.msra.mxu0 %v8168
        %8239 = vmatprep.subr.mxu0 0.0
        %8240 = vmatpush1.msra.mxu0 %v8169
        %8241 = vmatprep.mubr.f32.mxu0 %v8137
        %8242 = vmatmul.mubr.f32.gmra.mrb[0].mxu0 %v8130
        %v8243 = vpop.f32.mrb[0].mxu0
        %v8244 = vadd.f32 %v8175, %v8243
        %v8245 = vpop.f32.mrb[0].mxu0
        %8246 = vdwg.mxu0
        %8247 = vst [vmem:[%s347] sm:$0xff] %v8244
        %s8248 = sand.u32 %s186, 1
        %s8249 = scalar_lea.sflag [#allocation5], %s8248
        %s8250 = sand.u32 %s186, 1
        %s8251 = smul.addr %s8250, 8
        %s8252 = scalar_lea.vmem [#allocation12], %s8251
        // Predicated region
        $region69: #{tpu_custom_call.1} parent=47 // pred_check
          %p8253 = pneg %p196
        $region70: #{tpu_custom_call.1} parent=47 // pred_check_branch
          %8255 = sbr.rel (%p8253) target = $region72
        $region71: #{tpu_custom_call.1} parent=47 // pred_region
          %s8257 = ssub.s32 128, 128
          %8258 = vsyncadd %s8249, %s8257
          %s8259 = smul.addr %s26, 128
          %s8260 = scalar_lea.hbm %s7, %s8259
          %s8262 = sshll.u32 %s8252, 4
          %s8263 = int_to_ptr.vmem [resolvable:$true] %s8262
          %8265 = dma.vmem_to_hbm [thread:$0]  %s8263, 128, %s8260, %s8249
        $region72: #{tpu_custom_call.1} parent=47 // pred_fallthru
          _
      $region48: #{tpu_custom_call.1} parent=5 // pred_fallthru
        _
      %p8266 = scmp.le.s32.totalorder 2, %s21
      // Predicated region
      $region73: #{tpu_custom_call.1} parent=5 // pred_check
        %p8267 = pneg %p8266
      $region74: #{tpu_custom_call.1} parent=5 // pred_check_branch
        %8269 = sbr.rel (%p8267) target = $region76
      $region75: #{tpu_custom_call.1} parent=5 // pred_region
        %s8270 = ssub.s32 %s21, 2
        // Predicated region
        $region77: #{tpu_custom_call.1} parent=75 // pred_check
          %p8271 = pneg %p202
        $region78: #{tpu_custom_call.1} parent=75 // pred_check_branch
          %8273 = sbr.rel (%p8271) target = $region80
        $region79: #{tpu_custom_call.1} parent=75 // pred_region
          %s8274 = sand.u32 %s187, 1
          %s8275 = scalar_lea.sflag [#allocation5], %s8274
          %s8276 = sand.u32 %s187, 1
          %s8277 = smul.addr %s8276, 8
          %s8278 = scalar_lea.vmem [#allocation12], %s8277
          %8279 = dma.done %s8275, 128
        $region80: #{tpu_custom_call.1} parent=75 // pred_fallthru
          _
      $region76: #{tpu_custom_call.1} parent=5 // pred_fallthru
        _
    $region6: #{tpu_custom_call.1} parent=1 // loop_footer
      %s25 = sadd.s32 1, %s21
    $region7: #{tpu_custom_call.1} parent=1 // loop_footer_branch
      %20 = sbr.rel target = $region3
    $region8: #{tpu_custom_call.1} parent=1 // loop_exit
      _
    %8280 = vsyncpa [#allocation4], 1
    %s8281 = scalar_lea.sflag [#allocation4], 1
    %8282 = vsyncpa %s8281, 1
    %8283 = vsyncpa [#allocation7], 1
    %8284 = vsyncpa [#allocation10], 1
    %8285 = vsyncpa [#allocation5], 1
    %s8286 = scalar_lea.sflag [#allocation5], 1
    %8287 = vsyncpa %s8286, 1

</llo_original>
